<compile_context>
chip_gen: v6e
topology: v6e:2x2x1
jax: 0.10.0
libtpu: 0.0.40
codegen_flags: <defaults>
</compile_context>

<pallas_src>
import functools
import numpy as np
import jax
import jax.numpy as jnp
from jax.experimental import pallas as pl
from jax.experimental.pallas import tpu as pltpu

# ----------------------- small deterministic configuration -----------------------
NUM_CLS   = 10      # surrogate for NUM_CLS
CAT_NUM   = 4       # parts used by concat_net
TOP_N     = 4       # topN proposals
FEAT      = 128     # surrogate for resnet50 num_features (2048); keeps lanes dense
PROP_C    = 128     # ProposalNet hidden channels (same as the PyTorch module)
IMG       = 32      # input spatial size (surrogate for 448)
PAD_SIDE  = 8       # surrogate for pad_side = 224
PART_SIZE = 32      # part crops resized to this (surrogate for 224)
NP        = 128     # lane-dense padded width for all small heads (NUM_CLS, tidy)
PATCH_K   = 4 * 4 * 3   # stem 4x4 patch features
STEM_K    = 128         # patch features zero-padded to a lane-dense 128

HF = IMG // 4                                                     # feature-map side (8)
N_ANCHORS = 6 * HF * HF + 6 * (HF // 2) ** 2 + 9 * (HF // 4) ** 2  # rpn_score length

VMEM_LIMIT = 32 * 1024 * 1024   # explicit scoped-VMEM cap, safe on v5e/v6e/v7x

# ---------------- fused-ProposalNet geometry (flat row-shift conv) ----------------
H1, W1 = HF, HF                    # d1 spatial (8x8)
WP1    = W1 + 2                    # padded width, level 1/2          (10)
M1     = H1 * WP1                  # full padded-column output rows   (80)
R1     = (((H1 + 2) * WP1 + 2) + 7) // 8 * 8   # padded-flat input rows (104)
H2, W2 = H1 // 2, W1 // 2          # d2 spatial (4x4)
WP2    = W2 + 2                    # padded width, level 3            (6)
M3     = H2 * WP2                  # level-3 full output rows         (24)
R3     = (((H2 + 2) * WP2 + 2) + 7) // 8 * 8   # level-3 padded-flat rows (40)
H3, W3 = H2 // 2, W2 // 2          # d3 spatial (2x2)
L1, L2, L3 = H1 * W1, H2 * W2, H3 * W3          # 64, 16, 4 valid tidy pixels
TIN_ROWS = (L1 + L2 + L3 + 7) // 8 * 8          # 88 (sublane-aligned)


# ------------------------------ Pallas kernels ------------------------------
def _linear_kernel(x_ref, w_ref, b_ref, o_ref, *, relu):
    """Single-K-block matmul: dot + bias (+ReLU), no accumulator scratch."""
    xv = x_ref[...]
    if xv.dtype != jnp.bfloat16:          # cast inside the kernel (no HBM pre-pass)
        xv = xv.astype(jnp.bfloat16)
    out = jnp.dot(xv, w_ref[...], preferred_element_type=jnp.float32) + b_ref[...]
    if relu:
        out = jnp.maximum(out, 0.0)
    o_ref[...] = out.astype(o_ref.dtype)


def _linear_kernel_ktiled(x_ref, w_ref, b_ref, o_ref, acc_ref, *, relu):
    """K-tiled matmul with f32 VMEM accumulator (only used at real-scale K)."""
    k = pl.program_id(1)

    @pl.when(k == 0)
    def _():
        acc_ref[...] = jnp.zeros_like(acc_ref)

    xv = x_ref[...]
    if xv.dtype != jnp.bfloat16:
        xv = xv.astype(jnp.bfloat16)
    acc_ref[...] += jnp.dot(xv, w_ref[...], preferred_element_type=jnp.float32)

    @pl.when(k == pl.num_programs(1) - 1)
    def _():
        out = acc_ref[...] + b_ref[...]
        if relu:
            out = jnp.maximum(out, 0.0)
        o_ref[...] = out.astype(o_ref.dtype)


def pallas_linear(x, w, b, *, relu=False, out_dtype=jnp.float32):
    """y = x @ w + b (+ReLU).  x:(M,K) f32/bf16, w:(K,N) bf16, b:(N,) f32.
    N must be a multiple of 128 (lane-dense stores); callers pad weights at init."""
    M, K = x.shape
    Kw, N = w.shape
    assert K == Kw and N % 128 == 0

    # M tiling: keep >=2 parallel grid steps whenever sublane alignment allows it
    # (feeds both v7x TensorCores); 256-row tiles when M is large (v6e/v7x MXU depth).
    if M >= 512 and M % 256 == 0:
        tm = 256
    elif M > 128 and M % 128 == 0:
        tm = 128
    elif M >= 16 and M % 16 == 0:
        tm = M // 2
    else:
        tm = M

    tk = K
    if K > 1024:                           # only at real FEAT=2048 scale
        for cand in (1024, 512, 256, 128):
            if K % cand == 0:
                tk = cand
                break
    nk = K // tk
    bias = b.reshape(1, N).astype(jnp.float32)

    if nk == 1:
        return pl.pallas_call(
            functools.partial(_linear_kernel, relu=relu),
            out_shape=jax.ShapeDtypeStruct((M, N), out_dtype),
            grid=(M // tm,),
            in_specs=[
                pl.BlockSpec((tm, K), lambda i: (i, 0)),
                pl.BlockSpec((K, N), lambda i: (0, 0)),
                pl.BlockSpec((1, N), lambda i: (0, 0)),
            ],
            out_specs=pl.BlockSpec((tm, N), lambda i: (i, 0)),
            compiler_params=pltpu.CompilerParams(
                dimension_semantics=("parallel",),
                vmem_limit_bytes=VMEM_LIMIT),
        )(x, w, bias)

    return pl.pallas_call(
        functools.partial(_linear_kernel_ktiled, relu=relu),
        out_shape=jax.ShapeDtypeStruct((M, N), out_dtype),
        grid=(M // tm, nk),
        in_specs=[
            pl.BlockSpec((tm, tk), lambda i, k: (i, k)),
            pl.BlockSpec((tk, N), lambda i, k: (k, 0)),
            pl.BlockSpec((1, N), lambda i, k: (0, 0)),
        ],
        out_specs=pl.BlockSpec((tm, N), lambda i, k: (i, 0)),
        scratch_shapes=[pltpu.VMEM((tm, N), jnp.float32)],
        compiler_params=pltpu.CompilerParams(
            dimension_semantics=("parallel", "arbitrary"),
            vmem_limit_bytes=VMEM_LIMIT),
    )(x, w, bias)


def _gap_fc_kernel(x_ref, w_ref, b_ref, feat_ref, logit_ref):
    """Fused global-average-pool + FC head on the resident batch slice."""
    xm = jnp.mean(x_ref[...].astype(jnp.float32), axis=1)        # (bb, C) f32
    feat_ref[:, 0, :] = xm                                        # pooled feature, f32
    logits = jnp.dot(xm.astype(jnp.bfloat16), w_ref[...],
                     preferred_element_type=jnp.float32)
    logit_ref[:, 0, :] = logits + b_ref[...]


def pallas_gap_fc(x_flat, w, b):
    """x:(B, HW, C) bf16 -> (feature (B, C) f32, logits (B, NP) f32) in one call.
    Batch is split into 2 parallel grid steps when possible (v7x: both TCs)."""
    B, HW, C = x_flat.shape
    N = w.shape[1]
    nb = 2 if (B % 2 == 0 and B >= 2) else 1
    bb = B // nb
    feat3, logit3 = pl.pallas_call(
        _gap_fc_kernel,
        out_shape=(jax.ShapeDtypeStruct((B, 1, C), jnp.float32),
                   jax.ShapeDtypeStruct((B, 1, N), jnp.float32)),
        grid=(nb,),
        in_specs=[
            pl.BlockSpec((bb, HW, C), lambda i: (i, 0, 0)),
            pl.BlockSpec((C, N), lambda i: (0, 0)),
            pl.BlockSpec((1, N), lambda i: (0, 0)),
        ],
        out_specs=(pl.BlockSpec((bb, 1, C), lambda i: (i, 0, 0)),
                   pl.BlockSpec((bb, 1, N), lambda i: (i, 0, 0))),
        compiler_params=pltpu.CompilerParams(
            dimension_semantics=("parallel",),
            vmem_limit_bytes=VMEM_LIMIT),
    )(x_flat, w, b.reshape(1, N).astype(jnp.float32))
    return feat3.reshape(B, C), logit3.reshape(B, N)


def _proposal_kernel(x_ref, w1_ref, b1_ref, w2_ref, b2_ref, w3_ref, b3_ref,
                     tw_ref, tb_ref, out_ref,
                     xp1, xp2, xp3, d1f, d2f, d3f, tin):
    """Fully fused ProposalNet for one image: down1 -> down2 -> down3 -> tidy.
    Every intermediate stays in VMEM scratch (f32); weights are bf16, MXU acc f32."""

    def conv9(xp_ref, w_ref, b_ref, dst_ref, m_out, wp, cin):
        # 3x3 conv on the flat padded grid: each tap is a contiguous row-shifted
        # slice of the padded activation dotted with its (cin, cout) weight slab.
        acc = jnp.zeros(dst_ref.shape, jnp.float32)
        for di in range(3):
            for dj in range(3):
                t = di * 3 + dj
                xs = xp_ref[pl.ds(di * wp + dj, m_out), :].astype(jnp.bfloat16)
                ws = w_ref[pl.ds(t * cin, cin), :]
                acc = acc + jnp.dot(xs, ws, preferred_element_type=jnp.float32)
        dst_ref[...] = jnp.maximum(acc + b_ref[...], 0.0)          # bias + ReLU (f32)

    # zero the padded grids / tidy input (borders must be zero on every grid step)
    xp1[...] = jnp.zeros_like(xp1)
    xp2[...] = jnp.zeros_like(xp2)
    xp3[...] = jnp.zeros_like(xp3)
    tin[...] = jnp.zeros_like(tin)

    # level-1 padded input: 8x8 feature map copied into the interior of a 10x10 grid
    for i in range(H1):
        xp1[pl.ds((i + 1) * WP1 + 1, W1), :] = \
            x_ref[pl.ds(i * W1, W1), :].astype(jnp.float32)

    # down1 (3x3, stride 1)
    conv9(xp1, w1_ref, b1_ref, d1f, M1, WP1, FEAT)
    for i in range(H1):                              # drop junk padded columns,
        row = d1f[pl.ds(i * WP1, W1), :]             # re-pad for down2, feed tidy1
        xp2[pl.ds((i + 1) * WP1 + 1, W1), :] = row
        tin[pl.ds(i * W1, W1), :] = row

    # down2 (3x3, stride 2) = stride-1 math + in-VMEM even-row/even-col subsample
    conv9(xp2, w2_ref, b2_ref, d2f, M1, WP1, PROP_C)
    for i in range(H2):
        row = d2f[pl.ds(2 * i * WP1, W2, stride=2), :]
        xp3[pl.ds((i + 1) * WP2 + 1, W2), :] = row
        tin[pl.ds(L1 + i * W2, W2), :] = row

    # down3 (3x3, stride 2)
    conv9(xp3, w3_ref, b3_ref, d3f, M3, WP2, PROP_C)
    for i in range(H3):
        row = d3f[pl.ds(2 * i * WP2, W3, stride=2), :]
        tin[pl.ds(L1 + L2 + i * W3, W3), :] = row

    # fused tidy1/2/3: one lane-dense (N padded to 128) matmul over all levels' pixels
    out = jnp.dot(tin[...].astype(jnp.bfloat16), tw_ref[...],
                  preferred_element_type=jnp.float32)
    out_ref[...] = out + tb_ref[...]


def proposal_net_forward(feat_map, p):
    """feat_map: (B, HF*HF, FEAT) bf16 -> rpn_score (B, N_ANCHORS) f32."""
    B = feat_map.shape[0]
    out = pl.pallas_call(
        _proposal_kernel,
        out_shape=jax.ShapeDtypeStruct((B, TIN_ROWS, NP), jnp.float32),
        grid=(B,),
        in_specs=[
            pl.BlockSpec((None, H1 * W1, FEAT), lambda b: (b, 0, 0)),
            pl.BlockSpec((9 * FEAT, PROP_C), lambda b: (0, 0)),
            pl.BlockSpec((1, PROP_C), lambda b: (0, 0)),
            pl.BlockSpec((9 * PROP_C, PROP_C), lambda b: (0, 0)),
            pl.BlockSpec((1, PROP_C), lambda b: (0, 0)),
            pl.BlockSpec((9 * PROP_C, PROP_C), lambda b: (0, 0)),
            pl.BlockSpec((1, PROP_C), lambda b: (0, 0)),
            pl.BlockSpec((PROP_C, NP), lambda b: (0, 0)),
            pl.BlockSpec((1, NP), lambda b: (0, 0)),
        ],
        out_specs=pl.BlockSpec((None, TIN_ROWS, NP), lambda b: (b, 0, 0)),
        scratch_shapes=[
            pltpu.VMEM((R1, FEAT), jnp.float32),      # xp1: padded level-1 input
            pltpu.VMEM((R1, PROP_C), jnp.float32),    # xp2: padded d1
            pltpu.VMEM((R3, PROP_C), jnp.float32),    # xp3: padded d2
            pltpu.VMEM((M1, PROP_C), jnp.float32),    # d1f: down1 full-grid output
            pltpu.VMEM((M1, PROP_C), jnp.float32),    # d2f: down2 full-grid output
            pltpu.VMEM((M3, PROP_C), jnp.float32),    # d3f: down3 full-grid output
            pltpu.VMEM((TIN_ROWS, PROP_C), jnp.float32),  # tin: fused tidy input
        ],
        compiler_params=pltpu.CompilerParams(
            dimension_semantics=("parallel",),
            vmem_limit_bytes=VMEM_LIMIT),
    )(feat_map,
      p["down1_w"], p["down1_b"].reshape(1, PROP_C),
      p["down2_w"], p["down2_b"].reshape(1, PROP_C),
      p["down3_w"], p["down3_b"].reshape(1, PROP_C),
      p["tidy_w"], p["tidy_b"].reshape(1, NP))

    # unpack the lane-dense tidy slab into the reference NCHW .view() ordering
    t1 = out[:, :L1, 0:6].reshape(B, H1, W1, 6)
    t2 = out[:, L1:L1 + L2, 6:12].reshape(B, H2, W2, 6)
    t3 = out[:, L1 + L2:L1 + L2 + L3, 12:21].reshape(B, H3, W3, 9)
    flat = lambda t: jnp.transpose(t, (0, 3, 1, 2)).reshape(B, -1)
    return jnp.concatenate([flat(t1), flat(t2), flat(t3)], axis=1)


# ------------------------------ model pieces ------------------------------
# TODO(synk): the pretrained ResNet-50 backbone cannot be reproduced without its
# checkpoint; a small deterministic conv-stem + fused GAP/FC surrogate with the
# same (logits, rpn_feature, feature) interface is used instead.
def backbone_forward(x_nchw, p):
    x = jnp.transpose(x_nchw, (0, 2, 3, 1))                   # NHWC
    B, H, W, _ = x.shape
    Ho, Wo = H // 4, W // 4
    # 4x4/stride-4 stem: non-overlapping patches -> pure layout transform + matmul;
    # K padded 48->128 (lane-dense activation loads), zero rows in stem_w match.
    patches = x.reshape(B, Ho, 4, Wo, 4, 3)
    patches = jnp.transpose(patches, (0, 1, 3, 2, 4, 5)).reshape(B * Ho * Wo, PATCH_K)
    patches = jnp.pad(patches, ((0, 0), (0, STEM_K - PATCH_K)))
    feat_map = pallas_linear(patches, p["stem_w"], p["stem_b"],
                             relu=True, out_dtype=jnp.bfloat16)
    feat_map = feat_map.reshape(B, Ho * Wo, FEAT)              # (B, HW, C) rpn feature
    feature, logits = pallas_gap_fc(feat_map, p["fc_w"], p["fc_b"])
    resnet_out = logits[:, :NUM_CLS]
    return resnet_out, feat_map, feature


# TODO(synk): greedy hard-NMS is inherently sequential / data-dependent; it is run
# as a fixed-topN on-device jnp scan (same select/suppress rule as the original
# NumPy hard_nms), not as a Pallas kernel.
def hard_nms_topn(scores, boxes, topn, iou_thresh):
    areas = (boxes[:, 2] - boxes[:, 0]) * (boxes[:, 3] - boxes[:, 1])
    neg_inf = jnp.float32(-jnp.inf)

    def step(carry, _):
        avail, remaining = carry
        # if IoU suppression emptied the pool, fall back to the not-yet-chosen set
        # so returned indices are always distinct (matches "keep distinct boxes")
        use = jnp.where(jnp.max(avail) > neg_inf, avail, remaining)
        idx = jnp.argmax(use)
        chosen = boxes[idx]
        inter_hw = (jnp.minimum(boxes[:, 2:], chosen[2:])
                    - jnp.maximum(boxes[:, :2], chosen[:2]))
        inter = jnp.where(jnp.any(inter_hw < 0, axis=1), 0.0,
                          inter_hw[:, 0] * inter_hw[:, 1])
        union = jnp.maximum(areas + areas[idx] - inter, 1e-8)
        iou = inter / union
        avail = jnp.where(iou >= iou_thresh, neg_inf, avail)
        avail = avail.at[idx].set(neg_inf)
        remaining = remaining.at[idx].set(neg_inf)
        return (avail, remaining), idx

    _, idxs = jax.lax.scan(step, (scores, scores), None, length=topn)
    return idxs.astype(jnp.int32)


# TODO(synk): variable-box bilinear crop+resize is a gather-heavy op with no clean
# Pallas win at this size; it is vectorized on-device jnp (align_corners=True
# semantics of F.interpolate), avoiding the per-box Python loop / host sync.
def crop_resize_bilinear(img_chw, box):
    y0, x0, y1, x1 = box[0], box[1], box[2], box[3]
    t = jnp.arange(PART_SIZE, dtype=jnp.float32) * (1.0 / (PART_SIZE - 1))
    ys = y0 + t * (y1 - y0 - 1.0)
    xs = x0 + t * (x1 - x0 - 1.0)
    ylo = jnp.floor(ys); xlo = jnp.floor(xs)
    wy = (ys - ylo)[:, None]
    wx = (xs - xlo)[None, :]
    ylo_i = ylo.astype(jnp.int32)
    xlo_i = xlo.astype(jnp.int32)
    yhi_i = jnp.minimum(ylo_i + 1, y1.astype(jnp.int32) - 1)
    xhi_i = jnp.minimum(xlo_i + 1, x1.astype(jnp.int32) - 1)
    top = img_chw[:, ylo_i, :]
    bot = img_chw[:, yhi_i, :]
    tl = top[:, :, xlo_i]; tr = top[:, :, xhi_i]
    bl = bot[:, :, xlo_i]; br = bot[:, :, xhi_i]
    top_v = tl * (1.0 - wx) + tr * wx
    bot_v = bl * (1.0 - wx) + br * wx
    return top_v * (1.0 - wy) + bot_v * wy                    # (3, P, P)


def generate_edge_anchors():
    """Deterministic surrogate for generate_default_anchor_maps(); boxes already
    shifted into padded-image coordinates, ints, one per rpn_score element."""
    rng = np.random.RandomState(0)
    side = IMG + 2 * PAD_SIDE
    yc = rng.randint(PAD_SIDE, IMG + PAD_SIDE, size=N_ANCHORS)
    xc = rng.randint(PAD_SIDE, IMG + PAD_SIDE, size=N_ANCHORS)
    hh = rng.randint(2, IMG // 2, size=N_ANCHORS)
    ww = rng.randint(2, IMG // 2, size=N_ANCHORS)
    y0 = np.clip(yc - hh, 0, side - 2); y1 = np.clip(yc + hh, y0 + 2, side)
    x0 = np.clip(xc - ww, 0, side - 2); x1 = np.clip(xc + ww, x0 + 2, side)
    return np.stack([y0, x0, y1, x1], axis=1).astype(np.int64)


EDGE_ANCHORS = generate_edge_anchors()


def init_params(key):
    ks = jax.random.split(key, 12)

    def w(k, shape, fan_in):
        return (jax.random.normal(k, shape, dtype=jnp.float32)
                / np.sqrt(fan_in)).astype(jnp.bfloat16)

    zf = lambda n: jnp.zeros((n,), jnp.float32)

    def head_w(k, kdim):
        """Small classification head padded column-wise to NP=128 (lane-dense)."""
        wf = jnp.zeros((kdim, NP), jnp.float32)
        wf = wf.at[:, :NUM_CLS].set(
            jax.random.normal(k, (kdim, NUM_CLS), dtype=jnp.float32) / np.sqrt(kdim))
        return wf.astype(jnp.bfloat16)

    # stem weight: K padded 48 -> 128 (rows >= 48 are zero, match padded patches)
    sw = jnp.zeros((STEM_K, FEAT), jnp.float32)
    sw = sw.at[:PATCH_K, :].set(
        jax.random.normal(ks[0], (PATCH_K, FEAT), dtype=jnp.float32) / np.sqrt(PATCH_K))

    # fused tidy weight: cols 0:6 tidy1, 6:12 tidy2, 12:21 tidy3, rest zero padding
    tw = jnp.zeros((PROP_C, NP), jnp.float32)
    tw = tw.at[:, 0:6].set(jax.random.normal(ks[5], (PROP_C, 6), dtype=jnp.float32) / np.sqrt(PROP_C))
    tw = tw.at[:, 6:12].set(jax.random.normal(ks[6], (PROP_C, 6), dtype=jnp.float32) / np.sqrt(PROP_C))
    tw = tw.at[:, 12:21].set(jax.random.normal(ks[7], (PROP_C, 9), dtype=jnp.float32) / np.sqrt(PROP_C))

    return {
        "stem_w": sw.astype(jnp.bfloat16),                        "stem_b": zf(FEAT),
        "fc_w": head_w(ks[1], FEAT),                              "fc_b": zf(NP),
        "down1_w": w(ks[2], (9 * FEAT, PROP_C), 9 * FEAT),        "down1_b": zf(PROP_C),
        "down2_w": w(ks[3], (9 * PROP_C, PROP_C), 9 * PROP_C),    "down2_b": zf(PROP_C),
        "down3_w": w(ks[4], (9 * PROP_C, PROP_C), 9 * PROP_C),    "down3_b": zf(PROP_C),
        "tidy_w": tw.astype(jnp.bfloat16),                        "tidy_b": zf(NP),
        "concat_w": head_w(ks[8], FEAT * (CAT_NUM + 1)),          "concat_b": zf(NP),
        "partcls_w": head_w(ks[9], FEAT),                         "partcls_b": zf(NP),
    }


@jax.jit
def attention_net_forward(x, params):
    """x: (B, 3, IMG, IMG) float32, NCHW (PyTorch convention)."""
    batch = x.shape[0]
    resnet_out, rpn_feature, feature = backbone_forward(x, params)
    x_pad = jnp.pad(x, ((0, 0), (0, 0), (PAD_SIDE, PAD_SIDE), (PAD_SIDE, PAD_SIDE)))
    rpn_score = proposal_net_forward(rpn_feature, params)            # (B, N_ANCHORS)

    anchors = jnp.asarray(EDGE_ANCHORS, jnp.float32)
    top_n_index = jax.vmap(
        lambda s: hard_nms_topn(s, anchors, TOP_N, 0.25))(rpn_score)  # (B, topN)
    top_n_prob = jnp.take_along_axis(rpn_score, top_n_index, axis=1)

    boxes = anchors[top_n_index]                                      # (B, topN, 4)
    crop = jax.vmap(jax.vmap(crop_resize_bilinear, in_axes=(None, 0)), in_axes=(0, 0))
    part_imgs = crop(x_pad, boxes).reshape(batch * TOP_N, 3, PART_SIZE, PART_SIZE)

    _, _, part_features = backbone_forward(part_imgs, params)        # (B*topN, FEAT) f32
    part_feature = part_features.reshape(batch, TOP_N, FEAT)[:, :CAT_NUM, :]
    part_feature = part_feature.reshape(batch, CAT_NUM * FEAT)
    concat_out = jnp.concatenate([part_feature, feature], axis=1)
    concat_logits = pallas_linear(concat_out, params["concat_w"],
                                  params["concat_b"])[:, :NUM_CLS]
    part_logits = pallas_linear(part_features, params["partcls_w"],
                                params["partcls_b"])[:, :NUM_CLS]
    part_logits = part_logits.reshape(batch, TOP_N, NUM_CLS)
    raw_logits = resnet_out
    return [raw_logits, concat_logits, part_logits, top_n_index, top_n_prob]


if __name__ == "__main__":
    x = jax.random.normal(jax.random.PRNGKey(0), (2, 3, IMG, IMG), dtype=jnp.float32)
    params = init_params(jax.random.PRNGKey(42))
    outs = attention_net_forward(x, params)
    for o in outs:
        jax.block_until_ready(o)
    assert outs[0].shape == (2, NUM_CLS)
    assert outs[1].shape == (2, NUM_CLS)
    assert outs[2].shape == (2, TOP_N, NUM_CLS)
    assert outs[3].shape == (2, TOP_N)
    assert outs[4].shape == (2, TOP_N)
    print("KERNEL_OK")
</pallas_src>

<mosaic_0001>
module attributes {stable_mosaic.version = 11 : i64} {
  func.func @_linear_kernel(%arg0: i32, %arg1: memref<64x128xf32, #tpu.memory_space<vmem>>, %arg2: memref<128x128xbf16, #tpu.memory_space<vmem>>, %arg3: memref<1x128xf32, #tpu.memory_space<vmem>>, %arg4: memref<64x128xbf16, #tpu.memory_space<vmem>>) attributes {dimension_semantics = [#tpu.dimension_semantics<parallel>], iteration_bounds = array<i64: 2>, scalar_prefetch = 0 : i64, scratch_operands = 0 : i64, tpu.core_type = #tpu.core_type<tc>, window_params = [{transform_indices = @transform_0, window_bounds = array<i64: 64, 128>}, {pipeline_mode = #tpu.pipeline_mode<synchronous>, transform_indices = @transform_1, window_bounds = array<i64: 128, 128>}, {pipeline_mode = #tpu.pipeline_mode<synchronous>, transform_indices = @transform_2, window_bounds = array<i64: 1, 128>}, {transform_indices = @transform_3, window_bounds = array<i64: 64, 128>}]} {
    %c0 = arith.constant 0 : index
    %c0_0 = arith.constant 0 : index
    %0 = vector.load %arg1[%c0, %c0_0] : memref<64x128xf32, #tpu.memory_space<vmem>>, vector<64x128xf32>
    %1 = arith.truncf %0 : vector<64x128xf32> to vector<64x128xbf16>
    %c0_1 = arith.constant 0 : index
    %c0_2 = arith.constant 0 : index
    %2 = vector.load %arg2[%c0_1, %c0_2] : memref<128x128xbf16, #tpu.memory_space<vmem>>, vector<128x128xbf16>
    %cst = arith.constant dense<0.000000e+00> : vector<64x128xf32>
    %3 = tpu.matmul %1, %2, %cst {dimension_numbers = #tpu.dot_dimension_numbers<[1], [0], [0], [1], [0, 0, 1, 1], [], []>} : vector<64x128xbf16>, vector<128x128xbf16>, vector<64x128xf32> -> vector<64x128xf32>
    %c0_3 = arith.constant 0 : index
    %c0_4 = arith.constant 0 : index
    %4 = vector.load %arg3[%c0_3, %c0_4] : memref<1x128xf32, #tpu.memory_space<vmem>>, vector<1x128xf32>
    %5 = vector.broadcast %4 : vector<1x128xf32> to vector<64x128xf32>
    %6 = arith.addf %3, %5 : vector<64x128xf32>
    %cst_5 = arith.constant 0.000000e+00 : f32
    %7 = vector.broadcast %cst_5 : f32 to vector<64x128xf32>
    %8 = arith.maximumf %6, %7 : vector<64x128xf32>
    %9 = arith.truncf %8 : vector<64x128xf32> to vector<64x128xbf16>
    %c0_6 = arith.constant 0 : index
    %c0_7 = arith.constant 0 : index
    %10 = vector.load %arg4[%c0_6, %c0_7] : memref<64x128xbf16, #tpu.memory_space<vmem>>, vector<64x128xbf16>
    tpu.vector_store %arg4[%c0_6, %c0_7], %9 {strides = array<i32>} : memref<64x128xbf16, #tpu.memory_space<vmem>>, vector<64x128xbf16>,
    return
  }
  func.func @transform_0(%arg0: i32) -> (i32, i32) {
    %c0_i32 = arith.constant 0 : i32
    %c0_i32_0 = arith.constant 0 : i32
    return %arg0, %c0_i32 : i32, i32
  }
  func.func @transform_1(%arg0: i32) -> (i32, i32) {
    %c0_i32 = arith.constant 0 : i32
    %c0_i32_0 = arith.constant 0 : i32
    %c0_i32_1 = arith.constant 0 : i32
    return %c0_i32, %c0_i32_0 : i32, i32
  }
  func.func @transform_2(%arg0: i32) -> (i32, i32) {
    %c0_i32 = arith.constant 0 : i32
    %c0_i32_0 = arith.constant 0 : i32
    %c0_i32_1 = arith.constant 0 : i32
    return %c0_i32, %c0_i32_0 : i32, i32
  }
  func.func @transform_3(%arg0: i32) -> (i32, i32) {
    %c0_i32 = arith.constant 0 : i32
    %c0_i32_0 = arith.constant 0 : i32
    return %arg0, %c0_i32 : i32, i32
  }
}

module attributes {stable_mosaic.version = 11 : i64} {
  func.func @_gap_fc_kernel(%arg0: i32, %arg1: memref<1x64x128xbf16, #tpu.memory_space<vmem>>, %arg2: memref<128x128xbf16, #tpu.memory_space<vmem>>, %arg3: memref<1x128xf32, #tpu.memory_space<vmem>>, %arg4: memref<1x1x128xf32, #tpu.memory_space<vmem>>, %arg5: memref<1x1x128xf32, #tpu.memory_space<vmem>>) attributes {dimension_semantics = [#tpu.dimension_semantics<parallel>], iteration_bounds = array<i64: 2>, scalar_prefetch = 0 : i64, scratch_operands = 0 : i64, tpu.core_type = #tpu.core_type<tc>, window_params = [{transform_indices = @transform_0, window_bounds = array<i64: 1, 64, 128>}, {pipeline_mode = #tpu.pipeline_mode<synchronous>, transform_indices = @transform_1, window_bounds = array<i64: 128, 128>}, {pipeline_mode = #tpu.pipeline_mode<synchronous>, transform_indices = @transform_2, window_bounds = array<i64: 1, 128>}, {transform_indices = @transform_3, window_bounds = array<i64: 1, 1, 128>}, {transform_indices = @transform_4, window_bounds = array<i64: 1, 1, 128>}]} {
    %c0 = arith.constant 0 : index
    %c0_0 = arith.constant 0 : index
    %c0_1 = arith.constant 0 : index
    %0 = vector.load %arg1[%c0, %c0_0, %c0_1] : memref<1x64x128xbf16, #tpu.memory_space<vmem>>, vector<1x64x128xbf16>
    %1 = arith.extf %0 : vector<1x64x128xbf16> to vector<1x64x128xf32>
    %cst = arith.constant dense<0.000000e+00> : vector<1x128xf32>
    %2 = vector.multi_reduction <add>, %1, %cst [1] : vector<1x64x128xf32> to vector<1x128xf32>
    %cst_2 = arith.constant 6.400000e+01 : f32
    %3 = vector.broadcast %cst_2 : f32 to vector<1x128xf32>
    %4 = arith.divf %2, %3 : vector<1x128xf32>
    %c0_3 = arith.constant 0 : index
    %c0_4 = arith.constant 0 : index
    %c0_5 = arith.constant 0 : index
    %5 = vector.load %arg4[%c0_3, %c0_4, %c0_5] : memref<1x1x128xf32, #tpu.memory_space<vmem>>, vector<1x1x128xf32>
    %6 = vector.shape_cast %5 : vector<1x1x128xf32> to vector<1x128xf32>
    %7 = vector.shape_cast %4 : vector<1x128xf32> to vector<1x1x128xf32>
    tpu.vector_store %arg4[%c0_3, %c0_4, %c0_5], %7 {strides = array<i32>} : memref<1x1x128xf32, #tpu.memory_space<vmem>>, vector<1x1x128xf32>,
    %8 = arith.truncf %4 : vector<1x128xf32> to vector<1x128xbf16>
    %c0_6 = arith.constant 0 : index
    %c0_7 = arith.constant 0 : index
    %9 = vector.load %arg2[%c0_6, %c0_7] : memref<128x128xbf16, #tpu.memory_space<vmem>>, vector<128x128xbf16>
    %cst_8 = arith.constant dense<0.000000e+00> : vector<1x128xf32>
    %10 = tpu.matmul %8, %9, %cst_8 {dimension_numbers = #tpu.dot_dimension_numbers<[1], [0], [0], [1], [0, 0, 1, 1], [], []>} : vector<1x128xbf16>, vector<128x128xbf16>, vector<1x128xf32> -> vector<1x128xf32>
    %c0_9 = arith.constant 0 : index
    %c0_10 = arith.constant 0 : index
    %11 = vector.load %arg3[%c0_9, %c0_10] : memref<1x128xf32, #tpu.memory_space<vmem>>, vector<1x128xf32>
    %12 = arith.addf %10, %11 : vector<1x128xf32>
    %c0_11 = arith.constant 0 : index
    %c0_12 = arith.constant 0 : index
    %c0_13 = arith.constant 0 : index
    %13 = vector.load %arg5[%c0_11, %c0_12, %c0_13] : memref<1x1x128xf32, #tpu.memory_space<vmem>>, vector<1x1x128xf32>
    %14 = vector.shape_cast %13 : vector<1x1x128xf32> to vector<1x128xf32>
    %15 = vector.shape_cast %12 : vector<1x128xf32> to vector<1x1x128xf32>
    tpu.vector_store %arg5[%c0_11, %c0_12, %c0_13], %15 {strides = array<i32>} : memref<1x1x128xf32, #tpu.memory_space<vmem>>, vector<1x1x128xf32>,
    return
  }
  func.func @transform_0(%arg0: i32) -> (i32, i32, i32) {
    %c0_i32 = arith.constant 0 : i32
    %c0_i32_0 = arith.constant 0 : i32
    %c0_i32_1 = arith.constant 0 : i32
    return %arg0, %c0_i32, %c0_i32_0 : i32, i32, i32
  }
  func.func @transform_1(%arg0: i32) -> (i32, i32) {
    %c0_i32 = arith.constant 0 : i32
    %c0_i32_0 = arith.constant 0 : i32
    %c0_i32_1 = arith.constant 0 : i32
    return %c0_i32, %c0_i32_0 : i32, i32
  }
  func.func @transform_2(%arg0: i32) -> (i32, i32) {
    %c0_i32 = arith.constant 0 : i32
    %c0_i32_0 = arith.constant 0 : i32
    %c0_i32_1 = arith.constant 0 : i32
    return %c0_i32, %c0_i32_0 : i32, i32
  }
  func.func @transform_3(%arg0: i32) -> (i32, i32, i32) {
    %c0_i32 = arith.constant 0 : i32
    %c0_i32_0 = arith.constant 0 : i32
    %c0_i32_1 = arith.constant 0 : i32
    return %arg0, %c0_i32, %c0_i32_0 : i32, i32, i32
  }
  func.func @transform_4(%arg0: i32) -> (i32, i32, i32) {
    %c0_i32 = arith.constant 0 : i32
    %c0_i32_0 = arith.constant 0 : i32
    %c0_i32_1 = arith.constant 0 : i32
    return %arg0, %c0_i32, %c0_i32_0 : i32, i32, i32
  }
}

module attributes {stable_mosaic.version = 11 : i64} {
  func.func @_proposal_kernel(%arg0: i32, %arg1: memref<1x64x128xbf16, #tpu.memory_space<vmem>>, %arg2: memref<1152x128xbf16, #tpu.memory_space<vmem>>, %arg3: memref<1x128xf32, #tpu.memory_space<vmem>>, %arg4: memref<1152x128xbf16, #tpu.memory_space<vmem>>, %arg5: memref<1x128xf32, #tpu.memory_space<vmem>>, %arg6: memref<1152x128xbf16, #tpu.memory_space<vmem>>, %arg7: memref<1x128xf32, #tpu.memory_space<vmem>>, %arg8: memref<128x128xbf16, #tpu.memory_space<vmem>>, %arg9: memref<1x128xf32, #tpu.memory_space<vmem>>, %arg10: memref<1x88x128xf32, #tpu.memory_space<vmem>>, %arg11: memref<104x128xf32, #tpu.memory_space<vmem>>, %arg12: memref<104x128xf32, #tpu.memory_space<vmem>>, %arg13: memref<40x128xf32, #tpu.memory_space<vmem>>, %arg14: memref<80x128xf32, #tpu.memory_space<vmem>>, %arg15: memref<80x128xf32, #tpu.memory_space<vmem>>, %arg16: memref<24x128xf32, #tpu.memory_space<vmem>>, %arg17: memref<88x128xf32, #tpu.memory_space<vmem>>) attributes {dimension_semantics = [#tpu.dimension_semantics<parallel>], iteration_bounds = array<i64: 2>, scalar_prefetch = 0 : i64, scratch_operands = 7 : i64, tpu.core_type = #tpu.core_type<tc>, window_params = [{transform_indices = @transform_0, window_bounds = array<i64: 1, 64, 128>}, {pipeline_mode = #tpu.pipeline_mode<synchronous>, transform_indices = @transform_1, window_bounds = array<i64: 1152, 128>}, {pipeline_mode = #tpu.pipeline_mode<synchronous>, transform_indices = @transform_2, window_bounds = array<i64: 1, 128>}, {pipeline_mode = #tpu.pipeline_mode<synchronous>, transform_indices = @transform_3, window_bounds = array<i64: 1152, 128>}, {pipeline_mode = #tpu.pipeline_mode<synchronous>, transform_indices = @transform_4, window_bounds = array<i64: 1, 128>}, {pipeline_mode = #tpu.pipeline_mode<synchronous>, transform_indices = @transform_5, window_bounds = array<i64: 1152, 128>}, {pipeline_mode = #tpu.pipeline_mode<synchronous>, transform_indices = @transform_6, window_bounds = array<i64: 1, 128>}, {pipeline_mode = #tpu.pipeline_mode<synchronous>, transform_indices = @transform_7, window_bounds = array<i64: 128, 128>}, {pipeline_mode = #tpu.pipeline_mode<synchronous>, transform_indices = @transform_8, window_bounds = array<i64: 1, 128>}, {transform_indices = @transform_9, window_bounds = array<i64: 1, 88, 128>}]} {
    %cst = arith.constant 0.000000e+00 : f32
    %0 = vector.broadcast %cst : f32 to vector<104x128xf32>
    %c0 = arith.constant 0 : index
    %c0_0 = arith.constant 0 : index
    %1 = vector.load %arg11[%c0, %c0_0] : memref<104x128xf32, #tpu.memory_space<vmem>>, vector<104x128xf32>
    tpu.vector_store %arg11[%c0, %c0_0], %0 {strides = array<i32>} : memref<104x128xf32, #tpu.memory_space<vmem>>, vector<104x128xf32>,
    %cst_1 = arith.constant 0.000000e+00 : f32
    %2 = vector.broadcast %cst_1 : f32 to vector<104x128xf32>
    %c0_2 = arith.constant 0 : index
    %c0_3 = arith.constant 0 : index
    %3 = vector.load %arg12[%c0_2, %c0_3] : memref<104x128xf32, #tpu.memory_space<vmem>>, vector<104x128xf32>
    tpu.vector_store %arg12[%c0_2, %c0_3], %2 {strides = array<i32>} : memref<104x128xf32, #tpu.memory_space<vmem>>, vector<104x128xf32>,
    %cst_4 = arith.constant 0.000000e+00 : f32
    %4 = vector.broadcast %cst_4 : f32 to vector<40x128xf32>
    %c0_5 = arith.constant 0 : index
    %c0_6 = arith.constant 0 : index
    %5 = vector.load %arg13[%c0_5, %c0_6] : memref<40x128xf32, #tpu.memory_space<vmem>>, vector<40x128xf32>
    tpu.vector_store %arg13[%c0_5, %c0_6], %4 {strides = array<i32>} : memref<40x128xf32, #tpu.memory_space<vmem>>, vector<40x128xf32>,
    %cst_7 = arith.constant 0.000000e+00 : f32
    %6 = vector.broadcast %cst_7 : f32 to vector<88x128xf32>
    %c0_8 = arith.constant 0 : index
    %c0_9 = arith.constant 0 : index
    %7 = vector.load %arg17[%c0_8, %c0_9] : memref<88x128xf32, #tpu.memory_space<vmem>>, vector<88x128xf32>
    tpu.vector_store %arg17[%c0_8, %c0_9], %6 {strides = array<i32>} : memref<88x128xf32, #tpu.memory_space<vmem>>, vector<88x128xf32>,
    %c0_10 = arith.constant 0 : index
    %c0_11 = arith.constant 0 : index
    %c0_12 = arith.constant 0 : index
    %8 = vector.load %arg1[%c0_10, %c0_11, %c0_12] : memref<1x64x128xbf16, #tpu.memory_space<vmem>>, vector<1x8x128xbf16>
    %9 = vector.shape_cast %8 : vector<1x8x128xbf16> to vector<8x128xbf16>
    %10 = arith.extf %9 : vector<8x128xbf16> to vector<8x128xf32>
    %c11 = arith.constant 11 : index
    %c0_13 = arith.constant 0 : index
    %11 = vector.load %arg11[%c11, %c0_13] : memref<104x128xf32, #tpu.memory_space<vmem>>, vector<8x128xf32>
    tpu.vector_store %arg11[%c11, %c0_13], %10 {strides = array<i32>} : memref<104x128xf32, #tpu.memory_space<vmem>>, vector<8x128xf32>,
    %c0_14 = arith.constant 0 : index
    %c8 = arith.constant 8 : index
    %c0_15 = arith.constant 0 : index
    %12 = vector.load %arg1[%c0_14, %c8, %c0_15] : memref<1x64x128xbf16, #tpu.memory_space<vmem>>, vector<1x8x128xbf16>
    %13 = vector.shape_cast %12 : vector<1x8x128xbf16> to vector<8x128xbf16>
    %14 = arith.extf %13 : vector<8x128xbf16> to vector<8x128xf32>
    %c21 = arith.constant 21 : index
    %c0_16 = arith.constant 0 : index
    %15 = vector.load %arg11[%c21, %c0_16] : memref<104x128xf32, #tpu.memory_space<vmem>>, vector<8x128xf32>
    tpu.vector_store %arg11[%c21, %c0_16], %14 {strides = array<i32>} : memref<104x128xf32, #tpu.memory_space<vmem>>, vector<8x128xf32>,
    %c0_17 = arith.constant 0 : index
    %c16 = arith.constant 16 : index
    %c0_18 = arith.constant 0 : index
    %16 = vector.load %arg1[%c0_17, %c16, %c0_18] : memref<1x64x128xbf16, #tpu.memory_space<vmem>>, vector<1x8x128xbf16>
    %17 = vector.shape_cast %16 : vector<1x8x128xbf16> to vector<8x128xbf16>
    %18 = arith.extf %17 : vector<8x128xbf16> to vector<8x128xf32>
    %c31 = arith.constant 31 : index
    %c0_19 = arith.constant 0 : index
    %19 = vector.load %arg11[%c31, %c0_19] : memref<104x128xf32, #tpu.memory_space<vmem>>, vector<8x128xf32>
    tpu.vector_store %arg11[%c31, %c0_19], %18 {strides = array<i32>} : memref<104x128xf32, #tpu.memory_space<vmem>>, vector<8x128xf32>,
    %c0_20 = arith.constant 0 : index
    %c24 = arith.constant 24 : index
    %c0_21 = arith.constant 0 : index
    %20 = vector.load %arg1[%c0_20, %c24, %c0_21] : memref<1x64x128xbf16, #tpu.memory_space<vmem>>, vector<1x8x128xbf16>
    %21 = vector.shape_cast %20 : vector<1x8x128xbf16> to vector<8x128xbf16>
    %22 = arith.extf %21 : vector<8x128xbf16> to vector<8x128xf32>
    %c41 = arith.constant 41 : index
    %c0_22 = arith.constant 0 : index
    %23 = vector.load %arg11[%c41, %c0_22] : memref<104x128xf32, #tpu.memory_space<vmem>>, vector<8x128xf32>
    tpu.vector_store %arg11[%c41, %c0_22], %22 {strides = array<i32>} : memref<104x128xf32, #tpu.memory_space<vmem>>, vector<8x128xf32>,
    %c0_23 = arith.constant 0 : index
    %c32 = arith.constant 32 : index
    %c0_24 = arith.constant 0 : index
    %24 = vector.load %arg1[%c0_23, %c32, %c0_24] : memref<1x64x128xbf16, #tpu.memory_space<vmem>>, vector<1x8x128xbf16>
    %25 = vector.shape_cast %24 : vector<1x8x128xbf16> to vector<8x128xbf16>
    %26 = arith.extf %25 : vector<8x128xbf16> to vector<8x128xf32>
    %c51 = arith.constant 51 : index
    %c0_25 = arith.constant 0 : index
    %27 = vector.load %arg11[%c51, %c0_25] : memref<104x128xf32, #tpu.memory_space<vmem>>, vector<8x128xf32>
    tpu.vector_store %arg11[%c51, %c0_25], %26 {strides = array<i32>} : memref<104x128xf32, #tpu.memory_space<vmem>>, vector<8x128xf32>,
    %c0_26 = arith.constant 0 : index
    %c40 = arith.constant 40 : index
    %c0_27 = arith.constant 0 : index
    %28 = vector.load %arg1[%c0_26, %c40, %c0_27] : memref<1x64x128xbf16, #tpu.memory_space<vmem>>, vector<1x8x128xbf16>
    %29 = vector.shape_cast %28 : vector<1x8x128xbf16> to vector<8x128xbf16>
    %30 = arith.extf %29 : vector<8x128xbf16> to vector<8x128xf32>
    %c61 = arith.constant 61 : index
    %c0_28 = arith.constant 0 : index
    %31 = vector.load %arg11[%c61, %c0_28] : memref<104x128xf32, #tpu.memory_space<vmem>>, vector<8x128xf32>
    tpu.vector_store %arg11[%c61, %c0_28], %30 {strides = array<i32>} : memref<104x128xf32, #tpu.memory_space<vmem>>, vector<8x128xf32>,
    %c0_29 = arith.constant 0 : index
    %c48 = arith.constant 48 : index
    %c0_30 = arith.constant 0 : index
    %32 = vector.load %arg1[%c0_29, %c48, %c0_30] : memref<1x64x128xbf16, #tpu.memory_space<vmem>>, vector<1x8x128xbf16>
    %33 = vector.shape_cast %32 : vector<1x8x128xbf16> to vector<8x128xbf16>
    %34 = arith.extf %33 : vector<8x128xbf16> to vector<8x128xf32>
    %c71 = arith.constant 71 : index
    %c0_31 = arith.constant 0 : index
    %35 = vector.load %arg11[%c71, %c0_31] : memref<104x128xf32, #tpu.memory_space<vmem>>, vector<8x128xf32>
    tpu.vector_store %arg11[%c71, %c0_31], %34 {strides = array<i32>} : memref<104x128xf32, #tpu.memory_space<vmem>>, vector<8x128xf32>,
    %c0_32 = arith.constant 0 : index
    %c56 = arith.constant 56 : index
    %c0_33 = arith.constant 0 : index
    %36 = vector.load %arg1[%c0_32, %c56, %c0_33] : memref<1x64x128xbf16, #tpu.memory_space<vmem>>, vector<1x8x128xbf16>
    %37 = vector.shape_cast %36 : vector<1x8x128xbf16> to vector<8x128xbf16>
    %38 = arith.extf %37 : vector<8x128xbf16> to vector<8x128xf32>
    %c81 = arith.constant 81 : index
    %c0_34 = arith.constant 0 : index
    %39 = vector.load %arg11[%c81, %c0_34] : memref<104x128xf32, #tpu.memory_space<vmem>>, vector<8x128xf32>
    tpu.vector_store %arg11[%c81, %c0_34], %38 {strides = array<i32>} : memref<104x128xf32, #tpu.memory_space<vmem>>, vector<8x128xf32>,
    %cst_35 = arith.constant 0.000000e+00 : f32
    %40 = vector.broadcast %cst_35 : f32 to vector<80x128xf32>
    %c0_36 = arith.constant 0 : index
    %c0_37 = arith.constant 0 : index
    %41 = vector.load %arg11[%c0_36, %c0_37] : memref<104x128xf32, #tpu.memory_space<vmem>>, vector<80x128xf32>
    %42 = arith.truncf %41 : vector<80x128xf32> to vector<80x128xbf16>
    %c0_38 = arith.constant 0 : index
    %c0_39 = arith.constant 0 : index
    %43 = vector.load %arg2[%c0_38, %c0_39] : memref<1152x128xbf16, #tpu.memory_space<vmem>>, vector<128x128xbf16>
    %cst_40 = arith.constant dense<0.000000e+00> : vector<80x128xf32>
    %44 = tpu.matmul %42, %43, %cst_40 {dimension_numbers = #tpu.dot_dimension_numbers<[1], [0], [0], [1], [0, 0, 1, 1], [], []>} : vector<80x128xbf16>, vector<128x128xbf16>, vector<80x128xf32> -> vector<80x128xf32>
    %45 = arith.addf %40, %44 : vector<80x128xf32>
    %c1 = arith.constant 1 : index
    %c0_41 = arith.constant 0 : index
    %46 = vector.load %arg11[%c1, %c0_41] : memref<104x128xf32, #tpu.memory_space<vmem>>, vector<80x128xf32>
    %47 = arith.truncf %46 : vector<80x128xf32> to vector<80x128xbf16>
    %c128 = arith.constant 128 : index
    %c0_42 = arith.constant 0 : index
    %48 = vector.load %arg2[%c128, %c0_42] : memref<1152x128xbf16, #tpu.memory_space<vmem>>, vector<128x128xbf16>
    %cst_43 = arith.constant dense<0.000000e+00> : vector<80x128xf32>
    %49 = tpu.matmul %47, %48, %cst_43 {dimension_numbers = #tpu.dot_dimension_numbers<[1], [0], [0], [1], [0, 0, 1, 1], [], []>} : vector<80x128xbf16>, vector<128x128xbf16>, vector<80x128xf32> -> vector<80x128xf32>
    %50 = arith.addf %45, %49 : vector<80x128xf32>
    %c2 = arith.constant 2 : index
    %c0_44 = arith.constant 0 : index
    %51 = vector.load %arg11[%c2, %c0_44] : memref<104x128xf32, #tpu.memory_space<vmem>>, vector<80x128xf32>
    %52 = arith.truncf %51 : vector<80x128xf32> to vector<80x128xbf16>
    %c256 = arith.constant 256 : index
    %c0_45 = arith.constant 0 : index
    %53 = vector.load %arg2[%c256, %c0_45] : memref<1152x128xbf16, #tpu.memory_space<vmem>>, vector<128x128xbf16>
    %cst_46 = arith.constant dense<0.000000e+00> : vector<80x128xf32>
    %54 = tpu.matmul %52, %53, %cst_46 {dimension_numbers = #tpu.dot_dimension_numbers<[1], [0], [0], [1], [0, 0, 1, 1], [], []>} : vector<80x128xbf16>, vector<128x128xbf16>, vector<80x128xf32> -> vector<80x128xf32>
    %55 = arith.addf %50, %54 : vector<80x128xf32>
    %c10 = arith.constant 10 : index
    %c0_47 = arith.constant 0 : index
    %56 = vector.load %arg11[%c10, %c0_47] : memref<104x128xf32, #tpu.memory_space<vmem>>, vector<80x128xf32>
    %57 = arith.truncf %56 : vector<80x128xf32> to vector<80x128xbf16>
    %c384 = arith.constant 384 : index
    %c0_48 = arith.constant 0 : index
    %58 = vector.load %arg2[%c384, %c0_48] : memref<1152x128xbf16, #tpu.memory_space<vmem>>, vector<128x128xbf16>
    %cst_49 = arith.constant dense<0.000000e+00> : vector<80x128xf32>
    %59 = tpu.matmul %57, %58, %cst_49 {dimension_numbers = #tpu.dot_dimension_numbers<[1], [0], [0], [1], [0, 0, 1, 1], [], []>} : vector<80x128xbf16>, vector<128x128xbf16>, vector<80x128xf32> -> vector<80x128xf32>
    %60 = arith.addf %55, %59 : vector<80x128xf32>
    %c11_50 = arith.constant 11 : index
    %c0_51 = arith.constant 0 : index
    %61 = vector.load %arg11[%c11_50, %c0_51] : memref<104x128xf32, #tpu.memory_space<vmem>>, vector<80x128xf32>
    %62 = arith.truncf %61 : vector<80x128xf32> to vector<80x128xbf16>
    %c512 = arith.constant 512 : index
    %c0_52 = arith.constant 0 : index
    %63 = vector.load %arg2[%c512, %c0_52] : memref<1152x128xbf16, #tpu.memory_space<vmem>>, vector<128x128xbf16>
    %cst_53 = arith.constant dense<0.000000e+00> : vector<80x128xf32>
    %64 = tpu.matmul %62, %63, %cst_53 {dimension_numbers = #tpu.dot_dimension_numbers<[1], [0], [0], [1], [0, 0, 1, 1], [], []>} : vector<80x128xbf16>, vector<128x128xbf16>, vector<80x128xf32> -> vector<80x128xf32>
    %65 = arith.addf %60, %64 : vector<80x128xf32>
    %c12 = arith.constant 12 : index
    %c0_54 = arith.constant 0 : index
    %66 = vector.load %arg11[%c12, %c0_54] : memref<104x128xf32, #tpu.memory_space<vmem>>, vector<80x128xf32>
    %67 = arith.truncf %66 : vector<80x128xf32> to vector<80x128xbf16>
    %c640 = arith.constant 640 : index
    %c0_55 = arith.constant 0 : index
    %68 = vector.load %arg2[%c640, %c0_55] : memref<1152x128xbf16, #tpu.memory_space<vmem>>, vector<128x128xbf16>
    %cst_56 = arith.constant dense<0.000000e+00> : vector<80x128xf32>
    %69 = tpu.matmul %67, %68, %cst_56 {dimension_numbers = #tpu.dot_dimension_numbers<[1], [0], [0], [1], [0, 0, 1, 1], [], []>} : vector<80x128xbf16>, vector<128x128xbf16>, vector<80x128xf32> -> vector<80x128xf32>
    %70 = arith.addf %65, %69 : vector<80x128xf32>
    %c20 = arith.constant 20 : index
    %c0_57 = arith.constant 0 : index
    %71 = vector.load %arg11[%c20, %c0_57] : memref<104x128xf32, #tpu.memory_space<vmem>>, vector<80x128xf32>
    %72 = arith.truncf %71 : vector<80x128xf32> to vector<80x128xbf16>
    %c768 = arith.constant 768 : index
    %c0_58 = arith.constant 0 : index
    %73 = vector.load %arg2[%c768, %c0_58] : memref<1152x128xbf16, #tpu.memory_space<vmem>>, vector<128x128xbf16>
    %cst_59 = arith.constant dense<0.000000e+00> : vector<80x128xf32>
    %74 = tpu.matmul %72, %73, %cst_59 {dimension_numbers = #tpu.dot_dimension_numbers<[1], [0], [0], [1], [0, 0, 1, 1], [], []>} : vector<80x128xbf16>, vector<128x128xbf16>, vector<80x128xf32> -> vector<80x128xf32>
    %75 = arith.addf %70, %74 : vector<80x128xf32>
    %c21_60 = arith.constant 21 : index
    %c0_61 = arith.constant 0 : index
    %76 = vector.load %arg11[%c21_60, %c0_61] : memref<104x128xf32, #tpu.memory_space<vmem>>, vector<80x128xf32>
    %77 = arith.truncf %76 : vector<80x128xf32> to vector<80x128xbf16>
    %c896 = arith.constant 896 : index
    %c0_62 = arith.constant 0 : index
    %78 = vector.load %arg2[%c896, %c0_62] : memref<1152x128xbf16, #tpu.memory_space<vmem>>, vector<128x128xbf16>
    %cst_63 = arith.constant dense<0.000000e+00> : vector<80x128xf32>
    %79 = tpu.matmul %77, %78, %cst_63 {dimension_numbers = #tpu.dot_dimension_numbers<[1], [0], [0], [1], [0, 0, 1, 1], [], []>} : vector<80x128xbf16>, vector<128x128xbf16>, vector<80x128xf32> -> vector<80x128xf32>
    %80 = arith.addf %75, %79 : vector<80x128xf32>
    %c22 = arith.constant 22 : index
    %c0_64 = arith.constant 0 : index
    %81 = vector.load %arg11[%c22, %c0_64] : memref<104x128xf32, #tpu.memory_space<vmem>>, vector<80x128xf32>
    %82 = arith.truncf %81 : vector<80x128xf32> to vector<80x128xbf16>
    %c1024 = arith.constant 1024 : index
    %c0_65 = arith.constant 0 : index
    %83 = vector.load %arg2[%c1024, %c0_65] : memref<1152x128xbf16, #tpu.memory_space<vmem>>, vector<128x128xbf16>
    %cst_66 = arith.constant dense<0.000000e+00> : vector<80x128xf32>
    %84 = tpu.matmul %82, %83, %cst_66 {dimension_numbers = #tpu.dot_dimension_numbers<[1], [0], [0], [1], [0, 0, 1, 1], [], []>} : vector<80x128xbf16>, vector<128x128xbf16>, vector<80x128xf32> -> vector<80x128xf32>
    %85 = arith.addf %80, %84 : vector<80x128xf32>
    %c0_67 = arith.constant 0 : index
    %c0_68 = arith.constant 0 : index
    %86 = vector.load %arg3[%c0_67, %c0_68] : memref<1x128xf32, #tpu.memory_space<vmem>>, vector<1x128xf32>
    %87 = vector.broadcast %86 : vector<1x128xf32> to vector<80x128xf32>
    %88 = arith.addf %85, %87 : vector<80x128xf32>
    %cst_69 = arith.constant 0.000000e+00 : f32
    %89 = vector.broadcast %cst_69 : f32 to vector<80x128xf32>
    %90 = arith.maximumf %88, %89 : vector<80x128xf32>
    %c0_70 = arith.constant 0 : index
    %c0_71 = arith.constant 0 : index
    %91 = vector.load %arg14[%c0_70, %c0_71] : memref<80x128xf32, #tpu.memory_space<vmem>>, vector<80x128xf32>
    tpu.vector_store %arg14[%c0_70, %c0_71], %90 {strides = array<i32>} : memref<80x128xf32, #tpu.memory_space<vmem>>, vector<80x128xf32>,
    %c0_72 = arith.constant 0 : index
    %c0_73 = arith.constant 0 : index
    %92 = vector.load %arg14[%c0_72, %c0_73] : memref<80x128xf32, #tpu.memory_space<vmem>>, vector<8x128xf32>
    %c11_74 = arith.constant 11 : index
    %c0_75 = arith.constant 0 : index
    %93 = vector.load %arg12[%c11_74, %c0_75] : memref<104x128xf32, #tpu.memory_space<vmem>>, vector<8x128xf32>
    tpu.vector_store %arg12[%c11_74, %c0_75], %92 {strides = array<i32>} : memref<104x128xf32, #tpu.memory_space<vmem>>, vector<8x128xf32>,
    %c0_76 = arith.constant 0 : index
    %c0_77 = arith.constant 0 : index
    %94 = vector.load %arg17[%c0_76, %c0_77] : memref<88x128xf32, #tpu.memory_space<vmem>>, vector<8x128xf32>
    tpu.vector_store %arg17[%c0_76, %c0_77], %92 {strides = array<i32>} : memref<88x128xf32, #tpu.memory_space<vmem>>, vector<8x128xf32>,
    %c10_78 = arith.constant 10 : index
    %c0_79 = arith.constant 0 : index
    %95 = vector.load %arg14[%c10_78, %c0_79] : memref<80x128xf32, #tpu.memory_space<vmem>>, vector<8x128xf32>
    %c21_80 = arith.constant 21 : index
    %c0_81 = arith.constant 0 : index
    %96 = vector.load %arg12[%c21_80, %c0_81] : memref<104x128xf32, #tpu.memory_space<vmem>>, vector<8x128xf32>
    tpu.vector_store %arg12[%c21_80, %c0_81], %95 {strides = array<i32>} : memref<104x128xf32, #tpu.memory_space<vmem>>, vector<8x128xf32>,
    %c8_82 = arith.constant 8 : index
    %c0_83 = arith.constant 0 : index
    %97 = vector.load %arg17[%c8_82, %c0_83] : memref<88x128xf32, #tpu.memory_space<vmem>>, vector<8x128xf32>
    tpu.vector_store %arg17[%c8_82, %c0_83], %95 {strides = array<i32>} : memref<88x128xf32, #tpu.memory_space<vmem>>, vector<8x128xf32>,
    %c20_84 = arith.constant 20 : index
    %c0_85 = arith.constant 0 : index
    %98 = vector.load %arg14[%c20_84, %c0_85] : memref<80x128xf32, #tpu.memory_space<vmem>>, vector<8x128xf32>
    %c31_86 = arith.constant 31 : index
    %c0_87 = arith.constant 0 : index
    %99 = vector.load %arg12[%c31_86, %c0_87] : memref<104x128xf32, #tpu.memory_space<vmem>>, vector<8x128xf32>
    tpu.vector_store %arg12[%c31_86, %c0_87], %98 {strides = array<i32>} : memref<104x128xf32, #tpu.memory_space<vmem>>, vector<8x128xf32>,
    %c16_88 = arith.constant 16 : index
    %c0_89 = arith.constant 0 : index
    %100 = vector.load %arg17[%c16_88, %c0_89] : memref<88x128xf32, #tpu.memory_space<vmem>>, vector<8x128xf32>
    tpu.vector_store %arg17[%c16_88, %c0_89], %98 {strides = array<i32>} : memref<88x128xf32, #tpu.memory_space<vmem>>, vector<8x128xf32>,
    %c30 = arith.constant 30 : index
    %c0_90 = arith.constant 0 : index
    %101 = vector.load %arg14[%c30, %c0_90] : memref<80x128xf32, #tpu.memory_space<vmem>>, vector<8x128xf32>
    %c41_91 = arith.constant 41 : index
    %c0_92 = arith.constant 0 : index
    %102 = vector.load %arg12[%c41_91, %c0_92] : memref<104x128xf32, #tpu.memory_space<vmem>>, vector<8x128xf32>
    tpu.vector_store %arg12[%c41_91, %c0_92], %101 {strides = array<i32>} : memref<104x128xf32, #tpu.memory_space<vmem>>, vector<8x128xf32>,
    %c24_93 = arith.constant 24 : index
    %c0_94 = arith.constant 0 : index
    %103 = vector.load %arg17[%c24_93, %c0_94] : memref<88x128xf32, #tpu.memory_space<vmem>>, vector<8x128xf32>
    tpu.vector_store %arg17[%c24_93, %c0_94], %101 {strides = array<i32>} : memref<88x128xf32, #tpu.memory_space<vmem>>, vector<8x128xf32>,
    %c40_95 = arith.constant 40 : index
    %c0_96 = arith.constant 0 : index
    %104 = vector.load %arg14[%c40_95, %c0_96] : memref<80x128xf32, #tpu.memory_space<vmem>>, vector<8x128xf32>
    %c51_97 = arith.constant 51 : index
    %c0_98 = arith.constant 0 : index
    %105 = vector.load %arg12[%c51_97, %c0_98] : memref<104x128xf32, #tpu.memory_space<vmem>>, vector<8x128xf32>
    tpu.vector_store %arg12[%c51_97, %c0_98], %104 {strides = array<i32>} : memref<104x128xf32, #tpu.memory_space<vmem>>, vector<8x128xf32>,
    %c32_99 = arith.constant 32 : index
    %c0_100 = arith.constant 0 : index
    %106 = vector.load %arg17[%c32_99, %c0_100] : memref<88x128xf32, #tpu.memory_space<vmem>>, vector<8x128xf32>
    tpu.vector_store %arg17[%c32_99, %c0_100], %104 {strides = array<i32>} : memref<88x128xf32, #tpu.memory_space<vmem>>, vector<8x128xf32>,
    %c50 = arith.constant 50 : index
    %c0_101 = arith.constant 0 : index
    %107 = vector.load %arg14[%c50, %c0_101] : memref<80x128xf32, #tpu.memory_space<vmem>>, vector<8x128xf32>
    %c61_102 = arith.constant 61 : index
    %c0_103 = arith.constant 0 : index
    %108 = vector.load %arg12[%c61_102, %c0_103] : memref<104x128xf32, #tpu.memory_space<vmem>>, vector<8x128xf32>
    tpu.vector_store %arg12[%c61_102, %c0_103], %107 {strides = array<i32>} : memref<104x128xf32, #tpu.memory_space<vmem>>, vector<8x128xf32>,
    %c40_104 = arith.constant 40 : index
    %c0_105 = arith.constant 0 : index
    %109 = vector.load %arg17[%c40_104, %c0_105] : memref<88x128xf32, #tpu.memory_space<vmem>>, vector<8x128xf32>
    tpu.vector_store %arg17[%c40_104, %c0_105], %107 {strides = array<i32>} : memref<88x128xf32, #tpu.memory_space<vmem>>, vector<8x128xf32>,
    %c60 = arith.constant 60 : index
    %c0_106 = arith.constant 0 : index
    %110 = vector.load %arg14[%c60, %c0_106] : memref<80x128xf32, #tpu.memory_space<vmem>>, vector<8x128xf32>
    %c71_107 = arith.constant 71 : index
    %c0_108 = arith.constant 0 : index
    %111 = vector.load %arg12[%c71_107, %c0_108] : memref<104x128xf32, #tpu.memory_space<vmem>>, vector<8x128xf32>
    tpu.vector_store %arg12[%c71_107, %c0_108], %110 {strides = array<i32>} : memref<104x128xf32, #tpu.memory_space<vmem>>, vector<8x128xf32>,
    %c48_109 = arith.constant 48 : index
    %c0_110 = arith.constant 0 : index
    %112 = vector.load %arg17[%c48_109, %c0_110] : memref<88x128xf32, #tpu.memory_space<vmem>>, vector<8x128xf32>
    tpu.vector_store %arg17[%c48_109, %c0_110], %110 {strides = array<i32>} : memref<88x128xf32, #tpu.memory_space<vmem>>, vector<8x128xf32>,
    %c70 = arith.constant 70 : index
    %c0_111 = arith.constant 0 : index
    %113 = vector.load %arg14[%c70, %c0_111] : memref<80x128xf32, #tpu.memory_space<vmem>>, vector<8x128xf32>
    %c81_112 = arith.constant 81 : index
    %c0_113 = arith.constant 0 : index
    %114 = vector.load %arg12[%c81_112, %c0_113] : memref<104x128xf32, #tpu.memory_space<vmem>>, vector<8x128xf32>
    tpu.vector_store %arg12[%c81_112, %c0_113], %113 {strides = array<i32>} : memref<104x128xf32, #tpu.memory_space<vmem>>, vector<8x128xf32>,
    %c56_114 = arith.constant 56 : index
    %c0_115 = arith.constant 0 : index
    %115 = vector.load %arg17[%c56_114, %c0_115] : memref<88x128xf32, #tpu.memory_space<vmem>>, vector<8x128xf32>
    tpu.vector_store %arg17[%c56_114, %c0_115], %113 {strides = array<i32>} : memref<88x128xf32, #tpu.memory_space<vmem>>, vector<8x128xf32>,
    %cst_116 = arith.constant 0.000000e+00 : f32
    %116 = vector.broadcast %cst_116 : f32 to vector<80x128xf32>
    %c0_117 = arith.constant 0 : index
    %c0_118 = arith.constant 0 : index
    %117 = vector.load %arg12[%c0_117, %c0_118] : memref<104x128xf32, #tpu.memory_space<vmem>>, vector<80x128xf32>
    %118 = arith.truncf %117 : vector<80x128xf32> to vector<80x128xbf16>
    %c0_119 = arith.constant 0 : index
    %c0_120 = arith.constant 0 : index
    %119 = vector.load %arg4[%c0_119, %c0_120] : memref<1152x128xbf16, #tpu.memory_space<vmem>>, vector<128x128xbf16>
    %cst_121 = arith.constant dense<0.000000e+00> : vector<80x128xf32>
    %120 = tpu.matmul %118, %119, %cst_121 {dimension_numbers = #tpu.dot_dimension_numbers<[1], [0], [0], [1], [0, 0, 1, 1], [], []>} : vector<80x128xbf16>, vector<128x128xbf16>, vector<80x128xf32> -> vector<80x128xf32>
    %121 = arith.addf %116, %120 : vector<80x128xf32>
    %c1_122 = arith.constant 1 : index
    %c0_123 = arith.constant 0 : index
    %122 = vector.load %arg12[%c1_122, %c0_123] : memref<104x128xf32, #tpu.memory_space<vmem>>, vector<80x128xf32>
    %123 = arith.truncf %122 : vector<80x128xf32> to vector<80x128xbf16>
    %c128_124 = arith.constant 128 : index
    %c0_125 = arith.constant 0 : index
    %124 = vector.load %arg4[%c128_124, %c0_125] : memref<1152x128xbf16, #tpu.memory_space<vmem>>, vector<128x128xbf16>
    %cst_126 = arith.constant dense<0.000000e+00> : vector<80x128xf32>
    %125 = tpu.matmul %123, %124, %cst_126 {dimension_numbers = #tpu.dot_dimension_numbers<[1], [0], [0], [1], [0, 0, 1, 1], [], []>} : vector<80x128xbf16>, vector<128x128xbf16>, vector<80x128xf32> -> vector<80x128xf32>
    %126 = arith.addf %121, %125 : vector<80x128xf32>
    %c2_127 = arith.constant 2 : index
    %c0_128 = arith.constant 0 : index
    %127 = vector.load %arg12[%c2_127, %c0_128] : memref<104x128xf32, #tpu.memory_space<vmem>>, vector<80x128xf32>
    %128 = arith.truncf %127 : vector<80x128xf32> to vector<80x128xbf16>
    %c256_129 = arith.constant 256 : index
    %c0_130 = arith.constant 0 : index
    %129 = vector.load %arg4[%c256_129, %c0_130] : memref<1152x128xbf16, #tpu.memory_space<vmem>>, vector<128x128xbf16>
    %cst_131 = arith.constant dense<0.000000e+00> : vector<80x128xf32>
    %130 = tpu.matmul %128, %129, %cst_131 {dimension_numbers = #tpu.dot_dimension_numbers<[1], [0], [0], [1], [0, 0, 1, 1], [], []>} : vector<80x128xbf16>, vector<128x128xbf16>, vector<80x128xf32> -> vector<80x128xf32>
    %131 = arith.addf %126, %130 : vector<80x128xf32>
    %c10_132 = arith.constant 10 : index
    %c0_133 = arith.constant 0 : index
    %132 = vector.load %arg12[%c10_132, %c0_133] : memref<104x128xf32, #tpu.memory_space<vmem>>, vector<80x128xf32>
    %133 = arith.truncf %132 : vector<80x128xf32> to vector<80x128xbf16>
    %c384_134 = arith.constant 384 : index
    %c0_135 = arith.constant 0 : index
    %134 = vector.load %arg4[%c384_134, %c0_135] : memref<1152x128xbf16, #tpu.memory_space<vmem>>, vector<128x128xbf16>
    %cst_136 = arith.constant dense<0.000000e+00> : vector<80x128xf32>
    %135 = tpu.matmul %133, %134, %cst_136 {dimension_numbers = #tpu.dot_dimension_numbers<[1], [0], [0], [1], [0, 0, 1, 1], [], []>} : vector<80x128xbf16>, vector<128x128xbf16>, vector<80x128xf32> -> vector<80x128xf32>
    %136 = arith.addf %131, %135 : vector<80x128xf32>
    %c11_137 = arith.constant 11 : index
    %c0_138 = arith.constant 0 : index
    %137 = vector.load %arg12[%c11_137, %c0_138] : memref<104x128xf32, #tpu.memory_space<vmem>>, vector<80x128xf32>
    %138 = arith.truncf %137 : vector<80x128xf32> to vector<80x128xbf16>
    %c512_139 = arith.constant 512 : index
    %c0_140 = arith.constant 0 : index
    %139 = vector.load %arg4[%c512_139, %c0_140] : memref<1152x128xbf16, #tpu.memory_space<vmem>>, vector<128x128xbf16>
    %cst_141 = arith.constant dense<0.000000e+00> : vector<80x128xf32>
    %140 = tpu.matmul %138, %139, %cst_141 {dimension_numbers = #tpu.dot_dimension_numbers<[1], [0], [0], [1], [0, 0, 1, 1], [], []>} : vector<80x128xbf16>, vector<128x128xbf16>, vector<80x128xf32> -> vector<80x128xf32>
    %141 = arith.addf %136, %140 : vector<80x128xf32>
    %c12_142 = arith.constant 12 : index
    %c0_143 = arith.constant 0 : index
    %142 = vector.load %arg12[%c12_142, %c0_143] : memref<104x128xf32, #tpu.memory_space<vmem>>, vector<80x128xf32>
    %143 = arith.truncf %142 : vector<80x128xf32> to vector<80x128xbf16>
    %c640_144 = arith.constant 640 : index
    %c0_145 = arith.constant 0 : index
    %144 = vector.load %arg4[%c640_144, %c0_145] : memref<1152x128xbf16, #tpu.memory_space<vmem>>, vector<128x128xbf16>
    %cst_146 = arith.constant dense<0.000000e+00> : vector<80x128xf32>
    %145 = tpu.matmul %143, %144, %cst_146 {dimension_numbers = #tpu.dot_dimension_numbers<[1], [0], [0], [1], [0, 0, 1, 1], [], []>} : vector<80x128xbf16>, vector<128x128xbf16>, vector<80x128xf32> -> vector<80x128xf32>
    %146 = arith.addf %141, %145 : vector<80x128xf32>
    %c20_147 = arith.constant 20 : index
    %c0_148 = arith.constant 0 : index
    %147 = vector.load %arg12[%c20_147, %c0_148] : memref<104x128xf32, #tpu.memory_space<vmem>>, vector<80x128xf32>
    %148 = arith.truncf %147 : vector<80x128xf32> to vector<80x128xbf16>
    %c768_149 = arith.constant 768 : index
    %c0_150 = arith.constant 0 : index
    %149 = vector.load %arg4[%c768_149, %c0_150] : memref<1152x128xbf16, #tpu.memory_space<vmem>>, vector<128x128xbf16>
    %cst_151 = arith.constant dense<0.000000e+00> : vector<80x128xf32>
    %150 = tpu.matmul %148, %149, %cst_151 {dimension_numbers = #tpu.dot_dimension_numbers<[1], [0], [0], [1], [0, 0, 1, 1], [], []>} : vector<80x128xbf16>, vector<128x128xbf16>, vector<80x128xf32> -> vector<80x128xf32>
    %151 = arith.addf %146, %150 : vector<80x128xf32>
    %c21_152 = arith.constant 21 : index
    %c0_153 = arith.constant 0 : index
    %152 = vector.load %arg12[%c21_152, %c0_153] : memref<104x128xf32, #tpu.memory_space<vmem>>, vector<80x128xf32>
    %153 = arith.truncf %152 : vector<80x128xf32> to vector<80x128xbf16>
    %c896_154 = arith.constant 896 : index
    %c0_155 = arith.constant 0 : index
    %154 = vector.load %arg4[%c896_154, %c0_155] : memref<1152x128xbf16, #tpu.memory_space<vmem>>, vector<128x128xbf16>
    %cst_156 = arith.constant dense<0.000000e+00> : vector<80x128xf32>
    %155 = tpu.matmul %153, %154, %cst_156 {dimension_numbers = #tpu.dot_dimension_numbers<[1], [0], [0], [1], [0, 0, 1, 1], [], []>} : vector<80x128xbf16>, vector<128x128xbf16>, vector<80x128xf32> -> vector<80x128xf32>
    %156 = arith.addf %151, %155 : vector<80x128xf32>
    %c22_157 = arith.constant 22 : index
    %c0_158 = arith.constant 0 : index
    %157 = vector.load %arg12[%c22_157, %c0_158] : memref<104x128xf32, #tpu.memory_space<vmem>>, vector<80x128xf32>
    %158 = arith.truncf %157 : vector<80x128xf32> to vector<80x128xbf16>
    %c1024_159 = arith.constant 1024 : index
    %c0_160 = arith.constant 0 : index
    %159 = vector.load %arg4[%c1024_159, %c0_160] : memref<1152x128xbf16, #tpu.memory_space<vmem>>, vector<128x128xbf16>
    %cst_161 = arith.constant dense<0.000000e+00> : vector<80x128xf32>
    %160 = tpu.matmul %158, %159, %cst_161 {dimension_numbers = #tpu.dot_dimension_numbers<[1], [0], [0], [1], [0, 0, 1, 1], [], []>} : vector<80x128xbf16>, vector<128x128xbf16>, vector<80x128xf32> -> vector<80x128xf32>
    %161 = arith.addf %156, %160 : vector<80x128xf32>
    %c0_162 = arith.constant 0 : index
    %c0_163 = arith.constant 0 : index
    %162 = vector.load %arg5[%c0_162, %c0_163] : memref<1x128xf32, #tpu.memory_space<vmem>>, vector<1x128xf32>
    %163 = vector.broadcast %162 : vector<1x128xf32> to vector<80x128xf32>
    %164 = arith.addf %161, %163 : vector<80x128xf32>
    %cst_164 = arith.constant 0.000000e+00 : f32
    %165 = vector.broadcast %cst_164 : f32 to vector<80x128xf32>
    %166 = arith.maximumf %164, %165 : vector<80x128xf32>
    %c0_165 = arith.constant 0 : index
    %c0_166 = arith.constant 0 : index
    %167 = vector.load %arg15[%c0_165, %c0_166] : memref<80x128xf32, #tpu.memory_space<vmem>>, vector<80x128xf32>
    tpu.vector_store %arg15[%c0_165, %c0_166], %166 {strides = array<i32>} : memref<80x128xf32, #tpu.memory_space<vmem>>, vector<80x128xf32>,
    %c0_167 = arith.constant 0 : index
    %c0_168 = arith.constant 0 : index
    %168 = tpu.strided_load %arg15[%c0_167, %c0_168] {strides = array<i32: 2, 1>} : memref<80x128xf32, #tpu.memory_space<vmem>>, vector<4x128xf32>
    %c7 = arith.constant 7 : index
    %c0_169 = arith.constant 0 : index
    %169 = vector.load %arg13[%c7, %c0_169] : memref<40x128xf32, #tpu.memory_space<vmem>>, vector<4x128xf32>
    tpu.vector_store %arg13[%c7, %c0_169], %168 {strides = array<i32>} : memref<40x128xf32, #tpu.memory_space<vmem>>, vector<4x128xf32>,
    %c64 = arith.constant 64 : index
    %c0_170 = arith.constant 0 : index
    %170 = vector.load %arg17[%c64, %c0_170] : memref<88x128xf32, #tpu.memory_space<vmem>>, vector<4x128xf32>
    tpu.vector_store %arg17[%c64, %c0_170], %168 {strides = array<i32>} : memref<88x128xf32, #tpu.memory_space<vmem>>, vector<4x128xf32>,
    %c20_171 = arith.constant 20 : index
    %c0_172 = arith.constant 0 : index
    %171 = tpu.strided_load %arg15[%c20_171, %c0_172] {strides = array<i32: 2, 1>} : memref<80x128xf32, #tpu.memory_space<vmem>>, vector<4x128xf32>
    %c13 = arith.constant 13 : index
    %c0_173 = arith.constant 0 : index
    %172 = vector.load %arg13[%c13, %c0_173] : memref<40x128xf32, #tpu.memory_space<vmem>>, vector<4x128xf32>
    tpu.vector_store %arg13[%c13, %c0_173], %171 {strides = array<i32>} : memref<40x128xf32, #tpu.memory_space<vmem>>, vector<4x128xf32>,
    %c68 = arith.constant 68 : index
    %c0_174 = arith.constant 0 : index
    %173 = vector.load %arg17[%c68, %c0_174] : memref<88x128xf32, #tpu.memory_space<vmem>>, vector<4x128xf32>
    tpu.vector_store %arg17[%c68, %c0_174], %171 {strides = array<i32>} : memref<88x128xf32, #tpu.memory_space<vmem>>, vector<4x128xf32>,
    %c40_175 = arith.constant 40 : index
    %c0_176 = arith.constant 0 : index
    %174 = tpu.strided_load %arg15[%c40_175, %c0_176] {strides = array<i32: 2, 1>} : memref<80x128xf32, #tpu.memory_space<vmem>>, vector<4x128xf32>
    %c19 = arith.constant 19 : index
    %c0_177 = arith.constant 0 : index
    %175 = vector.load %arg13[%c19, %c0_177] : memref<40x128xf32, #tpu.memory_space<vmem>>, vector<4x128xf32>
    tpu.vector_store %arg13[%c19, %c0_177], %174 {strides = array<i32>} : memref<40x128xf32, #tpu.memory_space<vmem>>, vector<4x128xf32>,
    %c72 = arith.constant 72 : index
    %c0_178 = arith.constant 0 : index
    %176 = vector.load %arg17[%c72, %c0_178] : memref<88x128xf32, #tpu.memory_space<vmem>>, vector<4x128xf32>
    tpu.vector_store %arg17[%c72, %c0_178], %174 {strides = array<i32>} : memref<88x128xf32, #tpu.memory_space<vmem>>, vector<4x128xf32>,
    %c60_179 = arith.constant 60 : index
    %c0_180 = arith.constant 0 : index
    %177 = tpu.strided_load %arg15[%c60_179, %c0_180] {strides = array<i32: 2, 1>} : memref<80x128xf32, #tpu.memory_space<vmem>>, vector<4x128xf32>
    %c25 = arith.constant 25 : index
    %c0_181 = arith.constant 0 : index
    %178 = vector.load %arg13[%c25, %c0_181] : memref<40x128xf32, #tpu.memory_space<vmem>>, vector<4x128xf32>
    tpu.vector_store %arg13[%c25, %c0_181], %177 {strides = array<i32>} : memref<40x128xf32, #tpu.memory_space<vmem>>, vector<4x128xf32>,
    %c76 = arith.constant 76 : index
    %c0_182 = arith.constant 0 : index
    %179 = vector.load %arg17[%c76, %c0_182] : memref<88x128xf32, #tpu.memory_space<vmem>>, vector<4x128xf32>
    tpu.vector_store %arg17[%c76, %c0_182], %177 {strides = array<i32>} : memref<88x128xf32, #tpu.memory_space<vmem>>, vector<4x128xf32>,
    %cst_183 = arith.constant 0.000000e+00 : f32
    %180 = vector.broadcast %cst_183 : f32 to vector<24x128xf32>
    %c0_184 = arith.constant 0 : index
    %c0_185 = arith.constant 0 : index
    %181 = vector.load %arg13[%c0_184, %c0_185] : memref<40x128xf32, #tpu.memory_space<vmem>>, vector<24x128xf32>
    %182 = arith.truncf %181 : vector<24x128xf32> to vector<24x128xbf16>
    %c0_186 = arith.constant 0 : index
    %c0_187 = arith.constant 0 : index
    %183 = vector.load %arg6[%c0_186, %c0_187] : memref<1152x128xbf16, #tpu.memory_space<vmem>>, vector<128x128xbf16>
    %cst_188 = arith.constant dense<0.000000e+00> : vector<24x128xf32>
    %184 = tpu.matmul %182, %183, %cst_188 {dimension_numbers = #tpu.dot_dimension_numbers<[1], [0], [0], [1], [0, 0, 1, 1], [], []>} : vector<24x128xbf16>, vector<128x128xbf16>, vector<24x128xf32> -> vector<24x128xf32>
    %185 = arith.addf %180, %184 : vector<24x128xf32>
    %c1_189 = arith.constant 1 : index
    %c0_190 = arith.constant 0 : index
    %186 = vector.load %arg13[%c1_189, %c0_190] : memref<40x128xf32, #tpu.memory_space<vmem>>, vector<24x128xf32>
    %187 = arith.truncf %186 : vector<24x128xf32> to vector<24x128xbf16>
    %c128_191 = arith.constant 128 : index
    %c0_192 = arith.constant 0 : index
    %188 = vector.load %arg6[%c128_191, %c0_192] : memref<1152x128xbf16, #tpu.memory_space<vmem>>, vector<128x128xbf16>
    %cst_193 = arith.constant dense<0.000000e+00> : vector<24x128xf32>
    %189 = tpu.matmul %187, %188, %cst_193 {dimension_numbers = #tpu.dot_dimension_numbers<[1], [0], [0], [1], [0, 0, 1, 1], [], []>} : vector<24x128xbf16>, vector<128x128xbf16>, vector<24x128xf32> -> vector<24x128xf32>
    %190 = arith.addf %185, %189 : vector<24x128xf32>
    %c2_194 = arith.constant 2 : index
    %c0_195 = arith.constant 0 : index
    %191 = vector.load %arg13[%c2_194, %c0_195] : memref<40x128xf32, #tpu.memory_space<vmem>>, vector<24x128xf32>
    %192 = arith.truncf %191 : vector<24x128xf32> to vector<24x128xbf16>
    %c256_196 = arith.constant 256 : index
    %c0_197 = arith.constant 0 : index
    %193 = vector.load %arg6[%c256_196, %c0_197] : memref<1152x128xbf16, #tpu.memory_space<vmem>>, vector<128x128xbf16>
    %cst_198 = arith.constant dense<0.000000e+00> : vector<24x128xf32>
    %194 = tpu.matmul %192, %193, %cst_198 {dimension_numbers = #tpu.dot_dimension_numbers<[1], [0], [0], [1], [0, 0, 1, 1], [], []>} : vector<24x128xbf16>, vector<128x128xbf16>, vector<24x128xf32> -> vector<24x128xf32>
    %195 = arith.addf %190, %194 : vector<24x128xf32>
    %c6 = arith.constant 6 : index
    %c0_199 = arith.constant 0 : index
    %196 = vector.load %arg13[%c6, %c0_199] : memref<40x128xf32, #tpu.memory_space<vmem>>, vector<24x128xf32>
    %197 = arith.truncf %196 : vector<24x128xf32> to vector<24x128xbf16>
    %c384_200 = arith.constant 384 : index
    %c0_201 = arith.constant 0 : index
    %198 = vector.load %arg6[%c384_200, %c0_201] : memref<1152x128xbf16, #tpu.memory_space<vmem>>, vector<128x128xbf16>
    %cst_202 = arith.constant dense<0.000000e+00> : vector<24x128xf32>
    %199 = tpu.matmul %197, %198, %cst_202 {dimension_numbers = #tpu.dot_dimension_numbers<[1], [0], [0], [1], [0, 0, 1, 1], [], []>} : vector<24x128xbf16>, vector<128x128xbf16>, vector<24x128xf32> -> vector<24x128xf32>
    %200 = arith.addf %195, %199 : vector<24x128xf32>
    %c7_203 = arith.constant 7 : index
    %c0_204 = arith.constant 0 : index
    %201 = vector.load %arg13[%c7_203, %c0_204] : memref<40x128xf32, #tpu.memory_space<vmem>>, vector<24x128xf32>
    %202 = arith.truncf %201 : vector<24x128xf32> to vector<24x128xbf16>
    %c512_205 = arith.constant 512 : index
    %c0_206 = arith.constant 0 : index
    %203 = vector.load %arg6[%c512_205, %c0_206] : memref<1152x128xbf16, #tpu.memory_space<vmem>>, vector<128x128xbf16>
    %cst_207 = arith.constant dense<0.000000e+00> : vector<24x128xf32>
    %204 = tpu.matmul %202, %203, %cst_207 {dimension_numbers = #tpu.dot_dimension_numbers<[1], [0], [0], [1], [0, 0, 1, 1], [], []>} : vector<24x128xbf16>, vector<128x128xbf16>, vector<24x128xf32> -> vector<24x128xf32>
    %205 = arith.addf %200, %204 : vector<24x128xf32>
    %c8_208 = arith.constant 8 : index
    %c0_209 = arith.constant 0 : index
    %206 = vector.load %arg13[%c8_208, %c0_209] : memref<40x128xf32, #tpu.memory_space<vmem>>, vector<24x128xf32>
    %207 = arith.truncf %206 : vector<24x128xf32> to vector<24x128xbf16>
    %c640_210 = arith.constant 640 : index
    %c0_211 = arith.constant 0 : index
    %208 = vector.load %arg6[%c640_210, %c0_211] : memref<1152x128xbf16, #tpu.memory_space<vmem>>, vector<128x128xbf16>
    %cst_212 = arith.constant dense<0.000000e+00> : vector<24x128xf32>
    %209 = tpu.matmul %207, %208, %cst_212 {dimension_numbers = #tpu.dot_dimension_numbers<[1], [0], [0], [1], [0, 0, 1, 1], [], []>} : vector<24x128xbf16>, vector<128x128xbf16>, vector<24x128xf32> -> vector<24x128xf32>
    %210 = arith.addf %205, %209 : vector<24x128xf32>
    %c12_213 = arith.constant 12 : index
    %c0_214 = arith.constant 0 : index
    %211 = vector.load %arg13[%c12_213, %c0_214] : memref<40x128xf32, #tpu.memory_space<vmem>>, vector<24x128xf32>
    %212 = arith.truncf %211 : vector<24x128xf32> to vector<24x128xbf16>
    %c768_215 = arith.constant 768 : index
    %c0_216 = arith.constant 0 : index
    %213 = vector.load %arg6[%c768_215, %c0_216] : memref<1152x128xbf16, #tpu.memory_space<vmem>>, vector<128x128xbf16>
    %cst_217 = arith.constant dense<0.000000e+00> : vector<24x128xf32>
    %214 = tpu.matmul %212, %213, %cst_217 {dimension_numbers = #tpu.dot_dimension_numbers<[1], [0], [0], [1], [0, 0, 1, 1], [], []>} : vector<24x128xbf16>, vector<128x128xbf16>, vector<24x128xf32> -> vector<24x128xf32>
    %215 = arith.addf %210, %214 : vector<24x128xf32>
    %c13_218 = arith.constant 13 : index
    %c0_219 = arith.constant 0 : index
    %216 = vector.load %arg13[%c13_218, %c0_219] : memref<40x128xf32, #tpu.memory_space<vmem>>, vector<24x128xf32>
    %217 = arith.truncf %216 : vector<24x128xf32> to vector<24x128xbf16>
    %c896_220 = arith.constant 896 : index
    %c0_221 = arith.constant 0 : index
    %218 = vector.load %arg6[%c896_220, %c0_221] : memref<1152x128xbf16, #tpu.memory_space<vmem>>, vector<128x128xbf16>
    %cst_222 = arith.constant dense<0.000000e+00> : vector<24x128xf32>
    %219 = tpu.matmul %217, %218, %cst_222 {dimension_numbers = #tpu.dot_dimension_numbers<[1], [0], [0], [1], [0, 0, 1, 1], [], []>} : vector<24x128xbf16>, vector<128x128xbf16>, vector<24x128xf32> -> vector<24x128xf32>
    %220 = arith.addf %215, %219 : vector<24x128xf32>
    %c14 = arith.constant 14 : index
    %c0_223 = arith.constant 0 : index
    %221 = vector.load %arg13[%c14, %c0_223] : memref<40x128xf32, #tpu.memory_space<vmem>>, vector<24x128xf32>
    %222 = arith.truncf %221 : vector<24x128xf32> to vector<24x128xbf16>
    %c1024_224 = arith.constant 1024 : index
    %c0_225 = arith.constant 0 : index
    %223 = vector.load %arg6[%c1024_224, %c0_225] : memref<1152x128xbf16, #tpu.memory_space<vmem>>, vector<128x128xbf16>
    %cst_226 = arith.constant dense<0.000000e+00> : vector<24x128xf32>
    %224 = tpu.matmul %222, %223, %cst_226 {dimension_numbers = #tpu.dot_dimension_numbers<[1], [0], [0], [1], [0, 0, 1, 1], [], []>} : vector<24x128xbf16>, vector<128x128xbf16>, vector<24x128xf32> -> vector<24x128xf32>
    %225 = arith.addf %220, %224 : vector<24x128xf32>
    %c0_227 = arith.constant 0 : index
    %c0_228 = arith.constant 0 : index
    %226 = vector.load %arg7[%c0_227, %c0_228] : memref<1x128xf32, #tpu.memory_space<vmem>>, vector<1x128xf32>
    %227 = vector.broadcast %226 : vector<1x128xf32> to vector<24x128xf32>
    %228 = arith.addf %225, %227 : vector<24x128xf32>
    %cst_229 = arith.constant 0.000000e+00 : f32
    %229 = vector.broadcast %cst_229 : f32 to vector<24x128xf32>
    %230 = arith.maximumf %228, %229 : vector<24x128xf32>
    %c0_230 = arith.constant 0 : index
    %c0_231 = arith.constant 0 : index
    %231 = vector.load %arg16[%c0_230, %c0_231] : memref<24x128xf32, #tpu.memory_space<vmem>>, vector<24x128xf32>
    tpu.vector_store %arg16[%c0_230, %c0_231], %230 {strides = array<i32>} : memref<24x128xf32, #tpu.memory_space<vmem>>, vector<24x128xf32>,
    %c0_232 = arith.constant 0 : index
    %c0_233 = arith.constant 0 : index
    %232 = tpu.strided_load %arg16[%c0_232, %c0_233] {strides = array<i32: 2, 1>} : memref<24x128xf32, #tpu.memory_space<vmem>>, vector<2x128xf32>
    %c80 = arith.constant 80 : index
    %c0_234 = arith.constant 0 : index
    %233 = vector.load %arg17[%c80, %c0_234] : memref<88x128xf32, #tpu.memory_space<vmem>>, vector<2x128xf32>
    tpu.vector_store %arg17[%c80, %c0_234], %232 {strides = array<i32>} : memref<88x128xf32, #tpu.memory_space<vmem>>, vector<2x128xf32>,
    %c12_235 = arith.constant 12 : index
    %c0_236 = arith.constant 0 : index
    %234 = tpu.strided_load %arg16[%c12_235, %c0_236] {strides = array<i32: 2, 1>} : memref<24x128xf32, #tpu.memory_space<vmem>>, vector<2x128xf32>
    %c82 = arith.constant 82 : index
    %c0_237 = arith.constant 0 : index
    %235 = vector.load %arg17[%c82, %c0_237] : memref<88x128xf32, #tpu.memory_space<vmem>>, vector<2x128xf32>
    tpu.vector_store %arg17[%c82, %c0_237], %234 {strides = array<i32>} : memref<88x128xf32, #tpu.memory_space<vmem>>, vector<2x128xf32>,
    %c0_238 = arith.constant 0 : index
    %c0_239 = arith.constant 0 : index
    %236 = vector.load %arg17[%c0_238, %c0_239] : memref<88x128xf32, #tpu.memory_space<vmem>>, vector<88x128xf32>
    %237 = arith.truncf %236 : vector<88x128xf32> to vector<88x128xbf16>
    %c0_240 = arith.constant 0 : index
    %c0_241 = arith.constant 0 : index
    %238 = vector.load %arg8[%c0_240, %c0_241] : memref<128x128xbf16, #tpu.memory_space<vmem>>, vector<128x128xbf16>
    %cst_242 = arith.constant dense<0.000000e+00> : vector<88x128xf32>
    %239 = tpu.matmul %237, %238, %cst_242 {dimension_numbers = #tpu.dot_dimension_numbers<[1], [0], [0], [1], [0, 0, 1, 1], [], []>} : vector<88x128xbf16>, vector<128x128xbf16>, vector<88x128xf32> -> vector<88x128xf32>
    %c0_243 = arith.constant 0 : index
    %c0_244 = arith.constant 0 : index
    %240 = vector.load %arg9[%c0_243, %c0_244] : memref<1x128xf32, #tpu.memory_space<vmem>>, vector<1x128xf32>
    %241 = vector.broadcast %240 : vector<1x128xf32> to vector<88x128xf32>
    %242 = arith.addf %239, %241 : vector<88x128xf32>
    %c0_245 = arith.constant 0 : index
    %c0_246 = arith.constant 0 : index
    %c0_247 = arith.constant 0 : index
    %243 = vector.load %arg10[%c0_245, %c0_246, %c0_247] : memref<1x88x128xf32, #tpu.memory_space<vmem>>, vector<1x88x128xf32>
    %244 = vector.shape_cast %243 : vector<1x88x128xf32> to vector<88x128xf32>
    %245 = vector.shape_cast %242 : vector<88x128xf32> to vector<1x88x128xf32>
    tpu.vector_store %arg10[%c0_245, %c0_246, %c0_247], %245 {strides = array<i32>} : memref<1x88x128xf32, #tpu.memory_space<vmem>>, vector<1x88x128xf32>,
    return
  }
  func.func @transform_0(%arg0: i32) -> (i32, i32, i32) {
    %c0_i32 = arith.constant 0 : i32
    %c0_i32_0 = arith.constant 0 : i32
    %c0_i32_1 = arith.constant 0 : i32
    return %arg0, %c0_i32, %c0_i32_0 : i32, i32, i32
  }
  func.func @transform_1(%arg0: i32) -> (i32, i32) {
    %c0_i32 = arith.constant 0 : i32
    %c0_i32_0 = arith.constant 0 : i32
    %c0_i32_1 = arith.constant 0 : i32
    return %c0_i32, %c0_i32_0 : i32, i32
  }
  func.func @transform_2(%arg0: i32) -> (i32, i32) {
    %c0_i32 = arith.constant 0 : i32
    %c0_i32_0 = arith.constant 0 : i32
    %c0_i32_1 = arith.constant 0 : i32
    return %c0_i32, %c0_i32_0 : i32, i32
  }
  func.func @transform_3(%arg0: i32) -> (i32, i32) {
    %c0_i32 = arith.constant 0 : i32
    %c0_i32_0 = arith.constant 0 : i32
    %c0_i32_1 = arith.constant 0 : i32
    return %c0_i32, %c0_i32_0 : i32, i32
  }
  func.func @transform_4(%arg0: i32) -> (i32, i32) {
    %c0_i32 = arith.constant 0 : i32
    %c0_i32_0 = arith.constant 0 : i32
    %c0_i32_1 = arith.constant 0 : i32
    return %c0_i32, %c0_i32_0 : i32, i32
  }
  func.func @transform_5(%arg0: i32) -> (i32, i32) {
    %c0_i32 = arith.constant 0 : i32
    %c0_i32_0 = arith.constant 0 : i32
    %c0_i32_1 = arith.constant 0 : i32
    return %c0_i32, %c0_i32_0 : i32, i32
  }
  func.func @transform_6(%arg0: i32) -> (i32, i32) {
    %c0_i32 = arith.constant 0 : i32
    %c0_i32_0 = arith.constant 0 : i32
    %c0_i32_1 = arith.constant 0 : i32
    return %c0_i32, %c0_i32_0 : i32, i32
  }
  func.func @transform_7(%arg0: i32) -> (i32, i32) {
    %c0_i32 = arith.constant 0 : i32
    %c0_i32_0 = arith.constant 0 : i32
    %c0_i32_1 = arith.constant 0 : i32
    return %c0_i32, %c0_i32_0 : i32, i32
  }
  func.func @transform_8(%arg0: i32) -> (i32, i32) {
    %c0_i32 = arith.constant 0 : i32
    %c0_i32_0 = arith.constant 0 : i32
    %c0_i32_1 = arith.constant 0 : i32
    return %c0_i32, %c0_i32_0 : i32, i32
  }
  func.func @transform_9(%arg0: i32) -> (i32, i32, i32) {
    %c0_i32 = arith.constant 0 : i32
    %c0_i32_0 = arith.constant 0 : i32
    %c0_i32_1 = arith.constant 0 : i32
    return %arg0, %c0_i32, %c0_i32_0 : i32, i32, i32
  }
}

module attributes {stable_mosaic.version = 11 : i64} {
  func.func @_linear_kernel(%arg0: i32, %arg1: memref<256x128xf32, #tpu.memory_space<vmem>>, %arg2: memref<128x128xbf16, #tpu.memory_space<vmem>>, %arg3: memref<1x128xf32, #tpu.memory_space<vmem>>, %arg4: memref<256x128xbf16, #tpu.memory_space<vmem>>) attributes {dimension_semantics = [#tpu.dimension_semantics<parallel>], iteration_bounds = array<i64: 2>, scalar_prefetch = 0 : i64, scratch_operands = 0 : i64, tpu.core_type = #tpu.core_type<tc>, window_params = [{transform_indices = @transform_0, window_bounds = array<i64: 256, 128>}, {pipeline_mode = #tpu.pipeline_mode<synchronous>, transform_indices = @transform_1, window_bounds = array<i64: 128, 128>}, {pipeline_mode = #tpu.pipeline_mode<synchronous>, transform_indices = @transform_2, window_bounds = array<i64: 1, 128>}, {transform_indices = @transform_3, window_bounds = array<i64: 256, 128>}]} {
    %c0 = arith.constant 0 : index
    %c0_0 = arith.constant 0 : index
    %0 = vector.load %arg1[%c0, %c0_0] : memref<256x128xf32, #tpu.memory_space<vmem>>, vector<256x128xf32>
    %1 = arith.truncf %0 : vector<256x128xf32> to vector<256x128xbf16>
    %c0_1 = arith.constant 0 : index
    %c0_2 = arith.constant 0 : index
    %2 = vector.load %arg2[%c0_1, %c0_2] : memref<128x128xbf16, #tpu.memory_space<vmem>>, vector<128x128xbf16>
    %cst = arith.constant dense<0.000000e+00> : vector<256x128xf32>
    %3 = tpu.matmul %1, %2, %cst {dimension_numbers = #tpu.dot_dimension_numbers<[1], [0], [0], [1], [0, 0, 1, 1], [], []>} : vector<256x128xbf16>, vector<128x128xbf16>, vector<256x128xf32> -> vector<256x128xf32>
    %c0_3 = arith.constant 0 : index
    %c0_4 = arith.constant 0 : index
    %4 = vector.load %arg3[%c0_3, %c0_4] : memref<1x128xf32, #tpu.memory_space<vmem>>, vector<1x128xf32>
    %5 = vector.broadcast %4 : vector<1x128xf32> to vector<256x128xf32>
    %6 = arith.addf %3, %5 : vector<256x128xf32>
    %cst_5 = arith.constant 0.000000e+00 : f32
    %7 = vector.broadcast %cst_5 : f32 to vector<256x128xf32>
    %8 = arith.maximumf %6, %7 : vector<256x128xf32>
    %9 = arith.truncf %8 : vector<256x128xf32> to vector<256x128xbf16>
    %c0_6 = arith.constant 0 : index
    %c0_7 = arith.constant 0 : index
    %10 = vector.load %arg4[%c0_6, %c0_7] : memref<256x128xbf16, #tpu.memory_space<vmem>>, vector<256x128xbf16>
    tpu.vector_store %arg4[%c0_6, %c0_7], %9 {strides = array<i32>} : memref<256x128xbf16, #tpu.memory_space<vmem>>, vector<256x128xbf16>,
    return
  }
  func.func @transform_0(%arg0: i32) -> (i32, i32) {
    %c0_i32 = arith.constant 0 : i32
    %c0_i32_0 = arith.constant 0 : i32
    return %arg0, %c0_i32 : i32, i32
  }
  func.func @transform_1(%arg0: i32) -> (i32, i32) {
    %c0_i32 = arith.constant 0 : i32
    %c0_i32_0 = arith.constant 0 : i32
    %c0_i32_1 = arith.constant 0 : i32
    return %c0_i32, %c0_i32_0 : i32, i32
  }
  func.func @transform_2(%arg0: i32) -> (i32, i32) {
    %c0_i32 = arith.constant 0 : i32
    %c0_i32_0 = arith.constant 0 : i32
    %c0_i32_1 = arith.constant 0 : i32
    return %c0_i32, %c0_i32_0 : i32, i32
  }
  func.func @transform_3(%arg0: i32) -> (i32, i32) {
    %c0_i32 = arith.constant 0 : i32
    %c0_i32_0 = arith.constant 0 : i32
    return %arg0, %c0_i32 : i32, i32
  }
}

module attributes {stable_mosaic.version = 11 : i64} {
  func.func @_gap_fc_kernel(%arg0: i32, %arg1: memref<4x64x128xbf16, #tpu.memory_space<vmem>>, %arg2: memref<128x128xbf16, #tpu.memory_space<vmem>>, %arg3: memref<1x128xf32, #tpu.memory_space<vmem>>, %arg4: memref<4x1x128xf32, #tpu.memory_space<vmem>>, %arg5: memref<4x1x128xf32, #tpu.memory_space<vmem>>) attributes {dimension_semantics = [#tpu.dimension_semantics<parallel>], iteration_bounds = array<i64: 2>, scalar_prefetch = 0 : i64, scratch_operands = 0 : i64, tpu.core_type = #tpu.core_type<tc>, window_params = [{transform_indices = @transform_0, window_bounds = array<i64: 4, 64, 128>}, {pipeline_mode = #tpu.pipeline_mode<synchronous>, transform_indices = @transform_1, window_bounds = array<i64: 128, 128>}, {pipeline_mode = #tpu.pipeline_mode<synchronous>, transform_indices = @transform_2, window_bounds = array<i64: 1, 128>}, {transform_indices = @transform_3, window_bounds = array<i64: 4, 1, 128>}, {transform_indices = @transform_4, window_bounds = array<i64: 4, 1, 128>}]} {
    %c0 = arith.constant 0 : index
    %c0_0 = arith.constant 0 : index
    %c0_1 = arith.constant 0 : index
    %0 = vector.load %arg1[%c0, %c0_0, %c0_1] : memref<4x64x128xbf16, #tpu.memory_space<vmem>>, vector<4x64x128xbf16>
    %1 = arith.extf %0 : vector<4x64x128xbf16> to vector<4x64x128xf32>
    %cst = arith.constant dense<0.000000e+00> : vector<4x128xf32>
    %2 = vector.multi_reduction <add>, %1, %cst [1] : vector<4x64x128xf32> to vector<4x128xf32>
    %cst_2 = arith.constant 6.400000e+01 : f32
    %3 = vector.broadcast %cst_2 : f32 to vector<4x128xf32>
    %4 = arith.divf %2, %3 : vector<4x128xf32>
    %c0_3 = arith.constant 0 : index
    %c0_4 = arith.constant 0 : index
    %c0_5 = arith.constant 0 : index
    %5 = vector.load %arg4[%c0_3, %c0_4, %c0_5] : memref<4x1x128xf32, #tpu.memory_space<vmem>>, vector<4x1x128xf32>
    %6 = vector.shape_cast %5 : vector<4x1x128xf32> to vector<4x128xf32>
    %7 = vector.shape_cast %4 : vector<4x128xf32> to vector<4x1x128xf32>
    tpu.vector_store %arg4[%c0_3, %c0_4, %c0_5], %7 {strides = array<i32>} : memref<4x1x128xf32, #tpu.memory_space<vmem>>, vector<4x1x128xf32>,
    %8 = arith.truncf %4 : vector<4x128xf32> to vector<4x128xbf16>
    %c0_6 = arith.constant 0 : index
    %c0_7 = arith.constant 0 : index
    %9 = vector.load %arg2[%c0_6, %c0_7] : memref<128x128xbf16, #tpu.memory_space<vmem>>, vector<128x128xbf16>
    %cst_8 = arith.constant dense<0.000000e+00> : vector<4x128xf32>
    %10 = tpu.matmul %8, %9, %cst_8 {dimension_numbers = #tpu.dot_dimension_numbers<[1], [0], [0], [1], [0, 0, 1, 1], [], []>} : vector<4x128xbf16>, vector<128x128xbf16>, vector<4x128xf32> -> vector<4x128xf32>
    %c0_9 = arith.constant 0 : index
    %c0_10 = arith.constant 0 : index
    %11 = vector.load %arg3[%c0_9, %c0_10] : memref<1x128xf32, #tpu.memory_space<vmem>>, vector<1x128xf32>
    %12 = vector.broadcast %11 : vector<1x128xf32> to vector<4x128xf32>
    %13 = arith.addf %10, %12 : vector<4x128xf32>
    %c0_11 = arith.constant 0 : index
    %c0_12 = arith.constant 0 : index
    %c0_13 = arith.constant 0 : index
    %14 = vector.load %arg5[%c0_11, %c0_12, %c0_13] : memref<4x1x128xf32, #tpu.memory_space<vmem>>, vector<4x1x128xf32>
    %15 = vector.shape_cast %14 : vector<4x1x128xf32> to vector<4x128xf32>
    %16 = vector.shape_cast %13 : vector<4x128xf32> to vector<4x1x128xf32>
    tpu.vector_store %arg5[%c0_11, %c0_12, %c0_13], %16 {strides = array<i32>} : memref<4x1x128xf32, #tpu.memory_space<vmem>>, vector<4x1x128xf32>,
    return
  }
  func.func @transform_0(%arg0: i32) -> (i32, i32, i32) {
    %c0_i32 = arith.constant 0 : i32
    %c0_i32_0 = arith.constant 0 : i32
    %c0_i32_1 = arith.constant 0 : i32
    return %arg0, %c0_i32, %c0_i32_0 : i32, i32, i32
  }
  func.func @transform_1(%arg0: i32) -> (i32, i32) {
    %c0_i32 = arith.constant 0 : i32
    %c0_i32_0 = arith.constant 0 : i32
    %c0_i32_1 = arith.constant 0 : i32
    return %c0_i32, %c0_i32_0 : i32, i32
  }
  func.func @transform_2(%arg0: i32) -> (i32, i32) {
    %c0_i32 = arith.constant 0 : i32
    %c0_i32_0 = arith.constant 0 : i32
    %c0_i32_1 = arith.constant 0 : i32
    return %c0_i32, %c0_i32_0 : i32, i32
  }
  func.func @transform_3(%arg0: i32) -> (i32, i32, i32) {
    %c0_i32 = arith.constant 0 : i32
    %c0_i32_0 = arith.constant 0 : i32
    %c0_i32_1 = arith.constant 0 : i32
    return %arg0, %c0_i32, %c0_i32_0 : i32, i32, i32
  }
  func.func @transform_4(%arg0: i32) -> (i32, i32, i32) {
    %c0_i32 = arith.constant 0 : i32
    %c0_i32_0 = arith.constant 0 : i32
    %c0_i32_1 = arith.constant 0 : i32
    return %arg0, %c0_i32, %c0_i32_0 : i32, i32, i32
  }
}

module attributes {stable_mosaic.version = 11 : i64} {
  func.func @_linear_kernel(%arg0: i32, %arg1: memref<2x640xf32, #tpu.memory_space<vmem>>, %arg2: memref<640x128xbf16, #tpu.memory_space<vmem>>, %arg3: memref<1x128xf32, #tpu.memory_space<vmem>>, %arg4: memref<2x128xf32, #tpu.memory_space<vmem>>) attributes {dimension_semantics = [#tpu.dimension_semantics<parallel>], iteration_bounds = array<i64: 1>, scalar_prefetch = 0 : i64, scratch_operands = 0 : i64, tpu.core_type = #tpu.core_type<tc>, window_params = [{transform_indices = @transform_0, window_bounds = array<i64: 2, 640>}, {pipeline_mode = #tpu.pipeline_mode<synchronous>, transform_indices = @transform_1, window_bounds = array<i64: 640, 128>}, {pipeline_mode = #tpu.pipeline_mode<synchronous>, transform_indices = @transform_2, window_bounds = array<i64: 1, 128>}, {transform_indices = @transform_3, window_bounds = array<i64: 2, 128>}]} {
    %c0 = arith.constant 0 : index
    %c0_0 = arith.constant 0 : index
    %0 = vector.load %arg1[%c0, %c0_0] : memref<2x640xf32, #tpu.memory_space<vmem>>, vector<2x640xf32>
    %1 = arith.truncf %0 : vector<2x640xf32> to vector<2x640xbf16>
    %c0_1 = arith.constant 0 : index
    %c0_2 = arith.constant 0 : index
    %2 = vector.load %arg2[%c0_1, %c0_2] : memref<640x128xbf16, #tpu.memory_space<vmem>>, vector<640x128xbf16>
    %cst = arith.constant dense<0.000000e+00> : vector<2x128xf32>
    %3 = tpu.matmul %1, %2, %cst {dimension_numbers = #tpu.dot_dimension_numbers<[1], [0], [0], [1], [0, 0, 1, 1], [], []>} : vector<2x640xbf16>, vector<640x128xbf16>, vector<2x128xf32> -> vector<2x128xf32>
    %c0_3 = arith.constant 0 : index
    %c0_4 = arith.constant 0 : index
    %4 = vector.load %arg3[%c0_3, %c0_4] : memref<1x128xf32, #tpu.memory_space<vmem>>, vector<1x128xf32>
    %5 = vector.broadcast %4 : vector<1x128xf32> to vector<2x128xf32>
    %6 = arith.addf %3, %5 : vector<2x128xf32>
    %c0_5 = arith.constant 0 : index
    %c0_6 = arith.constant 0 : index
    %7 = vector.load %arg4[%c0_5, %c0_6] : memref<2x128xf32, #tpu.memory_space<vmem>>, vector<2x128xf32>
    tpu.vector_store %arg4[%c0_5, %c0_6], %6 {strides = array<i32>} : memref<2x128xf32, #tpu.memory_space<vmem>>, vector<2x128xf32>,
    return
  }
  func.func @transform_0(%arg0: i32) -> (i32, i32) {
    %c0_i32 = arith.constant 0 : i32
    %c0_i32_0 = arith.constant 0 : i32
    return %arg0, %c0_i32 : i32, i32
  }
  func.func @transform_1(%arg0: i32) -> (i32, i32) {
    %c0_i32 = arith.constant 0 : i32
    %c0_i32_0 = arith.constant 0 : i32
    %c0_i32_1 = arith.constant 0 : i32
    return %c0_i32, %c0_i32_0 : i32, i32
  }
  func.func @transform_2(%arg0: i32) -> (i32, i32) {
    %c0_i32 = arith.constant 0 : i32
    %c0_i32_0 = arith.constant 0 : i32
    %c0_i32_1 = arith.constant 0 : i32
    return %c0_i32, %c0_i32_0 : i32, i32
  }
  func.func @transform_3(%arg0: i32) -> (i32, i32) {
    %c0_i32 = arith.constant 0 : i32
    %c0_i32_0 = arith.constant 0 : i32
    return %arg0, %c0_i32 : i32, i32
  }
}

module attributes {stable_mosaic.version = 11 : i64} {
  func.func @_linear_kernel(%arg0: i32, %arg1: memref<8x128xf32, #tpu.memory_space<vmem>>, %arg2: memref<128x128xbf16, #tpu.memory_space<vmem>>, %arg3: memref<1x128xf32, #tpu.memory_space<vmem>>, %arg4: memref<8x128xf32, #tpu.memory_space<vmem>>) attributes {dimension_semantics = [#tpu.dimension_semantics<parallel>], iteration_bounds = array<i64: 1>, scalar_prefetch = 0 : i64, scratch_operands = 0 : i64, tpu.core_type = #tpu.core_type<tc>, window_params = [{transform_indices = @transform_0, window_bounds = array<i64: 8, 128>}, {pipeline_mode = #tpu.pipeline_mode<synchronous>, transform_indices = @transform_1, window_bounds = array<i64: 128, 128>}, {pipeline_mode = #tpu.pipeline_mode<synchronous>, transform_indices = @transform_2, window_bounds = array<i64: 1, 128>}, {transform_indices = @transform_3, window_bounds = array<i64: 8, 128>}]} {
    %c0 = arith.constant 0 : index
    %c0_0 = arith.constant 0 : index
    %0 = vector.load %arg1[%c0, %c0_0] : memref<8x128xf32, #tpu.memory_space<vmem>>, vector<8x128xf32>
    %1 = arith.truncf %0 : vector<8x128xf32> to vector<8x128xbf16>
    %c0_1 = arith.constant 0 : index
    %c0_2 = arith.constant 0 : index
    %2 = vector.load %arg2[%c0_1, %c0_2] : memref<128x128xbf16, #tpu.memory_space<vmem>>, vector<128x128xbf16>
    %cst = arith.constant dense<0.000000e+00> : vector<8x128xf32>
    %3 = tpu.matmul %1, %2, %cst {dimension_numbers = #tpu.dot_dimension_numbers<[1], [0], [0], [1], [0, 0, 1, 1], [], []>} : vector<8x128xbf16>, vector<128x128xbf16>, vector<8x128xf32> -> vector<8x128xf32>
    %c0_3 = arith.constant 0 : index
    %c0_4 = arith.constant 0 : index
    %4 = vector.load %arg3[%c0_3, %c0_4] : memref<1x128xf32, #tpu.memory_space<vmem>>, vector<1x128xf32>
    %5 = vector.broadcast %4 : vector<1x128xf32> to vector<8x128xf32>
    %6 = arith.addf %3, %5 : vector<8x128xf32>
    %c0_5 = arith.constant 0 : index
    %c0_6 = arith.constant 0 : index
    %7 = vector.load %arg4[%c0_5, %c0_6] : memref<8x128xf32, #tpu.memory_space<vmem>>, vector<8x128xf32>
    tpu.vector_store %arg4[%c0_5, %c0_6], %6 {strides = array<i32>} : memref<8x128xf32, #tpu.memory_space<vmem>>, vector<8x128xf32>,
    return
  }
  func.func @transform_0(%arg0: i32) -> (i32, i32) {
    %c0_i32 = arith.constant 0 : i32
    %c0_i32_0 = arith.constant 0 : i32
    return %arg0, %c0_i32 : i32, i32
  }
  func.func @transform_1(%arg0: i32) -> (i32, i32) {
    %c0_i32 = arith.constant 0 : i32
    %c0_i32_0 = arith.constant 0 : i32
    %c0_i32_1 = arith.constant 0 : i32
    return %c0_i32, %c0_i32_0 : i32, i32
  }
  func.func @transform_2(%arg0: i32) -> (i32, i32) {
    %c0_i32 = arith.constant 0 : i32
    %c0_i32_0 = arith.constant 0 : i32
    %c0_i32_1 = arith.constant 0 : i32
    return %c0_i32, %c0_i32_0 : i32, i32
  }
  func.func @transform_3(%arg0: i32) -> (i32, i32) {
    %c0_i32 = arith.constant 0 : i32
    %c0_i32_0 = arith.constant 0 : i32
    return %arg0, %c0_i32 : i32, i32
  }
}

</mosaic_0001>

<llo_original>
// kernel: custom-call.24
$region0: #{custom-call.24}
  %s0 = inlined_call_operand.vmem [shape: s32[4,2], index: 0, kind: output, shape index: {}]

// kernel: attention_net_forward.7
$region0: #{attention_net_forward.7}
  #allocation0 [shape = 'u32[]', space=smem, size = 0x4, offset = 0x4, fixed_abs, tag = 'smem constant byte address 0x4 - core index']
  #allocation1 [shape = 'u32[144,128]{1,0:T(1,128)}', space=vmem, size = 0x12000, scoped, tag = 'internal scratch']
  %s0 = inlined_call_operand.vmem [shape: f32[128,128], index: 0, kind: input, shape index: {}]
  %s1 = inlined_call_operand.vmem [shape: bf16[128,128], index: 1, kind: input, shape index: {}]
  %s2 = inlined_call_operand.vmem [shape: f32[1,128], index: 2, kind: input, shape index: {}]
  %s3 = inlined_call_operand.vmem [shape: bf16[128,128], index: 3, kind: output, shape index: {}]
  %s4 = sld [smem:[#allocation0]]
  $region45: #{attention_net_forward.7} parent=0
    _
  %s6 = ssub.s32 1, %s4
  %s7 = scalar_select 0, %s6, %s4
  loop: start=0, step=1, limit=4
  $region2: #{attention_net_forward.7} parent=0 // loop_pre_header
    _
  $region3: #{attention_net_forward.7} parent=0 // loop_header
    %s9 = sphi 0, %s13
    %p10 = scmp.ge.s32.totalorder %s9, 4
    %s19 = sphi 0, %s21
    %s22 = sphi 0, %s19
    %s23 = sphi 0, %s22
    %s39 = sphi 0, %s23
    %s43 = sphi 0, %s43
    %s45 = sphi 0, %s43
    %s46 = sphi 0, %s45
    %s60 = sphi 0, %s46
    %s64 = sphi 0, %s64
    %s66 = sphi 0, %s64
    %s67 = sphi 0, %s66
    %s81 = sphi 0, %s67
    %s87 = sphi 0, %s89
    %s90 = sphi 0, %s87
    %s91 = sphi 0, %s90
    %s107 = sphi 0, %s91
  $region4: #{attention_net_forward.7} parent=0 // loop_header_branch
    %12 = sbr.rel (%p10) target = $region8
  $region5: #{attention_net_forward.7} parent=0 // loop_body
    %s14 = ssub.s32 %s9, 1
    %s15 = ssub.s32 %s9, 2
    %s16 = sadd.s32 %s9, 1
    %s17 = ssub.s32 %s9, %s16
    %p18 = scmp.eq.s32.totalorder %s17, 0
    %s20 = sadd.s32 %s19, 1
    %s21 = scalar_select %p18, %s19, %s20
    %p24 = pneg %p18
    %p25 = scmp.eq.s32.totalorder %s9, 1
    %p26 = por %p24, %p25
    %p27 = scmp.ne.s32.totalorder %s19, %s22
    %p28 = scmp.eq.s32.totalorder %s9, 0
    %p29 = por %p27, %p28
    %p30 = scmp.ne.s32.totalorder %s19, %s22
    %p31 = scmp.eq.s32.totalorder %s14, 1
    %p32 = por %p30, %p31
    %p33 = scmp.ne.s32.totalorder %s22, %s23
    %p34 = scmp.eq.s32.totalorder %s14, 0
    %p35 = por %p33, %p34
    %p36 = scmp.ne.s32.totalorder %s22, %s23
    %p37 = scmp.eq.s32.totalorder %s15, 1
    %p38 = por %p36, %p37
    %p40 = scmp.ne.s32.totalorder %s23, %s39
    %p41 = scmp.eq.s32.totalorder %s15, 0
    %p42 = por %p40, %p41
    %s44 = sadd.s32 %s43, 1
    %p47 = scmp.eq.s32.totalorder %s9, 1
    %p48 = scmp.ne.s32.totalorder %s43, %s45
    %p49 = scmp.eq.s32.totalorder %s9, 0
    %p50 = por %p48, %p49
    %p51 = scmp.ne.s32.totalorder %s43, %s45
    %p52 = scmp.eq.s32.totalorder %s14, 1
    %p53 = por %p51, %p52
    %p54 = scmp.ne.s32.totalorder %s45, %s46
    %p55 = scmp.eq.s32.totalorder %s14, 0
    %p56 = por %p54, %p55
    %p57 = scmp.ne.s32.totalorder %s45, %s46
    %p58 = scmp.eq.s32.totalorder %s15, 1
    %p59 = por %p57, %p58
    %p61 = scmp.ne.s32.totalorder %s46, %s60
    %p62 = scmp.eq.s32.totalorder %s15, 0
    %p63 = por %p61, %p62
    %s65 = sadd.s32 %s64, 1
    %p68 = scmp.eq.s32.totalorder %s9, 1
    %p69 = scmp.ne.s32.totalorder %s64, %s66
    %p70 = scmp.eq.s32.totalorder %s9, 0
    %p71 = por %p69, %p70
    %p72 = scmp.ne.s32.totalorder %s64, %s66
    %p73 = scmp.eq.s32.totalorder %s14, 1
    %p74 = por %p72, %p73
    %p75 = scmp.ne.s32.totalorder %s66, %s67
    %p76 = scmp.eq.s32.totalorder %s14, 0
    %p77 = por %p75, %p76
    %p78 = scmp.ne.s32.totalorder %s66, %s67
    %p79 = scmp.eq.s32.totalorder %s15, 1
    %p80 = por %p78, %p79
    %p82 = scmp.ne.s32.totalorder %s67, %s81
    %p83 = scmp.eq.s32.totalorder %s15, 0
    %p84 = por %p82, %p83
    %s85 = ssub.s32 %s9, %s16
    %p86 = scmp.eq.s32.totalorder %s85, 0
    %s88 = sadd.s32 %s87, 1
    %s89 = scalar_select %p86, %s87, %s88
    %p92 = pneg %p86
    %p93 = scmp.eq.s32.totalorder %s9, 1
    %p94 = por %p92, %p93
    %p95 = scmp.ne.s32.totalorder %s87, %s90
    %p96 = scmp.eq.s32.totalorder %s9, 0
    %p97 = por %p95, %p96
    %p98 = scmp.ne.s32.totalorder %s87, %s90
    %p99 = scmp.eq.s32.totalorder %s14, 1
    %p100 = por %p98, %p99
    %p101 = scmp.ne.s32.totalorder %s90, %s91
    %p102 = scmp.eq.s32.totalorder %s14, 0
    %p103 = por %p101, %p102
    %p104 = scmp.ne.s32.totalorder %s90, %s91
    %p105 = scmp.eq.s32.totalorder %s15, 1
    %p106 = por %p104, %p105
    %p108 = scmp.ne.s32.totalorder %s91, %s107
    %p109 = scmp.eq.s32.totalorder %s15, 0
    %p110 = por %p108, %p109
    %p111 = scmp.le.s32.totalorder 1, %s9
    %p112 = scmp.lt.s32.totalorder %s9, 3
    %p113 = pnand %p111, %p112
    %p114 = pneg %p113
    // Predicated region
    $region9: #{attention_net_forward.7} parent=5 // pred_check
      _
    $region10: #{attention_net_forward.7} parent=5 // pred_check_branch
      %116 = sbr.rel (%p113) target = $region12
    $region11: #{attention_net_forward.7} parent=5 // pred_region
      %s117 = ssub.s32 %s9, 1
      // Predicated region
      $region13: #{attention_net_forward.7} parent=11 // pred_check
        %p118 = pneg %p56
      $region14: #{attention_net_forward.7} parent=11 // pred_check_branch
        %120 = sbr.rel (%p118) target = $region16
      $region15: #{attention_net_forward.7} parent=11 // pred_region
        _
      $region16: #{attention_net_forward.7} parent=11 // pred_fallthru
        _
      // Predicated region
      $region17: #{attention_net_forward.7} parent=11 // pred_check
        %p121 = pneg %p77
      $region18: #{attention_net_forward.7} parent=11 // pred_check_branch
        %123 = sbr.rel (%p121) target = $region20
      $region19: #{attention_net_forward.7} parent=11 // pred_region
        _
      $region20: #{attention_net_forward.7} parent=11 // pred_fallthru
        _
    $region12: #{attention_net_forward.7} parent=5 // pred_fallthru
      _
    %p124 = scmp.lt.s32.totalorder %s9, 2
    // Predicated region
    $region21: #{attention_net_forward.7} parent=5 // pred_check
      %p125 = pneg %p124
    $region22: #{attention_net_forward.7} parent=5 // pred_check_branch
      %127 = sbr.rel (%p125) target = $region24
    $region23: #{attention_net_forward.7} parent=5 // pred_region
      // Predicated region
      $region25: #{attention_net_forward.7} parent=23 // pred_check
        %p128 = pneg %p29
      $region26: #{attention_net_forward.7} parent=23 // pred_check_branch
        %130 = sbr.rel (%p128) target = $region28
      $region27: #{attention_net_forward.7} parent=23 // pred_region
        %s131 = smul.u32 8, %s9
        %p132 = scmp.lt.s32.totalorder %s131, 15
        %s133 = scalar_select %p132, %s131, 15
        %s134 = smul.addr %s133, 8
        %s135 = scalar_lea.vmem %s0, %s134
        %s136 = smul.u32 8, %s9
      $region28: #{attention_net_forward.7} parent=23 // pred_fallthru
        _
    $region24: #{attention_net_forward.7} parent=5 // pred_fallthru
      _
    %p137 = scmp.le.s32.totalorder 1, %s9
    %p138 = scmp.lt.s32.totalorder %s9, 3
    %p139 = pnand %p137, %p138
    %p140 = pneg %p139
    // Predicated region
    $region29: #{attention_net_forward.7} parent=5 // pred_check
      _
    $region30: #{attention_net_forward.7} parent=5 // pred_check_branch
      %142 = sbr.rel (%p139) target = $region32
    $region31: #{attention_net_forward.7} parent=5 // pred_region
      %s143 = ssub.s32 %s9, 1
      %s144 = smul.u32 8, %s14
      %p145 = scmp.lt.s32.totalorder %s144, 15
      %s146 = scalar_select %p145, %s144, 15
      %s147 = smul.addr %s146, 8
      %s148 = scalar_lea.vmem %s0, %s147
      %p149 = pneg %p35
      %p150 = pneg %p32
      %p151 = pneg %p56
      %p152 = pneg %p53
      %p153 = pneg %p77
      %p154 = pneg %p74
      %p155 = pneg %p103
      %p156 = pneg %p100
      %s157 = smul.u32 8, %s14
      %p158 = scmp.lt.s32.totalorder %s157, 15
      %s159 = scalar_select %p158, %s157, 15
      %s160 = smul.addr %s159, 4
      %s161 = scalar_lea.vmem %s3, %s160
      %s162 = smul.u32 8, %s14
      %p163 = scmp.lt.s32.totalorder %s162, 15
      %s164 = scalar_select %p163, %s162, 15
      %s165 = smul.addr %s164, 8
      %s166 = scalar_lea.vmem %s0, %s165
      %s167 = smul.u32 8, %s14
      %s168 = smul.u32 8, %s14
      %p169 = scmp.lt.s32.totalorder %s168, 15
      %s170 = scalar_select %p169, %s168, 15
      %s171 = smul.addr %s170, 4
      %s172 = scalar_lea.vmem %s3, %s171
      %s173 = smul.u32 8, %s14
      %v175 = vld [vmem:[%s166] sm:$0xff]
      %v176 = vld [vmem:[%s166 + $0x8] sm:$0xff]
      %v177 = vld [vmem:[%s166 + $0x10] sm:$0xff]
      %v178 = vld [vmem:[%s166 + $0x18] sm:$0xff]
      %v179 = vld [vmem:[%s166 + $0x20] sm:$0xff]
      %v180 = vld [vmem:[%s166 + $0x28] sm:$0xff]
      %v181 = vld [vmem:[%s166 + $0x30] sm:$0xff]
      %v182 = vld [vmem:[%s166 + $0x38] sm:$0xff]
      %v183 = vpack.c.bf16 %v176, %v175
      %v184 = vpack.c.bf16 %v178, %v177
      %v185 = vpack.c.bf16 %v180, %v179
      %v186 = vpack.c.bf16 %v182, %v181
      %v187 = vld [vmem:[%s1] sm:$0xf]
      %v188 = vld [vmem:[%s1 + $0x4] sm:$0xf]
      %v189 = vld [vmem:[%s1 + $0x8] sm:$0xf]
      %v190 = vld [vmem:[%s1 + $0xc] sm:$0xf]
      %v191 = vld [vmem:[%s1 + $0x10] sm:$0xf]
      %v192 = vld [vmem:[%s1 + $0x14] sm:$0xf]
      %v193 = vld [vmem:[%s1 + $0x18] sm:$0xf]
      %v194 = vld [vmem:[%s1 + $0x1c] sm:$0xf]
      %v195 = vld [vmem:[%s1 + $0x20] sm:$0xf]
      %v196 = vld [vmem:[%s1 + $0x24] sm:$0xf]
      %v197 = vld [vmem:[%s1 + $0x28] sm:$0xf]
      %v198 = vld [vmem:[%s1 + $0x2c] sm:$0xf]
      %v199 = vld [vmem:[%s1 + $0x30] sm:$0xf]
      %v200 = vld [vmem:[%s1 + $0x34] sm:$0xf]
      %v201 = vld [vmem:[%s1 + $0x38] sm:$0xf]
      %v202 = vld [vmem:[%s1 + $0x3c] sm:$0xf]
      %v203 = vld [vmem:[%s2] sm:$0x1]
      %v205 = vlaneseq
      %v206 = vshrl.u32 %v205, 7
      %v207 = vsub.s32 0, %v206
      %v208 = vrot.slane %v203, %v207
      %v226 = vunpack.c.l.b16 %v187
      %v227 = vunpack.c.l.b16 %v188
      %v228 = vunpack.c.l.b16 %v189
      %v229 = vunpack.c.l.b16 %v190
      %v230 = vunpack.c.l.b16 %v191
      %v231 = vunpack.c.l.b16 %v192
      %v232 = vunpack.c.l.b16 %v193
      %v233 = vunpack.c.l.b16 %v194
      %v234 = vunpack.c.l.b16 %v195
      %v235 = vunpack.c.l.b16 %v196
      %v236 = vunpack.c.l.b16 %v197
      %v237 = vunpack.c.l.b16 %v198
      %v238 = vunpack.c.l.b16 %v199
      %v239 = vunpack.c.l.b16 %v200
      %v240 = vunpack.c.l.b16 %v201
      %v241 = vunpack.c.l.b16 %v202
      %v242 = vpack.c.b16 %v227, %v226
      %v243 = vpack.c.b16 %v229, %v228
      %v244 = vpack.c.b16 %v231, %v230
      %v245 = vpack.c.b16 %v233, %v232
      %v246 = vpack.c.b16 %v235, %v234
      %v247 = vpack.c.b16 %v237, %v236
      %v248 = vpack.c.b16 %v239, %v238
      %v249 = vpack.c.b16 %v241, %v240
      %258 = vmatprep.subr.bf16.mxu0 0
      %259 = vmatpush1.bf16.msra.mxu0 %v249
      %260 = vmatprep.subr.bf16.mxu0 0
      %261 = vmatpush1.bf16.msra.mxu0 %v248
      %262 = vmatprep.subr.bf16.mxu0 0
      %263 = vmatpush1.bf16.msra.mxu0 %v247
      %264 = vmatprep.subr.bf16.mxu0 0
      %265 = vmatpush1.bf16.msra.mxu0 %v246
      %266 = vmatprep.subr.bf16.mxu0 0
      %267 = vmatpush1.bf16.msra.mxu0 %v245
      %268 = vmatprep.subr.bf16.mxu0 0
      %269 = vmatpush1.bf16.msra.mxu0 %v244
      %270 = vmatprep.subr.bf16.mxu0 0
      %271 = vmatpush1.bf16.msra.mxu0 %v243
      %272 = vmatprep.subr.bf16.mxu0 0
      %273 = vmatpush1.bf16.msra.mxu0 %v242
      %274 = vmatprep.subr.bf16.mxu0 0
      %275 = vmatpush2.bf16.msra.mxu0 0
      %276 = vmatprep.subr.bf16.mxu0 0
      %277 = vmatpush2.bf16.msra.mxu0 0
      %278 = vmatprep.subr.bf16.mxu0 0
      %279 = vmatpush2.bf16.msra.mxu0 0
      %280 = vmatprep.subr.bf16.mxu0 0
      %281 = vmatpush2.bf16.msra.mxu0 0
      %282 = vmatprep.subr.bf16.mxu0 0
      %283 = vmatpush2.bf16.msra.mxu0 0
      %284 = vmatprep.subr.bf16.mxu0 0
      %285 = vmatpush2.bf16.msra.mxu0 0
      %286 = vmatprep.subr.bf16.mxu0 0
      %287 = vmatpush2.bf16.msra.mxu0 0
      %288 = vmatprep.subr.bf16.mxu0 0
      %289 = vmatpush2.bf16.msra.mxu0 0
      %290 = vmatprep.mubr.bf16.mxu0 0
      %291 = vmatmul.mubr.bf16.gmra.mxu0 %v183
      %v292 = vpop.f32.mrf.mxu0
      %v293 = vadd.f32 %v208, %v292
      %v294 = vpop.f32.mrf.mxu0
      %v295 = vpop.f32.mrf.mxu0
      %v296 = vadd.f32 %v208, %v295
      %v297 = vpop.f32.mrf.mxu0
      %298 = vmatprep.mubr.bf16.mxu0 0
      %299 = vmatmul.mubr.bf16.gmra.mxu0 %v184
      %v300 = vpop.f32.mrf.mxu0
      %v301 = vadd.f32 %v208, %v300
      %v302 = vpop.f32.mrf.mxu0
      %v303 = vpop.f32.mrf.mxu0
      %v304 = vadd.f32 %v208, %v303
      %v305 = vpop.f32.mrf.mxu0
      %306 = vmatprep.mubr.bf16.mxu0 0
      %307 = vmatmul.mubr.bf16.gmra.mxu0 %v185
      %v308 = vpop.f32.mrf.mxu0
      %v309 = vadd.f32 %v208, %v308
      %v310 = vpop.f32.mrf.mxu0
      %v311 = vpop.f32.mrf.mxu0
      %v312 = vadd.f32 %v208, %v311
      %v313 = vpop.f32.mrf.mxu0
      %314 = vmatprep.mubr.bf16.mxu0 0
      %315 = vmatmul.mubr.bf16.gmra.mxu0 %v186
      %v316 = vpop.f32.mrf.mxu0
      %v317 = vadd.f32 %v208, %v316
      %v318 = vpop.f32.mrf.mxu0
      %v319 = vpop.f32.mrf.mxu0
      %v320 = vadd.f32 %v208, %v319
      %v321 = vpop.f32.mrf.mxu0
      %322 = vdwg.mxu0
      %v323 = vmax.f32 %v293, 0.0
      %v324 = vmax.f32 %v296, 0.0
      %v325 = vmax.f32 %v301, 0.0
      %v326 = vmax.f32 %v304, 0.0
      %v327 = vmax.f32 %v309, 0.0
      %v328 = vmax.f32 %v312, 0.0
      %v329 = vmax.f32 %v317, 0.0
      %v330 = vmax.f32 %v320, 0.0
      %v331 = vpack.c.bf16 %v324, %v323
      %v332 = vpack.c.bf16 %v326, %v325
      %v333 = vpack.c.bf16 %v328, %v327
      %v334 = vpack.c.bf16 %v330, %v329
      %v339 = vunpack.c.l.b16 %v331
      %v340 = vunpack.c.h.b16 %v331
      %v341 = vunpack.c.l.b16 %v332
      %v342 = vunpack.c.h.b16 %v332
      %v343 = vunpack.c.l.b16 %v333
      %v344 = vunpack.c.h.b16 %v333
      %v345 = vunpack.c.l.b16 %v334
      %v346 = vunpack.c.h.b16 %v334
      %v347 = vpack.c.b16 %v339, %v339
      %v348 = vpack.c.b16 %v340, %v340
      %v349 = vpack.c.b16 %v341, %v341
      %v350 = vpack.c.b16 %v342, %v342
      %v351 = vpack.c.b16 %v343, %v343
      %v352 = vpack.c.b16 %v344, %v344
      %v353 = vpack.c.b16 %v345, %v345
      %v354 = vpack.c.b16 %v346, %v346
      %363 = vst [vmem:[%s172] sm:$0xf] %v347
      %364 = vst [vmem:[%s172 + $0x4] sm:$0xf] %v348
      %365 = vst [vmem:[%s172 + $0x8] sm:$0xf] %v349
      %366 = vst [vmem:[%s172 + $0xc] sm:$0xf] %v350
      %367 = vst [vmem:[%s172 + $0x10] sm:$0xf] %v351
      %368 = vst [vmem:[%s172 + $0x14] sm:$0xf] %v352
      %369 = vst [vmem:[%s172 + $0x18] sm:$0xf] %v353
      %370 = vst [vmem:[%s172 + $0x1c] sm:$0xf] %v354
      %s371 = smul.u32 8, %s14
      %p372 = scmp.lt.s32.totalorder %s371, 15
      %s373 = scalar_select %p372, %s371, 15
      %s374 = smul.addr %s373, 4
      %s375 = scalar_lea.vmem %s3, %s374
      // Predicated region
      $region33: #{attention_net_forward.7} parent=31 // pred_check
        %p376 = pneg %p100
      $region34: #{attention_net_forward.7} parent=31 // pred_check_branch
        %378 = sbr.rel (%p376) target = $region36
      $region35: #{attention_net_forward.7} parent=31 // pred_region
        %s379 = smul.u32 8, %s14
      $region36: #{attention_net_forward.7} parent=31 // pred_fallthru
        _
    $region32: #{attention_net_forward.7} parent=5 // pred_fallthru
      _
    %p380 = scmp.le.s32.totalorder 2, %s9
    // Predicated region
    $region37: #{attention_net_forward.7} parent=5 // pred_check
      %p381 = pneg %p380
    $region38: #{attention_net_forward.7} parent=5 // pred_check_branch
      %383 = sbr.rel (%p381) target = $region40
    $region39: #{attention_net_forward.7} parent=5 // pred_region
      %s384 = ssub.s32 %s9, 2
      // Predicated region
      $region41: #{attention_net_forward.7} parent=39 // pred_check
        %p385 = pneg %p106
      $region42: #{attention_net_forward.7} parent=39 // pred_check_branch
        %387 = sbr.rel (%p385) target = $region44
      $region43: #{attention_net_forward.7} parent=39 // pred_region
        %s388 = smul.u32 8, %s15
        %p389 = scmp.lt.s32.totalorder %s388, 15
        %s390 = scalar_select %p389, %s388, 15
        %s391 = smul.addr %s390, 4
        %s392 = scalar_lea.vmem %s3, %s391
      $region44: #{attention_net_forward.7} parent=39 // pred_fallthru
        _
    $region40: #{attention_net_forward.7} parent=5 // pred_fallthru
      _
  $region6: #{attention_net_forward.7} parent=0 // loop_footer
    %s13 = sadd.s32 1, %s9
  $region7: #{attention_net_forward.7} parent=0 // loop_footer_branch
    %8 = sbr.rel target = $region3
  $region8: #{attention_net_forward.7} parent=0 // loop_exit
    _

// kernel: attention_net_forward.8
$region0: #{attention_net_forward.8}
  #allocation0 [shape = 'u32[]', space=smem, size = 0x4, offset = 0x4, fixed_abs, tag = 'smem constant byte address 0x4 - core index']
  #allocation1 [shape = 'u32[144,128]{1,0:T(1,128)}', space=vmem, size = 0x12000, scoped, tag = 'internal scratch']
  %s0 = inlined_call_operand.vmem [shape: bf16[2,64,128], index: 0, kind: input, shape index: {}]
  %s1 = inlined_call_operand.vmem [shape: bf16[128,128], index: 1, kind: input, shape index: {}]
  %s2 = inlined_call_operand.vmem [shape: f32[1,128], index: 2, kind: input, shape index: {}]
  %s3 = inlined_call_operand.vmem [shape: f32[2,1,128], index: 3, kind: output, shape index: {0}]
  %s4 = inlined_call_operand.hbm [shape: f32[2,1,128], index: 4, kind: output, shape index: {1}]
  %5 = xla_tuple %s3, %s4
  %s6 = sld [smem:[#allocation0]]
  $region53: #{attention_net_forward.8} parent=0
    _
  %s8 = ssub.s32 1, %s6
  %s9 = scalar_select 0, %s8, %s6
  $region1: #{attention_net_forward.8} parent=0
    #allocation2 [shape = 'u8[1024]{0}', space=vmem, size = 0x400, scoped, tag = 'output window, operand 1']
    #allocation3 [shape = 's32[2]{0}', space=sflag, size = 0x8, scoped, tag = 'scoped memory for attention_net_forward.8']
    %10 = vsyncpa [#allocation3], 0
    %s11 = scalar_lea.sflag [#allocation3], 1
    %12 = vsyncpa %s11, 0
    loop: start=0, step=1, limit=4
    $region2: #{attention_net_forward.8} parent=1 // loop_pre_header
      _
    $region3: #{attention_net_forward.8} parent=1 // loop_header
      %s14 = sphi 0, %s18
      %p15 = scmp.ge.s32.totalorder %s14, 4
      %s24 = sphi 0, %s26
      %s27 = sphi 0, %s24
      %s28 = sphi 0, %s27
      %s44 = sphi 0, %s28
      %s48 = sphi 0, %s48
      %s50 = sphi 0, %s48
      %s51 = sphi 0, %s50
      %s65 = sphi 0, %s51
      %s69 = sphi 0, %s69
      %s71 = sphi 0, %s69
      %s72 = sphi 0, %s71
      %s86 = sphi 0, %s72
      %s92 = sphi 0, %s94
      %s95 = sphi 0, %s92
      %s96 = sphi 0, %s95
      %s112 = sphi 0, %s96
      %s118 = sphi 0, %s120
      %s121 = sphi 0, %s118
      %s122 = sphi 0, %s121
      %s138 = sphi 0, %s122
    $region4: #{attention_net_forward.8} parent=1 // loop_header_branch
      %17 = sbr.rel (%p15) target = $region8
    $region5: #{attention_net_forward.8} parent=1 // loop_body
      %s19 = ssub.s32 %s14, 1
      %s20 = ssub.s32 %s14, 2
      %s21 = sadd.s32 %s14, 1
      %s22 = ssub.s32 %s14, %s21
      %p23 = scmp.eq.s32.totalorder %s22, 0
      %s25 = sadd.s32 %s24, 1
      %s26 = scalar_select %p23, %s24, %s25
      %p29 = pneg %p23
      %p30 = scmp.eq.s32.totalorder %s14, 1
      %p31 = por %p29, %p30
      %p32 = scmp.ne.s32.totalorder %s24, %s27
      %p33 = scmp.eq.s32.totalorder %s14, 0
      %p34 = por %p32, %p33
      %p35 = scmp.ne.s32.totalorder %s24, %s27
      %p36 = scmp.eq.s32.totalorder %s19, 1
      %p37 = por %p35, %p36
      %p38 = scmp.ne.s32.totalorder %s27, %s28
      %p39 = scmp.eq.s32.totalorder %s19, 0
      %p40 = por %p38, %p39
      %p41 = scmp.ne.s32.totalorder %s27, %s28
      %p42 = scmp.eq.s32.totalorder %s20, 1
      %p43 = por %p41, %p42
      %p45 = scmp.ne.s32.totalorder %s28, %s44
      %p46 = scmp.eq.s32.totalorder %s20, 0
      %p47 = por %p45, %p46
      %s49 = sadd.s32 %s48, 1
      %p52 = scmp.eq.s32.totalorder %s14, 1
      %p53 = scmp.ne.s32.totalorder %s48, %s50
      %p54 = scmp.eq.s32.totalorder %s14, 0
      %p55 = por %p53, %p54
      %p56 = scmp.ne.s32.totalorder %s48, %s50
      %p57 = scmp.eq.s32.totalorder %s19, 1
      %p58 = por %p56, %p57
      %p59 = scmp.ne.s32.totalorder %s50, %s51
      %p60 = scmp.eq.s32.totalorder %s19, 0
      %p61 = por %p59, %p60
      %p62 = scmp.ne.s32.totalorder %s50, %s51
      %p63 = scmp.eq.s32.totalorder %s20, 1
      %p64 = por %p62, %p63
      %p66 = scmp.ne.s32.totalorder %s51, %s65
      %p67 = scmp.eq.s32.totalorder %s20, 0
      %p68 = por %p66, %p67
      %s70 = sadd.s32 %s69, 1
      %p73 = scmp.eq.s32.totalorder %s14, 1
      %p74 = scmp.ne.s32.totalorder %s69, %s71
      %p75 = scmp.eq.s32.totalorder %s14, 0
      %p76 = por %p74, %p75
      %p77 = scmp.ne.s32.totalorder %s69, %s71
      %p78 = scmp.eq.s32.totalorder %s19, 1
      %p79 = por %p77, %p78
      %p80 = scmp.ne.s32.totalorder %s71, %s72
      %p81 = scmp.eq.s32.totalorder %s19, 0
      %p82 = por %p80, %p81
      %p83 = scmp.ne.s32.totalorder %s71, %s72
      %p84 = scmp.eq.s32.totalorder %s20, 1
      %p85 = por %p83, %p84
      %p87 = scmp.ne.s32.totalorder %s72, %s86
      %p88 = scmp.eq.s32.totalorder %s20, 0
      %p89 = por %p87, %p88
      %s90 = ssub.s32 %s14, %s21
      %p91 = scmp.eq.s32.totalorder %s90, 0
      %s93 = sadd.s32 %s92, 1
      %s94 = scalar_select %p91, %s92, %s93
      %p97 = pneg %p91
      %p98 = scmp.eq.s32.totalorder %s14, 1
      %p99 = por %p97, %p98
      %p100 = scmp.ne.s32.totalorder %s92, %s95
      %p101 = scmp.eq.s32.totalorder %s14, 0
      %p102 = por %p100, %p101
      %p103 = scmp.ne.s32.totalorder %s92, %s95
      %p104 = scmp.eq.s32.totalorder %s19, 1
      %p105 = por %p103, %p104
      %p106 = scmp.ne.s32.totalorder %s95, %s96
      %p107 = scmp.eq.s32.totalorder %s19, 0
      %p108 = por %p106, %p107
      %p109 = scmp.ne.s32.totalorder %s95, %s96
      %p110 = scmp.eq.s32.totalorder %s20, 1
      %p111 = por %p109, %p110
      %p113 = scmp.ne.s32.totalorder %s96, %s112
      %p114 = scmp.eq.s32.totalorder %s20, 0
      %p115 = por %p113, %p114
      %s116 = ssub.s32 %s14, %s21
      %p117 = scmp.eq.s32.totalorder %s116, 0
      %s119 = sadd.s32 %s118, 1
      %s120 = scalar_select %p117, %s118, %s119
      %p123 = pneg %p117
      %p124 = scmp.eq.s32.totalorder %s14, 1
      %p125 = por %p123, %p124
      %p126 = scmp.ne.s32.totalorder %s118, %s121
      %p127 = scmp.eq.s32.totalorder %s14, 0
      %p128 = por %p126, %p127
      %p129 = scmp.ne.s32.totalorder %s118, %s121
      %p130 = scmp.eq.s32.totalorder %s19, 1
      %p131 = por %p129, %p130
      %p132 = scmp.ne.s32.totalorder %s121, %s122
      %p133 = scmp.eq.s32.totalorder %s19, 0
      %p134 = por %p132, %p133
      %p135 = scmp.ne.s32.totalorder %s121, %s122
      %p136 = scmp.eq.s32.totalorder %s20, 1
      %p137 = por %p135, %p136
      %p139 = scmp.ne.s32.totalorder %s122, %s138
      %p140 = scmp.eq.s32.totalorder %s20, 0
      %p141 = por %p139, %p140
      %p142 = scmp.le.s32.totalorder 1, %s14
      %p143 = scmp.lt.s32.totalorder %s14, 3
      %p144 = pnand %p142, %p143
      %p145 = pneg %p144
      // Predicated region
      $region9: #{attention_net_forward.8} parent=5 // pred_check
        _
      $region10: #{attention_net_forward.8} parent=5 // pred_check_branch
        %147 = sbr.rel (%p144) target = $region12
      $region11: #{attention_net_forward.8} parent=5 // pred_region
        %s148 = ssub.s32 %s14, 1
        // Predicated region
        $region13: #{attention_net_forward.8} parent=11 // pred_check
          %p149 = pneg %p61
        $region14: #{attention_net_forward.8} parent=11 // pred_check_branch
          %151 = sbr.rel (%p149) target = $region16
        $region15: #{attention_net_forward.8} parent=11 // pred_region
          _
        $region16: #{attention_net_forward.8} parent=11 // pred_fallthru
          _
        // Predicated region
        $region17: #{attention_net_forward.8} parent=11 // pred_check
          %p152 = pneg %p82
        $region18: #{attention_net_forward.8} parent=11 // pred_check_branch
          %154 = sbr.rel (%p152) target = $region20
        $region19: #{attention_net_forward.8} parent=11 // pred_region
          _
        $region20: #{attention_net_forward.8} parent=11 // pred_fallthru
          _
      $region12: #{attention_net_forward.8} parent=5 // pred_fallthru
        _
      %p155 = scmp.lt.s32.totalorder %s14, 2
      // Predicated region
      $region21: #{attention_net_forward.8} parent=5 // pred_check
        %p156 = pneg %p155
      $region22: #{attention_net_forward.8} parent=5 // pred_check_branch
        %158 = sbr.rel (%p156) target = $region24
      $region23: #{attention_net_forward.8} parent=5 // pred_region
        // Predicated region
        $region25: #{attention_net_forward.8} parent=23 // pred_check
          %p159 = pneg %p34
        $region26: #{attention_net_forward.8} parent=23 // pred_check_branch
          %161 = sbr.rel (%p159) target = $region28
        $region27: #{attention_net_forward.8} parent=23 // pred_region
          %p162 = scmp.lt.s32.totalorder %s14, 1
          %s163 = scalar_select %p162, %s14, 1
          %s164 = smul.addr %s163, 8
          %s165 = smul.addr %s164, 4
          %s166 = scalar_lea.vmem %s0, %s165
        $region28: #{attention_net_forward.8} parent=23 // pred_fallthru
          _
      $region24: #{attention_net_forward.8} parent=5 // pred_fallthru
        _
      %p167 = scmp.le.s32.totalorder 1, %s14
      %p168 = scmp.lt.s32.totalorder %s14, 3
      %p169 = pnand %p167, %p168
      %p170 = pneg %p169
      // Predicated region
      $region29: #{attention_net_forward.8} parent=5 // pred_check
        _
      $region30: #{attention_net_forward.8} parent=5 // pred_check_branch
        %172 = sbr.rel (%p169) target = $region32
      $region31: #{attention_net_forward.8} parent=5 // pred_region
        %s173 = ssub.s32 %s14, 1
        %p174 = scmp.lt.s32.totalorder %s19, 1
        %s175 = scalar_select %p174, %s19, 1
        %s176 = smul.addr %s175, 8
        %s177 = smul.addr %s176, 4
        %s178 = scalar_lea.vmem %s0, %s177
        %p179 = pneg %p40
        %p180 = pneg %p37
        %p181 = pneg %p61
        %p182 = pneg %p58
        %p183 = pneg %p82
        %p184 = pneg %p79
        %p185 = pneg %p108
        %p186 = pneg %p105
        %p187 = scmp.lt.s32.totalorder %s19, 1
        %s188 = scalar_select %p187, %s19, 1
        %s189 = scalar_lea.vmem %s3, %s188
        %p190 = pneg %p134
        %p191 = pneg %p131
        %s192 = sand.u32 %s121, 1
        %s193 = scalar_lea.sflag [#allocation3], %s192
        %s194 = sand.u32 %s121, 1
        %s195 = scalar_lea.vmem [#allocation2], %s194
        %p196 = scmp.lt.s32.totalorder %s19, 1
        %s197 = scalar_select %p196, %s19, 1
        %s198 = smul.addr %s197, 8
        %s199 = smul.addr %s198, 4
        %s200 = scalar_lea.vmem %s0, %s199
        %p201 = scmp.lt.s32.totalorder %s19, 1
        %s202 = scalar_select %p201, %s19, 1
        %s203 = scalar_lea.vmem %s3, %s202
        %v205 = vld [vmem:[%s200] sm:$0xf]
        %v206 = vld [vmem:[%s200 + $0x4] sm:$0xf]
        %v207 = vld [vmem:[%s200 + $0x8] sm:$0xf]
        %v208 = vld [vmem:[%s200 + $0xc] sm:$0xf]
        %v209 = vld [vmem:[%s200 + $0x10] sm:$0xf]
        %v210 = vld [vmem:[%s200 + $0x14] sm:$0xf]
        %v211 = vld [vmem:[%s200 + $0x18] sm:$0xf]
        %v212 = vld [vmem:[%s200 + $0x1c] sm:$0xf]
        %v213 = vunpack.c.l.bf16 %v205
        %v214 = vunpack.c.l.bf16 %v206
        %v215 = vunpack.c.l.bf16 %v207
        %v216 = vunpack.c.l.bf16 %v208
        %v217 = vunpack.c.l.bf16 %v209
        %v218 = vunpack.c.l.bf16 %v210
        %v219 = vunpack.c.l.bf16 %v211
        %v220 = vunpack.c.l.bf16 %v212
        %v221 = vadd.f32 %v213, %v214
        %v222 = vadd.f32 %v221, %v215
        %v223 = vadd.f32 %v222, %v216
        %v224 = vadd.f32 %v223, %v217
        %v225 = vadd.f32 %v224, %v218
        %v226 = vadd.f32 %v225, %v219
        %v227 = vadd.f32 %v226, %v220
        %v228 = vrot.slane %v227, 4
        %v229 = vadd.f32 %v227, %v228
        %v230 = vrot.slane %v229, 2
        %v231 = vadd.f32 %v229, %v230
        %v232 = vrot.slane %v231, 1
        %v233 = vadd.f32 %v231, %v232
        %v234 = vrcp.pop 64.0
        %v235 = vmul.f32 %v233, %v234
        %236 = vst [vmem:[%s203] sm:$0x1] %v235
        %v237 = vpack.c.bf16 %v235, %v235
        %v238 = vld [vmem:[%s1] sm:$0xf]
        %v239 = vld [vmem:[%s1 + $0x4] sm:$0xf]
        %v240 = vld [vmem:[%s1 + $0x8] sm:$0xf]
        %v241 = vld [vmem:[%s1 + $0xc] sm:$0xf]
        %v242 = vld [vmem:[%s1 + $0x10] sm:$0xf]
        %v243 = vld [vmem:[%s1 + $0x14] sm:$0xf]
        %v244 = vld [vmem:[%s1 + $0x18] sm:$0xf]
        %v245 = vld [vmem:[%s1 + $0x1c] sm:$0xf]
        %v246 = vld [vmem:[%s1 + $0x20] sm:$0xf]
        %v247 = vld [vmem:[%s1 + $0x24] sm:$0xf]
        %v248 = vld [vmem:[%s1 + $0x28] sm:$0xf]
        %v249 = vld [vmem:[%s1 + $0x2c] sm:$0xf]
        %v250 = vld [vmem:[%s1 + $0x30] sm:$0xf]
        %v251 = vld [vmem:[%s1 + $0x34] sm:$0xf]
        %v252 = vld [vmem:[%s1 + $0x38] sm:$0xf]
        %v253 = vld [vmem:[%s1 + $0x3c] sm:$0xf]
        %v254 = vld [vmem:[%s2] sm:$0x1]
        %v271 = vunpack.c.l.b16 %v238
        %v272 = vunpack.c.l.b16 %v239
        %v273 = vunpack.c.l.b16 %v240
        %v274 = vunpack.c.l.b16 %v241
        %v275 = vunpack.c.l.b16 %v242
        %v276 = vunpack.c.l.b16 %v243
        %v277 = vunpack.c.l.b16 %v244
        %v278 = vunpack.c.l.b16 %v245
        %v279 = vunpack.c.l.b16 %v246
        %v280 = vunpack.c.l.b16 %v247
        %v281 = vunpack.c.l.b16 %v248
        %v282 = vunpack.c.l.b16 %v249
        %v283 = vunpack.c.l.b16 %v250
        %v284 = vunpack.c.l.b16 %v251
        %v285 = vunpack.c.l.b16 %v252
        %v286 = vunpack.c.l.b16 %v253
        %v287 = vpack.c.b16 %v272, %v271
        %v288 = vpack.c.b16 %v274, %v273
        %v289 = vpack.c.b16 %v276, %v275
        %v290 = vpack.c.b16 %v278, %v277
        %v291 = vpack.c.b16 %v280, %v279
        %v292 = vpack.c.b16 %v282, %v281
        %v293 = vpack.c.b16 %v284, %v283
        %v294 = vpack.c.b16 %v286, %v285
        %303 = vmatprep.subr.bf16.mxu0 0
        %304 = vmatpush1.bf16.msra.mxu0 %v294
        %305 = vmatprep.subr.bf16.mxu0 0
        %306 = vmatpush1.bf16.msra.mxu0 %v293
        %307 = vmatprep.subr.bf16.mxu0 0
        %308 = vmatpush1.bf16.msra.mxu0 %v292
        %309 = vmatprep.subr.bf16.mxu0 0
        %310 = vmatpush1.bf16.msra.mxu0 %v291
        %311 = vmatprep.subr.bf16.mxu0 0
        %312 = vmatpush1.bf16.msra.mxu0 %v290
        %313 = vmatprep.subr.bf16.mxu0 0
        %314 = vmatpush1.bf16.msra.mxu0 %v289
        %315 = vmatprep.subr.bf16.mxu0 0
        %316 = vmatpush1.bf16.msra.mxu0 %v288
        %317 = vmatprep.subr.bf16.mxu0 0
        %318 = vmatpush1.bf16.msra.mxu0 %v287
        %319 = vmatprep.subr.bf16.mxu0 0
        %320 = vmatpush2.bf16.msra.mxu0 0
        %321 = vmatprep.subr.bf16.mxu0 0
        %322 = vmatpush2.bf16.msra.mxu0 0
        %323 = vmatprep.subr.bf16.mxu0 0
        %324 = vmatpush2.bf16.msra.mxu0 0
        %325 = vmatprep.subr.bf16.mxu0 0
        %326 = vmatpush2.bf16.msra.mxu0 0
        %327 = vmatprep.subr.bf16.mxu0 0
        %328 = vmatpush2.bf16.msra.mxu0 0
        %329 = vmatprep.subr.bf16.mxu0 0
        %330 = vmatpush2.bf16.msra.mxu0 0
        %331 = vmatprep.subr.bf16.mxu0 0
        %332 = vmatpush2.bf16.msra.mxu0 0
        %333 = vmatprep.subr.bf16.mxu0 0
        %334 = vmatpush2.bf16.msra.mxu0 0
        %335 = vmatprep.mubr.bf16.mxu0 0
        %336 = vmatmul.mubr.bf16.gmra.mxu0 %v237
        %v337 = vpop.f32.mrf.mxu0
        %v338 = vadd.f32 %v254, %v337
        %v339 = vpop.f32.mrf.mxu0
        %v340 = vpop.f32.mrf.mxu0
        %v341 = vpop.f32.mrf.mxu0
        %342 = vdwg.mxu0
        %343 = vst [vmem:[%s195] sm:$0x1] %v338
        %p344 = scmp.lt.s32.totalorder %s19, 1
        %s345 = scalar_select %p344, %s19, 1
        %s346 = scalar_lea.vmem %s3, %s345
        %s347 = sand.u32 %s121, 1
        %s348 = scalar_lea.sflag [#allocation3], %s347
        %s349 = sand.u32 %s121, 1
        %s350 = scalar_lea.vmem [#allocation2], %s349
        // Predicated region
        $region33: #{attention_net_forward.8} parent=31 // pred_check
          %p351 = pneg %p105
        $region34: #{attention_net_forward.8} parent=31 // pred_check_branch
          %353 = sbr.rel (%p351) target = $region36
        $region35: #{attention_net_forward.8} parent=31 // pred_region
          _
        $region36: #{attention_net_forward.8} parent=31 // pred_fallthru
          _
        // Predicated region
        $region37: #{attention_net_forward.8} parent=31 // pred_check
          %p354 = pneg %p131
        $region38: #{attention_net_forward.8} parent=31 // pred_check_branch
          %356 = sbr.rel (%p354) target = $region40
        $region39: #{attention_net_forward.8} parent=31 // pred_region
          %s358 = ssub.s32 16, 16
          %359 = vsyncadd %s348, %s358
          %s360 = smul.addr %s19, 16
          %s361 = scalar_lea.hbm %s4, %s360
          %s363 = sshll.u32 %s350, 4
          %s364 = int_to_ptr.vmem [resolvable:$true] %s363
          %366 = dma.vmem_to_hbm [thread:$0]  %s364, 16, %s361, %s348
        $region40: #{attention_net_forward.8} parent=31 // pred_fallthru
          _
      $region32: #{attention_net_forward.8} parent=5 // pred_fallthru
        _
      %p367 = scmp.le.s32.totalorder 2, %s14
      // Predicated region
      $region41: #{attention_net_forward.8} parent=5 // pred_check
        %p368 = pneg %p367
      $region42: #{attention_net_forward.8} parent=5 // pred_check_branch
        %370 = sbr.rel (%p368) target = $region44
      $region43: #{attention_net_forward.8} parent=5 // pred_region
        %s371 = ssub.s32 %s14, 2
        // Predicated region
        $region45: #{attention_net_forward.8} parent=43 // pred_check
          %p372 = pneg %p111
        $region46: #{attention_net_forward.8} parent=43 // pred_check_branch
          %374 = sbr.rel (%p372) target = $region48
        $region47: #{attention_net_forward.8} parent=43 // pred_region
          %p375 = scmp.lt.s32.totalorder %s20, 1
          %s376 = scalar_select %p375, %s20, 1
          %s377 = scalar_lea.vmem %s3, %s376
        $region48: #{attention_net_forward.8} parent=43 // pred_fallthru
          _
        // Predicated region
        $region49: #{attention_net_forward.8} parent=43 // pred_check
          %p378 = pneg %p137
        $region50: #{attention_net_forward.8} parent=43 // pred_check_branch
          %380 = sbr.rel (%p378) target = $region52
        $region51: #{attention_net_forward.8} parent=43 // pred_region
          %s381 = sand.u32 %s122, 1
          %s382 = scalar_lea.sflag [#allocation3], %s381
          %s383 = sand.u32 %s122, 1
          %s384 = scalar_lea.vmem [#allocation2], %s383
          %385 = dma.done %s382, 16
        $region52: #{attention_net_forward.8} parent=43 // pred_fallthru
          _
      $region44: #{attention_net_forward.8} parent=5 // pred_fallthru
        _
    $region6: #{attention_net_forward.8} parent=1 // loop_footer
      %s18 = sadd.s32 1, %s14
    $region7: #{attention_net_forward.8} parent=1 // loop_footer_branch
      %13 = sbr.rel target = $region3
    $region8: #{attention_net_forward.8} parent=1 // loop_exit
      _
    %386 = vsyncpa [#allocation3], 1
    %s387 = scalar_lea.sflag [#allocation3], 1
    %388 = vsyncpa %s387, 1

// kernel: gt.12
$region0: #{gt.12}
  #allocation0 [shape = 's32[1]{0}', space=sflag, size = 0x4, scoped, tag = 'scoped memory for gt.12']
  %s0 = inlined_call_operand.<no memory space> [shape: f32[], index: 0, kind: input, shape index: {}]
  %s1 = inlined_call_operand.vmem [shape: f32[2], index: 1, kind: output, shape index: {}]
  %v2 = vstv %s0
  %3 = vst [vmem:[%s1] sm:$0x1] %v2

// kernel: attention_net_forward.9
$region0: #{attention_net_forward.9}
  #allocation0 [shape = 'u32[]', space=smem, size = 0x4, offset = 0x4, fixed_abs, tag = 'smem constant byte address 0x4 - core index']
  #allocation1 [shape = 'u32[144,128]{1,0:T(1,128)}', space=vmem, size = 0x12000, scoped, tag = 'internal scratch']
  #allocation2 [shape = 'f32[104,128]{1,0:T(8,128)}', space=vmem, size = 0xd000, scoped, tag = 'scratch operand']
  #allocation3 [shape = 'f32[104,128]{1,0:T(8,128)}', space=vmem, size = 0xd000, scoped, tag = 'scratch operand']
  #allocation4 [shape = 'f32[40,128]{1,0:T(8,128)}', space=vmem, size = 0x5000, scoped, tag = 'scratch operand']
  #allocation5 [shape = 'f32[80,128]{1,0:T(8,128)}', space=vmem, size = 0xa000, scoped, tag = 'scratch operand']
  #allocation6 [shape = 'f32[80,128]{1,0:T(8,128)}', space=vmem, size = 0xa000, scoped, tag = 'scratch operand']
  #allocation7 [shape = 'f32[24,128]{1,0:T(8,128)}', space=vmem, size = 0x3000, scoped, tag = 'scratch operand']
  #allocation8 [shape = 'f32[88,128]{1,0:T(8,128)}', space=vmem, size = 0xb000, scoped, tag = 'scratch operand']
  %s0 = inlined_call_operand.vmem [shape: bf16[2,64,128], index: 0, kind: input, shape index: {}]
  %s1 = inlined_call_operand.vmem [shape: bf16[1152,128], index: 1, kind: input, shape index: {}]
  %s2 = inlined_call_operand.vmem [shape: f32[1,128], index: 2, kind: input, shape index: {}]
  %s3 = inlined_call_operand.vmem [shape: bf16[1152,128], index: 3, kind: input, shape index: {}]
  %s4 = inlined_call_operand.vmem [shape: f32[1,128], index: 4, kind: input, shape index: {}]
  %s5 = inlined_call_operand.vmem [shape: bf16[1152,128], index: 5, kind: input, shape index: {}]
  %s6 = inlined_call_operand.vmem [shape: f32[1,128], index: 6, kind: input, shape index: {}]
  %s7 = inlined_call_operand.vmem [shape: bf16[128,128], index: 7, kind: input, shape index: {}]
  %s8 = inlined_call_operand.vmem [shape: f32[1,128], index: 8, kind: input, shape index: {}]
  %s9 = inlined_call_operand.vmem [shape: f32[2,88,128], index: 9, kind: output, shape index: {}]
  %s10 = sld [smem:[#allocation0]]
  $region69: #{attention_net_forward.9} parent=0
    _
  %s12 = ssub.s32 1, %s10
  %s13 = scalar_select 0, %s12, %s10
  loop: start=0, step=1, limit=4
  $region2: #{attention_net_forward.9} parent=0 // loop_pre_header
    _
  $region3: #{attention_net_forward.9} parent=0 // loop_header
    %s15 = sphi 0, %s19
    %p16 = scmp.ge.s32.totalorder %s15, 4
    %s25 = sphi 0, %s27
    %s28 = sphi 0, %s25
    %s29 = sphi 0, %s28
    %s45 = sphi 0, %s29
    %s49 = sphi 0, %s49
    %s51 = sphi 0, %s49
    %s52 = sphi 0, %s51
    %s66 = sphi 0, %s52
    %s70 = sphi 0, %s70
    %s72 = sphi 0, %s70
    %s73 = sphi 0, %s72
    %s87 = sphi 0, %s73
    %s91 = sphi 0, %s91
    %s93 = sphi 0, %s91
    %s94 = sphi 0, %s93
    %s108 = sphi 0, %s94
    %s112 = sphi 0, %s112
    %s114 = sphi 0, %s112
    %s115 = sphi 0, %s114
    %s129 = sphi 0, %s115
    %s133 = sphi 0, %s133
    %s135 = sphi 0, %s133
    %s136 = sphi 0, %s135
    %s150 = sphi 0, %s136
    %s154 = sphi 0, %s154
    %s156 = sphi 0, %s154
    %s157 = sphi 0, %s156
    %s171 = sphi 0, %s157
    %s175 = sphi 0, %s175
    %s177 = sphi 0, %s175
    %s178 = sphi 0, %s177
    %s192 = sphi 0, %s178
    %s196 = sphi 0, %s196
    %s198 = sphi 0, %s196
    %s199 = sphi 0, %s198
    %s213 = sphi 0, %s199
    %s219 = sphi 0, %s221
    %s222 = sphi 0, %s219
    %s223 = sphi 0, %s222
    %s239 = sphi 0, %s223
  $region4: #{attention_net_forward.9} parent=0 // loop_header_branch
    %18 = sbr.rel (%p16) target = $region8
  $region5: #{attention_net_forward.9} parent=0 // loop_body
    %s20 = ssub.s32 %s15, 1
    %s21 = ssub.s32 %s15, 2
    %s22 = sadd.s32 %s15, 1
    %s23 = ssub.s32 %s15, %s22
    %p24 = scmp.eq.s32.totalorder %s23, 0
    %s26 = sadd.s32 %s25, 1
    %s27 = scalar_select %p24, %s25, %s26
    %p30 = pneg %p24
    %p31 = scmp.eq.s32.totalorder %s15, 1
    %p32 = por %p30, %p31
    %p33 = scmp.ne.s32.totalorder %s25, %s28
    %p34 = scmp.eq.s32.totalorder %s15, 0
    %p35 = por %p33, %p34
    %p36 = scmp.ne.s32.totalorder %s25, %s28
    %p37 = scmp.eq.s32.totalorder %s20, 1
    %p38 = por %p36, %p37
    %p39 = scmp.ne.s32.totalorder %s28, %s29
    %p40 = scmp.eq.s32.totalorder %s20, 0
    %p41 = por %p39, %p40
    %p42 = scmp.ne.s32.totalorder %s28, %s29
    %p43 = scmp.eq.s32.totalorder %s21, 1
    %p44 = por %p42, %p43
    %p46 = scmp.ne.s32.totalorder %s29, %s45
    %p47 = scmp.eq.s32.totalorder %s21, 0
    %p48 = por %p46, %p47
    %s50 = sadd.s32 %s49, 1
    %p53 = scmp.eq.s32.totalorder %s15, 1
    %p54 = scmp.ne.s32.totalorder %s49, %s51
    %p55 = scmp.eq.s32.totalorder %s15, 0
    %p56 = por %p54, %p55
    %p57 = scmp.ne.s32.totalorder %s49, %s51
    %p58 = scmp.eq.s32.totalorder %s20, 1
    %p59 = por %p57, %p58
    %p60 = scmp.ne.s32.totalorder %s51, %s52
    %p61 = scmp.eq.s32.totalorder %s20, 0
    %p62 = por %p60, %p61
    %p63 = scmp.ne.s32.totalorder %s51, %s52
    %p64 = scmp.eq.s32.totalorder %s21, 1
    %p65 = por %p63, %p64
    %p67 = scmp.ne.s32.totalorder %s52, %s66
    %p68 = scmp.eq.s32.totalorder %s21, 0
    %p69 = por %p67, %p68
    %s71 = sadd.s32 %s70, 1
    %p74 = scmp.eq.s32.totalorder %s15, 1
    %p75 = scmp.ne.s32.totalorder %s70, %s72
    %p76 = scmp.eq.s32.totalorder %s15, 0
    %p77 = por %p75, %p76
    %p78 = scmp.ne.s32.totalorder %s70, %s72
    %p79 = scmp.eq.s32.totalorder %s20, 1
    %p80 = por %p78, %p79
    %p81 = scmp.ne.s32.totalorder %s72, %s73
    %p82 = scmp.eq.s32.totalorder %s20, 0
    %p83 = por %p81, %p82
    %p84 = scmp.ne.s32.totalorder %s72, %s73
    %p85 = scmp.eq.s32.totalorder %s21, 1
    %p86 = por %p84, %p85
    %p88 = scmp.ne.s32.totalorder %s73, %s87
    %p89 = scmp.eq.s32.totalorder %s21, 0
    %p90 = por %p88, %p89
    %s92 = sadd.s32 %s91, 1
    %p95 = scmp.eq.s32.totalorder %s15, 1
    %p96 = scmp.ne.s32.totalorder %s91, %s93
    %p97 = scmp.eq.s32.totalorder %s15, 0
    %p98 = por %p96, %p97
    %p99 = scmp.ne.s32.totalorder %s91, %s93
    %p100 = scmp.eq.s32.totalorder %s20, 1
    %p101 = por %p99, %p100
    %p102 = scmp.ne.s32.totalorder %s93, %s94
    %p103 = scmp.eq.s32.totalorder %s20, 0
    %p104 = por %p102, %p103
    %p105 = scmp.ne.s32.totalorder %s93, %s94
    %p106 = scmp.eq.s32.totalorder %s21, 1
    %p107 = por %p105, %p106
    %p109 = scmp.ne.s32.totalorder %s94, %s108
    %p110 = scmp.eq.s32.totalorder %s21, 0
    %p111 = por %p109, %p110
    %s113 = sadd.s32 %s112, 1
    %p116 = scmp.eq.s32.totalorder %s15, 1
    %p117 = scmp.ne.s32.totalorder %s112, %s114
    %p118 = scmp.eq.s32.totalorder %s15, 0
    %p119 = por %p117, %p118
    %p120 = scmp.ne.s32.totalorder %s112, %s114
    %p121 = scmp.eq.s32.totalorder %s20, 1
    %p122 = por %p120, %p121
    %p123 = scmp.ne.s32.totalorder %s114, %s115
    %p124 = scmp.eq.s32.totalorder %s20, 0
    %p125 = por %p123, %p124
    %p126 = scmp.ne.s32.totalorder %s114, %s115
    %p127 = scmp.eq.s32.totalorder %s21, 1
    %p128 = por %p126, %p127
    %p130 = scmp.ne.s32.totalorder %s115, %s129
    %p131 = scmp.eq.s32.totalorder %s21, 0
    %p132 = por %p130, %p131
    %s134 = sadd.s32 %s133, 1
    %p137 = scmp.eq.s32.totalorder %s15, 1
    %p138 = scmp.ne.s32.totalorder %s133, %s135
    %p139 = scmp.eq.s32.totalorder %s15, 0
    %p140 = por %p138, %p139
    %p141 = scmp.ne.s32.totalorder %s133, %s135
    %p142 = scmp.eq.s32.totalorder %s20, 1
    %p143 = por %p141, %p142
    %p144 = scmp.ne.s32.totalorder %s135, %s136
    %p145 = scmp.eq.s32.totalorder %s20, 0
    %p146 = por %p144, %p145
    %p147 = scmp.ne.s32.totalorder %s135, %s136
    %p148 = scmp.eq.s32.totalorder %s21, 1
    %p149 = por %p147, %p148
    %p151 = scmp.ne.s32.totalorder %s136, %s150
    %p152 = scmp.eq.s32.totalorder %s21, 0
    %p153 = por %p151, %p152
    %s155 = sadd.s32 %s154, 1
    %p158 = scmp.eq.s32.totalorder %s15, 1
    %p159 = scmp.ne.s32.totalorder %s154, %s156
    %p160 = scmp.eq.s32.totalorder %s15, 0
    %p161 = por %p159, %p160
    %p162 = scmp.ne.s32.totalorder %s154, %s156
    %p163 = scmp.eq.s32.totalorder %s20, 1
    %p164 = por %p162, %p163
    %p165 = scmp.ne.s32.totalorder %s156, %s157
    %p166 = scmp.eq.s32.totalorder %s20, 0
    %p167 = por %p165, %p166
    %p168 = scmp.ne.s32.totalorder %s156, %s157
    %p169 = scmp.eq.s32.totalorder %s21, 1
    %p170 = por %p168, %p169
    %p172 = scmp.ne.s32.totalorder %s157, %s171
    %p173 = scmp.eq.s32.totalorder %s21, 0
    %p174 = por %p172, %p173
    %s176 = sadd.s32 %s175, 1
    %p179 = scmp.eq.s32.totalorder %s15, 1
    %p180 = scmp.ne.s32.totalorder %s175, %s177
    %p181 = scmp.eq.s32.totalorder %s15, 0
    %p182 = por %p180, %p181
    %p183 = scmp.ne.s32.totalorder %s175, %s177
    %p184 = scmp.eq.s32.totalorder %s20, 1
    %p185 = por %p183, %p184
    %p186 = scmp.ne.s32.totalorder %s177, %s178
    %p187 = scmp.eq.s32.totalorder %s20, 0
    %p188 = por %p186, %p187
    %p189 = scmp.ne.s32.totalorder %s177, %s178
    %p190 = scmp.eq.s32.totalorder %s21, 1
    %p191 = por %p189, %p190
    %p193 = scmp.ne.s32.totalorder %s178, %s192
    %p194 = scmp.eq.s32.totalorder %s21, 0
    %p195 = por %p193, %p194
    %s197 = sadd.s32 %s196, 1
    %p200 = scmp.eq.s32.totalorder %s15, 1
    %p201 = scmp.ne.s32.totalorder %s196, %s198
    %p202 = scmp.eq.s32.totalorder %s15, 0
    %p203 = por %p201, %p202
    %p204 = scmp.ne.s32.totalorder %s196, %s198
    %p205 = scmp.eq.s32.totalorder %s20, 1
    %p206 = por %p204, %p205
    %p207 = scmp.ne.s32.totalorder %s198, %s199
    %p208 = scmp.eq.s32.totalorder %s20, 0
    %p209 = por %p207, %p208
    %p210 = scmp.ne.s32.totalorder %s198, %s199
    %p211 = scmp.eq.s32.totalorder %s21, 1
    %p212 = por %p210, %p211
    %p214 = scmp.ne.s32.totalorder %s199, %s213
    %p215 = scmp.eq.s32.totalorder %s21, 0
    %p216 = por %p214, %p215
    %s217 = ssub.s32 %s15, %s22
    %p218 = scmp.eq.s32.totalorder %s217, 0
    %s220 = sadd.s32 %s219, 1
    %s221 = scalar_select %p218, %s219, %s220
    %p224 = pneg %p218
    %p225 = scmp.eq.s32.totalorder %s15, 1
    %p226 = por %p224, %p225
    %p227 = scmp.ne.s32.totalorder %s219, %s222
    %p228 = scmp.eq.s32.totalorder %s15, 0
    %p229 = por %p227, %p228
    %p230 = scmp.ne.s32.totalorder %s219, %s222
    %p231 = scmp.eq.s32.totalorder %s20, 1
    %p232 = por %p230, %p231
    %p233 = scmp.ne.s32.totalorder %s222, %s223
    %p234 = scmp.eq.s32.totalorder %s20, 0
    %p235 = por %p233, %p234
    %p236 = scmp.ne.s32.totalorder %s222, %s223
    %p237 = scmp.eq.s32.totalorder %s21, 1
    %p238 = por %p236, %p237
    %p240 = scmp.ne.s32.totalorder %s223, %s239
    %p241 = scmp.eq.s32.totalorder %s21, 0
    %p242 = por %p240, %p241
    %p243 = scmp.le.s32.totalorder 1, %s15
    %p244 = scmp.lt.s32.totalorder %s15, 3
    %p245 = pnand %p243, %p244
    %p246 = pneg %p245
    // Predicated region
    $region9: #{attention_net_forward.9} parent=5 // pred_check
      _
    $region10: #{attention_net_forward.9} parent=5 // pred_check_branch
      %248 = sbr.rel (%p245) target = $region12
    $region11: #{attention_net_forward.9} parent=5 // pred_region
      %s249 = ssub.s32 %s15, 1
      // Predicated region
      $region13: #{attention_net_forward.9} parent=11 // pred_check
        %p250 = pneg %p62
      $region14: #{attention_net_forward.9} parent=11 // pred_check_branch
        %252 = sbr.rel (%p250) target = $region16
      $region15: #{attention_net_forward.9} parent=11 // pred_region
        _
      $region16: #{attention_net_forward.9} parent=11 // pred_fallthru
        _
      // Predicated region
      $region17: #{attention_net_forward.9} parent=11 // pred_check
        %p253 = pneg %p83
      $region18: #{attention_net_forward.9} parent=11 // pred_check_branch
        %255 = sbr.rel (%p253) target = $region20
      $region19: #{attention_net_forward.9} parent=11 // pred_region
        _
      $region20: #{attention_net_forward.9} parent=11 // pred_fallthru
        _
      // Predicated region
      $region21: #{attention_net_forward.9} parent=11 // pred_check
        %p256 = pneg %p104
      $region22: #{attention_net_forward.9} parent=11 // pred_check_branch
        %258 = sbr.rel (%p256) target = $region24
      $region23: #{attention_net_forward.9} parent=11 // pred_region
        _
      $region24: #{attention_net_forward.9} parent=11 // pred_fallthru
        _
      // Predicated region
      $region25: #{attention_net_forward.9} parent=11 // pred_check
        %p259 = pneg %p125
      $region26: #{attention_net_forward.9} parent=11 // pred_check_branch
        %261 = sbr.rel (%p259) target = $region28
      $region27: #{attention_net_forward.9} parent=11 // pred_region
        _
      $region28: #{attention_net_forward.9} parent=11 // pred_fallthru
        _
      // Predicated region
      $region29: #{attention_net_forward.9} parent=11 // pred_check
        %p262 = pneg %p146
      $region30: #{attention_net_forward.9} parent=11 // pred_check_branch
        %264 = sbr.rel (%p262) target = $region32
      $region31: #{attention_net_forward.9} parent=11 // pred_region
        _
      $region32: #{attention_net_forward.9} parent=11 // pred_fallthru
        _
      // Predicated region
      $region33: #{attention_net_forward.9} parent=11 // pred_check
        %p265 = pneg %p167
      $region34: #{attention_net_forward.9} parent=11 // pred_check_branch
        %267 = sbr.rel (%p265) target = $region36
      $region35: #{attention_net_forward.9} parent=11 // pred_region
        _
      $region36: #{attention_net_forward.9} parent=11 // pred_fallthru
        _
      // Predicated region
      $region37: #{attention_net_forward.9} parent=11 // pred_check
        %p268 = pneg %p188
      $region38: #{attention_net_forward.9} parent=11 // pred_check_branch
        %270 = sbr.rel (%p268) target = $region40
      $region39: #{attention_net_forward.9} parent=11 // pred_region
        _
      $region40: #{attention_net_forward.9} parent=11 // pred_fallthru
        _
      // Predicated region
      $region41: #{attention_net_forward.9} parent=11 // pred_check
        %p271 = pneg %p209
      $region42: #{attention_net_forward.9} parent=11 // pred_check_branch
        %273 = sbr.rel (%p271) target = $region44
      $region43: #{attention_net_forward.9} parent=11 // pred_region
        _
      $region44: #{attention_net_forward.9} parent=11 // pred_fallthru
        _
    $region12: #{attention_net_forward.9} parent=5 // pred_fallthru
      _
    %p274 = scmp.lt.s32.totalorder %s15, 2
    // Predicated region
    $region45: #{attention_net_forward.9} parent=5 // pred_check
      %p275 = pneg %p274
    $region46: #{attention_net_forward.9} parent=5 // pred_check_branch
      %277 = sbr.rel (%p275) target = $region48
    $region47: #{attention_net_forward.9} parent=5 // pred_region
      // Predicated region
      $region49: #{attention_net_forward.9} parent=47 // pred_check
        %p278 = pneg %p35
      $region50: #{attention_net_forward.9} parent=47 // pred_check_branch
        %280 = sbr.rel (%p278) target = $region52
      $region51: #{attention_net_forward.9} parent=47 // pred_region
        %p281 = scmp.lt.s32.totalorder %s15, 1
        %s282 = scalar_select %p281, %s15, 1
        %s283 = smul.addr %s282, 8
        %s284 = smul.addr %s283, 4
        %s285 = scalar_lea.vmem %s0, %s284
      $region52: #{attention_net_forward.9} parent=47 // pred_fallthru
        _
    $region48: #{attention_net_forward.9} parent=5 // pred_fallthru
      _
    %p286 = scmp.le.s32.totalorder 1, %s15
    %p287 = scmp.lt.s32.totalorder %s15, 3
    %p288 = pnand %p286, %p287
    %p289 = pneg %p288
    // Predicated region
    $region53: #{attention_net_forward.9} parent=5 // pred_check
      _
    $region54: #{attention_net_forward.9} parent=5 // pred_check_branch
      %291 = sbr.rel (%p288) target = $region56
    $region55: #{attention_net_forward.9} parent=5 // pred_region
      %s292 = ssub.s32 %s15, 1
      %p293 = scmp.lt.s32.totalorder %s20, 1
      %s294 = scalar_select %p293, %s20, 1
      %s295 = smul.addr %s294, 8
      %s296 = smul.addr %s295, 4
      %s297 = scalar_lea.vmem %s0, %s296
      %p298 = pneg %p41
      %p299 = pneg %p38
      %p300 = pneg %p62
      %p301 = pneg %p59
      %p302 = pneg %p83
      %p303 = pneg %p80
      %p304 = pneg %p104
      %p305 = pneg %p101
      %p306 = pneg %p125
      %p307 = pneg %p122
      %p308 = pneg %p146
      %p309 = pneg %p143
      %p310 = pneg %p167
      %p311 = pneg %p164
      %p312 = pneg %p188
      %p313 = pneg %p185
      %p314 = pneg %p209
      %p315 = pneg %p206
      %p316 = pneg %p235
      %p317 = pneg %p232
      %p318 = scmp.lt.s32.totalorder %s20, 1
      %s319 = scalar_select %p318, %s20, 1
      %s320 = smul.addr %s319, 11
      %s321 = smul.addr %s320, 8
      %s322 = scalar_lea.vmem %s9, %s321
      %p323 = scmp.lt.s32.totalorder %s20, 1
      %s324 = scalar_select %p323, %s20, 1
      %s325 = smul.addr %s324, 8
      %s326 = smul.addr %s325, 4
      %s327 = scalar_lea.vmem %s0, %s326
      %p328 = scmp.lt.s32.totalorder %s20, 1
      %s329 = scalar_select %p328, %s20, 1
      %s330 = smul.addr %s329, 11
      %s331 = smul.addr %s330, 8
      %s332 = scalar_lea.vmem %s9, %s331
      %334 = vst [vmem:[#allocation2] sm:$0xff] 0.0
      %335 = vst [vmem:[#allocation2 + $0x8] sm:$0xff] 0.0
      %336 = vst [vmem:[#allocation2 + $0x10] sm:$0xff] 0.0
      %337 = vst [vmem:[#allocation2 + $0x18] sm:$0xff] 0.0
      %338 = vst [vmem:[#allocation2 + $0x20] sm:$0xff] 0.0
      %339 = vst [vmem:[#allocation2 + $0x28] sm:$0xff] 0.0
      %340 = vst [vmem:[#allocation2 + $0x30] sm:$0xff] 0.0
      %341 = vst [vmem:[#allocation2 + $0x38] sm:$0xff] 0.0
      %342 = vst [vmem:[#allocation2 + $0x40] sm:$0xff] 0.0
      %343 = vst [vmem:[#allocation2 + $0x48] sm:$0xff] 0.0
      %344 = vst [vmem:[#allocation2 + $0x50] sm:$0xff] 0.0
      %345 = vst [vmem:[#allocation2 + $0x58] sm:$0xff] 0.0
      %346 = vst [vmem:[#allocation2 + $0x60] sm:$0xff] 0.0
      %347 = vst [vmem:[#allocation3] sm:$0xff] 0.0
      %348 = vst [vmem:[#allocation3 + $0x8] sm:$0xff] 0.0
      %349 = vst [vmem:[#allocation3 + $0x10] sm:$0xff] 0.0
      %350 = vst [vmem:[#allocation3 + $0x18] sm:$0xff] 0.0
      %351 = vst [vmem:[#allocation3 + $0x20] sm:$0xff] 0.0
      %352 = vst [vmem:[#allocation3 + $0x28] sm:$0xff] 0.0
      %353 = vst [vmem:[#allocation3 + $0x30] sm:$0xff] 0.0
      %354 = vst [vmem:[#allocation3 + $0x38] sm:$0xff] 0.0
      %355 = vst [vmem:[#allocation3 + $0x40] sm:$0xff] 0.0
      %356 = vst [vmem:[#allocation3 + $0x48] sm:$0xff] 0.0
      %357 = vst [vmem:[#allocation3 + $0x50] sm:$0xff] 0.0
      %358 = vst [vmem:[#allocation3 + $0x58] sm:$0xff] 0.0
      %359 = vst [vmem:[#allocation3 + $0x60] sm:$0xff] 0.0
      %360 = vst [vmem:[#allocation4] sm:$0xff] 0.0
      %361 = vst [vmem:[#allocation4 + $0x8] sm:$0xff] 0.0
      %362 = vst [vmem:[#allocation4 + $0x10] sm:$0xff] 0.0
      %363 = vst [vmem:[#allocation4 + $0x18] sm:$0xff] 0.0
      %364 = vst [vmem:[#allocation4 + $0x20] sm:$0xff] 0.0
      %365 = vst [vmem:[#allocation8] sm:$0xff] 0.0
      %366 = vst [vmem:[#allocation8 + $0x8] sm:$0xff] 0.0
      %367 = vst [vmem:[#allocation8 + $0x10] sm:$0xff] 0.0
      %368 = vst [vmem:[#allocation8 + $0x18] sm:$0xff] 0.0
      %369 = vst [vmem:[#allocation8 + $0x20] sm:$0xff] 0.0
      %370 = vst [vmem:[#allocation8 + $0x28] sm:$0xff] 0.0
      %371 = vst [vmem:[#allocation8 + $0x30] sm:$0xff] 0.0
      %372 = vst [vmem:[#allocation8 + $0x38] sm:$0xff] 0.0
      %373 = vst [vmem:[#allocation8 + $0x40] sm:$0xff] 0.0
      %374 = vst [vmem:[#allocation8 + $0x48] sm:$0xff] 0.0
      %375 = vst [vmem:[#allocation8 + $0x50] sm:$0xff] 0.0
      %v376 = vld [vmem:[%s327] sm:$0xf]
      %v377 = vunpack.c.l.bf16 %v376
      %378 = vst [vmem:[#allocation2 + $0xb] sm:$0xff] %v377
      %v379 = vld [vmem:[%s327 + $0x4] sm:$0xf]
      %v380 = vunpack.c.l.bf16 %v379
      %381 = vst [vmem:[#allocation2 + $0x15] sm:$0xff] %v380
      %v382 = vld [vmem:[%s327 + $0x8] sm:$0xf]
      %v383 = vunpack.c.l.bf16 %v382
      %384 = vst [vmem:[#allocation2 + $0x1f] sm:$0xff] %v383
      %v385 = vld [vmem:[%s327 + $0xc] sm:$0xf]
      %v386 = vunpack.c.l.bf16 %v385
      %387 = vst [vmem:[#allocation2 + $0x29] sm:$0xff] %v386
      %v388 = vld [vmem:[%s327 + $0x10] sm:$0xf]
      %v389 = vunpack.c.l.bf16 %v388
      %390 = vst [vmem:[#allocation2 + $0x33] sm:$0xff] %v389
      %v391 = vld [vmem:[%s327 + $0x14] sm:$0xf]
      %v392 = vunpack.c.l.bf16 %v391
      %393 = vst [vmem:[#allocation2 + $0x3d] sm:$0xff] %v392
      %v394 = vld [vmem:[%s327 + $0x18] sm:$0xf]
      %v395 = vunpack.c.l.bf16 %v394
      %396 = vst [vmem:[#allocation2 + $0x47] sm:$0xff] %v395
      %v397 = vld [vmem:[%s327 + $0x1c] sm:$0xf]
      %v398 = vunpack.c.l.bf16 %v397
      %399 = vst [vmem:[#allocation2 + $0x51] sm:$0xff] %v398
      %v400 = vld [vmem:[#allocation2] sm:$0xff]
      %v401 = vld [vmem:[#allocation2 + $0x8] sm:$0xff]
      %v402 = vld [vmem:[#allocation2 + $0x10] sm:$0xff]
      %v403 = vld [vmem:[#allocation2 + $0x18] sm:$0xff]
      %v404 = vld [vmem:[#allocation2 + $0x20] sm:$0xff]
      %v405 = vld [vmem:[#allocation2 + $0x28] sm:$0xff]
      %v406 = vld [vmem:[#allocation2 + $0x30] sm:$0xff]
      %v407 = vld [vmem:[#allocation2 + $0x38] sm:$0xff]
      %v408 = vld [vmem:[#allocation2 + $0x40] sm:$0xff]
      %v409 = vld [vmem:[#allocation2 + $0x48] sm:$0xff]
      %v410 = vpack.c.bf16 %v401, %v400
      %v411 = vpack.c.bf16 %v403, %v402
      %v412 = vpack.c.bf16 %v405, %v404
      %v413 = vpack.c.bf16 %v407, %v406
      %v414 = vpack.c.bf16 %v409, %v408
      %v415 = vld [vmem:[%s1] sm:$0xf]
      %v416 = vld [vmem:[%s1 + $0x4] sm:$0xf]
      %v417 = vld [vmem:[%s1 + $0x8] sm:$0xf]
      %v418 = vld [vmem:[%s1 + $0xc] sm:$0xf]
      %v419 = vld [vmem:[%s1 + $0x10] sm:$0xf]
      %v420 = vld [vmem:[%s1 + $0x14] sm:$0xf]
      %v421 = vld [vmem:[%s1 + $0x18] sm:$0xf]
      %v422 = vld [vmem:[%s1 + $0x1c] sm:$0xf]
      %v423 = vld [vmem:[%s1 + $0x20] sm:$0xf]
      %v424 = vld [vmem:[%s1 + $0x24] sm:$0xf]
      %v425 = vld [vmem:[%s1 + $0x28] sm:$0xf]
      %v426 = vld [vmem:[%s1 + $0x2c] sm:$0xf]
      %v427 = vld [vmem:[%s1 + $0x30] sm:$0xf]
      %v428 = vld [vmem:[%s1 + $0x34] sm:$0xf]
      %v429 = vld [vmem:[%s1 + $0x38] sm:$0xf]
      %v430 = vld [vmem:[%s1 + $0x3c] sm:$0xf]
      %v431 = vld [vmem:[#allocation2 + $0x1] sm:$0xff]
      %v432 = vld [vmem:[#allocation2 + $0x9] sm:$0xff]
      %v433 = vld [vmem:[#allocation2 + $0x11] sm:$0xff]
      %v434 = vld [vmem:[#allocation2 + $0x19] sm:$0xff]
      %v435 = vld [vmem:[#allocation2 + $0x21] sm:$0xff]
      %v436 = vld [vmem:[#allocation2 + $0x29] sm:$0xff]
      %v437 = vld [vmem:[#allocation2 + $0x31] sm:$0xff]
      %v438 = vld [vmem:[#allocation2 + $0x39] sm:$0xff]
      %v439 = vld [vmem:[#allocation2 + $0x41] sm:$0xff]
      %v440 = vld [vmem:[#allocation2 + $0x49] sm:$0xff]
      %v441 = vpack.c.bf16 %v432, %v431
      %v442 = vpack.c.bf16 %v434, %v433
      %v443 = vpack.c.bf16 %v436, %v435
      %v444 = vpack.c.bf16 %v438, %v437
      %v445 = vpack.c.bf16 %v440, %v439
      %v446 = vld [vmem:[%s1 + $0x40] sm:$0xf]
      %v447 = vld [vmem:[%s1 + $0x44] sm:$0xf]
      %v448 = vld [vmem:[%s1 + $0x48] sm:$0xf]
      %v449 = vld [vmem:[%s1 + $0x4c] sm:$0xf]
      %v450 = vld [vmem:[%s1 + $0x50] sm:$0xf]
      %v451 = vld [vmem:[%s1 + $0x54] sm:$0xf]
      %v452 = vld [vmem:[%s1 + $0x58] sm:$0xf]
      %v453 = vld [vmem:[%s1 + $0x5c] sm:$0xf]
      %v454 = vld [vmem:[%s1 + $0x60] sm:$0xf]
      %v455 = vld [vmem:[%s1 + $0x64] sm:$0xf]
      %v456 = vld [vmem:[%s1 + $0x68] sm:$0xf]
      %v457 = vld [vmem:[%s1 + $0x6c] sm:$0xf]
      %v458 = vld [vmem:[%s1 + $0x70] sm:$0xf]
      %v459 = vld [vmem:[%s1 + $0x74] sm:$0xf]
      %v460 = vld [vmem:[%s1 + $0x78] sm:$0xf]
      %v461 = vld [vmem:[%s1 + $0x7c] sm:$0xf]
      %v478 = vunpack.c.l.b16 %v446
      %v479 = vunpack.c.l.b16 %v447
      %v480 = vunpack.c.l.b16 %v448
      %v481 = vunpack.c.l.b16 %v449
      %v482 = vunpack.c.l.b16 %v450
      %v483 = vunpack.c.l.b16 %v451
      %v484 = vunpack.c.l.b16 %v452
      %v485 = vunpack.c.l.b16 %v453
      %v486 = vunpack.c.l.b16 %v454
      %v487 = vunpack.c.l.b16 %v455
      %v488 = vunpack.c.l.b16 %v456
      %v489 = vunpack.c.l.b16 %v457
      %v490 = vunpack.c.l.b16 %v458
      %v491 = vunpack.c.l.b16 %v459
      %v492 = vunpack.c.l.b16 %v460
      %v493 = vunpack.c.l.b16 %v461
      %v494 = vpack.c.b16 %v479, %v478
      %v495 = vpack.c.b16 %v481, %v480
      %v496 = vpack.c.b16 %v483, %v482
      %v497 = vpack.c.b16 %v485, %v484
      %v498 = vpack.c.b16 %v487, %v486
      %v499 = vpack.c.b16 %v489, %v488
      %v500 = vpack.c.b16 %v491, %v490
      %v501 = vpack.c.b16 %v493, %v492
      %510 = vmatprep.subr.bf16.mxu0 0
      %511 = vmatpush1.bf16.msra.mxu0 %v501
      %512 = vmatprep.subr.bf16.mxu0 0
      %513 = vmatpush1.bf16.msra.mxu0 %v500
      %514 = vmatprep.subr.bf16.mxu0 0
      %515 = vmatpush1.bf16.msra.mxu0 %v499
      %516 = vmatprep.subr.bf16.mxu0 0
      %517 = vmatpush1.bf16.msra.mxu0 %v498
      %518 = vmatprep.subr.bf16.mxu0 0
      %519 = vmatpush1.bf16.msra.mxu0 %v497
      %520 = vmatprep.subr.bf16.mxu0 0
      %521 = vmatpush1.bf16.msra.mxu0 %v496
      %522 = vmatprep.subr.bf16.mxu0 0
      %523 = vmatpush1.bf16.msra.mxu0 %v495
      %524 = vmatprep.subr.bf16.mxu0 0
      %525 = vmatpush1.bf16.msra.mxu0 %v494
      %526 = vmatprep.subr.bf16.mxu0 0
      %527 = vmatpush2.bf16.msra.mxu0 0
      %528 = vmatprep.subr.bf16.mxu0 0
      %529 = vmatpush2.bf16.msra.mxu0 0
      %530 = vmatprep.subr.bf16.mxu0 0
      %531 = vmatpush2.bf16.msra.mxu0 0
      %532 = vmatprep.subr.bf16.mxu0 0
      %533 = vmatpush2.bf16.msra.mxu0 0
      %534 = vmatprep.subr.bf16.mxu0 0
      %535 = vmatpush2.bf16.msra.mxu0 0
      %536 = vmatprep.subr.bf16.mxu0 0
      %537 = vmatpush2.bf16.msra.mxu0 0
      %538 = vmatprep.subr.bf16.mxu0 0
      %539 = vmatpush2.bf16.msra.mxu0 0
      %540 = vmatprep.subr.bf16.mxu0 0
      %541 = vmatpush2.bf16.msra.mxu0 0
      %542 = vmatprep.mubr.bf16.mxu0 0
      %543 = vmatmul.mubr.bf16.gmra.mxu0 %v441
      %v544 = vpop.f32.mrf.mxu0
      %v545 = vadd.f32 0.0, %v544
      %v546 = vpop.f32.mrf.mxu0
      %v547 = vpop.f32.mrf.mxu0
      %v548 = vadd.f32 0.0, %v547
      %v549 = vpop.f32.mrf.mxu0
      %550 = vmatprep.mubr.bf16.mxu0 0
      %551 = vmatmul.mubr.bf16.gmra.mxu0 %v442
      %v552 = vpop.f32.mrf.mxu0
      %v553 = vadd.f32 0.0, %v552
      %v554 = vpop.f32.mrf.mxu0
      %v555 = vpop.f32.mrf.mxu0
      %v556 = vadd.f32 0.0, %v555
      %v557 = vpop.f32.mrf.mxu0
      %558 = vmatprep.mubr.bf16.mxu0 0
      %559 = vmatmul.mubr.bf16.gmra.mxu0 %v443
      %v560 = vpop.f32.mrf.mxu0
      %v561 = vadd.f32 0.0, %v560
      %v562 = vpop.f32.mrf.mxu0
      %v563 = vpop.f32.mrf.mxu0
      %v564 = vadd.f32 0.0, %v563
      %v565 = vpop.f32.mrf.mxu0
      %566 = vmatprep.mubr.bf16.mxu0 0
      %567 = vmatmul.mubr.bf16.gmra.mxu0 %v444
      %v568 = vpop.f32.mrf.mxu0
      %v569 = vadd.f32 0.0, %v568
      %v570 = vpop.f32.mrf.mxu0
      %v571 = vpop.f32.mrf.mxu0
      %v572 = vadd.f32 0.0, %v571
      %v573 = vpop.f32.mrf.mxu0
      %574 = vmatprep.mubr.bf16.mxu0 0
      %575 = vmatmul.mubr.bf16.gmra.mxu0 %v445
      %v576 = vpop.f32.mrf.mxu0
      %v577 = vadd.f32 0.0, %v576
      %v578 = vpop.f32.mrf.mxu0
      %v579 = vpop.f32.mrf.mxu0
      %v580 = vadd.f32 0.0, %v579
      %v581 = vpop.f32.mrf.mxu0
      %582 = vdwg.mxu0
      %v599 = vunpack.c.l.b16 %v415
      %v600 = vunpack.c.l.b16 %v416
      %v601 = vunpack.c.l.b16 %v417
      %v602 = vunpack.c.l.b16 %v418
      %v603 = vunpack.c.l.b16 %v419
      %v604 = vunpack.c.l.b16 %v420
      %v605 = vunpack.c.l.b16 %v421
      %v606 = vunpack.c.l.b16 %v422
      %v607 = vunpack.c.l.b16 %v423
      %v608 = vunpack.c.l.b16 %v424
      %v609 = vunpack.c.l.b16 %v425
      %v610 = vunpack.c.l.b16 %v426
      %v611 = vunpack.c.l.b16 %v427
      %v612 = vunpack.c.l.b16 %v428
      %v613 = vunpack.c.l.b16 %v429
      %v614 = vunpack.c.l.b16 %v430
      %v615 = vpack.c.b16 %v600, %v599
      %v616 = vpack.c.b16 %v602, %v601
      %v617 = vpack.c.b16 %v604, %v603
      %v618 = vpack.c.b16 %v606, %v605
      %v619 = vpack.c.b16 %v608, %v607
      %v620 = vpack.c.b16 %v610, %v609
      %v621 = vpack.c.b16 %v612, %v611
      %v622 = vpack.c.b16 %v614, %v613
      %631 = vmatprep.subr.bf16.mxu0 0
      %632 = vmatpush1.bf16.msra.mxu0 %v622
      %633 = vmatprep.subr.bf16.mxu0 0
      %634 = vmatpush1.bf16.msra.mxu0 %v621
      %635 = vmatprep.subr.bf16.mxu0 0
      %636 = vmatpush1.bf16.msra.mxu0 %v620
      %637 = vmatprep.subr.bf16.mxu0 0
      %638 = vmatpush1.bf16.msra.mxu0 %v619
      %639 = vmatprep.subr.bf16.mxu0 0
      %640 = vmatpush1.bf16.msra.mxu0 %v618
      %641 = vmatprep.subr.bf16.mxu0 0
      %642 = vmatpush1.bf16.msra.mxu0 %v617
      %643 = vmatprep.subr.bf16.mxu0 0
      %644 = vmatpush1.bf16.msra.mxu0 %v616
      %645 = vmatprep.subr.bf16.mxu0 0
      %646 = vmatpush1.bf16.msra.mxu0 %v615
      %647 = vmatprep.subr.bf16.mxu0 0
      %648 = vmatpush2.bf16.msra.mxu0 0
      %649 = vmatprep.subr.bf16.mxu0 0
      %650 = vmatpush2.bf16.msra.mxu0 0
      %651 = vmatprep.subr.bf16.mxu0 0
      %652 = vmatpush2.bf16.msra.mxu0 0
      %653 = vmatprep.subr.bf16.mxu0 0
      %654 = vmatpush2.bf16.msra.mxu0 0
      %655 = vmatprep.subr.bf16.mxu0 0
      %656 = vmatpush2.bf16.msra.mxu0 0
      %657 = vmatprep.subr.bf16.mxu0 0
      %658 = vmatpush2.bf16.msra.mxu0 0
      %659 = vmatprep.subr.bf16.mxu0 0
      %660 = vmatpush2.bf16.msra.mxu0 0
      %661 = vmatprep.subr.bf16.mxu0 0
      %662 = vmatpush2.bf16.msra.mxu0 0
      %663 = vmatprep.mubr.bf16.mxu0 0
      %664 = vmatmul.mubr.bf16.gmra.mxu0 %v410
      %v665 = vpop.f32.mrf.mxu0
      %v666 = vadd.f32 %v545, %v665
      %v667 = vpop.f32.mrf.mxu0
      %v668 = vpop.f32.mrf.mxu0
      %v669 = vadd.f32 %v548, %v668
      %v670 = vpop.f32.mrf.mxu0
      %671 = vmatprep.mubr.bf16.mxu0 0
      %672 = vmatmul.mubr.bf16.gmra.mxu0 %v411
      %v673 = vpop.f32.mrf.mxu0
      %v674 = vadd.f32 %v553, %v673
      %v675 = vpop.f32.mrf.mxu0
      %v676 = vpop.f32.mrf.mxu0
      %v677 = vadd.f32 %v556, %v676
      %v678 = vpop.f32.mrf.mxu0
      %679 = vmatprep.mubr.bf16.mxu0 0
      %680 = vmatmul.mubr.bf16.gmra.mxu0 %v412
      %v681 = vpop.f32.mrf.mxu0
      %v682 = vadd.f32 %v561, %v681
      %v683 = vpop.f32.mrf.mxu0
      %v684 = vpop.f32.mrf.mxu0
      %v685 = vadd.f32 %v564, %v684
      %v686 = vpop.f32.mrf.mxu0
      %687 = vmatprep.mubr.bf16.mxu0 0
      %688 = vmatmul.mubr.bf16.gmra.mxu0 %v413
      %v689 = vpop.f32.mrf.mxu0
      %v690 = vadd.f32 %v569, %v689
      %v691 = vpop.f32.mrf.mxu0
      %v692 = vpop.f32.mrf.mxu0
      %v693 = vadd.f32 %v572, %v692
      %v694 = vpop.f32.mrf.mxu0
      %695 = vmatprep.mubr.bf16.mxu0 0
      %696 = vmatmul.mubr.bf16.gmra.mxu0 %v414
      %v697 = vpop.f32.mrf.mxu0
      %v698 = vadd.f32 %v577, %v697
      %v699 = vpop.f32.mrf.mxu0
      %v700 = vpop.f32.mrf.mxu0
      %v701 = vadd.f32 %v580, %v700
      %v702 = vpop.f32.mrf.mxu0
      %703 = vdwg.mxu0
      %v704 = vld [vmem:[#allocation2 + $0x2] sm:$0xff]
      %v705 = vld [vmem:[#allocation2 + $0xa] sm:$0xff]
      %v706 = vld [vmem:[#allocation2 + $0x12] sm:$0xff]
      %v707 = vld [vmem:[#allocation2 + $0x1a] sm:$0xff]
      %v708 = vld [vmem:[#allocation2 + $0x22] sm:$0xff]
      %v709 = vld [vmem:[#allocation2 + $0x2a] sm:$0xff]
      %v710 = vld [vmem:[#allocation2 + $0x32] sm:$0xff]
      %v711 = vld [vmem:[#allocation2 + $0x3a] sm:$0xff]
      %v712 = vld [vmem:[#allocation2 + $0x42] sm:$0xff]
      %v713 = vld [vmem:[#allocation2 + $0x4a] sm:$0xff]
      %v714 = vpack.c.bf16 %v705, %v704
      %v715 = vpack.c.bf16 %v707, %v706
      %v716 = vpack.c.bf16 %v709, %v708
      %v717 = vpack.c.bf16 %v711, %v710
      %v718 = vpack.c.bf16 %v713, %v712
      %v719 = vld [vmem:[%s1 + $0x80] sm:$0xf]
      %v720 = vld [vmem:[%s1 + $0x84] sm:$0xf]
      %v721 = vld [vmem:[%s1 + $0x88] sm:$0xf]
      %v722 = vld [vmem:[%s1 + $0x8c] sm:$0xf]
      %v723 = vld [vmem:[%s1 + $0x90] sm:$0xf]
      %v724 = vld [vmem:[%s1 + $0x94] sm:$0xf]
      %v725 = vld [vmem:[%s1 + $0x98] sm:$0xf]
      %v726 = vld [vmem:[%s1 + $0x9c] sm:$0xf]
      %v727 = vld [vmem:[%s1 + $0xa0] sm:$0xf]
      %v728 = vld [vmem:[%s1 + $0xa4] sm:$0xf]
      %v729 = vld [vmem:[%s1 + $0xa8] sm:$0xf]
      %v730 = vld [vmem:[%s1 + $0xac] sm:$0xf]
      %v731 = vld [vmem:[%s1 + $0xb0] sm:$0xf]
      %v732 = vld [vmem:[%s1 + $0xb4] sm:$0xf]
      %v733 = vld [vmem:[%s1 + $0xb8] sm:$0xf]
      %v734 = vld [vmem:[%s1 + $0xbc] sm:$0xf]
      %v751 = vunpack.c.l.b16 %v719
      %v752 = vunpack.c.l.b16 %v720
      %v753 = vunpack.c.l.b16 %v721
      %v754 = vunpack.c.l.b16 %v722
      %v755 = vunpack.c.l.b16 %v723
      %v756 = vunpack.c.l.b16 %v724
      %v757 = vunpack.c.l.b16 %v725
      %v758 = vunpack.c.l.b16 %v726
      %v759 = vunpack.c.l.b16 %v727
      %v760 = vunpack.c.l.b16 %v728
      %v761 = vunpack.c.l.b16 %v729
      %v762 = vunpack.c.l.b16 %v730
      %v763 = vunpack.c.l.b16 %v731
      %v764 = vunpack.c.l.b16 %v732
      %v765 = vunpack.c.l.b16 %v733
      %v766 = vunpack.c.l.b16 %v734
      %v767 = vpack.c.b16 %v752, %v751
      %v768 = vpack.c.b16 %v754, %v753
      %v769 = vpack.c.b16 %v756, %v755
      %v770 = vpack.c.b16 %v758, %v757
      %v771 = vpack.c.b16 %v760, %v759
      %v772 = vpack.c.b16 %v762, %v761
      %v773 = vpack.c.b16 %v764, %v763
      %v774 = vpack.c.b16 %v766, %v765
      %783 = vmatprep.subr.bf16.mxu0 0
      %784 = vmatpush1.bf16.msra.mxu0 %v774
      %785 = vmatprep.subr.bf16.mxu0 0
      %786 = vmatpush1.bf16.msra.mxu0 %v773
      %787 = vmatprep.subr.bf16.mxu0 0
      %788 = vmatpush1.bf16.msra.mxu0 %v772
      %789 = vmatprep.subr.bf16.mxu0 0
      %790 = vmatpush1.bf16.msra.mxu0 %v771
      %791 = vmatprep.subr.bf16.mxu0 0
      %792 = vmatpush1.bf16.msra.mxu0 %v770
      %793 = vmatprep.subr.bf16.mxu0 0
      %794 = vmatpush1.bf16.msra.mxu0 %v769
      %795 = vmatprep.subr.bf16.mxu0 0
      %796 = vmatpush1.bf16.msra.mxu0 %v768
      %797 = vmatprep.subr.bf16.mxu0 0
      %798 = vmatpush1.bf16.msra.mxu0 %v767
      %799 = vmatprep.subr.bf16.mxu0 0
      %800 = vmatpush2.bf16.msra.mxu0 0
      %801 = vmatprep.subr.bf16.mxu0 0
      %802 = vmatpush2.bf16.msra.mxu0 0
      %803 = vmatprep.subr.bf16.mxu0 0
      %804 = vmatpush2.bf16.msra.mxu0 0
      %805 = vmatprep.subr.bf16.mxu0 0
      %806 = vmatpush2.bf16.msra.mxu0 0
      %807 = vmatprep.subr.bf16.mxu0 0
      %808 = vmatpush2.bf16.msra.mxu0 0
      %809 = vmatprep.subr.bf16.mxu0 0
      %810 = vmatpush2.bf16.msra.mxu0 0
      %811 = vmatprep.subr.bf16.mxu0 0
      %812 = vmatpush2.bf16.msra.mxu0 0
      %813 = vmatprep.subr.bf16.mxu0 0
      %814 = vmatpush2.bf16.msra.mxu0 0
      %815 = vmatprep.mubr.bf16.mxu0 0
      %816 = vmatmul.mubr.bf16.gmra.mxu0 %v714
      %v817 = vpop.f32.mrf.mxu0
      %v818 = vadd.f32 0.0, %v817
      %v819 = vpop.f32.mrf.mxu0
      %v820 = vpop.f32.mrf.mxu0
      %v821 = vadd.f32 0.0, %v820
      %v822 = vpop.f32.mrf.mxu0
      %823 = vmatprep.mubr.bf16.mxu0 0
      %824 = vmatmul.mubr.bf16.gmra.mxu0 %v715
      %v825 = vpop.f32.mrf.mxu0
      %v826 = vadd.f32 0.0, %v825
      %v827 = vpop.f32.mrf.mxu0
      %v828 = vpop.f32.mrf.mxu0
      %v829 = vadd.f32 0.0, %v828
      %v830 = vpop.f32.mrf.mxu0
      %831 = vmatprep.mubr.bf16.mxu0 0
      %832 = vmatmul.mubr.bf16.gmra.mxu0 %v716
      %v833 = vpop.f32.mrf.mxu0
      %v834 = vadd.f32 0.0, %v833
      %v835 = vpop.f32.mrf.mxu0
      %v836 = vpop.f32.mrf.mxu0
      %v837 = vadd.f32 0.0, %v836
      %v838 = vpop.f32.mrf.mxu0
      %839 = vmatprep.mubr.bf16.mxu0 0
      %840 = vmatmul.mubr.bf16.gmra.mxu0 %v717
      %v841 = vpop.f32.mrf.mxu0
      %v842 = vadd.f32 0.0, %v841
      %v843 = vpop.f32.mrf.mxu0
      %v844 = vpop.f32.mrf.mxu0
      %v845 = vadd.f32 0.0, %v844
      %v846 = vpop.f32.mrf.mxu0
      %847 = vmatprep.mubr.bf16.mxu0 0
      %848 = vmatmul.mubr.bf16.gmra.mxu0 %v718
      %v849 = vpop.f32.mrf.mxu0
      %v850 = vadd.f32 0.0, %v849
      %v851 = vpop.f32.mrf.mxu0
      %v852 = vpop.f32.mrf.mxu0
      %v853 = vadd.f32 0.0, %v852
      %v854 = vpop.f32.mrf.mxu0
      %855 = vdwg.mxu0
      %v856 = vadd.f32 %v666, %v818
      %v857 = vadd.f32 %v669, %v821
      %v858 = vadd.f32 %v674, %v826
      %v859 = vadd.f32 %v677, %v829
      %v860 = vadd.f32 %v682, %v834
      %v861 = vadd.f32 %v685, %v837
      %v862 = vadd.f32 %v690, %v842
      %v863 = vadd.f32 %v693, %v845
      %v864 = vadd.f32 %v698, %v850
      %v865 = vadd.f32 %v701, %v853
      %v866 = vld [vmem:[#allocation2 + $0xa] sm:$0xff]
      %v867 = vld [vmem:[#allocation2 + $0x12] sm:$0xff]
      %v868 = vld [vmem:[#allocation2 + $0x1a] sm:$0xff]
      %v869 = vld [vmem:[#allocation2 + $0x22] sm:$0xff]
      %v870 = vld [vmem:[#allocation2 + $0x2a] sm:$0xff]
      %v871 = vld [vmem:[#allocation2 + $0x32] sm:$0xff]
      %v872 = vld [vmem:[#allocation2 + $0x3a] sm:$0xff]
      %v873 = vld [vmem:[#allocation2 + $0x42] sm:$0xff]
      %v874 = vld [vmem:[#allocation2 + $0x4a] sm:$0xff]
      %v875 = vld [vmem:[#allocation2 + $0x52] sm:$0xff]
      %v876 = vpack.c.bf16 %v867, %v866
      %v877 = vpack.c.bf16 %v869, %v868
      %v878 = vpack.c.bf16 %v871, %v870
      %v879 = vpack.c.bf16 %v873, %v872
      %v880 = vpack.c.bf16 %v875, %v874
      %v881 = vld [vmem:[%s1 + $0xc0] sm:$0xf]
      %v882 = vld [vmem:[%s1 + $0xc4] sm:$0xf]
      %v883 = vld [vmem:[%s1 + $0xc8] sm:$0xf]
      %v884 = vld [vmem:[%s1 + $0xcc] sm:$0xf]
      %v885 = vld [vmem:[%s1 + $0xd0] sm:$0xf]
      %v886 = vld [vmem:[%s1 + $0xd4] sm:$0xf]
      %v887 = vld [vmem:[%s1 + $0xd8] sm:$0xf]
      %v888 = vld [vmem:[%s1 + $0xdc] sm:$0xf]
      %v889 = vld [vmem:[%s1 + $0xe0] sm:$0xf]
      %v890 = vld [vmem:[%s1 + $0xe4] sm:$0xf]
      %v891 = vld [vmem:[%s1 + $0xe8] sm:$0xf]
      %v892 = vld [vmem:[%s1 + $0xec] sm:$0xf]
      %v893 = vld [vmem:[%s1 + $0xf0] sm:$0xf]
      %v894 = vld [vmem:[%s1 + $0xf4] sm:$0xf]
      %v895 = vld [vmem:[%s1 + $0xf8] sm:$0xf]
      %v896 = vld [vmem:[%s1 + $0xfc] sm:$0xf]
      %v913 = vunpack.c.l.b16 %v881
      %v914 = vunpack.c.l.b16 %v882
      %v915 = vunpack.c.l.b16 %v883
      %v916 = vunpack.c.l.b16 %v884
      %v917 = vunpack.c.l.b16 %v885
      %v918 = vunpack.c.l.b16 %v886
      %v919 = vunpack.c.l.b16 %v887
      %v920 = vunpack.c.l.b16 %v888
      %v921 = vunpack.c.l.b16 %v889
      %v922 = vunpack.c.l.b16 %v890
      %v923 = vunpack.c.l.b16 %v891
      %v924 = vunpack.c.l.b16 %v892
      %v925 = vunpack.c.l.b16 %v893
      %v926 = vunpack.c.l.b16 %v894
      %v927 = vunpack.c.l.b16 %v895
      %v928 = vunpack.c.l.b16 %v896
      %v929 = vpack.c.b16 %v914, %v913
      %v930 = vpack.c.b16 %v916, %v915
      %v931 = vpack.c.b16 %v918, %v917
      %v932 = vpack.c.b16 %v920, %v919
      %v933 = vpack.c.b16 %v922, %v921
      %v934 = vpack.c.b16 %v924, %v923
      %v935 = vpack.c.b16 %v926, %v925
      %v936 = vpack.c.b16 %v928, %v927
      %945 = vmatprep.subr.bf16.mxu0 0
      %946 = vmatpush1.bf16.msra.mxu0 %v936
      %947 = vmatprep.subr.bf16.mxu0 0
      %948 = vmatpush1.bf16.msra.mxu0 %v935
      %949 = vmatprep.subr.bf16.mxu0 0
      %950 = vmatpush1.bf16.msra.mxu0 %v934
      %951 = vmatprep.subr.bf16.mxu0 0
      %952 = vmatpush1.bf16.msra.mxu0 %v933
      %953 = vmatprep.subr.bf16.mxu0 0
      %954 = vmatpush1.bf16.msra.mxu0 %v932
      %955 = vmatprep.subr.bf16.mxu0 0
      %956 = vmatpush1.bf16.msra.mxu0 %v931
      %957 = vmatprep.subr.bf16.mxu0 0
      %958 = vmatpush1.bf16.msra.mxu0 %v930
      %959 = vmatprep.subr.bf16.mxu0 0
      %960 = vmatpush1.bf16.msra.mxu0 %v929
      %961 = vmatprep.subr.bf16.mxu0 0
      %962 = vmatpush2.bf16.msra.mxu0 0
      %963 = vmatprep.subr.bf16.mxu0 0
      %964 = vmatpush2.bf16.msra.mxu0 0
      %965 = vmatprep.subr.bf16.mxu0 0
      %966 = vmatpush2.bf16.msra.mxu0 0
      %967 = vmatprep.subr.bf16.mxu0 0
      %968 = vmatpush2.bf16.msra.mxu0 0
      %969 = vmatprep.subr.bf16.mxu0 0
      %970 = vmatpush2.bf16.msra.mxu0 0
      %971 = vmatprep.subr.bf16.mxu0 0
      %972 = vmatpush2.bf16.msra.mxu0 0
      %973 = vmatprep.subr.bf16.mxu0 0
      %974 = vmatpush2.bf16.msra.mxu0 0
      %975 = vmatprep.subr.bf16.mxu0 0
      %976 = vmatpush2.bf16.msra.mxu0 0
      %977 = vmatprep.mubr.bf16.mxu0 0
      %978 = vmatmul.mubr.bf16.gmra.mxu0 %v876
      %v979 = vpop.f32.mrf.mxu0
      %v980 = vadd.f32 0.0, %v979
      %v981 = vpop.f32.mrf.mxu0
      %v982 = vpop.f32.mrf.mxu0
      %v983 = vadd.f32 0.0, %v982
      %v984 = vpop.f32.mrf.mxu0
      %985 = vmatprep.mubr.bf16.mxu0 0
      %986 = vmatmul.mubr.bf16.gmra.mxu0 %v877
      %v987 = vpop.f32.mrf.mxu0
      %v988 = vadd.f32 0.0, %v987
      %v989 = vpop.f32.mrf.mxu0
      %v990 = vpop.f32.mrf.mxu0
      %v991 = vadd.f32 0.0, %v990
      %v992 = vpop.f32.mrf.mxu0
      %993 = vmatprep.mubr.bf16.mxu0 0
      %994 = vmatmul.mubr.bf16.gmra.mxu0 %v878
      %v995 = vpop.f32.mrf.mxu0
      %v996 = vadd.f32 0.0, %v995
      %v997 = vpop.f32.mrf.mxu0
      %v998 = vpop.f32.mrf.mxu0
      %v999 = vadd.f32 0.0, %v998
      %v1000 = vpop.f32.mrf.mxu0
      %1001 = vmatprep.mubr.bf16.mxu0 0
      %1002 = vmatmul.mubr.bf16.gmra.mxu0 %v879
      %v1003 = vpop.f32.mrf.mxu0
      %v1004 = vadd.f32 0.0, %v1003
      %v1005 = vpop.f32.mrf.mxu0
      %v1006 = vpop.f32.mrf.mxu0
      %v1007 = vadd.f32 0.0, %v1006
      %v1008 = vpop.f32.mrf.mxu0
      %1009 = vmatprep.mubr.bf16.mxu0 0
      %1010 = vmatmul.mubr.bf16.gmra.mxu0 %v880
      %v1011 = vpop.f32.mrf.mxu0
      %v1012 = vadd.f32 0.0, %v1011
      %v1013 = vpop.f32.mrf.mxu0
      %v1014 = vpop.f32.mrf.mxu0
      %v1015 = vadd.f32 0.0, %v1014
      %v1016 = vpop.f32.mrf.mxu0
      %1017 = vdwg.mxu0
      %v1018 = vadd.f32 %v856, %v980
      %v1019 = vadd.f32 %v857, %v983
      %v1020 = vadd.f32 %v858, %v988
      %v1021 = vadd.f32 %v859, %v991
      %v1022 = vadd.f32 %v860, %v996
      %v1023 = vadd.f32 %v861, %v999
      %v1024 = vadd.f32 %v862, %v1004
      %v1025 = vadd.f32 %v863, %v1007
      %v1026 = vadd.f32 %v864, %v1012
      %v1027 = vadd.f32 %v865, %v1015
      %v1028 = vld [vmem:[#allocation2 + $0xb] sm:$0xff]
      %v1029 = vld [vmem:[#allocation2 + $0x13] sm:$0xff]
      %v1030 = vld [vmem:[#allocation2 + $0x1b] sm:$0xff]
      %v1031 = vld [vmem:[#allocation2 + $0x23] sm:$0xff]
      %v1032 = vld [vmem:[#allocation2 + $0x2b] sm:$0xff]
      %v1033 = vld [vmem:[#allocation2 + $0x33] sm:$0xff]
      %v1034 = vld [vmem:[#allocation2 + $0x3b] sm:$0xff]
      %v1035 = vld [vmem:[#allocation2 + $0x43] sm:$0xff]
      %v1036 = vld [vmem:[#allocation2 + $0x4b] sm:$0xff]
      %v1037 = vld [vmem:[#allocation2 + $0x53] sm:$0xff]
      %v1038 = vpack.c.bf16 %v1029, %v1028
      %v1039 = vpack.c.bf16 %v1031, %v1030
      %v1040 = vpack.c.bf16 %v1033, %v1032
      %v1041 = vpack.c.bf16 %v1035, %v1034
      %v1042 = vpack.c.bf16 %v1037, %v1036
      %v1043 = vld [vmem:[%s1 + $0x100] sm:$0xf]
      %v1044 = vld [vmem:[%s1 + $0x104] sm:$0xf]
      %v1045 = vld [vmem:[%s1 + $0x108] sm:$0xf]
      %v1046 = vld [vmem:[%s1 + $0x10c] sm:$0xf]
      %v1047 = vld [vmem:[%s1 + $0x110] sm:$0xf]
      %v1048 = vld [vmem:[%s1 + $0x114] sm:$0xf]
      %v1049 = vld [vmem:[%s1 + $0x118] sm:$0xf]
      %v1050 = vld [vmem:[%s1 + $0x11c] sm:$0xf]
      %v1051 = vld [vmem:[%s1 + $0x120] sm:$0xf]
      %v1052 = vld [vmem:[%s1 + $0x124] sm:$0xf]
      %v1053 = vld [vmem:[%s1 + $0x128] sm:$0xf]
      %v1054 = vld [vmem:[%s1 + $0x12c] sm:$0xf]
      %v1055 = vld [vmem:[%s1 + $0x130] sm:$0xf]
      %v1056 = vld [vmem:[%s1 + $0x134] sm:$0xf]
      %v1057 = vld [vmem:[%s1 + $0x138] sm:$0xf]
      %v1058 = vld [vmem:[%s1 + $0x13c] sm:$0xf]
      %v1075 = vunpack.c.l.b16 %v1043
      %v1076 = vunpack.c.l.b16 %v1044
      %v1077 = vunpack.c.l.b16 %v1045
      %v1078 = vunpack.c.l.b16 %v1046
      %v1079 = vunpack.c.l.b16 %v1047
      %v1080 = vunpack.c.l.b16 %v1048
      %v1081 = vunpack.c.l.b16 %v1049
      %v1082 = vunpack.c.l.b16 %v1050
      %v1083 = vunpack.c.l.b16 %v1051
      %v1084 = vunpack.c.l.b16 %v1052
      %v1085 = vunpack.c.l.b16 %v1053
      %v1086 = vunpack.c.l.b16 %v1054
      %v1087 = vunpack.c.l.b16 %v1055
      %v1088 = vunpack.c.l.b16 %v1056
      %v1089 = vunpack.c.l.b16 %v1057
      %v1090 = vunpack.c.l.b16 %v1058
      %v1091 = vpack.c.b16 %v1076, %v1075
      %v1092 = vpack.c.b16 %v1078, %v1077
      %v1093 = vpack.c.b16 %v1080, %v1079
      %v1094 = vpack.c.b16 %v1082, %v1081
      %v1095 = vpack.c.b16 %v1084, %v1083
      %v1096 = vpack.c.b16 %v1086, %v1085
      %v1097 = vpack.c.b16 %v1088, %v1087
      %v1098 = vpack.c.b16 %v1090, %v1089
      %1107 = vmatprep.subr.bf16.mxu0 0
      %1108 = vmatpush1.bf16.msra.mxu0 %v1098
      %1109 = vmatprep.subr.bf16.mxu0 0
      %1110 = vmatpush1.bf16.msra.mxu0 %v1097
      %1111 = vmatprep.subr.bf16.mxu0 0
      %1112 = vmatpush1.bf16.msra.mxu0 %v1096
      %1113 = vmatprep.subr.bf16.mxu0 0
      %1114 = vmatpush1.bf16.msra.mxu0 %v1095
      %1115 = vmatprep.subr.bf16.mxu0 0
      %1116 = vmatpush1.bf16.msra.mxu0 %v1094
      %1117 = vmatprep.subr.bf16.mxu0 0
      %1118 = vmatpush1.bf16.msra.mxu0 %v1093
      %1119 = vmatprep.subr.bf16.mxu0 0
      %1120 = vmatpush1.bf16.msra.mxu0 %v1092
      %1121 = vmatprep.subr.bf16.mxu0 0
      %1122 = vmatpush1.bf16.msra.mxu0 %v1091
      %1123 = vmatprep.subr.bf16.mxu0 0
      %1124 = vmatpush2.bf16.msra.mxu0 0
      %1125 = vmatprep.subr.bf16.mxu0 0
      %1126 = vmatpush2.bf16.msra.mxu0 0
      %1127 = vmatprep.subr.bf16.mxu0 0
      %1128 = vmatpush2.bf16.msra.mxu0 0
      %1129 = vmatprep.subr.bf16.mxu0 0
      %1130 = vmatpush2.bf16.msra.mxu0 0
      %1131 = vmatprep.subr.bf16.mxu0 0
      %1132 = vmatpush2.bf16.msra.mxu0 0
      %1133 = vmatprep.subr.bf16.mxu0 0
      %1134 = vmatpush2.bf16.msra.mxu0 0
      %1135 = vmatprep.subr.bf16.mxu0 0
      %1136 = vmatpush2.bf16.msra.mxu0 0
      %1137 = vmatprep.subr.bf16.mxu0 0
      %1138 = vmatpush2.bf16.msra.mxu0 0
      %1139 = vmatprep.mubr.bf16.mxu0 0
      %1140 = vmatmul.mubr.bf16.gmra.mxu0 %v1038
      %v1141 = vpop.f32.mrf.mxu0
      %v1142 = vadd.f32 0.0, %v1141
      %v1143 = vpop.f32.mrf.mxu0
      %v1144 = vpop.f32.mrf.mxu0
      %v1145 = vadd.f32 0.0, %v1144
      %v1146 = vpop.f32.mrf.mxu0
      %1147 = vmatprep.mubr.bf16.mxu0 0
      %1148 = vmatmul.mubr.bf16.gmra.mxu0 %v1039
      %v1149 = vpop.f32.mrf.mxu0
      %v1150 = vadd.f32 0.0, %v1149
      %v1151 = vpop.f32.mrf.mxu0
      %v1152 = vpop.f32.mrf.mxu0
      %v1153 = vadd.f32 0.0, %v1152
      %v1154 = vpop.f32.mrf.mxu0
      %1155 = vmatprep.mubr.bf16.mxu0 0
      %1156 = vmatmul.mubr.bf16.gmra.mxu0 %v1040
      %v1157 = vpop.f32.mrf.mxu0
      %v1158 = vadd.f32 0.0, %v1157
      %v1159 = vpop.f32.mrf.mxu0
      %v1160 = vpop.f32.mrf.mxu0
      %v1161 = vadd.f32 0.0, %v1160
      %v1162 = vpop.f32.mrf.mxu0
      %1163 = vmatprep.mubr.bf16.mxu0 0
      %1164 = vmatmul.mubr.bf16.gmra.mxu0 %v1041
      %v1165 = vpop.f32.mrf.mxu0
      %v1166 = vadd.f32 0.0, %v1165
      %v1167 = vpop.f32.mrf.mxu0
      %v1168 = vpop.f32.mrf.mxu0
      %v1169 = vadd.f32 0.0, %v1168
      %v1170 = vpop.f32.mrf.mxu0
      %1171 = vmatprep.mubr.bf16.mxu0 0
      %1172 = vmatmul.mubr.bf16.gmra.mxu0 %v1042
      %v1173 = vpop.f32.mrf.mxu0
      %v1174 = vadd.f32 0.0, %v1173
      %v1175 = vpop.f32.mrf.mxu0
      %v1176 = vpop.f32.mrf.mxu0
      %v1177 = vadd.f32 0.0, %v1176
      %v1178 = vpop.f32.mrf.mxu0
      %1179 = vdwg.mxu0
      %v1180 = vadd.f32 %v1018, %v1142
      %v1181 = vadd.f32 %v1019, %v1145
      %v1182 = vadd.f32 %v1020, %v1150
      %v1183 = vadd.f32 %v1021, %v1153
      %v1184 = vadd.f32 %v1022, %v1158
      %v1185 = vadd.f32 %v1023, %v1161
      %v1186 = vadd.f32 %v1024, %v1166
      %v1187 = vadd.f32 %v1025, %v1169
      %v1188 = vadd.f32 %v1026, %v1174
      %v1189 = vadd.f32 %v1027, %v1177
      %v1190 = vld [vmem:[#allocation2 + $0xc] sm:$0xff]
      %v1191 = vld [vmem:[#allocation2 + $0x14] sm:$0xff]
      %v1192 = vld [vmem:[#allocation2 + $0x1c] sm:$0xff]
      %v1193 = vld [vmem:[#allocation2 + $0x24] sm:$0xff]
      %v1194 = vld [vmem:[#allocation2 + $0x2c] sm:$0xff]
      %v1195 = vld [vmem:[#allocation2 + $0x34] sm:$0xff]
      %v1196 = vld [vmem:[#allocation2 + $0x3c] sm:$0xff]
      %v1197 = vld [vmem:[#allocation2 + $0x44] sm:$0xff]
      %v1198 = vld [vmem:[#allocation2 + $0x4c] sm:$0xff]
      %v1199 = vld [vmem:[#allocation2 + $0x54] sm:$0xff]
      %v1200 = vpack.c.bf16 %v1191, %v1190
      %v1201 = vpack.c.bf16 %v1193, %v1192
      %v1202 = vpack.c.bf16 %v1195, %v1194
      %v1203 = vpack.c.bf16 %v1197, %v1196
      %v1204 = vpack.c.bf16 %v1199, %v1198
      %v1205 = vld [vmem:[%s1 + $0x140] sm:$0xf]
      %v1206 = vld [vmem:[%s1 + $0x144] sm:$0xf]
      %v1207 = vld [vmem:[%s1 + $0x148] sm:$0xf]
      %v1208 = vld [vmem:[%s1 + $0x14c] sm:$0xf]
      %v1209 = vld [vmem:[%s1 + $0x150] sm:$0xf]
      %v1210 = vld [vmem:[%s1 + $0x154] sm:$0xf]
      %v1211 = vld [vmem:[%s1 + $0x158] sm:$0xf]
      %v1212 = vld [vmem:[%s1 + $0x15c] sm:$0xf]
      %v1213 = vld [vmem:[%s1 + $0x160] sm:$0xf]
      %v1214 = vld [vmem:[%s1 + $0x164] sm:$0xf]
      %v1215 = vld [vmem:[%s1 + $0x168] sm:$0xf]
      %v1216 = vld [vmem:[%s1 + $0x16c] sm:$0xf]
      %v1217 = vld [vmem:[%s1 + $0x170] sm:$0xf]
      %v1218 = vld [vmem:[%s1 + $0x174] sm:$0xf]
      %v1219 = vld [vmem:[%s1 + $0x178] sm:$0xf]
      %v1220 = vld [vmem:[%s1 + $0x17c] sm:$0xf]
      %v1237 = vunpack.c.l.b16 %v1205
      %v1238 = vunpack.c.l.b16 %v1206
      %v1239 = vunpack.c.l.b16 %v1207
      %v1240 = vunpack.c.l.b16 %v1208
      %v1241 = vunpack.c.l.b16 %v1209
      %v1242 = vunpack.c.l.b16 %v1210
      %v1243 = vunpack.c.l.b16 %v1211
      %v1244 = vunpack.c.l.b16 %v1212
      %v1245 = vunpack.c.l.b16 %v1213
      %v1246 = vunpack.c.l.b16 %v1214
      %v1247 = vunpack.c.l.b16 %v1215
      %v1248 = vunpack.c.l.b16 %v1216
      %v1249 = vunpack.c.l.b16 %v1217
      %v1250 = vunpack.c.l.b16 %v1218
      %v1251 = vunpack.c.l.b16 %v1219
      %v1252 = vunpack.c.l.b16 %v1220
      %v1253 = vpack.c.b16 %v1238, %v1237
      %v1254 = vpack.c.b16 %v1240, %v1239
      %v1255 = vpack.c.b16 %v1242, %v1241
      %v1256 = vpack.c.b16 %v1244, %v1243
      %v1257 = vpack.c.b16 %v1246, %v1245
      %v1258 = vpack.c.b16 %v1248, %v1247
      %v1259 = vpack.c.b16 %v1250, %v1249
      %v1260 = vpack.c.b16 %v1252, %v1251
      %1269 = vmatprep.subr.bf16.mxu0 0
      %1270 = vmatpush1.bf16.msra.mxu0 %v1260
      %1271 = vmatprep.subr.bf16.mxu0 0
      %1272 = vmatpush1.bf16.msra.mxu0 %v1259
      %1273 = vmatprep.subr.bf16.mxu0 0
      %1274 = vmatpush1.bf16.msra.mxu0 %v1258
      %1275 = vmatprep.subr.bf16.mxu0 0
      %1276 = vmatpush1.bf16.msra.mxu0 %v1257
      %1277 = vmatprep.subr.bf16.mxu0 0
      %1278 = vmatpush1.bf16.msra.mxu0 %v1256
      %1279 = vmatprep.subr.bf16.mxu0 0
      %1280 = vmatpush1.bf16.msra.mxu0 %v1255
      %1281 = vmatprep.subr.bf16.mxu0 0
      %1282 = vmatpush1.bf16.msra.mxu0 %v1254
      %1283 = vmatprep.subr.bf16.mxu0 0
      %1284 = vmatpush1.bf16.msra.mxu0 %v1253
      %1285 = vmatprep.subr.bf16.mxu0 0
      %1286 = vmatpush2.bf16.msra.mxu0 0
      %1287 = vmatprep.subr.bf16.mxu0 0
      %1288 = vmatpush2.bf16.msra.mxu0 0
      %1289 = vmatprep.subr.bf16.mxu0 0
      %1290 = vmatpush2.bf16.msra.mxu0 0
      %1291 = vmatprep.subr.bf16.mxu0 0
      %1292 = vmatpush2.bf16.msra.mxu0 0
      %1293 = vmatprep.subr.bf16.mxu0 0
      %1294 = vmatpush2.bf16.msra.mxu0 0
      %1295 = vmatprep.subr.bf16.mxu0 0
      %1296 = vmatpush2.bf16.msra.mxu0 0
      %1297 = vmatprep.subr.bf16.mxu0 0
      %1298 = vmatpush2.bf16.msra.mxu0 0
      %1299 = vmatprep.subr.bf16.mxu0 0
      %1300 = vmatpush2.bf16.msra.mxu0 0
      %1301 = vmatprep.mubr.bf16.mxu0 0
      %1302 = vmatmul.mubr.bf16.gmra.mxu0 %v1200
      %v1303 = vpop.f32.mrf.mxu0
      %v1304 = vadd.f32 0.0, %v1303
      %v1305 = vpop.f32.mrf.mxu0
      %v1306 = vpop.f32.mrf.mxu0
      %v1307 = vadd.f32 0.0, %v1306
      %v1308 = vpop.f32.mrf.mxu0
      %1309 = vmatprep.mubr.bf16.mxu0 0
      %1310 = vmatmul.mubr.bf16.gmra.mxu0 %v1201
      %v1311 = vpop.f32.mrf.mxu0
      %v1312 = vadd.f32 0.0, %v1311
      %v1313 = vpop.f32.mrf.mxu0
      %v1314 = vpop.f32.mrf.mxu0
      %v1315 = vadd.f32 0.0, %v1314
      %v1316 = vpop.f32.mrf.mxu0
      %1317 = vmatprep.mubr.bf16.mxu0 0
      %1318 = vmatmul.mubr.bf16.gmra.mxu0 %v1202
      %v1319 = vpop.f32.mrf.mxu0
      %v1320 = vadd.f32 0.0, %v1319
      %v1321 = vpop.f32.mrf.mxu0
      %v1322 = vpop.f32.mrf.mxu0
      %v1323 = vadd.f32 0.0, %v1322
      %v1324 = vpop.f32.mrf.mxu0
      %1325 = vmatprep.mubr.bf16.mxu0 0
      %1326 = vmatmul.mubr.bf16.gmra.mxu0 %v1203
      %v1327 = vpop.f32.mrf.mxu0
      %v1328 = vadd.f32 0.0, %v1327
      %v1329 = vpop.f32.mrf.mxu0
      %v1330 = vpop.f32.mrf.mxu0
      %v1331 = vadd.f32 0.0, %v1330
      %v1332 = vpop.f32.mrf.mxu0
      %1333 = vmatprep.mubr.bf16.mxu0 0
      %1334 = vmatmul.mubr.bf16.gmra.mxu0 %v1204
      %v1335 = vpop.f32.mrf.mxu0
      %v1336 = vadd.f32 0.0, %v1335
      %v1337 = vpop.f32.mrf.mxu0
      %v1338 = vpop.f32.mrf.mxu0
      %v1339 = vadd.f32 0.0, %v1338
      %v1340 = vpop.f32.mrf.mxu0
      %1341 = vdwg.mxu0
      %v1342 = vadd.f32 %v1180, %v1304
      %v1343 = vadd.f32 %v1181, %v1307
      %v1344 = vadd.f32 %v1182, %v1312
      %v1345 = vadd.f32 %v1183, %v1315
      %v1346 = vadd.f32 %v1184, %v1320
      %v1347 = vadd.f32 %v1185, %v1323
      %v1348 = vadd.f32 %v1186, %v1328
      %v1349 = vadd.f32 %v1187, %v1331
      %v1350 = vadd.f32 %v1188, %v1336
      %v1351 = vadd.f32 %v1189, %v1339
      %v1352 = vld [vmem:[#allocation2 + $0x14] sm:$0xff]
      %v1353 = vld [vmem:[#allocation2 + $0x1c] sm:$0xff]
      %v1354 = vld [vmem:[#allocation2 + $0x24] sm:$0xff]
      %v1355 = vld [vmem:[#allocation2 + $0x2c] sm:$0xff]
      %v1356 = vld [vmem:[#allocation2 + $0x34] sm:$0xff]
      %v1357 = vld [vmem:[#allocation2 + $0x3c] sm:$0xff]
      %v1358 = vld [vmem:[#allocation2 + $0x44] sm:$0xff]
      %v1359 = vld [vmem:[#allocation2 + $0x4c] sm:$0xff]
      %v1360 = vld [vmem:[#allocation2 + $0x54] sm:$0xff]
      %v1361 = vld [vmem:[#allocation2 + $0x5c] sm:$0xff]
      %v1362 = vpack.c.bf16 %v1353, %v1352
      %v1363 = vpack.c.bf16 %v1355, %v1354
      %v1364 = vpack.c.bf16 %v1357, %v1356
      %v1365 = vpack.c.bf16 %v1359, %v1358
      %v1366 = vpack.c.bf16 %v1361, %v1360
      %v1367 = vld [vmem:[%s1 + $0x180] sm:$0xf]
      %v1368 = vld [vmem:[%s1 + $0x184] sm:$0xf]
      %v1369 = vld [vmem:[%s1 + $0x188] sm:$0xf]
      %v1370 = vld [vmem:[%s1 + $0x18c] sm:$0xf]
      %v1371 = vld [vmem:[%s1 + $0x190] sm:$0xf]
      %v1372 = vld [vmem:[%s1 + $0x194] sm:$0xf]
      %v1373 = vld [vmem:[%s1 + $0x198] sm:$0xf]
      %v1374 = vld [vmem:[%s1 + $0x19c] sm:$0xf]
      %v1375 = vld [vmem:[%s1 + $0x1a0] sm:$0xf]
      %v1376 = vld [vmem:[%s1 + $0x1a4] sm:$0xf]
      %v1377 = vld [vmem:[%s1 + $0x1a8] sm:$0xf]
      %v1378 = vld [vmem:[%s1 + $0x1ac] sm:$0xf]
      %v1379 = vld [vmem:[%s1 + $0x1b0] sm:$0xf]
      %v1380 = vld [vmem:[%s1 + $0x1b4] sm:$0xf]
      %v1381 = vld [vmem:[%s1 + $0x1b8] sm:$0xf]
      %v1382 = vld [vmem:[%s1 + $0x1bc] sm:$0xf]
      %v1399 = vunpack.c.l.b16 %v1367
      %v1400 = vunpack.c.l.b16 %v1368
      %v1401 = vunpack.c.l.b16 %v1369
      %v1402 = vunpack.c.l.b16 %v1370
      %v1403 = vunpack.c.l.b16 %v1371
      %v1404 = vunpack.c.l.b16 %v1372
      %v1405 = vunpack.c.l.b16 %v1373
      %v1406 = vunpack.c.l.b16 %v1374
      %v1407 = vunpack.c.l.b16 %v1375
      %v1408 = vunpack.c.l.b16 %v1376
      %v1409 = vunpack.c.l.b16 %v1377
      %v1410 = vunpack.c.l.b16 %v1378
      %v1411 = vunpack.c.l.b16 %v1379
      %v1412 = vunpack.c.l.b16 %v1380
      %v1413 = vunpack.c.l.b16 %v1381
      %v1414 = vunpack.c.l.b16 %v1382
      %v1415 = vpack.c.b16 %v1400, %v1399
      %v1416 = vpack.c.b16 %v1402, %v1401
      %v1417 = vpack.c.b16 %v1404, %v1403
      %v1418 = vpack.c.b16 %v1406, %v1405
      %v1419 = vpack.c.b16 %v1408, %v1407
      %v1420 = vpack.c.b16 %v1410, %v1409
      %v1421 = vpack.c.b16 %v1412, %v1411
      %v1422 = vpack.c.b16 %v1414, %v1413
      %1431 = vmatprep.subr.bf16.mxu0 0
      %1432 = vmatpush1.bf16.msra.mxu0 %v1422
      %1433 = vmatprep.subr.bf16.mxu0 0
      %1434 = vmatpush1.bf16.msra.mxu0 %v1421
      %1435 = vmatprep.subr.bf16.mxu0 0
      %1436 = vmatpush1.bf16.msra.mxu0 %v1420
      %1437 = vmatprep.subr.bf16.mxu0 0
      %1438 = vmatpush1.bf16.msra.mxu0 %v1419
      %1439 = vmatprep.subr.bf16.mxu0 0
      %1440 = vmatpush1.bf16.msra.mxu0 %v1418
      %1441 = vmatprep.subr.bf16.mxu0 0
      %1442 = vmatpush1.bf16.msra.mxu0 %v1417
      %1443 = vmatprep.subr.bf16.mxu0 0
      %1444 = vmatpush1.bf16.msra.mxu0 %v1416
      %1445 = vmatprep.subr.bf16.mxu0 0
      %1446 = vmatpush1.bf16.msra.mxu0 %v1415
      %1447 = vmatprep.subr.bf16.mxu0 0
      %1448 = vmatpush2.bf16.msra.mxu0 0
      %1449 = vmatprep.subr.bf16.mxu0 0
      %1450 = vmatpush2.bf16.msra.mxu0 0
      %1451 = vmatprep.subr.bf16.mxu0 0
      %1452 = vmatpush2.bf16.msra.mxu0 0
      %1453 = vmatprep.subr.bf16.mxu0 0
      %1454 = vmatpush2.bf16.msra.mxu0 0
      %1455 = vmatprep.subr.bf16.mxu0 0
      %1456 = vmatpush2.bf16.msra.mxu0 0
      %1457 = vmatprep.subr.bf16.mxu0 0
      %1458 = vmatpush2.bf16.msra.mxu0 0
      %1459 = vmatprep.subr.bf16.mxu0 0
      %1460 = vmatpush2.bf16.msra.mxu0 0
      %1461 = vmatprep.subr.bf16.mxu0 0
      %1462 = vmatpush2.bf16.msra.mxu0 0
      %1463 = vmatprep.mubr.bf16.mxu0 0
      %1464 = vmatmul.mubr.bf16.gmra.mxu0 %v1362
      %v1465 = vpop.f32.mrf.mxu0
      %v1466 = vadd.f32 0.0, %v1465
      %v1467 = vpop.f32.mrf.mxu0
      %v1468 = vpop.f32.mrf.mxu0
      %v1469 = vadd.f32 0.0, %v1468
      %v1470 = vpop.f32.mrf.mxu0
      %1471 = vmatprep.mubr.bf16.mxu0 0
      %1472 = vmatmul.mubr.bf16.gmra.mxu0 %v1363
      %v1473 = vpop.f32.mrf.mxu0
      %v1474 = vadd.f32 0.0, %v1473
      %v1475 = vpop.f32.mrf.mxu0
      %v1476 = vpop.f32.mrf.mxu0
      %v1477 = vadd.f32 0.0, %v1476
      %v1478 = vpop.f32.mrf.mxu0
      %1479 = vmatprep.mubr.bf16.mxu0 0
      %1480 = vmatmul.mubr.bf16.gmra.mxu0 %v1364
      %v1481 = vpop.f32.mrf.mxu0
      %v1482 = vadd.f32 0.0, %v1481
      %v1483 = vpop.f32.mrf.mxu0
      %v1484 = vpop.f32.mrf.mxu0
      %v1485 = vadd.f32 0.0, %v1484
      %v1486 = vpop.f32.mrf.mxu0
      %1487 = vmatprep.mubr.bf16.mxu0 0
      %1488 = vmatmul.mubr.bf16.gmra.mxu0 %v1365
      %v1489 = vpop.f32.mrf.mxu0
      %v1490 = vadd.f32 0.0, %v1489
      %v1491 = vpop.f32.mrf.mxu0
      %v1492 = vpop.f32.mrf.mxu0
      %v1493 = vadd.f32 0.0, %v1492
      %v1494 = vpop.f32.mrf.mxu0
      %1495 = vmatprep.mubr.bf16.mxu0 0
      %1496 = vmatmul.mubr.bf16.gmra.mxu0 %v1366
      %v1497 = vpop.f32.mrf.mxu0
      %v1498 = vadd.f32 0.0, %v1497
      %v1499 = vpop.f32.mrf.mxu0
      %v1500 = vpop.f32.mrf.mxu0
      %v1501 = vadd.f32 0.0, %v1500
      %v1502 = vpop.f32.mrf.mxu0
      %1503 = vdwg.mxu0
      %v1504 = vadd.f32 %v1342, %v1466
      %v1505 = vadd.f32 %v1343, %v1469
      %v1506 = vadd.f32 %v1344, %v1474
      %v1507 = vadd.f32 %v1345, %v1477
      %v1508 = vadd.f32 %v1346, %v1482
      %v1509 = vadd.f32 %v1347, %v1485
      %v1510 = vadd.f32 %v1348, %v1490
      %v1511 = vadd.f32 %v1349, %v1493
      %v1512 = vadd.f32 %v1350, %v1498
      %v1513 = vadd.f32 %v1351, %v1501
      %v1514 = vld [vmem:[#allocation2 + $0x15] sm:$0xff]
      %v1515 = vld [vmem:[#allocation2 + $0x1d] sm:$0xff]
      %v1516 = vld [vmem:[#allocation2 + $0x25] sm:$0xff]
      %v1517 = vld [vmem:[#allocation2 + $0x2d] sm:$0xff]
      %v1518 = vld [vmem:[#allocation2 + $0x35] sm:$0xff]
      %v1519 = vld [vmem:[#allocation2 + $0x3d] sm:$0xff]
      %v1520 = vld [vmem:[#allocation2 + $0x45] sm:$0xff]
      %v1521 = vld [vmem:[#allocation2 + $0x4d] sm:$0xff]
      %v1522 = vld [vmem:[#allocation2 + $0x55] sm:$0xff]
      %v1523 = vld [vmem:[#allocation2 + $0x5d] sm:$0xff]
      %v1524 = vpack.c.bf16 %v1515, %v1514
      %v1525 = vpack.c.bf16 %v1517, %v1516
      %v1526 = vpack.c.bf16 %v1519, %v1518
      %v1527 = vpack.c.bf16 %v1521, %v1520
      %v1528 = vpack.c.bf16 %v1523, %v1522
      %v1529 = vld [vmem:[%s1 + $0x1c0] sm:$0xf]
      %v1530 = vld [vmem:[%s1 + $0x1c4] sm:$0xf]
      %v1531 = vld [vmem:[%s1 + $0x1c8] sm:$0xf]
      %v1532 = vld [vmem:[%s1 + $0x1cc] sm:$0xf]
      %v1533 = vld [vmem:[%s1 + $0x1d0] sm:$0xf]
      %v1534 = vld [vmem:[%s1 + $0x1d4] sm:$0xf]
      %v1535 = vld [vmem:[%s1 + $0x1d8] sm:$0xf]
      %v1536 = vld [vmem:[%s1 + $0x1dc] sm:$0xf]
      %v1537 = vld [vmem:[%s1 + $0x1e0] sm:$0xf]
      %v1538 = vld [vmem:[%s1 + $0x1e4] sm:$0xf]
      %v1539 = vld [vmem:[%s1 + $0x1e8] sm:$0xf]
      %v1540 = vld [vmem:[%s1 + $0x1ec] sm:$0xf]
      %v1541 = vld [vmem:[%s1 + $0x1f0] sm:$0xf]
      %v1542 = vld [vmem:[%s1 + $0x1f4] sm:$0xf]
      %v1543 = vld [vmem:[%s1 + $0x1f8] sm:$0xf]
      %v1544 = vld [vmem:[%s1 + $0x1fc] sm:$0xf]
      %v1561 = vunpack.c.l.b16 %v1529
      %v1562 = vunpack.c.l.b16 %v1530
      %v1563 = vunpack.c.l.b16 %v1531
      %v1564 = vunpack.c.l.b16 %v1532
      %v1565 = vunpack.c.l.b16 %v1533
      %v1566 = vunpack.c.l.b16 %v1534
      %v1567 = vunpack.c.l.b16 %v1535
      %v1568 = vunpack.c.l.b16 %v1536
      %v1569 = vunpack.c.l.b16 %v1537
      %v1570 = vunpack.c.l.b16 %v1538
      %v1571 = vunpack.c.l.b16 %v1539
      %v1572 = vunpack.c.l.b16 %v1540
      %v1573 = vunpack.c.l.b16 %v1541
      %v1574 = vunpack.c.l.b16 %v1542
      %v1575 = vunpack.c.l.b16 %v1543
      %v1576 = vunpack.c.l.b16 %v1544
      %v1577 = vpack.c.b16 %v1562, %v1561
      %v1578 = vpack.c.b16 %v1564, %v1563
      %v1579 = vpack.c.b16 %v1566, %v1565
      %v1580 = vpack.c.b16 %v1568, %v1567
      %v1581 = vpack.c.b16 %v1570, %v1569
      %v1582 = vpack.c.b16 %v1572, %v1571
      %v1583 = vpack.c.b16 %v1574, %v1573
      %v1584 = vpack.c.b16 %v1576, %v1575
      %1593 = vmatprep.subr.bf16.mxu0 0
      %1594 = vmatpush1.bf16.msra.mxu0 %v1584
      %1595 = vmatprep.subr.bf16.mxu0 0
      %1596 = vmatpush1.bf16.msra.mxu0 %v1583
      %1597 = vmatprep.subr.bf16.mxu0 0
      %1598 = vmatpush1.bf16.msra.mxu0 %v1582
      %1599 = vmatprep.subr.bf16.mxu0 0
      %1600 = vmatpush1.bf16.msra.mxu0 %v1581
      %1601 = vmatprep.subr.bf16.mxu0 0
      %1602 = vmatpush1.bf16.msra.mxu0 %v1580
      %1603 = vmatprep.subr.bf16.mxu0 0
      %1604 = vmatpush1.bf16.msra.mxu0 %v1579
      %1605 = vmatprep.subr.bf16.mxu0 0
      %1606 = vmatpush1.bf16.msra.mxu0 %v1578
      %1607 = vmatprep.subr.bf16.mxu0 0
      %1608 = vmatpush1.bf16.msra.mxu0 %v1577
      %1609 = vmatprep.subr.bf16.mxu0 0
      %1610 = vmatpush2.bf16.msra.mxu0 0
      %1611 = vmatprep.subr.bf16.mxu0 0
      %1612 = vmatpush2.bf16.msra.mxu0 0
      %1613 = vmatprep.subr.bf16.mxu0 0
      %1614 = vmatpush2.bf16.msra.mxu0 0
      %1615 = vmatprep.subr.bf16.mxu0 0
      %1616 = vmatpush2.bf16.msra.mxu0 0
      %1617 = vmatprep.subr.bf16.mxu0 0
      %1618 = vmatpush2.bf16.msra.mxu0 0
      %1619 = vmatprep.subr.bf16.mxu0 0
      %1620 = vmatpush2.bf16.msra.mxu0 0
      %1621 = vmatprep.subr.bf16.mxu0 0
      %1622 = vmatpush2.bf16.msra.mxu0 0
      %1623 = vmatprep.subr.bf16.mxu0 0
      %1624 = vmatpush2.bf16.msra.mxu0 0
      %1625 = vmatprep.mubr.bf16.mxu0 0
      %1626 = vmatmul.mubr.bf16.gmra.mxu0 %v1524
      %v1627 = vpop.f32.mrf.mxu0
      %v1628 = vadd.f32 0.0, %v1627
      %v1629 = vpop.f32.mrf.mxu0
      %v1630 = vpop.f32.mrf.mxu0
      %v1631 = vadd.f32 0.0, %v1630
      %v1632 = vpop.f32.mrf.mxu0
      %1633 = vmatprep.mubr.bf16.mxu0 0
      %1634 = vmatmul.mubr.bf16.gmra.mxu0 %v1525
      %v1635 = vpop.f32.mrf.mxu0
      %v1636 = vadd.f32 0.0, %v1635
      %v1637 = vpop.f32.mrf.mxu0
      %v1638 = vpop.f32.mrf.mxu0
      %v1639 = vadd.f32 0.0, %v1638
      %v1640 = vpop.f32.mrf.mxu0
      %1641 = vmatprep.mubr.bf16.mxu0 0
      %1642 = vmatmul.mubr.bf16.gmra.mxu0 %v1526
      %v1643 = vpop.f32.mrf.mxu0
      %v1644 = vadd.f32 0.0, %v1643
      %v1645 = vpop.f32.mrf.mxu0
      %v1646 = vpop.f32.mrf.mxu0
      %v1647 = vadd.f32 0.0, %v1646
      %v1648 = vpop.f32.mrf.mxu0
      %1649 = vmatprep.mubr.bf16.mxu0 0
      %1650 = vmatmul.mubr.bf16.gmra.mxu0 %v1527
      %v1651 = vpop.f32.mrf.mxu0
      %v1652 = vadd.f32 0.0, %v1651
      %v1653 = vpop.f32.mrf.mxu0
      %v1654 = vpop.f32.mrf.mxu0
      %v1655 = vadd.f32 0.0, %v1654
      %v1656 = vpop.f32.mrf.mxu0
      %1657 = vmatprep.mubr.bf16.mxu0 0
      %1658 = vmatmul.mubr.bf16.gmra.mxu0 %v1528
      %v1659 = vpop.f32.mrf.mxu0
      %v1660 = vadd.f32 0.0, %v1659
      %v1661 = vpop.f32.mrf.mxu0
      %v1662 = vpop.f32.mrf.mxu0
      %v1663 = vadd.f32 0.0, %v1662
      %v1664 = vpop.f32.mrf.mxu0
      %1665 = vdwg.mxu0
      %v1666 = vadd.f32 %v1504, %v1628
      %v1667 = vadd.f32 %v1505, %v1631
      %v1668 = vadd.f32 %v1506, %v1636
      %v1669 = vadd.f32 %v1507, %v1639
      %v1670 = vadd.f32 %v1508, %v1644
      %v1671 = vadd.f32 %v1509, %v1647
      %v1672 = vadd.f32 %v1510, %v1652
      %v1673 = vadd.f32 %v1511, %v1655
      %v1674 = vadd.f32 %v1512, %v1660
      %v1675 = vadd.f32 %v1513, %v1663
      %v1676 = vld [vmem:[#allocation2 + $0x16] sm:$0xff]
      %v1677 = vld [vmem:[#allocation2 + $0x1e] sm:$0xff]
      %v1678 = vld [vmem:[#allocation2 + $0x26] sm:$0xff]
      %v1679 = vld [vmem:[#allocation2 + $0x2e] sm:$0xff]
      %v1680 = vld [vmem:[#allocation2 + $0x36] sm:$0xff]
      %v1681 = vld [vmem:[#allocation2 + $0x3e] sm:$0xff]
      %v1682 = vld [vmem:[#allocation2 + $0x46] sm:$0xff]
      %v1683 = vld [vmem:[#allocation2 + $0x4e] sm:$0xff]
      %v1684 = vld [vmem:[#allocation2 + $0x56] sm:$0xff]
      %v1685 = vld [vmem:[#allocation2 + $0x5e] sm:$0xff]
      %v1686 = vpack.c.bf16 %v1677, %v1676
      %v1687 = vpack.c.bf16 %v1679, %v1678
      %v1688 = vpack.c.bf16 %v1681, %v1680
      %v1689 = vpack.c.bf16 %v1683, %v1682
      %v1690 = vpack.c.bf16 %v1685, %v1684
      %v1691 = vld [vmem:[%s1 + $0x200] sm:$0xf]
      %v1692 = vld [vmem:[%s1 + $0x204] sm:$0xf]
      %v1693 = vld [vmem:[%s1 + $0x208] sm:$0xf]
      %v1694 = vld [vmem:[%s1 + $0x20c] sm:$0xf]
      %v1695 = vld [vmem:[%s1 + $0x210] sm:$0xf]
      %v1696 = vld [vmem:[%s1 + $0x214] sm:$0xf]
      %v1697 = vld [vmem:[%s1 + $0x218] sm:$0xf]
      %v1698 = vld [vmem:[%s1 + $0x21c] sm:$0xf]
      %v1699 = vld [vmem:[%s1 + $0x220] sm:$0xf]
      %v1700 = vld [vmem:[%s1 + $0x224] sm:$0xf]
      %v1701 = vld [vmem:[%s1 + $0x228] sm:$0xf]
      %v1702 = vld [vmem:[%s1 + $0x22c] sm:$0xf]
      %v1703 = vld [vmem:[%s1 + $0x230] sm:$0xf]
      %v1704 = vld [vmem:[%s1 + $0x234] sm:$0xf]
      %v1705 = vld [vmem:[%s1 + $0x238] sm:$0xf]
      %v1706 = vld [vmem:[%s1 + $0x23c] sm:$0xf]
      %v1723 = vunpack.c.l.b16 %v1691
      %v1724 = vunpack.c.l.b16 %v1692
      %v1725 = vunpack.c.l.b16 %v1693
      %v1726 = vunpack.c.l.b16 %v1694
      %v1727 = vunpack.c.l.b16 %v1695
      %v1728 = vunpack.c.l.b16 %v1696
      %v1729 = vunpack.c.l.b16 %v1697
      %v1730 = vunpack.c.l.b16 %v1698
      %v1731 = vunpack.c.l.b16 %v1699
      %v1732 = vunpack.c.l.b16 %v1700
      %v1733 = vunpack.c.l.b16 %v1701
      %v1734 = vunpack.c.l.b16 %v1702
      %v1735 = vunpack.c.l.b16 %v1703
      %v1736 = vunpack.c.l.b16 %v1704
      %v1737 = vunpack.c.l.b16 %v1705
      %v1738 = vunpack.c.l.b16 %v1706
      %v1739 = vpack.c.b16 %v1724, %v1723
      %v1740 = vpack.c.b16 %v1726, %v1725
      %v1741 = vpack.c.b16 %v1728, %v1727
      %v1742 = vpack.c.b16 %v1730, %v1729
      %v1743 = vpack.c.b16 %v1732, %v1731
      %v1744 = vpack.c.b16 %v1734, %v1733
      %v1745 = vpack.c.b16 %v1736, %v1735
      %v1746 = vpack.c.b16 %v1738, %v1737
      %1755 = vmatprep.subr.bf16.mxu0 0
      %1756 = vmatpush1.bf16.msra.mxu0 %v1746
      %1757 = vmatprep.subr.bf16.mxu0 0
      %1758 = vmatpush1.bf16.msra.mxu0 %v1745
      %1759 = vmatprep.subr.bf16.mxu0 0
      %1760 = vmatpush1.bf16.msra.mxu0 %v1744
      %1761 = vmatprep.subr.bf16.mxu0 0
      %1762 = vmatpush1.bf16.msra.mxu0 %v1743
      %1763 = vmatprep.subr.bf16.mxu0 0
      %1764 = vmatpush1.bf16.msra.mxu0 %v1742
      %1765 = vmatprep.subr.bf16.mxu0 0
      %1766 = vmatpush1.bf16.msra.mxu0 %v1741
      %1767 = vmatprep.subr.bf16.mxu0 0
      %1768 = vmatpush1.bf16.msra.mxu0 %v1740
      %1769 = vmatprep.subr.bf16.mxu0 0
      %1770 = vmatpush1.bf16.msra.mxu0 %v1739
      %1771 = vmatprep.subr.bf16.mxu0 0
      %1772 = vmatpush2.bf16.msra.mxu0 0
      %1773 = vmatprep.subr.bf16.mxu0 0
      %1774 = vmatpush2.bf16.msra.mxu0 0
      %1775 = vmatprep.subr.bf16.mxu0 0
      %1776 = vmatpush2.bf16.msra.mxu0 0
      %1777 = vmatprep.subr.bf16.mxu0 0
      %1778 = vmatpush2.bf16.msra.mxu0 0
      %1779 = vmatprep.subr.bf16.mxu0 0
      %1780 = vmatpush2.bf16.msra.mxu0 0
      %1781 = vmatprep.subr.bf16.mxu0 0
      %1782 = vmatpush2.bf16.msra.mxu0 0
      %1783 = vmatprep.subr.bf16.mxu0 0
      %1784 = vmatpush2.bf16.msra.mxu0 0
      %1785 = vmatprep.subr.bf16.mxu0 0
      %1786 = vmatpush2.bf16.msra.mxu0 0
      %1787 = vmatprep.mubr.bf16.mxu0 0
      %1788 = vmatmul.mubr.bf16.gmra.mxu0 %v1686
      %v1789 = vpop.f32.mrf.mxu0
      %v1790 = vadd.f32 0.0, %v1789
      %v1791 = vpop.f32.mrf.mxu0
      %v1792 = vpop.f32.mrf.mxu0
      %v1793 = vadd.f32 0.0, %v1792
      %v1794 = vpop.f32.mrf.mxu0
      %1795 = vmatprep.mubr.bf16.mxu0 0
      %1796 = vmatmul.mubr.bf16.gmra.mxu0 %v1687
      %v1797 = vpop.f32.mrf.mxu0
      %v1798 = vadd.f32 0.0, %v1797
      %v1799 = vpop.f32.mrf.mxu0
      %v1800 = vpop.f32.mrf.mxu0
      %v1801 = vadd.f32 0.0, %v1800
      %v1802 = vpop.f32.mrf.mxu0
      %1803 = vmatprep.mubr.bf16.mxu0 0
      %1804 = vmatmul.mubr.bf16.gmra.mxu0 %v1688
      %v1805 = vpop.f32.mrf.mxu0
      %v1806 = vadd.f32 0.0, %v1805
      %v1807 = vpop.f32.mrf.mxu0
      %v1808 = vpop.f32.mrf.mxu0
      %v1809 = vadd.f32 0.0, %v1808
      %v1810 = vpop.f32.mrf.mxu0
      %1811 = vmatprep.mubr.bf16.mxu0 0
      %1812 = vmatmul.mubr.bf16.gmra.mxu0 %v1689
      %v1813 = vpop.f32.mrf.mxu0
      %v1814 = vadd.f32 0.0, %v1813
      %v1815 = vpop.f32.mrf.mxu0
      %v1816 = vpop.f32.mrf.mxu0
      %v1817 = vadd.f32 0.0, %v1816
      %v1818 = vpop.f32.mrf.mxu0
      %1819 = vmatprep.mubr.bf16.mxu0 0
      %1820 = vmatmul.mubr.bf16.gmra.mxu0 %v1690
      %v1821 = vpop.f32.mrf.mxu0
      %v1822 = vadd.f32 0.0, %v1821
      %v1823 = vpop.f32.mrf.mxu0
      %v1824 = vpop.f32.mrf.mxu0
      %v1825 = vadd.f32 0.0, %v1824
      %v1826 = vpop.f32.mrf.mxu0
      %1827 = vdwg.mxu0
      %v1828 = vadd.f32 %v1666, %v1790
      %v1829 = vadd.f32 %v1667, %v1793
      %v1830 = vadd.f32 %v1668, %v1798
      %v1831 = vadd.f32 %v1669, %v1801
      %v1832 = vadd.f32 %v1670, %v1806
      %v1833 = vadd.f32 %v1671, %v1809
      %v1834 = vadd.f32 %v1672, %v1814
      %v1835 = vadd.f32 %v1673, %v1817
      %v1836 = vadd.f32 %v1674, %v1822
      %v1837 = vadd.f32 %v1675, %v1825
      %v1838 = vld [vmem:[%s2] sm:$0x1]
      %v1840 = vlaneseq
      %v1841 = vshrl.u32 %v1840, 7
      %v1842 = vsub.s32 0, %v1841
      %v1843 = vrot.slane %v1838, %v1842
      %v1845 = vadd.f32 %v1828, %v1843
      %v1846 = vadd.f32 %v1829, %v1843
      %v1847 = vadd.f32 %v1830, %v1843
      %v1848 = vadd.f32 %v1831, %v1843
      %v1849 = vadd.f32 %v1832, %v1843
      %v1850 = vadd.f32 %v1833, %v1843
      %v1851 = vadd.f32 %v1834, %v1843
      %v1852 = vadd.f32 %v1835, %v1843
      %v1853 = vadd.f32 %v1836, %v1843
      %v1854 = vadd.f32 %v1837, %v1843
      %v1855 = vmax.f32 %v1845, 0.0
      %v1856 = vmax.f32 %v1846, 0.0
      %v1857 = vmax.f32 %v1847, 0.0
      %v1858 = vmax.f32 %v1848, 0.0
      %v1859 = vmax.f32 %v1849, 0.0
      %v1860 = vmax.f32 %v1850, 0.0
      %v1861 = vmax.f32 %v1851, 0.0
      %v1862 = vmax.f32 %v1852, 0.0
      %v1863 = vmax.f32 %v1853, 0.0
      %v1864 = vmax.f32 %v1854, 0.0
      %1865 = vst [vmem:[#allocation5] sm:$0xff] %v1855
      %1866 = vst [vmem:[#allocation5 + $0x8] sm:$0xff] %v1856
      %1867 = vst [vmem:[#allocation5 + $0x10] sm:$0xff] %v1857
      %1868 = vst [vmem:[#allocation5 + $0x18] sm:$0xff] %v1858
      %1869 = vst [vmem:[#allocation5 + $0x20] sm:$0xff] %v1859
      %1870 = vst [vmem:[#allocation5 + $0x28] sm:$0xff] %v1860
      %1871 = vst [vmem:[#allocation5 + $0x30] sm:$0xff] %v1861
      %1872 = vst [vmem:[#allocation5 + $0x38] sm:$0xff] %v1862
      %1873 = vst [vmem:[#allocation5 + $0x40] sm:$0xff] %v1863
      %1874 = vst [vmem:[#allocation5 + $0x48] sm:$0xff] %v1864
      %v1875 = vld [vmem:[#allocation5] sm:$0xff]
      %1876 = vst [vmem:[#allocation3 + $0xb] sm:$0xff] %v1875
      %1877 = vst [vmem:[#allocation8] sm:$0xff] %v1875
      %v1878 = vld [vmem:[#allocation5 + $0xa] sm:$0xff]
      %1879 = vst [vmem:[#allocation3 + $0x15] sm:$0xff] %v1878
      %1880 = vst [vmem:[#allocation8 + $0x8] sm:$0xff] %v1878
      %v1881 = vld [vmem:[#allocation5 + $0x14] sm:$0xff]
      %1882 = vst [vmem:[#allocation3 + $0x1f] sm:$0xff] %v1881
      %1883 = vst [vmem:[#allocation8 + $0x10] sm:$0xff] %v1881
      %v1884 = vld [vmem:[#allocation5 + $0x1e] sm:$0xff]
      %1885 = vst [vmem:[#allocation3 + $0x29] sm:$0xff] %v1884
      %1886 = vst [vmem:[#allocation8 + $0x18] sm:$0xff] %v1884
      %v1887 = vld [vmem:[#allocation5 + $0x28] sm:$0xff]
      %1888 = vst [vmem:[#allocation3 + $0x33] sm:$0xff] %v1887
      %1889 = vst [vmem:[#allocation8 + $0x20] sm:$0xff] %v1887
      %v1890 = vld [vmem:[#allocation5 + $0x32] sm:$0xff]
      %1891 = vst [vmem:[#allocation3 + $0x3d] sm:$0xff] %v1890
      %1892 = vst [vmem:[#allocation8 + $0x28] sm:$0xff] %v1890
      %v1893 = vld [vmem:[#allocation5 + $0x3c] sm:$0xff]
      %1894 = vst [vmem:[#allocation3 + $0x47] sm:$0xff] %v1893
      %1895 = vst [vmem:[#allocation8 + $0x30] sm:$0xff] %v1893
      %v1896 = vld [vmem:[#allocation5 + $0x46] sm:$0xff]
      %1897 = vst [vmem:[#allocation3 + $0x51] sm:$0xff] %v1896
      %1898 = vst [vmem:[#allocation8 + $0x38] sm:$0xff] %v1896
      %v1899 = vld [vmem:[#allocation3] sm:$0xff]
      %v1900 = vld [vmem:[#allocation3 + $0x8] sm:$0xff]
      %v1901 = vld [vmem:[#allocation3 + $0x10] sm:$0xff]
      %v1902 = vld [vmem:[#allocation3 + $0x18] sm:$0xff]
      %v1903 = vld [vmem:[#allocation3 + $0x20] sm:$0xff]
      %v1904 = vld [vmem:[#allocation3 + $0x28] sm:$0xff]
      %v1905 = vld [vmem:[#allocation3 + $0x30] sm:$0xff]
      %v1906 = vld [vmem:[#allocation3 + $0x38] sm:$0xff]
      %v1907 = vld [vmem:[#allocation3 + $0x40] sm:$0xff]
      %v1908 = vld [vmem:[#allocation3 + $0x48] sm:$0xff]
      %v1909 = vpack.c.bf16 %v1900, %v1899
      %v1910 = vpack.c.bf16 %v1902, %v1901
      %v1911 = vpack.c.bf16 %v1904, %v1903
      %v1912 = vpack.c.bf16 %v1906, %v1905
      %v1913 = vpack.c.bf16 %v1908, %v1907
      %v1914 = vld [vmem:[%s3] sm:$0xf]
      %v1915 = vld [vmem:[%s3 + $0x4] sm:$0xf]
      %v1916 = vld [vmem:[%s3 + $0x8] sm:$0xf]
      %v1917 = vld [vmem:[%s3 + $0xc] sm:$0xf]
      %v1918 = vld [vmem:[%s3 + $0x10] sm:$0xf]
      %v1919 = vld [vmem:[%s3 + $0x14] sm:$0xf]
      %v1920 = vld [vmem:[%s3 + $0x18] sm:$0xf]
      %v1921 = vld [vmem:[%s3 + $0x1c] sm:$0xf]
      %v1922 = vld [vmem:[%s3 + $0x20] sm:$0xf]
      %v1923 = vld [vmem:[%s3 + $0x24] sm:$0xf]
      %v1924 = vld [vmem:[%s3 + $0x28] sm:$0xf]
      %v1925 = vld [vmem:[%s3 + $0x2c] sm:$0xf]
      %v1926 = vld [vmem:[%s3 + $0x30] sm:$0xf]
      %v1927 = vld [vmem:[%s3 + $0x34] sm:$0xf]
      %v1928 = vld [vmem:[%s3 + $0x38] sm:$0xf]
      %v1929 = vld [vmem:[%s3 + $0x3c] sm:$0xf]
      %v1930 = vld [vmem:[#allocation3 + $0x1] sm:$0xff]
      %v1931 = vld [vmem:[#allocation3 + $0x9] sm:$0xff]
      %v1932 = vld [vmem:[#allocation3 + $0x11] sm:$0xff]
      %v1933 = vld [vmem:[#allocation3 + $0x19] sm:$0xff]
      %v1934 = vld [vmem:[#allocation3 + $0x21] sm:$0xff]
      %v1935 = vld [vmem:[#allocation3 + $0x29] sm:$0xff]
      %v1936 = vld [vmem:[#allocation3 + $0x31] sm:$0xff]
      %v1937 = vld [vmem:[#allocation3 + $0x39] sm:$0xff]
      %v1938 = vld [vmem:[#allocation3 + $0x41] sm:$0xff]
      %v1939 = vld [vmem:[#allocation3 + $0x49] sm:$0xff]
      %v1940 = vpack.c.bf16 %v1931, %v1930
      %v1941 = vpack.c.bf16 %v1933, %v1932
      %v1942 = vpack.c.bf16 %v1935, %v1934
      %v1943 = vpack.c.bf16 %v1937, %v1936
      %v1944 = vpack.c.bf16 %v1939, %v1938
      %v1945 = vld [vmem:[%s3 + $0x40] sm:$0xf]
      %v1946 = vld [vmem:[%s3 + $0x44] sm:$0xf]
      %v1947 = vld [vmem:[%s3 + $0x48] sm:$0xf]
      %v1948 = vld [vmem:[%s3 + $0x4c] sm:$0xf]
      %v1949 = vld [vmem:[%s3 + $0x50] sm:$0xf]
      %v1950 = vld [vmem:[%s3 + $0x54] sm:$0xf]
      %v1951 = vld [vmem:[%s3 + $0x58] sm:$0xf]
      %v1952 = vld [vmem:[%s3 + $0x5c] sm:$0xf]
      %v1953 = vld [vmem:[%s3 + $0x60] sm:$0xf]
      %v1954 = vld [vmem:[%s3 + $0x64] sm:$0xf]
      %v1955 = vld [vmem:[%s3 + $0x68] sm:$0xf]
      %v1956 = vld [vmem:[%s3 + $0x6c] sm:$0xf]
      %v1957 = vld [vmem:[%s3 + $0x70] sm:$0xf]
      %v1958 = vld [vmem:[%s3 + $0x74] sm:$0xf]
      %v1959 = vld [vmem:[%s3 + $0x78] sm:$0xf]
      %v1960 = vld [vmem:[%s3 + $0x7c] sm:$0xf]
      %v1977 = vunpack.c.l.b16 %v1945
      %v1978 = vunpack.c.l.b16 %v1946
      %v1979 = vunpack.c.l.b16 %v1947
      %v1980 = vunpack.c.l.b16 %v1948
      %v1981 = vunpack.c.l.b16 %v1949
      %v1982 = vunpack.c.l.b16 %v1950
      %v1983 = vunpack.c.l.b16 %v1951
      %v1984 = vunpack.c.l.b16 %v1952
      %v1985 = vunpack.c.l.b16 %v1953
      %v1986 = vunpack.c.l.b16 %v1954
      %v1987 = vunpack.c.l.b16 %v1955
      %v1988 = vunpack.c.l.b16 %v1956
      %v1989 = vunpack.c.l.b16 %v1957
      %v1990 = vunpack.c.l.b16 %v1958
      %v1991 = vunpack.c.l.b16 %v1959
      %v1992 = vunpack.c.l.b16 %v1960
      %v1993 = vpack.c.b16 %v1978, %v1977
      %v1994 = vpack.c.b16 %v1980, %v1979
      %v1995 = vpack.c.b16 %v1982, %v1981
      %v1996 = vpack.c.b16 %v1984, %v1983
      %v1997 = vpack.c.b16 %v1986, %v1985
      %v1998 = vpack.c.b16 %v1988, %v1987
      %v1999 = vpack.c.b16 %v1990, %v1989
      %v2000 = vpack.c.b16 %v1992, %v1991
      %2009 = vmatprep.subr.bf16.mxu0 0
      %2010 = vmatpush1.bf16.msra.mxu0 %v2000
      %2011 = vmatprep.subr.bf16.mxu0 0
      %2012 = vmatpush1.bf16.msra.mxu0 %v1999
      %2013 = vmatprep.subr.bf16.mxu0 0
      %2014 = vmatpush1.bf16.msra.mxu0 %v1998
      %2015 = vmatprep.subr.bf16.mxu0 0
      %2016 = vmatpush1.bf16.msra.mxu0 %v1997
      %2017 = vmatprep.subr.bf16.mxu0 0
      %2018 = vmatpush1.bf16.msra.mxu0 %v1996
      %2019 = vmatprep.subr.bf16.mxu0 0
      %2020 = vmatpush1.bf16.msra.mxu0 %v1995
      %2021 = vmatprep.subr.bf16.mxu0 0
      %2022 = vmatpush1.bf16.msra.mxu0 %v1994
      %2023 = vmatprep.subr.bf16.mxu0 0
      %2024 = vmatpush1.bf16.msra.mxu0 %v1993
      %2025 = vmatprep.subr.bf16.mxu0 0
      %2026 = vmatpush2.bf16.msra.mxu0 0
      %2027 = vmatprep.subr.bf16.mxu0 0
      %2028 = vmatpush2.bf16.msra.mxu0 0
      %2029 = vmatprep.subr.bf16.mxu0 0
      %2030 = vmatpush2.bf16.msra.mxu0 0
      %2031 = vmatprep.subr.bf16.mxu0 0
      %2032 = vmatpush2.bf16.msra.mxu0 0
      %2033 = vmatprep.subr.bf16.mxu0 0
      %2034 = vmatpush2.bf16.msra.mxu0 0
      %2035 = vmatprep.subr.bf16.mxu0 0
      %2036 = vmatpush2.bf16.msra.mxu0 0
      %2037 = vmatprep.subr.bf16.mxu0 0
      %2038 = vmatpush2.bf16.msra.mxu0 0
      %2039 = vmatprep.subr.bf16.mxu0 0
      %2040 = vmatpush2.bf16.msra.mxu0 0
      %2041 = vmatprep.mubr.bf16.mxu0 0
      %2042 = vmatmul.mubr.bf16.gmra.mxu0 %v1940
      %v2043 = vpop.f32.mrf.mxu0
      %v2044 = vadd.f32 0.0, %v2043
      %v2045 = vpop.f32.mrf.mxu0
      %v2046 = vpop.f32.mrf.mxu0
      %v2047 = vadd.f32 0.0, %v2046
      %v2048 = vpop.f32.mrf.mxu0
      %2049 = vmatprep.mubr.bf16.mxu0 0
      %2050 = vmatmul.mubr.bf16.gmra.mxu0 %v1941
      %v2051 = vpop.f32.mrf.mxu0
      %v2052 = vadd.f32 0.0, %v2051
      %v2053 = vpop.f32.mrf.mxu0
      %v2054 = vpop.f32.mrf.mxu0
      %v2055 = vadd.f32 0.0, %v2054
      %v2056 = vpop.f32.mrf.mxu0
      %2057 = vmatprep.mubr.bf16.mxu0 0
      %2058 = vmatmul.mubr.bf16.gmra.mxu0 %v1942
      %v2059 = vpop.f32.mrf.mxu0
      %v2060 = vadd.f32 0.0, %v2059
      %v2061 = vpop.f32.mrf.mxu0
      %v2062 = vpop.f32.mrf.mxu0
      %v2063 = vadd.f32 0.0, %v2062
      %v2064 = vpop.f32.mrf.mxu0
      %2065 = vmatprep.mubr.bf16.mxu0 0
      %2066 = vmatmul.mubr.bf16.gmra.mxu0 %v1943
      %v2067 = vpop.f32.mrf.mxu0
      %v2068 = vadd.f32 0.0, %v2067
      %v2069 = vpop.f32.mrf.mxu0
      %v2070 = vpop.f32.mrf.mxu0
      %v2071 = vadd.f32 0.0, %v2070
      %v2072 = vpop.f32.mrf.mxu0
      %2073 = vmatprep.mubr.bf16.mxu0 0
      %2074 = vmatmul.mubr.bf16.gmra.mxu0 %v1944
      %v2075 = vpop.f32.mrf.mxu0
      %v2076 = vadd.f32 0.0, %v2075
      %v2077 = vpop.f32.mrf.mxu0
      %v2078 = vpop.f32.mrf.mxu0
      %v2079 = vadd.f32 0.0, %v2078
      %v2080 = vpop.f32.mrf.mxu0
      %2081 = vdwg.mxu0
      %v2098 = vunpack.c.l.b16 %v1914
      %v2099 = vunpack.c.l.b16 %v1915
      %v2100 = vunpack.c.l.b16 %v1916
      %v2101 = vunpack.c.l.b16 %v1917
      %v2102 = vunpack.c.l.b16 %v1918
      %v2103 = vunpack.c.l.b16 %v1919
      %v2104 = vunpack.c.l.b16 %v1920
      %v2105 = vunpack.c.l.b16 %v1921
      %v2106 = vunpack.c.l.b16 %v1922
      %v2107 = vunpack.c.l.b16 %v1923
      %v2108 = vunpack.c.l.b16 %v1924
      %v2109 = vunpack.c.l.b16 %v1925
      %v2110 = vunpack.c.l.b16 %v1926
      %v2111 = vunpack.c.l.b16 %v1927
      %v2112 = vunpack.c.l.b16 %v1928
      %v2113 = vunpack.c.l.b16 %v1929
      %v2114 = vpack.c.b16 %v2099, %v2098
      %v2115 = vpack.c.b16 %v2101, %v2100
      %v2116 = vpack.c.b16 %v2103, %v2102
      %v2117 = vpack.c.b16 %v2105, %v2104
      %v2118 = vpack.c.b16 %v2107, %v2106
      %v2119 = vpack.c.b16 %v2109, %v2108
      %v2120 = vpack.c.b16 %v2111, %v2110
      %v2121 = vpack.c.b16 %v2113, %v2112
      %2130 = vmatprep.subr.bf16.mxu0 0
      %2131 = vmatpush1.bf16.msra.mxu0 %v2121
      %2132 = vmatprep.subr.bf16.mxu0 0
      %2133 = vmatpush1.bf16.msra.mxu0 %v2120
      %2134 = vmatprep.subr.bf16.mxu0 0
      %2135 = vmatpush1.bf16.msra.mxu0 %v2119
      %2136 = vmatprep.subr.bf16.mxu0 0
      %2137 = vmatpush1.bf16.msra.mxu0 %v2118
      %2138 = vmatprep.subr.bf16.mxu0 0
      %2139 = vmatpush1.bf16.msra.mxu0 %v2117
      %2140 = vmatprep.subr.bf16.mxu0 0
      %2141 = vmatpush1.bf16.msra.mxu0 %v2116
      %2142 = vmatprep.subr.bf16.mxu0 0
      %2143 = vmatpush1.bf16.msra.mxu0 %v2115
      %2144 = vmatprep.subr.bf16.mxu0 0
      %2145 = vmatpush1.bf16.msra.mxu0 %v2114
      %2146 = vmatprep.subr.bf16.mxu0 0
      %2147 = vmatpush2.bf16.msra.mxu0 0
      %2148 = vmatprep.subr.bf16.mxu0 0
      %2149 = vmatpush2.bf16.msra.mxu0 0
      %2150 = vmatprep.subr.bf16.mxu0 0
      %2151 = vmatpush2.bf16.msra.mxu0 0
      %2152 = vmatprep.subr.bf16.mxu0 0
      %2153 = vmatpush2.bf16.msra.mxu0 0
      %2154 = vmatprep.subr.bf16.mxu0 0
      %2155 = vmatpush2.bf16.msra.mxu0 0
      %2156 = vmatprep.subr.bf16.mxu0 0
      %2157 = vmatpush2.bf16.msra.mxu0 0
      %2158 = vmatprep.subr.bf16.mxu0 0
      %2159 = vmatpush2.bf16.msra.mxu0 0
      %2160 = vmatprep.subr.bf16.mxu0 0
      %2161 = vmatpush2.bf16.msra.mxu0 0
      %2162 = vmatprep.mubr.bf16.mxu0 0
      %2163 = vmatmul.mubr.bf16.gmra.mxu0 %v1909
      %v2164 = vpop.f32.mrf.mxu0
      %v2165 = vadd.f32 %v2044, %v2164
      %v2166 = vpop.f32.mrf.mxu0
      %v2167 = vpop.f32.mrf.mxu0
      %v2168 = vadd.f32 %v2047, %v2167
      %v2169 = vpop.f32.mrf.mxu0
      %2170 = vmatprep.mubr.bf16.mxu0 0
      %2171 = vmatmul.mubr.bf16.gmra.mxu0 %v1910
      %v2172 = vpop.f32.mrf.mxu0
      %v2173 = vadd.f32 %v2052, %v2172
      %v2174 = vpop.f32.mrf.mxu0
      %v2175 = vpop.f32.mrf.mxu0
      %v2176 = vadd.f32 %v2055, %v2175
      %v2177 = vpop.f32.mrf.mxu0
      %2178 = vmatprep.mubr.bf16.mxu0 0
      %2179 = vmatmul.mubr.bf16.gmra.mxu0 %v1911
      %v2180 = vpop.f32.mrf.mxu0
      %v2181 = vadd.f32 %v2060, %v2180
      %v2182 = vpop.f32.mrf.mxu0
      %v2183 = vpop.f32.mrf.mxu0
      %v2184 = vadd.f32 %v2063, %v2183
      %v2185 = vpop.f32.mrf.mxu0
      %2186 = vmatprep.mubr.bf16.mxu0 0
      %2187 = vmatmul.mubr.bf16.gmra.mxu0 %v1912
      %v2188 = vpop.f32.mrf.mxu0
      %v2189 = vadd.f32 %v2068, %v2188
      %v2190 = vpop.f32.mrf.mxu0
      %v2191 = vpop.f32.mrf.mxu0
      %v2192 = vadd.f32 %v2071, %v2191
      %v2193 = vpop.f32.mrf.mxu0
      %2194 = vmatprep.mubr.bf16.mxu0 0
      %2195 = vmatmul.mubr.bf16.gmra.mxu0 %v1913
      %v2196 = vpop.f32.mrf.mxu0
      %v2197 = vadd.f32 %v2076, %v2196
      %v2198 = vpop.f32.mrf.mxu0
      %v2199 = vpop.f32.mrf.mxu0
      %v2200 = vadd.f32 %v2079, %v2199
      %v2201 = vpop.f32.mrf.mxu0
      %2202 = vdwg.mxu0
      %v2203 = vld [vmem:[#allocation3 + $0x2] sm:$0xff]
      %v2204 = vld [vmem:[#allocation3 + $0xa] sm:$0xff]
      %v2205 = vld [vmem:[#allocation3 + $0x12] sm:$0xff]
      %v2206 = vld [vmem:[#allocation3 + $0x1a] sm:$0xff]
      %v2207 = vld [vmem:[#allocation3 + $0x22] sm:$0xff]
      %v2208 = vld [vmem:[#allocation3 + $0x2a] sm:$0xff]
      %v2209 = vld [vmem:[#allocation3 + $0x32] sm:$0xff]
      %v2210 = vld [vmem:[#allocation3 + $0x3a] sm:$0xff]
      %v2211 = vld [vmem:[#allocation3 + $0x42] sm:$0xff]
      %v2212 = vld [vmem:[#allocation3 + $0x4a] sm:$0xff]
      %v2213 = vpack.c.bf16 %v2204, %v2203
      %v2214 = vpack.c.bf16 %v2206, %v2205
      %v2215 = vpack.c.bf16 %v2208, %v2207
      %v2216 = vpack.c.bf16 %v2210, %v2209
      %v2217 = vpack.c.bf16 %v2212, %v2211
      %v2218 = vld [vmem:[%s3 + $0x80] sm:$0xf]
      %v2219 = vld [vmem:[%s3 + $0x84] sm:$0xf]
      %v2220 = vld [vmem:[%s3 + $0x88] sm:$0xf]
      %v2221 = vld [vmem:[%s3 + $0x8c] sm:$0xf]
      %v2222 = vld [vmem:[%s3 + $0x90] sm:$0xf]
      %v2223 = vld [vmem:[%s3 + $0x94] sm:$0xf]
      %v2224 = vld [vmem:[%s3 + $0x98] sm:$0xf]
      %v2225 = vld [vmem:[%s3 + $0x9c] sm:$0xf]
      %v2226 = vld [vmem:[%s3 + $0xa0] sm:$0xf]
      %v2227 = vld [vmem:[%s3 + $0xa4] sm:$0xf]
      %v2228 = vld [vmem:[%s3 + $0xa8] sm:$0xf]
      %v2229 = vld [vmem:[%s3 + $0xac] sm:$0xf]
      %v2230 = vld [vmem:[%s3 + $0xb0] sm:$0xf]
      %v2231 = vld [vmem:[%s3 + $0xb4] sm:$0xf]
      %v2232 = vld [vmem:[%s3 + $0xb8] sm:$0xf]
      %v2233 = vld [vmem:[%s3 + $0xbc] sm:$0xf]
      %v2250 = vunpack.c.l.b16 %v2218
      %v2251 = vunpack.c.l.b16 %v2219
      %v2252 = vunpack.c.l.b16 %v2220
      %v2253 = vunpack.c.l.b16 %v2221
      %v2254 = vunpack.c.l.b16 %v2222
      %v2255 = vunpack.c.l.b16 %v2223
      %v2256 = vunpack.c.l.b16 %v2224
      %v2257 = vunpack.c.l.b16 %v2225
      %v2258 = vunpack.c.l.b16 %v2226
      %v2259 = vunpack.c.l.b16 %v2227
      %v2260 = vunpack.c.l.b16 %v2228
      %v2261 = vunpack.c.l.b16 %v2229
      %v2262 = vunpack.c.l.b16 %v2230
      %v2263 = vunpack.c.l.b16 %v2231
      %v2264 = vunpack.c.l.b16 %v2232
      %v2265 = vunpack.c.l.b16 %v2233
      %v2266 = vpack.c.b16 %v2251, %v2250
      %v2267 = vpack.c.b16 %v2253, %v2252
      %v2268 = vpack.c.b16 %v2255, %v2254
      %v2269 = vpack.c.b16 %v2257, %v2256
      %v2270 = vpack.c.b16 %v2259, %v2258
      %v2271 = vpack.c.b16 %v2261, %v2260
      %v2272 = vpack.c.b16 %v2263, %v2262
      %v2273 = vpack.c.b16 %v2265, %v2264
      %2282 = vmatprep.subr.bf16.mxu0 0
      %2283 = vmatpush1.bf16.msra.mxu0 %v2273
      %2284 = vmatprep.subr.bf16.mxu0 0
      %2285 = vmatpush1.bf16.msra.mxu0 %v2272
      %2286 = vmatprep.subr.bf16.mxu0 0
      %2287 = vmatpush1.bf16.msra.mxu0 %v2271
      %2288 = vmatprep.subr.bf16.mxu0 0
      %2289 = vmatpush1.bf16.msra.mxu0 %v2270
      %2290 = vmatprep.subr.bf16.mxu0 0
      %2291 = vmatpush1.bf16.msra.mxu0 %v2269
      %2292 = vmatprep.subr.bf16.mxu0 0
      %2293 = vmatpush1.bf16.msra.mxu0 %v2268
      %2294 = vmatprep.subr.bf16.mxu0 0
      %2295 = vmatpush1.bf16.msra.mxu0 %v2267
      %2296 = vmatprep.subr.bf16.mxu0 0
      %2297 = vmatpush1.bf16.msra.mxu0 %v2266
      %2298 = vmatprep.subr.bf16.mxu0 0
      %2299 = vmatpush2.bf16.msra.mxu0 0
      %2300 = vmatprep.subr.bf16.mxu0 0
      %2301 = vmatpush2.bf16.msra.mxu0 0
      %2302 = vmatprep.subr.bf16.mxu0 0
      %2303 = vmatpush2.bf16.msra.mxu0 0
      %2304 = vmatprep.subr.bf16.mxu0 0
      %2305 = vmatpush2.bf16.msra.mxu0 0
      %2306 = vmatprep.subr.bf16.mxu0 0
      %2307 = vmatpush2.bf16.msra.mxu0 0
      %2308 = vmatprep.subr.bf16.mxu0 0
      %2309 = vmatpush2.bf16.msra.mxu0 0
      %2310 = vmatprep.subr.bf16.mxu0 0
      %2311 = vmatpush2.bf16.msra.mxu0 0
      %2312 = vmatprep.subr.bf16.mxu0 0
      %2313 = vmatpush2.bf16.msra.mxu0 0
      %2314 = vmatprep.mubr.bf16.mxu0 0
      %2315 = vmatmul.mubr.bf16.gmra.mxu0 %v2213
      %v2316 = vpop.f32.mrf.mxu0
      %v2317 = vadd.f32 0.0, %v2316
      %v2318 = vpop.f32.mrf.mxu0
      %v2319 = vpop.f32.mrf.mxu0
      %v2320 = vadd.f32 0.0, %v2319
      %v2321 = vpop.f32.mrf.mxu0
      %2322 = vmatprep.mubr.bf16.mxu0 0
      %2323 = vmatmul.mubr.bf16.gmra.mxu0 %v2214
      %v2324 = vpop.f32.mrf.mxu0
      %v2325 = vadd.f32 0.0, %v2324
      %v2326 = vpop.f32.mrf.mxu0
      %v2327 = vpop.f32.mrf.mxu0
      %v2328 = vadd.f32 0.0, %v2327
      %v2329 = vpop.f32.mrf.mxu0
      %2330 = vmatprep.mubr.bf16.mxu0 0
      %2331 = vmatmul.mubr.bf16.gmra.mxu0 %v2215
      %v2332 = vpop.f32.mrf.mxu0
      %v2333 = vadd.f32 0.0, %v2332
      %v2334 = vpop.f32.mrf.mxu0
      %v2335 = vpop.f32.mrf.mxu0
      %v2336 = vadd.f32 0.0, %v2335
      %v2337 = vpop.f32.mrf.mxu0
      %2338 = vmatprep.mubr.bf16.mxu0 0
      %2339 = vmatmul.mubr.bf16.gmra.mxu0 %v2216
      %v2340 = vpop.f32.mrf.mxu0
      %v2341 = vadd.f32 0.0, %v2340
      %v2342 = vpop.f32.mrf.mxu0
      %v2343 = vpop.f32.mrf.mxu0
      %v2344 = vadd.f32 0.0, %v2343
      %v2345 = vpop.f32.mrf.mxu0
      %2346 = vmatprep.mubr.bf16.mxu0 0
      %2347 = vmatmul.mubr.bf16.gmra.mxu0 %v2217
      %v2348 = vpop.f32.mrf.mxu0
      %v2349 = vadd.f32 0.0, %v2348
      %v2350 = vpop.f32.mrf.mxu0
      %v2351 = vpop.f32.mrf.mxu0
      %v2352 = vadd.f32 0.0, %v2351
      %v2353 = vpop.f32.mrf.mxu0
      %2354 = vdwg.mxu0
      %v2355 = vadd.f32 %v2165, %v2317
      %v2356 = vadd.f32 %v2168, %v2320
      %v2357 = vadd.f32 %v2173, %v2325
      %v2358 = vadd.f32 %v2176, %v2328
      %v2359 = vadd.f32 %v2181, %v2333
      %v2360 = vadd.f32 %v2184, %v2336
      %v2361 = vadd.f32 %v2189, %v2341
      %v2362 = vadd.f32 %v2192, %v2344
      %v2363 = vadd.f32 %v2197, %v2349
      %v2364 = vadd.f32 %v2200, %v2352
      %v2365 = vld [vmem:[#allocation3 + $0xa] sm:$0xff]
      %v2366 = vld [vmem:[#allocation3 + $0x12] sm:$0xff]
      %v2367 = vld [vmem:[#allocation3 + $0x1a] sm:$0xff]
      %v2368 = vld [vmem:[#allocation3 + $0x22] sm:$0xff]
      %v2369 = vld [vmem:[#allocation3 + $0x2a] sm:$0xff]
      %v2370 = vld [vmem:[#allocation3 + $0x32] sm:$0xff]
      %v2371 = vld [vmem:[#allocation3 + $0x3a] sm:$0xff]
      %v2372 = vld [vmem:[#allocation3 + $0x42] sm:$0xff]
      %v2373 = vld [vmem:[#allocation3 + $0x4a] sm:$0xff]
      %v2374 = vld [vmem:[#allocation3 + $0x52] sm:$0xff]
      %v2375 = vpack.c.bf16 %v2366, %v2365
      %v2376 = vpack.c.bf16 %v2368, %v2367
      %v2377 = vpack.c.bf16 %v2370, %v2369
      %v2378 = vpack.c.bf16 %v2372, %v2371
      %v2379 = vpack.c.bf16 %v2374, %v2373
      %v2380 = vld [vmem:[%s3 + $0xc0] sm:$0xf]
      %v2381 = vld [vmem:[%s3 + $0xc4] sm:$0xf]
      %v2382 = vld [vmem:[%s3 + $0xc8] sm:$0xf]
      %v2383 = vld [vmem:[%s3 + $0xcc] sm:$0xf]
      %v2384 = vld [vmem:[%s3 + $0xd0] sm:$0xf]
      %v2385 = vld [vmem:[%s3 + $0xd4] sm:$0xf]
      %v2386 = vld [vmem:[%s3 + $0xd8] sm:$0xf]
      %v2387 = vld [vmem:[%s3 + $0xdc] sm:$0xf]
      %v2388 = vld [vmem:[%s3 + $0xe0] sm:$0xf]
      %v2389 = vld [vmem:[%s3 + $0xe4] sm:$0xf]
      %v2390 = vld [vmem:[%s3 + $0xe8] sm:$0xf]
      %v2391 = vld [vmem:[%s3 + $0xec] sm:$0xf]
      %v2392 = vld [vmem:[%s3 + $0xf0] sm:$0xf]
      %v2393 = vld [vmem:[%s3 + $0xf4] sm:$0xf]
      %v2394 = vld [vmem:[%s3 + $0xf8] sm:$0xf]
      %v2395 = vld [vmem:[%s3 + $0xfc] sm:$0xf]
      %v2412 = vunpack.c.l.b16 %v2380
      %v2413 = vunpack.c.l.b16 %v2381
      %v2414 = vunpack.c.l.b16 %v2382
      %v2415 = vunpack.c.l.b16 %v2383
      %v2416 = vunpack.c.l.b16 %v2384
      %v2417 = vunpack.c.l.b16 %v2385
      %v2418 = vunpack.c.l.b16 %v2386
      %v2419 = vunpack.c.l.b16 %v2387
      %v2420 = vunpack.c.l.b16 %v2388
      %v2421 = vunpack.c.l.b16 %v2389
      %v2422 = vunpack.c.l.b16 %v2390
      %v2423 = vunpack.c.l.b16 %v2391
      %v2424 = vunpack.c.l.b16 %v2392
      %v2425 = vunpack.c.l.b16 %v2393
      %v2426 = vunpack.c.l.b16 %v2394
      %v2427 = vunpack.c.l.b16 %v2395
      %v2428 = vpack.c.b16 %v2413, %v2412
      %v2429 = vpack.c.b16 %v2415, %v2414
      %v2430 = vpack.c.b16 %v2417, %v2416
      %v2431 = vpack.c.b16 %v2419, %v2418
      %v2432 = vpack.c.b16 %v2421, %v2420
      %v2433 = vpack.c.b16 %v2423, %v2422
      %v2434 = vpack.c.b16 %v2425, %v2424
      %v2435 = vpack.c.b16 %v2427, %v2426
      %2444 = vmatprep.subr.bf16.mxu0 0
      %2445 = vmatpush1.bf16.msra.mxu0 %v2435
      %2446 = vmatprep.subr.bf16.mxu0 0
      %2447 = vmatpush1.bf16.msra.mxu0 %v2434
      %2448 = vmatprep.subr.bf16.mxu0 0
      %2449 = vmatpush1.bf16.msra.mxu0 %v2433
      %2450 = vmatprep.subr.bf16.mxu0 0
      %2451 = vmatpush1.bf16.msra.mxu0 %v2432
      %2452 = vmatprep.subr.bf16.mxu0 0
      %2453 = vmatpush1.bf16.msra.mxu0 %v2431
      %2454 = vmatprep.subr.bf16.mxu0 0
      %2455 = vmatpush1.bf16.msra.mxu0 %v2430
      %2456 = vmatprep.subr.bf16.mxu0 0
      %2457 = vmatpush1.bf16.msra.mxu0 %v2429
      %2458 = vmatprep.subr.bf16.mxu0 0
      %2459 = vmatpush1.bf16.msra.mxu0 %v2428
      %2460 = vmatprep.subr.bf16.mxu0 0
      %2461 = vmatpush2.bf16.msra.mxu0 0
      %2462 = vmatprep.subr.bf16.mxu0 0
      %2463 = vmatpush2.bf16.msra.mxu0 0
      %2464 = vmatprep.subr.bf16.mxu0 0
      %2465 = vmatpush2.bf16.msra.mxu0 0
      %2466 = vmatprep.subr.bf16.mxu0 0
      %2467 = vmatpush2.bf16.msra.mxu0 0
      %2468 = vmatprep.subr.bf16.mxu0 0
      %2469 = vmatpush2.bf16.msra.mxu0 0
      %2470 = vmatprep.subr.bf16.mxu0 0
      %2471 = vmatpush2.bf16.msra.mxu0 0
      %2472 = vmatprep.subr.bf16.mxu0 0
      %2473 = vmatpush2.bf16.msra.mxu0 0
      %2474 = vmatprep.subr.bf16.mxu0 0
      %2475 = vmatpush2.bf16.msra.mxu0 0
      %2476 = vmatprep.mubr.bf16.mxu0 0
      %2477 = vmatmul.mubr.bf16.gmra.mxu0 %v2375
      %v2478 = vpop.f32.mrf.mxu0
      %v2479 = vadd.f32 0.0, %v2478
      %v2480 = vpop.f32.mrf.mxu0
      %v2481 = vpop.f32.mrf.mxu0
      %v2482 = vadd.f32 0.0, %v2481
      %v2483 = vpop.f32.mrf.mxu0
      %2484 = vmatprep.mubr.bf16.mxu0 0
      %2485 = vmatmul.mubr.bf16.gmra.mxu0 %v2376
      %v2486 = vpop.f32.mrf.mxu0
      %v2487 = vadd.f32 0.0, %v2486
      %v2488 = vpop.f32.mrf.mxu0
      %v2489 = vpop.f32.mrf.mxu0
      %v2490 = vadd.f32 0.0, %v2489
      %v2491 = vpop.f32.mrf.mxu0
      %2492 = vmatprep.mubr.bf16.mxu0 0
      %2493 = vmatmul.mubr.bf16.gmra.mxu0 %v2377
      %v2494 = vpop.f32.mrf.mxu0
      %v2495 = vadd.f32 0.0, %v2494
      %v2496 = vpop.f32.mrf.mxu0
      %v2497 = vpop.f32.mrf.mxu0
      %v2498 = vadd.f32 0.0, %v2497
      %v2499 = vpop.f32.mrf.mxu0
      %2500 = vmatprep.mubr.bf16.mxu0 0
      %2501 = vmatmul.mubr.bf16.gmra.mxu0 %v2378
      %v2502 = vpop.f32.mrf.mxu0
      %v2503 = vadd.f32 0.0, %v2502
      %v2504 = vpop.f32.mrf.mxu0
      %v2505 = vpop.f32.mrf.mxu0
      %v2506 = vadd.f32 0.0, %v2505
      %v2507 = vpop.f32.mrf.mxu0
      %2508 = vmatprep.mubr.bf16.mxu0 0
      %2509 = vmatmul.mubr.bf16.gmra.mxu0 %v2379
      %v2510 = vpop.f32.mrf.mxu0
      %v2511 = vadd.f32 0.0, %v2510
      %v2512 = vpop.f32.mrf.mxu0
      %v2513 = vpop.f32.mrf.mxu0
      %v2514 = vadd.f32 0.0, %v2513
      %v2515 = vpop.f32.mrf.mxu0
      %2516 = vdwg.mxu0
      %v2517 = vadd.f32 %v2355, %v2479
      %v2518 = vadd.f32 %v2356, %v2482
      %v2519 = vadd.f32 %v2357, %v2487
      %v2520 = vadd.f32 %v2358, %v2490
      %v2521 = vadd.f32 %v2359, %v2495
      %v2522 = vadd.f32 %v2360, %v2498
      %v2523 = vadd.f32 %v2361, %v2503
      %v2524 = vadd.f32 %v2362, %v2506
      %v2525 = vadd.f32 %v2363, %v2511
      %v2526 = vadd.f32 %v2364, %v2514
      %v2527 = vld [vmem:[#allocation3 + $0xb] sm:$0xff]
      %v2528 = vld [vmem:[#allocation3 + $0x13] sm:$0xff]
      %v2529 = vld [vmem:[#allocation3 + $0x1b] sm:$0xff]
      %v2530 = vld [vmem:[#allocation3 + $0x23] sm:$0xff]
      %v2531 = vld [vmem:[#allocation3 + $0x2b] sm:$0xff]
      %v2532 = vld [vmem:[#allocation3 + $0x33] sm:$0xff]
      %v2533 = vld [vmem:[#allocation3 + $0x3b] sm:$0xff]
      %v2534 = vld [vmem:[#allocation3 + $0x43] sm:$0xff]
      %v2535 = vld [vmem:[#allocation3 + $0x4b] sm:$0xff]
      %v2536 = vld [vmem:[#allocation3 + $0x53] sm:$0xff]
      %v2537 = vpack.c.bf16 %v2528, %v2527
      %v2538 = vpack.c.bf16 %v2530, %v2529
      %v2539 = vpack.c.bf16 %v2532, %v2531
      %v2540 = vpack.c.bf16 %v2534, %v2533
      %v2541 = vpack.c.bf16 %v2536, %v2535
      %v2542 = vld [vmem:[%s3 + $0x100] sm:$0xf]
      %v2543 = vld [vmem:[%s3 + $0x104] sm:$0xf]
      %v2544 = vld [vmem:[%s3 + $0x108] sm:$0xf]
      %v2545 = vld [vmem:[%s3 + $0x10c] sm:$0xf]
      %v2546 = vld [vmem:[%s3 + $0x110] sm:$0xf]
      %v2547 = vld [vmem:[%s3 + $0x114] sm:$0xf]
      %v2548 = vld [vmem:[%s3 + $0x118] sm:$0xf]
      %v2549 = vld [vmem:[%s3 + $0x11c] sm:$0xf]
      %v2550 = vld [vmem:[%s3 + $0x120] sm:$0xf]
      %v2551 = vld [vmem:[%s3 + $0x124] sm:$0xf]
      %v2552 = vld [vmem:[%s3 + $0x128] sm:$0xf]
      %v2553 = vld [vmem:[%s3 + $0x12c] sm:$0xf]
      %v2554 = vld [vmem:[%s3 + $0x130] sm:$0xf]
      %v2555 = vld [vmem:[%s3 + $0x134] sm:$0xf]
      %v2556 = vld [vmem:[%s3 + $0x138] sm:$0xf]
      %v2557 = vld [vmem:[%s3 + $0x13c] sm:$0xf]
      %v2574 = vunpack.c.l.b16 %v2542
      %v2575 = vunpack.c.l.b16 %v2543
      %v2576 = vunpack.c.l.b16 %v2544
      %v2577 = vunpack.c.l.b16 %v2545
      %v2578 = vunpack.c.l.b16 %v2546
      %v2579 = vunpack.c.l.b16 %v2547
      %v2580 = vunpack.c.l.b16 %v2548
      %v2581 = vunpack.c.l.b16 %v2549
      %v2582 = vunpack.c.l.b16 %v2550
      %v2583 = vunpack.c.l.b16 %v2551
      %v2584 = vunpack.c.l.b16 %v2552
      %v2585 = vunpack.c.l.b16 %v2553
      %v2586 = vunpack.c.l.b16 %v2554
      %v2587 = vunpack.c.l.b16 %v2555
      %v2588 = vunpack.c.l.b16 %v2556
      %v2589 = vunpack.c.l.b16 %v2557
      %v2590 = vpack.c.b16 %v2575, %v2574
      %v2591 = vpack.c.b16 %v2577, %v2576
      %v2592 = vpack.c.b16 %v2579, %v2578
      %v2593 = vpack.c.b16 %v2581, %v2580
      %v2594 = vpack.c.b16 %v2583, %v2582
      %v2595 = vpack.c.b16 %v2585, %v2584
      %v2596 = vpack.c.b16 %v2587, %v2586
      %v2597 = vpack.c.b16 %v2589, %v2588
      %2606 = vmatprep.subr.bf16.mxu0 0
      %2607 = vmatpush1.bf16.msra.mxu0 %v2597
      %2608 = vmatprep.subr.bf16.mxu0 0
      %2609 = vmatpush1.bf16.msra.mxu0 %v2596
      %2610 = vmatprep.subr.bf16.mxu0 0
      %2611 = vmatpush1.bf16.msra.mxu0 %v2595
      %2612 = vmatprep.subr.bf16.mxu0 0
      %2613 = vmatpush1.bf16.msra.mxu0 %v2594
      %2614 = vmatprep.subr.bf16.mxu0 0
      %2615 = vmatpush1.bf16.msra.mxu0 %v2593
      %2616 = vmatprep.subr.bf16.mxu0 0
      %2617 = vmatpush1.bf16.msra.mxu0 %v2592
      %2618 = vmatprep.subr.bf16.mxu0 0
      %2619 = vmatpush1.bf16.msra.mxu0 %v2591
      %2620 = vmatprep.subr.bf16.mxu0 0
      %2621 = vmatpush1.bf16.msra.mxu0 %v2590
      %2622 = vmatprep.subr.bf16.mxu0 0
      %2623 = vmatpush2.bf16.msra.mxu0 0
      %2624 = vmatprep.subr.bf16.mxu0 0
      %2625 = vmatpush2.bf16.msra.mxu0 0
      %2626 = vmatprep.subr.bf16.mxu0 0
      %2627 = vmatpush2.bf16.msra.mxu0 0
      %2628 = vmatprep.subr.bf16.mxu0 0
      %2629 = vmatpush2.bf16.msra.mxu0 0
      %2630 = vmatprep.subr.bf16.mxu0 0
      %2631 = vmatpush2.bf16.msra.mxu0 0
      %2632 = vmatprep.subr.bf16.mxu0 0
      %2633 = vmatpush2.bf16.msra.mxu0 0
      %2634 = vmatprep.subr.bf16.mxu0 0
      %2635 = vmatpush2.bf16.msra.mxu0 0
      %2636 = vmatprep.subr.bf16.mxu0 0
      %2637 = vmatpush2.bf16.msra.mxu0 0
      %2638 = vmatprep.mubr.bf16.mxu0 0
      %2639 = vmatmul.mubr.bf16.gmra.mxu0 %v2537
      %v2640 = vpop.f32.mrf.mxu0
      %v2641 = vadd.f32 0.0, %v2640
      %v2642 = vpop.f32.mrf.mxu0
      %v2643 = vpop.f32.mrf.mxu0
      %v2644 = vadd.f32 0.0, %v2643
      %v2645 = vpop.f32.mrf.mxu0
      %2646 = vmatprep.mubr.bf16.mxu0 0
      %2647 = vmatmul.mubr.bf16.gmra.mxu0 %v2538
      %v2648 = vpop.f32.mrf.mxu0
      %v2649 = vadd.f32 0.0, %v2648
      %v2650 = vpop.f32.mrf.mxu0
      %v2651 = vpop.f32.mrf.mxu0
      %v2652 = vadd.f32 0.0, %v2651
      %v2653 = vpop.f32.mrf.mxu0
      %2654 = vmatprep.mubr.bf16.mxu0 0
      %2655 = vmatmul.mubr.bf16.gmra.mxu0 %v2539
      %v2656 = vpop.f32.mrf.mxu0
      %v2657 = vadd.f32 0.0, %v2656
      %v2658 = vpop.f32.mrf.mxu0
      %v2659 = vpop.f32.mrf.mxu0
      %v2660 = vadd.f32 0.0, %v2659
      %v2661 = vpop.f32.mrf.mxu0
      %2662 = vmatprep.mubr.bf16.mxu0 0
      %2663 = vmatmul.mubr.bf16.gmra.mxu0 %v2540
      %v2664 = vpop.f32.mrf.mxu0
      %v2665 = vadd.f32 0.0, %v2664
      %v2666 = vpop.f32.mrf.mxu0
      %v2667 = vpop.f32.mrf.mxu0
      %v2668 = vadd.f32 0.0, %v2667
      %v2669 = vpop.f32.mrf.mxu0
      %2670 = vmatprep.mubr.bf16.mxu0 0
      %2671 = vmatmul.mubr.bf16.gmra.mxu0 %v2541
      %v2672 = vpop.f32.mrf.mxu0
      %v2673 = vadd.f32 0.0, %v2672
      %v2674 = vpop.f32.mrf.mxu0
      %v2675 = vpop.f32.mrf.mxu0
      %v2676 = vadd.f32 0.0, %v2675
      %v2677 = vpop.f32.mrf.mxu0
      %2678 = vdwg.mxu0
      %v2679 = vadd.f32 %v2517, %v2641
      %v2680 = vadd.f32 %v2518, %v2644
      %v2681 = vadd.f32 %v2519, %v2649
      %v2682 = vadd.f32 %v2520, %v2652
      %v2683 = vadd.f32 %v2521, %v2657
      %v2684 = vadd.f32 %v2522, %v2660
      %v2685 = vadd.f32 %v2523, %v2665
      %v2686 = vadd.f32 %v2524, %v2668
      %v2687 = vadd.f32 %v2525, %v2673
      %v2688 = vadd.f32 %v2526, %v2676
      %v2689 = vld [vmem:[#allocation3 + $0xc] sm:$0xff]
      %v2690 = vld [vmem:[#allocation3 + $0x14] sm:$0xff]
      %v2691 = vld [vmem:[#allocation3 + $0x1c] sm:$0xff]
      %v2692 = vld [vmem:[#allocation3 + $0x24] sm:$0xff]
      %v2693 = vld [vmem:[#allocation3 + $0x2c] sm:$0xff]
      %v2694 = vld [vmem:[#allocation3 + $0x34] sm:$0xff]
      %v2695 = vld [vmem:[#allocation3 + $0x3c] sm:$0xff]
      %v2696 = vld [vmem:[#allocation3 + $0x44] sm:$0xff]
      %v2697 = vld [vmem:[#allocation3 + $0x4c] sm:$0xff]
      %v2698 = vld [vmem:[#allocation3 + $0x54] sm:$0xff]
      %v2699 = vpack.c.bf16 %v2690, %v2689
      %v2700 = vpack.c.bf16 %v2692, %v2691
      %v2701 = vpack.c.bf16 %v2694, %v2693
      %v2702 = vpack.c.bf16 %v2696, %v2695
      %v2703 = vpack.c.bf16 %v2698, %v2697
      %v2704 = vld [vmem:[%s3 + $0x140] sm:$0xf]
      %v2705 = vld [vmem:[%s3 + $0x144] sm:$0xf]
      %v2706 = vld [vmem:[%s3 + $0x148] sm:$0xf]
      %v2707 = vld [vmem:[%s3 + $0x14c] sm:$0xf]
      %v2708 = vld [vmem:[%s3 + $0x150] sm:$0xf]
      %v2709 = vld [vmem:[%s3 + $0x154] sm:$0xf]
      %v2710 = vld [vmem:[%s3 + $0x158] sm:$0xf]
      %v2711 = vld [vmem:[%s3 + $0x15c] sm:$0xf]
      %v2712 = vld [vmem:[%s3 + $0x160] sm:$0xf]
      %v2713 = vld [vmem:[%s3 + $0x164] sm:$0xf]
      %v2714 = vld [vmem:[%s3 + $0x168] sm:$0xf]
      %v2715 = vld [vmem:[%s3 + $0x16c] sm:$0xf]
      %v2716 = vld [vmem:[%s3 + $0x170] sm:$0xf]
      %v2717 = vld [vmem:[%s3 + $0x174] sm:$0xf]
      %v2718 = vld [vmem:[%s3 + $0x178] sm:$0xf]
      %v2719 = vld [vmem:[%s3 + $0x17c] sm:$0xf]
      %v2736 = vunpack.c.l.b16 %v2704
      %v2737 = vunpack.c.l.b16 %v2705
      %v2738 = vunpack.c.l.b16 %v2706
      %v2739 = vunpack.c.l.b16 %v2707
      %v2740 = vunpack.c.l.b16 %v2708
      %v2741 = vunpack.c.l.b16 %v2709
      %v2742 = vunpack.c.l.b16 %v2710
      %v2743 = vunpack.c.l.b16 %v2711
      %v2744 = vunpack.c.l.b16 %v2712
      %v2745 = vunpack.c.l.b16 %v2713
      %v2746 = vunpack.c.l.b16 %v2714
      %v2747 = vunpack.c.l.b16 %v2715
      %v2748 = vunpack.c.l.b16 %v2716
      %v2749 = vunpack.c.l.b16 %v2717
      %v2750 = vunpack.c.l.b16 %v2718
      %v2751 = vunpack.c.l.b16 %v2719
      %v2752 = vpack.c.b16 %v2737, %v2736
      %v2753 = vpack.c.b16 %v2739, %v2738
      %v2754 = vpack.c.b16 %v2741, %v2740
      %v2755 = vpack.c.b16 %v2743, %v2742
      %v2756 = vpack.c.b16 %v2745, %v2744
      %v2757 = vpack.c.b16 %v2747, %v2746
      %v2758 = vpack.c.b16 %v2749, %v2748
      %v2759 = vpack.c.b16 %v2751, %v2750
      %2768 = vmatprep.subr.bf16.mxu0 0
      %2769 = vmatpush1.bf16.msra.mxu0 %v2759
      %2770 = vmatprep.subr.bf16.mxu0 0
      %2771 = vmatpush1.bf16.msra.mxu0 %v2758
      %2772 = vmatprep.subr.bf16.mxu0 0
      %2773 = vmatpush1.bf16.msra.mxu0 %v2757
      %2774 = vmatprep.subr.bf16.mxu0 0
      %2775 = vmatpush1.bf16.msra.mxu0 %v2756
      %2776 = vmatprep.subr.bf16.mxu0 0
      %2777 = vmatpush1.bf16.msra.mxu0 %v2755
      %2778 = vmatprep.subr.bf16.mxu0 0
      %2779 = vmatpush1.bf16.msra.mxu0 %v2754
      %2780 = vmatprep.subr.bf16.mxu0 0
      %2781 = vmatpush1.bf16.msra.mxu0 %v2753
      %2782 = vmatprep.subr.bf16.mxu0 0
      %2783 = vmatpush1.bf16.msra.mxu0 %v2752
      %2784 = vmatprep.subr.bf16.mxu0 0
      %2785 = vmatpush2.bf16.msra.mxu0 0
      %2786 = vmatprep.subr.bf16.mxu0 0
      %2787 = vmatpush2.bf16.msra.mxu0 0
      %2788 = vmatprep.subr.bf16.mxu0 0
      %2789 = vmatpush2.bf16.msra.mxu0 0
      %2790 = vmatprep.subr.bf16.mxu0 0
      %2791 = vmatpush2.bf16.msra.mxu0 0
      %2792 = vmatprep.subr.bf16.mxu0 0
      %2793 = vmatpush2.bf16.msra.mxu0 0
      %2794 = vmatprep.subr.bf16.mxu0 0
      %2795 = vmatpush2.bf16.msra.mxu0 0
      %2796 = vmatprep.subr.bf16.mxu0 0
      %2797 = vmatpush2.bf16.msra.mxu0 0
      %2798 = vmatprep.subr.bf16.mxu0 0
      %2799 = vmatpush2.bf16.msra.mxu0 0
      %2800 = vmatprep.mubr.bf16.mxu0 0
      %2801 = vmatmul.mubr.bf16.gmra.mxu0 %v2699
      %v2802 = vpop.f32.mrf.mxu0
      %v2803 = vadd.f32 0.0, %v2802
      %v2804 = vpop.f32.mrf.mxu0
      %v2805 = vpop.f32.mrf.mxu0
      %v2806 = vadd.f32 0.0, %v2805
      %v2807 = vpop.f32.mrf.mxu0
      %2808 = vmatprep.mubr.bf16.mxu0 0
      %2809 = vmatmul.mubr.bf16.gmra.mxu0 %v2700
      %v2810 = vpop.f32.mrf.mxu0
      %v2811 = vadd.f32 0.0, %v2810
      %v2812 = vpop.f32.mrf.mxu0
      %v2813 = vpop.f32.mrf.mxu0
      %v2814 = vadd.f32 0.0, %v2813
      %v2815 = vpop.f32.mrf.mxu0
      %2816 = vmatprep.mubr.bf16.mxu0 0
      %2817 = vmatmul.mubr.bf16.gmra.mxu0 %v2701
      %v2818 = vpop.f32.mrf.mxu0
      %v2819 = vadd.f32 0.0, %v2818
      %v2820 = vpop.f32.mrf.mxu0
      %v2821 = vpop.f32.mrf.mxu0
      %v2822 = vadd.f32 0.0, %v2821
      %v2823 = vpop.f32.mrf.mxu0
      %2824 = vmatprep.mubr.bf16.mxu0 0
      %2825 = vmatmul.mubr.bf16.gmra.mxu0 %v2702
      %v2826 = vpop.f32.mrf.mxu0
      %v2827 = vadd.f32 0.0, %v2826
      %v2828 = vpop.f32.mrf.mxu0
      %v2829 = vpop.f32.mrf.mxu0
      %v2830 = vadd.f32 0.0, %v2829
      %v2831 = vpop.f32.mrf.mxu0
      %2832 = vmatprep.mubr.bf16.mxu0 0
      %2833 = vmatmul.mubr.bf16.gmra.mxu0 %v2703
      %v2834 = vpop.f32.mrf.mxu0
      %v2835 = vadd.f32 0.0, %v2834
      %v2836 = vpop.f32.mrf.mxu0
      %v2837 = vpop.f32.mrf.mxu0
      %v2838 = vadd.f32 0.0, %v2837
      %v2839 = vpop.f32.mrf.mxu0
      %2840 = vdwg.mxu0
      %v2841 = vadd.f32 %v2679, %v2803
      %v2842 = vadd.f32 %v2680, %v2806
      %v2843 = vadd.f32 %v2681, %v2811
      %v2844 = vadd.f32 %v2682, %v2814
      %v2845 = vadd.f32 %v2683, %v2819
      %v2846 = vadd.f32 %v2684, %v2822
      %v2847 = vadd.f32 %v2685, %v2827
      %v2848 = vadd.f32 %v2686, %v2830
      %v2849 = vadd.f32 %v2687, %v2835
      %v2850 = vadd.f32 %v2688, %v2838
      %v2851 = vld [vmem:[#allocation3 + $0x14] sm:$0xff]
      %v2852 = vld [vmem:[#allocation3 + $0x1c] sm:$0xff]
      %v2853 = vld [vmem:[#allocation3 + $0x24] sm:$0xff]
      %v2854 = vld [vmem:[#allocation3 + $0x2c] sm:$0xff]
      %v2855 = vld [vmem:[#allocation3 + $0x34] sm:$0xff]
      %v2856 = vld [vmem:[#allocation3 + $0x3c] sm:$0xff]
      %v2857 = vld [vmem:[#allocation3 + $0x44] sm:$0xff]
      %v2858 = vld [vmem:[#allocation3 + $0x4c] sm:$0xff]
      %v2859 = vld [vmem:[#allocation3 + $0x54] sm:$0xff]
      %v2860 = vld [vmem:[#allocation3 + $0x5c] sm:$0xff]
      %v2861 = vpack.c.bf16 %v2852, %v2851
      %v2862 = vpack.c.bf16 %v2854, %v2853
      %v2863 = vpack.c.bf16 %v2856, %v2855
      %v2864 = vpack.c.bf16 %v2858, %v2857
      %v2865 = vpack.c.bf16 %v2860, %v2859
      %v2866 = vld [vmem:[%s3 + $0x180] sm:$0xf]
      %v2867 = vld [vmem:[%s3 + $0x184] sm:$0xf]
      %v2868 = vld [vmem:[%s3 + $0x188] sm:$0xf]
      %v2869 = vld [vmem:[%s3 + $0x18c] sm:$0xf]
      %v2870 = vld [vmem:[%s3 + $0x190] sm:$0xf]
      %v2871 = vld [vmem:[%s3 + $0x194] sm:$0xf]
      %v2872 = vld [vmem:[%s3 + $0x198] sm:$0xf]
      %v2873 = vld [vmem:[%s3 + $0x19c] sm:$0xf]
      %v2874 = vld [vmem:[%s3 + $0x1a0] sm:$0xf]
      %v2875 = vld [vmem:[%s3 + $0x1a4] sm:$0xf]
      %v2876 = vld [vmem:[%s3 + $0x1a8] sm:$0xf]
      %v2877 = vld [vmem:[%s3 + $0x1ac] sm:$0xf]
      %v2878 = vld [vmem:[%s3 + $0x1b0] sm:$0xf]
      %v2879 = vld [vmem:[%s3 + $0x1b4] sm:$0xf]
      %v2880 = vld [vmem:[%s3 + $0x1b8] sm:$0xf]
      %v2881 = vld [vmem:[%s3 + $0x1bc] sm:$0xf]
      %v2898 = vunpack.c.l.b16 %v2866
      %v2899 = vunpack.c.l.b16 %v2867
      %v2900 = vunpack.c.l.b16 %v2868
      %v2901 = vunpack.c.l.b16 %v2869
      %v2902 = vunpack.c.l.b16 %v2870
      %v2903 = vunpack.c.l.b16 %v2871
      %v2904 = vunpack.c.l.b16 %v2872
      %v2905 = vunpack.c.l.b16 %v2873
      %v2906 = vunpack.c.l.b16 %v2874
      %v2907 = vunpack.c.l.b16 %v2875
      %v2908 = vunpack.c.l.b16 %v2876
      %v2909 = vunpack.c.l.b16 %v2877
      %v2910 = vunpack.c.l.b16 %v2878
      %v2911 = vunpack.c.l.b16 %v2879
      %v2912 = vunpack.c.l.b16 %v2880
      %v2913 = vunpack.c.l.b16 %v2881
      %v2914 = vpack.c.b16 %v2899, %v2898
      %v2915 = vpack.c.b16 %v2901, %v2900
      %v2916 = vpack.c.b16 %v2903, %v2902
      %v2917 = vpack.c.b16 %v2905, %v2904
      %v2918 = vpack.c.b16 %v2907, %v2906
      %v2919 = vpack.c.b16 %v2909, %v2908
      %v2920 = vpack.c.b16 %v2911, %v2910
      %v2921 = vpack.c.b16 %v2913, %v2912
      %2930 = vmatprep.subr.bf16.mxu0 0
      %2931 = vmatpush1.bf16.msra.mxu0 %v2921
      %2932 = vmatprep.subr.bf16.mxu0 0
      %2933 = vmatpush1.bf16.msra.mxu0 %v2920
      %2934 = vmatprep.subr.bf16.mxu0 0
      %2935 = vmatpush1.bf16.msra.mxu0 %v2919
      %2936 = vmatprep.subr.bf16.mxu0 0
      %2937 = vmatpush1.bf16.msra.mxu0 %v2918
      %2938 = vmatprep.subr.bf16.mxu0 0
      %2939 = vmatpush1.bf16.msra.mxu0 %v2917
      %2940 = vmatprep.subr.bf16.mxu0 0
      %2941 = vmatpush1.bf16.msra.mxu0 %v2916
      %2942 = vmatprep.subr.bf16.mxu0 0
      %2943 = vmatpush1.bf16.msra.mxu0 %v2915
      %2944 = vmatprep.subr.bf16.mxu0 0
      %2945 = vmatpush1.bf16.msra.mxu0 %v2914
      %2946 = vmatprep.subr.bf16.mxu0 0
      %2947 = vmatpush2.bf16.msra.mxu0 0
      %2948 = vmatprep.subr.bf16.mxu0 0
      %2949 = vmatpush2.bf16.msra.mxu0 0
      %2950 = vmatprep.subr.bf16.mxu0 0
      %2951 = vmatpush2.bf16.msra.mxu0 0
      %2952 = vmatprep.subr.bf16.mxu0 0
      %2953 = vmatpush2.bf16.msra.mxu0 0
      %2954 = vmatprep.subr.bf16.mxu0 0
      %2955 = vmatpush2.bf16.msra.mxu0 0
      %2956 = vmatprep.subr.bf16.mxu0 0
      %2957 = vmatpush2.bf16.msra.mxu0 0
      %2958 = vmatprep.subr.bf16.mxu0 0
      %2959 = vmatpush2.bf16.msra.mxu0 0
      %2960 = vmatprep.subr.bf16.mxu0 0
      %2961 = vmatpush2.bf16.msra.mxu0 0
      %2962 = vmatprep.mubr.bf16.mxu0 0
      %2963 = vmatmul.mubr.bf16.gmra.mxu0 %v2861
      %v2964 = vpop.f32.mrf.mxu0
      %v2965 = vadd.f32 0.0, %v2964
      %v2966 = vpop.f32.mrf.mxu0
      %v2967 = vpop.f32.mrf.mxu0
      %v2968 = vadd.f32 0.0, %v2967
      %v2969 = vpop.f32.mrf.mxu0
      %2970 = vmatprep.mubr.bf16.mxu0 0
      %2971 = vmatmul.mubr.bf16.gmra.mxu0 %v2862
      %v2972 = vpop.f32.mrf.mxu0
      %v2973 = vadd.f32 0.0, %v2972
      %v2974 = vpop.f32.mrf.mxu0
      %v2975 = vpop.f32.mrf.mxu0
      %v2976 = vadd.f32 0.0, %v2975
      %v2977 = vpop.f32.mrf.mxu0
      %2978 = vmatprep.mubr.bf16.mxu0 0
      %2979 = vmatmul.mubr.bf16.gmra.mxu0 %v2863
      %v2980 = vpop.f32.mrf.mxu0
      %v2981 = vadd.f32 0.0, %v2980
      %v2982 = vpop.f32.mrf.mxu0
      %v2983 = vpop.f32.mrf.mxu0
      %v2984 = vadd.f32 0.0, %v2983
      %v2985 = vpop.f32.mrf.mxu0
      %2986 = vmatprep.mubr.bf16.mxu0 0
      %2987 = vmatmul.mubr.bf16.gmra.mxu0 %v2864
      %v2988 = vpop.f32.mrf.mxu0
      %v2989 = vadd.f32 0.0, %v2988
      %v2990 = vpop.f32.mrf.mxu0
      %v2991 = vpop.f32.mrf.mxu0
      %v2992 = vadd.f32 0.0, %v2991
      %v2993 = vpop.f32.mrf.mxu0
      %2994 = vmatprep.mubr.bf16.mxu0 0
      %2995 = vmatmul.mubr.bf16.gmra.mxu0 %v2865
      %v2996 = vpop.f32.mrf.mxu0
      %v2997 = vadd.f32 0.0, %v2996
      %v2998 = vpop.f32.mrf.mxu0
      %v2999 = vpop.f32.mrf.mxu0
      %v3000 = vadd.f32 0.0, %v2999
      %v3001 = vpop.f32.mrf.mxu0
      %3002 = vdwg.mxu0
      %v3003 = vadd.f32 %v2841, %v2965
      %v3004 = vadd.f32 %v2842, %v2968
      %v3005 = vadd.f32 %v2843, %v2973
      %v3006 = vadd.f32 %v2844, %v2976
      %v3007 = vadd.f32 %v2845, %v2981
      %v3008 = vadd.f32 %v2846, %v2984
      %v3009 = vadd.f32 %v2847, %v2989
      %v3010 = vadd.f32 %v2848, %v2992
      %v3011 = vadd.f32 %v2849, %v2997
      %v3012 = vadd.f32 %v2850, %v3000
      %v3013 = vld [vmem:[#allocation3 + $0x15] sm:$0xff]
      %v3014 = vld [vmem:[#allocation3 + $0x1d] sm:$0xff]
      %v3015 = vld [vmem:[#allocation3 + $0x25] sm:$0xff]
      %v3016 = vld [vmem:[#allocation3 + $0x2d] sm:$0xff]
      %v3017 = vld [vmem:[#allocation3 + $0x35] sm:$0xff]
      %v3018 = vld [vmem:[#allocation3 + $0x3d] sm:$0xff]
      %v3019 = vld [vmem:[#allocation3 + $0x45] sm:$0xff]
      %v3020 = vld [vmem:[#allocation3 + $0x4d] sm:$0xff]
      %v3021 = vld [vmem:[#allocation3 + $0x55] sm:$0xff]
      %v3022 = vld [vmem:[#allocation3 + $0x5d] sm:$0xff]
      %v3023 = vpack.c.bf16 %v3014, %v3013
      %v3024 = vpack.c.bf16 %v3016, %v3015
      %v3025 = vpack.c.bf16 %v3018, %v3017
      %v3026 = vpack.c.bf16 %v3020, %v3019
      %v3027 = vpack.c.bf16 %v3022, %v3021
      %v3028 = vld [vmem:[%s3 + $0x1c0] sm:$0xf]
      %v3029 = vld [vmem:[%s3 + $0x1c4] sm:$0xf]
      %v3030 = vld [vmem:[%s3 + $0x1c8] sm:$0xf]
      %v3031 = vld [vmem:[%s3 + $0x1cc] sm:$0xf]
      %v3032 = vld [vmem:[%s3 + $0x1d0] sm:$0xf]
      %v3033 = vld [vmem:[%s3 + $0x1d4] sm:$0xf]
      %v3034 = vld [vmem:[%s3 + $0x1d8] sm:$0xf]
      %v3035 = vld [vmem:[%s3 + $0x1dc] sm:$0xf]
      %v3036 = vld [vmem:[%s3 + $0x1e0] sm:$0xf]
      %v3037 = vld [vmem:[%s3 + $0x1e4] sm:$0xf]
      %v3038 = vld [vmem:[%s3 + $0x1e8] sm:$0xf]
      %v3039 = vld [vmem:[%s3 + $0x1ec] sm:$0xf]
      %v3040 = vld [vmem:[%s3 + $0x1f0] sm:$0xf]
      %v3041 = vld [vmem:[%s3 + $0x1f4] sm:$0xf]
      %v3042 = vld [vmem:[%s3 + $0x1f8] sm:$0xf]
      %v3043 = vld [vmem:[%s3 + $0x1fc] sm:$0xf]
      %v3060 = vunpack.c.l.b16 %v3028
      %v3061 = vunpack.c.l.b16 %v3029
      %v3062 = vunpack.c.l.b16 %v3030
      %v3063 = vunpack.c.l.b16 %v3031
      %v3064 = vunpack.c.l.b16 %v3032
      %v3065 = vunpack.c.l.b16 %v3033
      %v3066 = vunpack.c.l.b16 %v3034
      %v3067 = vunpack.c.l.b16 %v3035
      %v3068 = vunpack.c.l.b16 %v3036
      %v3069 = vunpack.c.l.b16 %v3037
      %v3070 = vunpack.c.l.b16 %v3038
      %v3071 = vunpack.c.l.b16 %v3039
      %v3072 = vunpack.c.l.b16 %v3040
      %v3073 = vunpack.c.l.b16 %v3041
      %v3074 = vunpack.c.l.b16 %v3042
      %v3075 = vunpack.c.l.b16 %v3043
      %v3076 = vpack.c.b16 %v3061, %v3060
      %v3077 = vpack.c.b16 %v3063, %v3062
      %v3078 = vpack.c.b16 %v3065, %v3064
      %v3079 = vpack.c.b16 %v3067, %v3066
      %v3080 = vpack.c.b16 %v3069, %v3068
      %v3081 = vpack.c.b16 %v3071, %v3070
      %v3082 = vpack.c.b16 %v3073, %v3072
      %v3083 = vpack.c.b16 %v3075, %v3074
      %3092 = vmatprep.subr.bf16.mxu0 0
      %3093 = vmatpush1.bf16.msra.mxu0 %v3083
      %3094 = vmatprep.subr.bf16.mxu0 0
      %3095 = vmatpush1.bf16.msra.mxu0 %v3082
      %3096 = vmatprep.subr.bf16.mxu0 0
      %3097 = vmatpush1.bf16.msra.mxu0 %v3081
      %3098 = vmatprep.subr.bf16.mxu0 0
      %3099 = vmatpush1.bf16.msra.mxu0 %v3080
      %3100 = vmatprep.subr.bf16.mxu0 0
      %3101 = vmatpush1.bf16.msra.mxu0 %v3079
      %3102 = vmatprep.subr.bf16.mxu0 0
      %3103 = vmatpush1.bf16.msra.mxu0 %v3078
      %3104 = vmatprep.subr.bf16.mxu0 0
      %3105 = vmatpush1.bf16.msra.mxu0 %v3077
      %3106 = vmatprep.subr.bf16.mxu0 0
      %3107 = vmatpush1.bf16.msra.mxu0 %v3076
      %3108 = vmatprep.subr.bf16.mxu0 0
      %3109 = vmatpush2.bf16.msra.mxu0 0
      %3110 = vmatprep.subr.bf16.mxu0 0
      %3111 = vmatpush2.bf16.msra.mxu0 0
      %3112 = vmatprep.subr.bf16.mxu0 0
      %3113 = vmatpush2.bf16.msra.mxu0 0
      %3114 = vmatprep.subr.bf16.mxu0 0
      %3115 = vmatpush2.bf16.msra.mxu0 0
      %3116 = vmatprep.subr.bf16.mxu0 0
      %3117 = vmatpush2.bf16.msra.mxu0 0
      %3118 = vmatprep.subr.bf16.mxu0 0
      %3119 = vmatpush2.bf16.msra.mxu0 0
      %3120 = vmatprep.subr.bf16.mxu0 0
      %3121 = vmatpush2.bf16.msra.mxu0 0
      %3122 = vmatprep.subr.bf16.mxu0 0
      %3123 = vmatpush2.bf16.msra.mxu0 0
      %3124 = vmatprep.mubr.bf16.mxu0 0
      %3125 = vmatmul.mubr.bf16.gmra.mxu0 %v3023
      %v3126 = vpop.f32.mrf.mxu0
      %v3127 = vadd.f32 0.0, %v3126
      %v3128 = vpop.f32.mrf.mxu0
      %v3129 = vpop.f32.mrf.mxu0
      %v3130 = vadd.f32 0.0, %v3129
      %v3131 = vpop.f32.mrf.mxu0
      %3132 = vmatprep.mubr.bf16.mxu0 0
      %3133 = vmatmul.mubr.bf16.gmra.mxu0 %v3024
      %v3134 = vpop.f32.mrf.mxu0
      %v3135 = vadd.f32 0.0, %v3134
      %v3136 = vpop.f32.mrf.mxu0
      %v3137 = vpop.f32.mrf.mxu0
      %v3138 = vadd.f32 0.0, %v3137
      %v3139 = vpop.f32.mrf.mxu0
      %3140 = vmatprep.mubr.bf16.mxu0 0
      %3141 = vmatmul.mubr.bf16.gmra.mxu0 %v3025
      %v3142 = vpop.f32.mrf.mxu0
      %v3143 = vadd.f32 0.0, %v3142
      %v3144 = vpop.f32.mrf.mxu0
      %v3145 = vpop.f32.mrf.mxu0
      %v3146 = vadd.f32 0.0, %v3145
      %v3147 = vpop.f32.mrf.mxu0
      %3148 = vmatprep.mubr.bf16.mxu0 0
      %3149 = vmatmul.mubr.bf16.gmra.mxu0 %v3026
      %v3150 = vpop.f32.mrf.mxu0
      %v3151 = vadd.f32 0.0, %v3150
      %v3152 = vpop.f32.mrf.mxu0
      %v3153 = vpop.f32.mrf.mxu0
      %v3154 = vadd.f32 0.0, %v3153
      %v3155 = vpop.f32.mrf.mxu0
      %3156 = vmatprep.mubr.bf16.mxu0 0
      %3157 = vmatmul.mubr.bf16.gmra.mxu0 %v3027
      %v3158 = vpop.f32.mrf.mxu0
      %v3159 = vadd.f32 0.0, %v3158
      %v3160 = vpop.f32.mrf.mxu0
      %v3161 = vpop.f32.mrf.mxu0
      %v3162 = vadd.f32 0.0, %v3161
      %v3163 = vpop.f32.mrf.mxu0
      %3164 = vdwg.mxu0
      %v3165 = vadd.f32 %v3003, %v3127
      %v3166 = vadd.f32 %v3004, %v3130
      %v3167 = vadd.f32 %v3005, %v3135
      %v3168 = vadd.f32 %v3006, %v3138
      %v3169 = vadd.f32 %v3007, %v3143
      %v3170 = vadd.f32 %v3008, %v3146
      %v3171 = vadd.f32 %v3009, %v3151
      %v3172 = vadd.f32 %v3010, %v3154
      %v3173 = vadd.f32 %v3011, %v3159
      %v3174 = vadd.f32 %v3012, %v3162
      %v3175 = vld [vmem:[#allocation3 + $0x16] sm:$0xff]
      %v3176 = vld [vmem:[#allocation3 + $0x1e] sm:$0xff]
      %v3177 = vld [vmem:[#allocation3 + $0x26] sm:$0xff]
      %v3178 = vld [vmem:[#allocation3 + $0x2e] sm:$0xff]
      %v3179 = vld [vmem:[#allocation3 + $0x36] sm:$0xff]
      %v3180 = vld [vmem:[#allocation3 + $0x3e] sm:$0xff]
      %v3181 = vld [vmem:[#allocation3 + $0x46] sm:$0xff]
      %v3182 = vld [vmem:[#allocation3 + $0x4e] sm:$0xff]
      %v3183 = vld [vmem:[#allocation3 + $0x56] sm:$0xff]
      %v3184 = vld [vmem:[#allocation3 + $0x5e] sm:$0xff]
      %v3185 = vpack.c.bf16 %v3176, %v3175
      %v3186 = vpack.c.bf16 %v3178, %v3177
      %v3187 = vpack.c.bf16 %v3180, %v3179
      %v3188 = vpack.c.bf16 %v3182, %v3181
      %v3189 = vpack.c.bf16 %v3184, %v3183
      %v3190 = vld [vmem:[%s3 + $0x200] sm:$0xf]
      %v3191 = vld [vmem:[%s3 + $0x204] sm:$0xf]
      %v3192 = vld [vmem:[%s3 + $0x208] sm:$0xf]
      %v3193 = vld [vmem:[%s3 + $0x20c] sm:$0xf]
      %v3194 = vld [vmem:[%s3 + $0x210] sm:$0xf]
      %v3195 = vld [vmem:[%s3 + $0x214] sm:$0xf]
      %v3196 = vld [vmem:[%s3 + $0x218] sm:$0xf]
      %v3197 = vld [vmem:[%s3 + $0x21c] sm:$0xf]
      %v3198 = vld [vmem:[%s3 + $0x220] sm:$0xf]
      %v3199 = vld [vmem:[%s3 + $0x224] sm:$0xf]
      %v3200 = vld [vmem:[%s3 + $0x228] sm:$0xf]
      %v3201 = vld [vmem:[%s3 + $0x22c] sm:$0xf]
      %v3202 = vld [vmem:[%s3 + $0x230] sm:$0xf]
      %v3203 = vld [vmem:[%s3 + $0x234] sm:$0xf]
      %v3204 = vld [vmem:[%s3 + $0x238] sm:$0xf]
      %v3205 = vld [vmem:[%s3 + $0x23c] sm:$0xf]
      %v3222 = vunpack.c.l.b16 %v3190
      %v3223 = vunpack.c.l.b16 %v3191
      %v3224 = vunpack.c.l.b16 %v3192
      %v3225 = vunpack.c.l.b16 %v3193
      %v3226 = vunpack.c.l.b16 %v3194
      %v3227 = vunpack.c.l.b16 %v3195
      %v3228 = vunpack.c.l.b16 %v3196
      %v3229 = vunpack.c.l.b16 %v3197
      %v3230 = vunpack.c.l.b16 %v3198
      %v3231 = vunpack.c.l.b16 %v3199
      %v3232 = vunpack.c.l.b16 %v3200
      %v3233 = vunpack.c.l.b16 %v3201
      %v3234 = vunpack.c.l.b16 %v3202
      %v3235 = vunpack.c.l.b16 %v3203
      %v3236 = vunpack.c.l.b16 %v3204
      %v3237 = vunpack.c.l.b16 %v3205
      %v3238 = vpack.c.b16 %v3223, %v3222
      %v3239 = vpack.c.b16 %v3225, %v3224
      %v3240 = vpack.c.b16 %v3227, %v3226
      %v3241 = vpack.c.b16 %v3229, %v3228
      %v3242 = vpack.c.b16 %v3231, %v3230
      %v3243 = vpack.c.b16 %v3233, %v3232
      %v3244 = vpack.c.b16 %v3235, %v3234
      %v3245 = vpack.c.b16 %v3237, %v3236
      %3254 = vmatprep.subr.bf16.mxu0 0
      %3255 = vmatpush1.bf16.msra.mxu0 %v3245
      %3256 = vmatprep.subr.bf16.mxu0 0
      %3257 = vmatpush1.bf16.msra.mxu0 %v3244
      %3258 = vmatprep.subr.bf16.mxu0 0
      %3259 = vmatpush1.bf16.msra.mxu0 %v3243
      %3260 = vmatprep.subr.bf16.mxu0 0
      %3261 = vmatpush1.bf16.msra.mxu0 %v3242
      %3262 = vmatprep.subr.bf16.mxu0 0
      %3263 = vmatpush1.bf16.msra.mxu0 %v3241
      %3264 = vmatprep.subr.bf16.mxu0 0
      %3265 = vmatpush1.bf16.msra.mxu0 %v3240
      %3266 = vmatprep.subr.bf16.mxu0 0
      %3267 = vmatpush1.bf16.msra.mxu0 %v3239
      %3268 = vmatprep.subr.bf16.mxu0 0
      %3269 = vmatpush1.bf16.msra.mxu0 %v3238
      %3270 = vmatprep.subr.bf16.mxu0 0
      %3271 = vmatpush2.bf16.msra.mxu0 0
      %3272 = vmatprep.subr.bf16.mxu0 0
      %3273 = vmatpush2.bf16.msra.mxu0 0
      %3274 = vmatprep.subr.bf16.mxu0 0
      %3275 = vmatpush2.bf16.msra.mxu0 0
      %3276 = vmatprep.subr.bf16.mxu0 0
      %3277 = vmatpush2.bf16.msra.mxu0 0
      %3278 = vmatprep.subr.bf16.mxu0 0
      %3279 = vmatpush2.bf16.msra.mxu0 0
      %3280 = vmatprep.subr.bf16.mxu0 0
      %3281 = vmatpush2.bf16.msra.mxu0 0
      %3282 = vmatprep.subr.bf16.mxu0 0
      %3283 = vmatpush2.bf16.msra.mxu0 0
      %3284 = vmatprep.subr.bf16.mxu0 0
      %3285 = vmatpush2.bf16.msra.mxu0 0
      %3286 = vmatprep.mubr.bf16.mxu0 0
      %3287 = vmatmul.mubr.bf16.gmra.mxu0 %v3185
      %v3288 = vpop.f32.mrf.mxu0
      %v3289 = vadd.f32 0.0, %v3288
      %v3290 = vpop.f32.mrf.mxu0
      %v3291 = vpop.f32.mrf.mxu0
      %v3292 = vadd.f32 0.0, %v3291
      %v3293 = vpop.f32.mrf.mxu0
      %3294 = vmatprep.mubr.bf16.mxu0 0
      %3295 = vmatmul.mubr.bf16.gmra.mxu0 %v3186
      %v3296 = vpop.f32.mrf.mxu0
      %v3297 = vadd.f32 0.0, %v3296
      %v3298 = vpop.f32.mrf.mxu0
      %v3299 = vpop.f32.mrf.mxu0
      %v3300 = vadd.f32 0.0, %v3299
      %v3301 = vpop.f32.mrf.mxu0
      %3302 = vmatprep.mubr.bf16.mxu0 0
      %3303 = vmatmul.mubr.bf16.gmra.mxu0 %v3187
      %v3304 = vpop.f32.mrf.mxu0
      %v3305 = vadd.f32 0.0, %v3304
      %v3306 = vpop.f32.mrf.mxu0
      %v3307 = vpop.f32.mrf.mxu0
      %v3308 = vadd.f32 0.0, %v3307
      %v3309 = vpop.f32.mrf.mxu0
      %3310 = vmatprep.mubr.bf16.mxu0 0
      %3311 = vmatmul.mubr.bf16.gmra.mxu0 %v3188
      %v3312 = vpop.f32.mrf.mxu0
      %v3313 = vadd.f32 0.0, %v3312
      %v3314 = vpop.f32.mrf.mxu0
      %v3315 = vpop.f32.mrf.mxu0
      %v3316 = vadd.f32 0.0, %v3315
      %v3317 = vpop.f32.mrf.mxu0
      %3318 = vmatprep.mubr.bf16.mxu0 0
      %3319 = vmatmul.mubr.bf16.gmra.mxu0 %v3189
      %v3320 = vpop.f32.mrf.mxu0
      %v3321 = vadd.f32 0.0, %v3320
      %v3322 = vpop.f32.mrf.mxu0
      %v3323 = vpop.f32.mrf.mxu0
      %v3324 = vadd.f32 0.0, %v3323
      %v3325 = vpop.f32.mrf.mxu0
      %3326 = vdwg.mxu0
      %v3327 = vadd.f32 %v3165, %v3289
      %v3328 = vadd.f32 %v3166, %v3292
      %v3329 = vadd.f32 %v3167, %v3297
      %v3330 = vadd.f32 %v3168, %v3300
      %v3331 = vadd.f32 %v3169, %v3305
      %v3332 = vadd.f32 %v3170, %v3308
      %v3333 = vadd.f32 %v3171, %v3313
      %v3334 = vadd.f32 %v3172, %v3316
      %v3335 = vadd.f32 %v3173, %v3321
      %v3336 = vadd.f32 %v3174, %v3324
      %v3337 = vld [vmem:[%s4] sm:$0x1]
      %v3339 = vlaneseq
      %v3340 = vshrl.u32 %v3339, 7
      %v3341 = vsub.s32 0, %v3340
      %v3342 = vrot.slane %v3337, %v3341
      %v3344 = vadd.f32 %v3327, %v3342
      %v3345 = vadd.f32 %v3328, %v3342
      %v3346 = vadd.f32 %v3329, %v3342
      %v3347 = vadd.f32 %v3330, %v3342
      %v3348 = vadd.f32 %v3331, %v3342
      %v3349 = vadd.f32 %v3332, %v3342
      %v3350 = vadd.f32 %v3333, %v3342
      %v3351 = vadd.f32 %v3334, %v3342
      %v3352 = vadd.f32 %v3335, %v3342
      %v3353 = vadd.f32 %v3336, %v3342
      %v3354 = vmax.f32 %v3344, 0.0
      %v3355 = vmax.f32 %v3345, 0.0
      %v3356 = vmax.f32 %v3346, 0.0
      %v3357 = vmax.f32 %v3347, 0.0
      %v3358 = vmax.f32 %v3348, 0.0
      %v3359 = vmax.f32 %v3349, 0.0
      %v3360 = vmax.f32 %v3350, 0.0
      %v3361 = vmax.f32 %v3351, 0.0
      %v3362 = vmax.f32 %v3352, 0.0
      %v3363 = vmax.f32 %v3353, 0.0
      %3364 = vst [vmem:[#allocation6] sm:$0xff] %v3354
      %3365 = vst [vmem:[#allocation6 + $0x8] sm:$0xff] %v3355
      %3366 = vst [vmem:[#allocation6 + $0x10] sm:$0xff] %v3356
      %3367 = vst [vmem:[#allocation6 + $0x18] sm:$0xff] %v3357
      %3368 = vst [vmem:[#allocation6 + $0x20] sm:$0xff] %v3358
      %3369 = vst [vmem:[#allocation6 + $0x28] sm:$0xff] %v3359
      %3370 = vst [vmem:[#allocation6 + $0x30] sm:$0xff] %v3360
      %3371 = vst [vmem:[#allocation6 + $0x38] sm:$0xff] %v3361
      %3372 = vst [vmem:[#allocation6 + $0x40] sm:$0xff] %v3362
      %3373 = vst [vmem:[#allocation6 + $0x48] sm:$0xff] %v3363
      %v3374 = vld [vmem:[#allocation6] ss:$2 sm:$0xf]
      %3375 = vst [vmem:[#allocation4 + $0x7] sm:$0xf] %v3374
      %3376 = vst [vmem:[#allocation8 + $0x40] sm:$0xf] %v3374
      %s3377 = scalar_lea.vmem [#allocation6], 20
      %v3378 = vld [vmem:[%s3377] ss:$2 sm:$0xf]
      %3379 = vst [vmem:[#allocation4 + $0xd] sm:$0xf] %v3378
      %3380 = vst [vmem:[#allocation8 + $0x44] sm:$0xf] %v3378
      %s3381 = scalar_lea.vmem [#allocation6], 40
      %v3382 = vld [vmem:[%s3381] ss:$2 sm:$0xf]
      %3383 = vst [vmem:[#allocation4 + $0x13] sm:$0xf] %v3382
      %3384 = vst [vmem:[#allocation8 + $0x48] sm:$0xf] %v3382
      %s3385 = scalar_lea.vmem [#allocation6], 60
      %v3386 = vld [vmem:[%s3385] ss:$2 sm:$0xf]
      %3387 = vst [vmem:[#allocation4 + $0x19] sm:$0xf] %v3386
      %3388 = vst [vmem:[#allocation8 + $0x4c] sm:$0xf] %v3386
      %v3389 = vld [vmem:[#allocation4] sm:$0xff]
      %v3390 = vld [vmem:[#allocation4 + $0x8] sm:$0xff]
      %v3391 = vld [vmem:[#allocation4 + $0x10] sm:$0xff]
      %v3392 = vpack.c.bf16 %v3390, %v3389
      %v3393 = vpack.c.bf16 %v3391, %v3391
      %v3394 = vld [vmem:[%s5] sm:$0xf]
      %v3395 = vld [vmem:[%s5 + $0x4] sm:$0xf]
      %v3396 = vld [vmem:[%s5 + $0x8] sm:$0xf]
      %v3397 = vld [vmem:[%s5 + $0xc] sm:$0xf]
      %v3398 = vld [vmem:[%s5 + $0x10] sm:$0xf]
      %v3399 = vld [vmem:[%s5 + $0x14] sm:$0xf]
      %v3400 = vld [vmem:[%s5 + $0x18] sm:$0xf]
      %v3401 = vld [vmem:[%s5 + $0x1c] sm:$0xf]
      %v3402 = vld [vmem:[%s5 + $0x20] sm:$0xf]
      %v3403 = vld [vmem:[%s5 + $0x24] sm:$0xf]
      %v3404 = vld [vmem:[%s5 + $0x28] sm:$0xf]
      %v3405 = vld [vmem:[%s5 + $0x2c] sm:$0xf]
      %v3406 = vld [vmem:[%s5 + $0x30] sm:$0xf]
      %v3407 = vld [vmem:[%s5 + $0x34] sm:$0xf]
      %v3408 = vld [vmem:[%s5 + $0x38] sm:$0xf]
      %v3409 = vld [vmem:[%s5 + $0x3c] sm:$0xf]
      %v3410 = vld [vmem:[#allocation4 + $0x1] sm:$0xff]
      %v3411 = vld [vmem:[#allocation4 + $0x9] sm:$0xff]
      %v3412 = vld [vmem:[#allocation4 + $0x11] sm:$0xff]
      %v3413 = vpack.c.bf16 %v3411, %v3410
      %v3414 = vpack.c.bf16 %v3412, %v3412
      %v3415 = vld [vmem:[%s5 + $0x40] sm:$0xf]
      %v3416 = vld [vmem:[%s5 + $0x44] sm:$0xf]
      %v3417 = vld [vmem:[%s5 + $0x48] sm:$0xf]
      %v3418 = vld [vmem:[%s5 + $0x4c] sm:$0xf]
      %v3419 = vld [vmem:[%s5 + $0x50] sm:$0xf]
      %v3420 = vld [vmem:[%s5 + $0x54] sm:$0xf]
      %v3421 = vld [vmem:[%s5 + $0x58] sm:$0xf]
      %v3422 = vld [vmem:[%s5 + $0x5c] sm:$0xf]
      %v3423 = vld [vmem:[%s5 + $0x60] sm:$0xf]
      %v3424 = vld [vmem:[%s5 + $0x64] sm:$0xf]
      %v3425 = vld [vmem:[%s5 + $0x68] sm:$0xf]
      %v3426 = vld [vmem:[%s5 + $0x6c] sm:$0xf]
      %v3427 = vld [vmem:[%s5 + $0x70] sm:$0xf]
      %v3428 = vld [vmem:[%s5 + $0x74] sm:$0xf]
      %v3429 = vld [vmem:[%s5 + $0x78] sm:$0xf]
      %v3430 = vld [vmem:[%s5 + $0x7c] sm:$0xf]
      %v3447 = vunpack.c.l.b16 %v3415
      %v3448 = vunpack.c.l.b16 %v3416
      %v3449 = vunpack.c.l.b16 %v3417
      %v3450 = vunpack.c.l.b16 %v3418
      %v3451 = vunpack.c.l.b16 %v3419
      %v3452 = vunpack.c.l.b16 %v3420
      %v3453 = vunpack.c.l.b16 %v3421
      %v3454 = vunpack.c.l.b16 %v3422
      %v3455 = vunpack.c.l.b16 %v3423
      %v3456 = vunpack.c.l.b16 %v3424
      %v3457 = vunpack.c.l.b16 %v3425
      %v3458 = vunpack.c.l.b16 %v3426
      %v3459 = vunpack.c.l.b16 %v3427
      %v3460 = vunpack.c.l.b16 %v3428
      %v3461 = vunpack.c.l.b16 %v3429
      %v3462 = vunpack.c.l.b16 %v3430
      %v3463 = vpack.c.b16 %v3448, %v3447
      %v3464 = vpack.c.b16 %v3450, %v3449
      %v3465 = vpack.c.b16 %v3452, %v3451
      %v3466 = vpack.c.b16 %v3454, %v3453
      %v3467 = vpack.c.b16 %v3456, %v3455
      %v3468 = vpack.c.b16 %v3458, %v3457
      %v3469 = vpack.c.b16 %v3460, %v3459
      %v3470 = vpack.c.b16 %v3462, %v3461
      %3479 = vmatprep.subr.bf16.mxu0 0
      %3480 = vmatpush1.bf16.msra.mxu0 %v3470
      %3481 = vmatprep.subr.bf16.mxu0 0
      %3482 = vmatpush1.bf16.msra.mxu0 %v3469
      %3483 = vmatprep.subr.bf16.mxu0 0
      %3484 = vmatpush1.bf16.msra.mxu0 %v3468
      %3485 = vmatprep.subr.bf16.mxu0 0
      %3486 = vmatpush1.bf16.msra.mxu0 %v3467
      %3487 = vmatprep.subr.bf16.mxu0 0
      %3488 = vmatpush1.bf16.msra.mxu0 %v3466
      %3489 = vmatprep.subr.bf16.mxu0 0
      %3490 = vmatpush1.bf16.msra.mxu0 %v3465
      %3491 = vmatprep.subr.bf16.mxu0 0
      %3492 = vmatpush1.bf16.msra.mxu0 %v3464
      %3493 = vmatprep.subr.bf16.mxu0 0
      %3494 = vmatpush1.bf16.msra.mxu0 %v3463
      %3495 = vmatprep.subr.bf16.mxu0 0
      %3496 = vmatpush2.bf16.msra.mxu0 0
      %3497 = vmatprep.subr.bf16.mxu0 0
      %3498 = vmatpush2.bf16.msra.mxu0 0
      %3499 = vmatprep.subr.bf16.mxu0 0
      %3500 = vmatpush2.bf16.msra.mxu0 0
      %3501 = vmatprep.subr.bf16.mxu0 0
      %3502 = vmatpush2.bf16.msra.mxu0 0
      %3503 = vmatprep.subr.bf16.mxu0 0
      %3504 = vmatpush2.bf16.msra.mxu0 0
      %3505 = vmatprep.subr.bf16.mxu0 0
      %3506 = vmatpush2.bf16.msra.mxu0 0
      %3507 = vmatprep.subr.bf16.mxu0 0
      %3508 = vmatpush2.bf16.msra.mxu0 0
      %3509 = vmatprep.subr.bf16.mxu0 0
      %3510 = vmatpush2.bf16.msra.mxu0 0
      %3511 = vmatprep.mubr.bf16.mxu0 0
      %3512 = vmatmul.mubr.bf16.gmra.mxu0 %v3413
      %v3513 = vpop.f32.mrf.mxu0
      %v3514 = vadd.f32 0.0, %v3513
      %v3515 = vpop.f32.mrf.mxu0
      %v3516 = vpop.f32.mrf.mxu0
      %v3517 = vadd.f32 0.0, %v3516
      %v3518 = vpop.f32.mrf.mxu0
      %3519 = vmatprep.mubr.bf16.mxu0 0
      %3520 = vmatmul.mubr.bf16.gmra.mxu0 %v3414
      %v3521 = vpop.f32.mrf.mxu0
      %v3522 = vadd.f32 0.0, %v3521
      %v3523 = vpop.f32.mrf.mxu0
      %v3524 = vpop.f32.mrf.mxu0
      %v3525 = vpop.f32.mrf.mxu0
      %3526 = vdwg.mxu0
      %v3543 = vunpack.c.l.b16 %v3394
      %v3544 = vunpack.c.l.b16 %v3395
      %v3545 = vunpack.c.l.b16 %v3396
      %v3546 = vunpack.c.l.b16 %v3397
      %v3547 = vunpack.c.l.b16 %v3398
      %v3548 = vunpack.c.l.b16 %v3399
      %v3549 = vunpack.c.l.b16 %v3400
      %v3550 = vunpack.c.l.b16 %v3401
      %v3551 = vunpack.c.l.b16 %v3402
      %v3552 = vunpack.c.l.b16 %v3403
      %v3553 = vunpack.c.l.b16 %v3404
      %v3554 = vunpack.c.l.b16 %v3405
      %v3555 = vunpack.c.l.b16 %v3406
      %v3556 = vunpack.c.l.b16 %v3407
      %v3557 = vunpack.c.l.b16 %v3408
      %v3558 = vunpack.c.l.b16 %v3409
      %v3559 = vpack.c.b16 %v3544, %v3543
      %v3560 = vpack.c.b16 %v3546, %v3545
      %v3561 = vpack.c.b16 %v3548, %v3547
      %v3562 = vpack.c.b16 %v3550, %v3549
      %v3563 = vpack.c.b16 %v3552, %v3551
      %v3564 = vpack.c.b16 %v3554, %v3553
      %v3565 = vpack.c.b16 %v3556, %v3555
      %v3566 = vpack.c.b16 %v3558, %v3557
      %3575 = vmatprep.subr.bf16.mxu0 0
      %3576 = vmatpush1.bf16.msra.mxu0 %v3566
      %3577 = vmatprep.subr.bf16.mxu0 0
      %3578 = vmatpush1.bf16.msra.mxu0 %v3565
      %3579 = vmatprep.subr.bf16.mxu0 0
      %3580 = vmatpush1.bf16.msra.mxu0 %v3564
      %3581 = vmatprep.subr.bf16.mxu0 0
      %3582 = vmatpush1.bf16.msra.mxu0 %v3563
      %3583 = vmatprep.subr.bf16.mxu0 0
      %3584 = vmatpush1.bf16.msra.mxu0 %v3562
      %3585 = vmatprep.subr.bf16.mxu0 0
      %3586 = vmatpush1.bf16.msra.mxu0 %v3561
      %3587 = vmatprep.subr.bf16.mxu0 0
      %3588 = vmatpush1.bf16.msra.mxu0 %v3560
      %3589 = vmatprep.subr.bf16.mxu0 0
      %3590 = vmatpush1.bf16.msra.mxu0 %v3559
      %3591 = vmatprep.subr.bf16.mxu0 0
      %3592 = vmatpush2.bf16.msra.mxu0 0
      %3593 = vmatprep.subr.bf16.mxu0 0
      %3594 = vmatpush2.bf16.msra.mxu0 0
      %3595 = vmatprep.subr.bf16.mxu0 0
      %3596 = vmatpush2.bf16.msra.mxu0 0
      %3597 = vmatprep.subr.bf16.mxu0 0
      %3598 = vmatpush2.bf16.msra.mxu0 0
      %3599 = vmatprep.subr.bf16.mxu0 0
      %3600 = vmatpush2.bf16.msra.mxu0 0
      %3601 = vmatprep.subr.bf16.mxu0 0
      %3602 = vmatpush2.bf16.msra.mxu0 0
      %3603 = vmatprep.subr.bf16.mxu0 0
      %3604 = vmatpush2.bf16.msra.mxu0 0
      %3605 = vmatprep.subr.bf16.mxu0 0
      %3606 = vmatpush2.bf16.msra.mxu0 0
      %3607 = vmatprep.mubr.bf16.mxu0 0
      %3608 = vmatmul.mubr.bf16.gmra.mxu0 %v3392
      %v3609 = vpop.f32.mrf.mxu0
      %v3610 = vadd.f32 %v3514, %v3609
      %v3611 = vpop.f32.mrf.mxu0
      %v3612 = vpop.f32.mrf.mxu0
      %v3613 = vadd.f32 %v3517, %v3612
      %v3614 = vpop.f32.mrf.mxu0
      %3615 = vmatprep.mubr.bf16.mxu0 0
      %3616 = vmatmul.mubr.bf16.gmra.mxu0 %v3393
      %v3617 = vpop.f32.mrf.mxu0
      %v3618 = vadd.f32 %v3522, %v3617
      %v3619 = vpop.f32.mrf.mxu0
      %v3620 = vpop.f32.mrf.mxu0
      %v3621 = vpop.f32.mrf.mxu0
      %3622 = vdwg.mxu0
      %v3623 = vld [vmem:[#allocation4 + $0x2] sm:$0xff]
      %v3624 = vld [vmem:[#allocation4 + $0xa] sm:$0xff]
      %v3625 = vld [vmem:[#allocation4 + $0x12] sm:$0xff]
      %v3626 = vpack.c.bf16 %v3624, %v3623
      %v3627 = vpack.c.bf16 %v3625, %v3625
      %v3628 = vld [vmem:[%s5 + $0x80] sm:$0xf]
      %v3629 = vld [vmem:[%s5 + $0x84] sm:$0xf]
      %v3630 = vld [vmem:[%s5 + $0x88] sm:$0xf]
      %v3631 = vld [vmem:[%s5 + $0x8c] sm:$0xf]
      %v3632 = vld [vmem:[%s5 + $0x90] sm:$0xf]
      %v3633 = vld [vmem:[%s5 + $0x94] sm:$0xf]
      %v3634 = vld [vmem:[%s5 + $0x98] sm:$0xf]
      %v3635 = vld [vmem:[%s5 + $0x9c] sm:$0xf]
      %v3636 = vld [vmem:[%s5 + $0xa0] sm:$0xf]
      %v3637 = vld [vmem:[%s5 + $0xa4] sm:$0xf]
      %v3638 = vld [vmem:[%s5 + $0xa8] sm:$0xf]
      %v3639 = vld [vmem:[%s5 + $0xac] sm:$0xf]
      %v3640 = vld [vmem:[%s5 + $0xb0] sm:$0xf]
      %v3641 = vld [vmem:[%s5 + $0xb4] sm:$0xf]
      %v3642 = vld [vmem:[%s5 + $0xb8] sm:$0xf]
      %v3643 = vld [vmem:[%s5 + $0xbc] sm:$0xf]
      %v3660 = vunpack.c.l.b16 %v3628
      %v3661 = vunpack.c.l.b16 %v3629
      %v3662 = vunpack.c.l.b16 %v3630
      %v3663 = vunpack.c.l.b16 %v3631
      %v3664 = vunpack.c.l.b16 %v3632
      %v3665 = vunpack.c.l.b16 %v3633
      %v3666 = vunpack.c.l.b16 %v3634
      %v3667 = vunpack.c.l.b16 %v3635
      %v3668 = vunpack.c.l.b16 %v3636
      %v3669 = vunpack.c.l.b16 %v3637
      %v3670 = vunpack.c.l.b16 %v3638
      %v3671 = vunpack.c.l.b16 %v3639
      %v3672 = vunpack.c.l.b16 %v3640
      %v3673 = vunpack.c.l.b16 %v3641
      %v3674 = vunpack.c.l.b16 %v3642
      %v3675 = vunpack.c.l.b16 %v3643
      %v3676 = vpack.c.b16 %v3661, %v3660
      %v3677 = vpack.c.b16 %v3663, %v3662
      %v3678 = vpack.c.b16 %v3665, %v3664
      %v3679 = vpack.c.b16 %v3667, %v3666
      %v3680 = vpack.c.b16 %v3669, %v3668
      %v3681 = vpack.c.b16 %v3671, %v3670
      %v3682 = vpack.c.b16 %v3673, %v3672
      %v3683 = vpack.c.b16 %v3675, %v3674
      %3692 = vmatprep.subr.bf16.mxu0 0
      %3693 = vmatpush1.bf16.msra.mxu0 %v3683
      %3694 = vmatprep.subr.bf16.mxu0 0
      %3695 = vmatpush1.bf16.msra.mxu0 %v3682
      %3696 = vmatprep.subr.bf16.mxu0 0
      %3697 = vmatpush1.bf16.msra.mxu0 %v3681
      %3698 = vmatprep.subr.bf16.mxu0 0
      %3699 = vmatpush1.bf16.msra.mxu0 %v3680
      %3700 = vmatprep.subr.bf16.mxu0 0
      %3701 = vmatpush1.bf16.msra.mxu0 %v3679
      %3702 = vmatprep.subr.bf16.mxu0 0
      %3703 = vmatpush1.bf16.msra.mxu0 %v3678
      %3704 = vmatprep.subr.bf16.mxu0 0
      %3705 = vmatpush1.bf16.msra.mxu0 %v3677
      %3706 = vmatprep.subr.bf16.mxu0 0
      %3707 = vmatpush1.bf16.msra.mxu0 %v3676
      %3708 = vmatprep.subr.bf16.mxu0 0
      %3709 = vmatpush2.bf16.msra.mxu0 0
      %3710 = vmatprep.subr.bf16.mxu0 0
      %3711 = vmatpush2.bf16.msra.mxu0 0
      %3712 = vmatprep.subr.bf16.mxu0 0
      %3713 = vmatpush2.bf16.msra.mxu0 0
      %3714 = vmatprep.subr.bf16.mxu0 0
      %3715 = vmatpush2.bf16.msra.mxu0 0
      %3716 = vmatprep.subr.bf16.mxu0 0
      %3717 = vmatpush2.bf16.msra.mxu0 0
      %3718 = vmatprep.subr.bf16.mxu0 0
      %3719 = vmatpush2.bf16.msra.mxu0 0
      %3720 = vmatprep.subr.bf16.mxu0 0
      %3721 = vmatpush2.bf16.msra.mxu0 0
      %3722 = vmatprep.subr.bf16.mxu0 0
      %3723 = vmatpush2.bf16.msra.mxu0 0
      %3724 = vmatprep.mubr.bf16.mxu0 0
      %3725 = vmatmul.mubr.bf16.gmra.mxu0 %v3626
      %v3726 = vpop.f32.mrf.mxu0
      %v3727 = vadd.f32 0.0, %v3726
      %v3728 = vpop.f32.mrf.mxu0
      %v3729 = vpop.f32.mrf.mxu0
      %v3730 = vadd.f32 0.0, %v3729
      %v3731 = vpop.f32.mrf.mxu0
      %3732 = vmatprep.mubr.bf16.mxu0 0
      %3733 = vmatmul.mubr.bf16.gmra.mxu0 %v3627
      %v3734 = vpop.f32.mrf.mxu0
      %v3735 = vadd.f32 0.0, %v3734
      %v3736 = vpop.f32.mrf.mxu0
      %v3737 = vpop.f32.mrf.mxu0
      %v3738 = vpop.f32.mrf.mxu0
      %3739 = vdwg.mxu0
      %v3740 = vadd.f32 %v3610, %v3727
      %v3741 = vadd.f32 %v3613, %v3730
      %v3742 = vadd.f32 %v3618, %v3735
      %v3743 = vld [vmem:[#allocation4 + $0x6] sm:$0xff]
      %v3744 = vld [vmem:[#allocation4 + $0xe] sm:$0xff]
      %v3745 = vld [vmem:[#allocation4 + $0x16] sm:$0xff]
      %v3746 = vpack.c.bf16 %v3744, %v3743
      %v3747 = vpack.c.bf16 %v3745, %v3745
      %v3748 = vld [vmem:[%s5 + $0xc0] sm:$0xf]
      %v3749 = vld [vmem:[%s5 + $0xc4] sm:$0xf]
      %v3750 = vld [vmem:[%s5 + $0xc8] sm:$0xf]
      %v3751 = vld [vmem:[%s5 + $0xcc] sm:$0xf]
      %v3752 = vld [vmem:[%s5 + $0xd0] sm:$0xf]
      %v3753 = vld [vmem:[%s5 + $0xd4] sm:$0xf]
      %v3754 = vld [vmem:[%s5 + $0xd8] sm:$0xf]
      %v3755 = vld [vmem:[%s5 + $0xdc] sm:$0xf]
      %v3756 = vld [vmem:[%s5 + $0xe0] sm:$0xf]
      %v3757 = vld [vmem:[%s5 + $0xe4] sm:$0xf]
      %v3758 = vld [vmem:[%s5 + $0xe8] sm:$0xf]
      %v3759 = vld [vmem:[%s5 + $0xec] sm:$0xf]
      %v3760 = vld [vmem:[%s5 + $0xf0] sm:$0xf]
      %v3761 = vld [vmem:[%s5 + $0xf4] sm:$0xf]
      %v3762 = vld [vmem:[%s5 + $0xf8] sm:$0xf]
      %v3763 = vld [vmem:[%s5 + $0xfc] sm:$0xf]
      %v3780 = vunpack.c.l.b16 %v3748
      %v3781 = vunpack.c.l.b16 %v3749
      %v3782 = vunpack.c.l.b16 %v3750
      %v3783 = vunpack.c.l.b16 %v3751
      %v3784 = vunpack.c.l.b16 %v3752
      %v3785 = vunpack.c.l.b16 %v3753
      %v3786 = vunpack.c.l.b16 %v3754
      %v3787 = vunpack.c.l.b16 %v3755
      %v3788 = vunpack.c.l.b16 %v3756
      %v3789 = vunpack.c.l.b16 %v3757
      %v3790 = vunpack.c.l.b16 %v3758
      %v3791 = vunpack.c.l.b16 %v3759
      %v3792 = vunpack.c.l.b16 %v3760
      %v3793 = vunpack.c.l.b16 %v3761
      %v3794 = vunpack.c.l.b16 %v3762
      %v3795 = vunpack.c.l.b16 %v3763
      %v3796 = vpack.c.b16 %v3781, %v3780
      %v3797 = vpack.c.b16 %v3783, %v3782
      %v3798 = vpack.c.b16 %v3785, %v3784
      %v3799 = vpack.c.b16 %v3787, %v3786
      %v3800 = vpack.c.b16 %v3789, %v3788
      %v3801 = vpack.c.b16 %v3791, %v3790
      %v3802 = vpack.c.b16 %v3793, %v3792
      %v3803 = vpack.c.b16 %v3795, %v3794
      %3812 = vmatprep.subr.bf16.mxu0 0
      %3813 = vmatpush1.bf16.msra.mxu0 %v3803
      %3814 = vmatprep.subr.bf16.mxu0 0
      %3815 = vmatpush1.bf16.msra.mxu0 %v3802
      %3816 = vmatprep.subr.bf16.mxu0 0
      %3817 = vmatpush1.bf16.msra.mxu0 %v3801
      %3818 = vmatprep.subr.bf16.mxu0 0
      %3819 = vmatpush1.bf16.msra.mxu0 %v3800
      %3820 = vmatprep.subr.bf16.mxu0 0
      %3821 = vmatpush1.bf16.msra.mxu0 %v3799
      %3822 = vmatprep.subr.bf16.mxu0 0
      %3823 = vmatpush1.bf16.msra.mxu0 %v3798
      %3824 = vmatprep.subr.bf16.mxu0 0
      %3825 = vmatpush1.bf16.msra.mxu0 %v3797
      %3826 = vmatprep.subr.bf16.mxu0 0
      %3827 = vmatpush1.bf16.msra.mxu0 %v3796
      %3828 = vmatprep.subr.bf16.mxu0 0
      %3829 = vmatpush2.bf16.msra.mxu0 0
      %3830 = vmatprep.subr.bf16.mxu0 0
      %3831 = vmatpush2.bf16.msra.mxu0 0
      %3832 = vmatprep.subr.bf16.mxu0 0
      %3833 = vmatpush2.bf16.msra.mxu0 0
      %3834 = vmatprep.subr.bf16.mxu0 0
      %3835 = vmatpush2.bf16.msra.mxu0 0
      %3836 = vmatprep.subr.bf16.mxu0 0
      %3837 = vmatpush2.bf16.msra.mxu0 0
      %3838 = vmatprep.subr.bf16.mxu0 0
      %3839 = vmatpush2.bf16.msra.mxu0 0
      %3840 = vmatprep.subr.bf16.mxu0 0
      %3841 = vmatpush2.bf16.msra.mxu0 0
      %3842 = vmatprep.subr.bf16.mxu0 0
      %3843 = vmatpush2.bf16.msra.mxu0 0
      %3844 = vmatprep.mubr.bf16.mxu0 0
      %3845 = vmatmul.mubr.bf16.gmra.mxu0 %v3746
      %v3846 = vpop.f32.mrf.mxu0
      %v3847 = vadd.f32 0.0, %v3846
      %v3848 = vpop.f32.mrf.mxu0
      %v3849 = vpop.f32.mrf.mxu0
      %v3850 = vadd.f32 0.0, %v3849
      %v3851 = vpop.f32.mrf.mxu0
      %3852 = vmatprep.mubr.bf16.mxu0 0
      %3853 = vmatmul.mubr.bf16.gmra.mxu0 %v3747
      %v3854 = vpop.f32.mrf.mxu0
      %v3855 = vadd.f32 0.0, %v3854
      %v3856 = vpop.f32.mrf.mxu0
      %v3857 = vpop.f32.mrf.mxu0
      %v3858 = vpop.f32.mrf.mxu0
      %3859 = vdwg.mxu0
      %v3860 = vadd.f32 %v3740, %v3847
      %v3861 = vadd.f32 %v3741, %v3850
      %v3862 = vadd.f32 %v3742, %v3855
      %v3863 = vld [vmem:[#allocation4 + $0x7] sm:$0xff]
      %v3864 = vld [vmem:[#allocation4 + $0xf] sm:$0xff]
      %v3865 = vld [vmem:[#allocation4 + $0x17] sm:$0xff]
      %v3866 = vpack.c.bf16 %v3864, %v3863
      %v3867 = vpack.c.bf16 %v3865, %v3865
      %v3868 = vld [vmem:[%s5 + $0x100] sm:$0xf]
      %v3869 = vld [vmem:[%s5 + $0x104] sm:$0xf]
      %v3870 = vld [vmem:[%s5 + $0x108] sm:$0xf]
      %v3871 = vld [vmem:[%s5 + $0x10c] sm:$0xf]
      %v3872 = vld [vmem:[%s5 + $0x110] sm:$0xf]
      %v3873 = vld [vmem:[%s5 + $0x114] sm:$0xf]
      %v3874 = vld [vmem:[%s5 + $0x118] sm:$0xf]
      %v3875 = vld [vmem:[%s5 + $0x11c] sm:$0xf]
      %v3876 = vld [vmem:[%s5 + $0x120] sm:$0xf]
      %v3877 = vld [vmem:[%s5 + $0x124] sm:$0xf]
      %v3878 = vld [vmem:[%s5 + $0x128] sm:$0xf]
      %v3879 = vld [vmem:[%s5 + $0x12c] sm:$0xf]
      %v3880 = vld [vmem:[%s5 + $0x130] sm:$0xf]
      %v3881 = vld [vmem:[%s5 + $0x134] sm:$0xf]
      %v3882 = vld [vmem:[%s5 + $0x138] sm:$0xf]
      %v3883 = vld [vmem:[%s5 + $0x13c] sm:$0xf]
      %v3900 = vunpack.c.l.b16 %v3868
      %v3901 = vunpack.c.l.b16 %v3869
      %v3902 = vunpack.c.l.b16 %v3870
      %v3903 = vunpack.c.l.b16 %v3871
      %v3904 = vunpack.c.l.b16 %v3872
      %v3905 = vunpack.c.l.b16 %v3873
      %v3906 = vunpack.c.l.b16 %v3874
      %v3907 = vunpack.c.l.b16 %v3875
      %v3908 = vunpack.c.l.b16 %v3876
      %v3909 = vunpack.c.l.b16 %v3877
      %v3910 = vunpack.c.l.b16 %v3878
      %v3911 = vunpack.c.l.b16 %v3879
      %v3912 = vunpack.c.l.b16 %v3880
      %v3913 = vunpack.c.l.b16 %v3881
      %v3914 = vunpack.c.l.b16 %v3882
      %v3915 = vunpack.c.l.b16 %v3883
      %v3916 = vpack.c.b16 %v3901, %v3900
      %v3917 = vpack.c.b16 %v3903, %v3902
      %v3918 = vpack.c.b16 %v3905, %v3904
      %v3919 = vpack.c.b16 %v3907, %v3906
      %v3920 = vpack.c.b16 %v3909, %v3908
      %v3921 = vpack.c.b16 %v3911, %v3910
      %v3922 = vpack.c.b16 %v3913, %v3912
      %v3923 = vpack.c.b16 %v3915, %v3914
      %3932 = vmatprep.subr.bf16.mxu0 0
      %3933 = vmatpush1.bf16.msra.mxu0 %v3923
      %3934 = vmatprep.subr.bf16.mxu0 0
      %3935 = vmatpush1.bf16.msra.mxu0 %v3922
      %3936 = vmatprep.subr.bf16.mxu0 0
      %3937 = vmatpush1.bf16.msra.mxu0 %v3921
      %3938 = vmatprep.subr.bf16.mxu0 0
      %3939 = vmatpush1.bf16.msra.mxu0 %v3920
      %3940 = vmatprep.subr.bf16.mxu0 0
      %3941 = vmatpush1.bf16.msra.mxu0 %v3919
      %3942 = vmatprep.subr.bf16.mxu0 0
      %3943 = vmatpush1.bf16.msra.mxu0 %v3918
      %3944 = vmatprep.subr.bf16.mxu0 0
      %3945 = vmatpush1.bf16.msra.mxu0 %v3917
      %3946 = vmatprep.subr.bf16.mxu0 0
      %3947 = vmatpush1.bf16.msra.mxu0 %v3916
      %3948 = vmatprep.subr.bf16.mxu0 0
      %3949 = vmatpush2.bf16.msra.mxu0 0
      %3950 = vmatprep.subr.bf16.mxu0 0
      %3951 = vmatpush2.bf16.msra.mxu0 0
      %3952 = vmatprep.subr.bf16.mxu0 0
      %3953 = vmatpush2.bf16.msra.mxu0 0
      %3954 = vmatprep.subr.bf16.mxu0 0
      %3955 = vmatpush2.bf16.msra.mxu0 0
      %3956 = vmatprep.subr.bf16.mxu0 0
      %3957 = vmatpush2.bf16.msra.mxu0 0
      %3958 = vmatprep.subr.bf16.mxu0 0
      %3959 = vmatpush2.bf16.msra.mxu0 0
      %3960 = vmatprep.subr.bf16.mxu0 0
      %3961 = vmatpush2.bf16.msra.mxu0 0
      %3962 = vmatprep.subr.bf16.mxu0 0
      %3963 = vmatpush2.bf16.msra.mxu0 0
      %3964 = vmatprep.mubr.bf16.mxu0 0
      %3965 = vmatmul.mubr.bf16.gmra.mxu0 %v3866
      %v3966 = vpop.f32.mrf.mxu0
      %v3967 = vadd.f32 0.0, %v3966
      %v3968 = vpop.f32.mrf.mxu0
      %v3969 = vpop.f32.mrf.mxu0
      %v3970 = vadd.f32 0.0, %v3969
      %v3971 = vpop.f32.mrf.mxu0
      %3972 = vmatprep.mubr.bf16.mxu0 0
      %3973 = vmatmul.mubr.bf16.gmra.mxu0 %v3867
      %v3974 = vpop.f32.mrf.mxu0
      %v3975 = vadd.f32 0.0, %v3974
      %v3976 = vpop.f32.mrf.mxu0
      %v3977 = vpop.f32.mrf.mxu0
      %v3978 = vpop.f32.mrf.mxu0
      %3979 = vdwg.mxu0
      %v3980 = vadd.f32 %v3860, %v3967
      %v3981 = vadd.f32 %v3861, %v3970
      %v3982 = vadd.f32 %v3862, %v3975
      %v3983 = vld [vmem:[#allocation4 + $0x8] sm:$0xff]
      %v3984 = vld [vmem:[#allocation4 + $0x10] sm:$0xff]
      %v3985 = vld [vmem:[#allocation4 + $0x18] sm:$0xff]
      %v3986 = vpack.c.bf16 %v3984, %v3983
      %v3987 = vpack.c.bf16 %v3985, %v3985
      %v3988 = vld [vmem:[%s5 + $0x140] sm:$0xf]
      %v3989 = vld [vmem:[%s5 + $0x144] sm:$0xf]
      %v3990 = vld [vmem:[%s5 + $0x148] sm:$0xf]
      %v3991 = vld [vmem:[%s5 + $0x14c] sm:$0xf]
      %v3992 = vld [vmem:[%s5 + $0x150] sm:$0xf]
      %v3993 = vld [vmem:[%s5 + $0x154] sm:$0xf]
      %v3994 = vld [vmem:[%s5 + $0x158] sm:$0xf]
      %v3995 = vld [vmem:[%s5 + $0x15c] sm:$0xf]
      %v3996 = vld [vmem:[%s5 + $0x160] sm:$0xf]
      %v3997 = vld [vmem:[%s5 + $0x164] sm:$0xf]
      %v3998 = vld [vmem:[%s5 + $0x168] sm:$0xf]
      %v3999 = vld [vmem:[%s5 + $0x16c] sm:$0xf]
      %v4000 = vld [vmem:[%s5 + $0x170] sm:$0xf]
      %v4001 = vld [vmem:[%s5 + $0x174] sm:$0xf]
      %v4002 = vld [vmem:[%s5 + $0x178] sm:$0xf]
      %v4003 = vld [vmem:[%s5 + $0x17c] sm:$0xf]
      %v4020 = vunpack.c.l.b16 %v3988
      %v4021 = vunpack.c.l.b16 %v3989
      %v4022 = vunpack.c.l.b16 %v3990
      %v4023 = vunpack.c.l.b16 %v3991
      %v4024 = vunpack.c.l.b16 %v3992
      %v4025 = vunpack.c.l.b16 %v3993
      %v4026 = vunpack.c.l.b16 %v3994
      %v4027 = vunpack.c.l.b16 %v3995
      %v4028 = vunpack.c.l.b16 %v3996
      %v4029 = vunpack.c.l.b16 %v3997
      %v4030 = vunpack.c.l.b16 %v3998
      %v4031 = vunpack.c.l.b16 %v3999
      %v4032 = vunpack.c.l.b16 %v4000
      %v4033 = vunpack.c.l.b16 %v4001
      %v4034 = vunpack.c.l.b16 %v4002
      %v4035 = vunpack.c.l.b16 %v4003
      %v4036 = vpack.c.b16 %v4021, %v4020
      %v4037 = vpack.c.b16 %v4023, %v4022
      %v4038 = vpack.c.b16 %v4025, %v4024
      %v4039 = vpack.c.b16 %v4027, %v4026
      %v4040 = vpack.c.b16 %v4029, %v4028
      %v4041 = vpack.c.b16 %v4031, %v4030
      %v4042 = vpack.c.b16 %v4033, %v4032
      %v4043 = vpack.c.b16 %v4035, %v4034
      %4052 = vmatprep.subr.bf16.mxu0 0
      %4053 = vmatpush1.bf16.msra.mxu0 %v4043
      %4054 = vmatprep.subr.bf16.mxu0 0
      %4055 = vmatpush1.bf16.msra.mxu0 %v4042
      %4056 = vmatprep.subr.bf16.mxu0 0
      %4057 = vmatpush1.bf16.msra.mxu0 %v4041
      %4058 = vmatprep.subr.bf16.mxu0 0
      %4059 = vmatpush1.bf16.msra.mxu0 %v4040
      %4060 = vmatprep.subr.bf16.mxu0 0
      %4061 = vmatpush1.bf16.msra.mxu0 %v4039
      %4062 = vmatprep.subr.bf16.mxu0 0
      %4063 = vmatpush1.bf16.msra.mxu0 %v4038
      %4064 = vmatprep.subr.bf16.mxu0 0
      %4065 = vmatpush1.bf16.msra.mxu0 %v4037
      %4066 = vmatprep.subr.bf16.mxu0 0
      %4067 = vmatpush1.bf16.msra.mxu0 %v4036
      %4068 = vmatprep.subr.bf16.mxu0 0
      %4069 = vmatpush2.bf16.msra.mxu0 0
      %4070 = vmatprep.subr.bf16.mxu0 0
      %4071 = vmatpush2.bf16.msra.mxu0 0
      %4072 = vmatprep.subr.bf16.mxu0 0
      %4073 = vmatpush2.bf16.msra.mxu0 0
      %4074 = vmatprep.subr.bf16.mxu0 0
      %4075 = vmatpush2.bf16.msra.mxu0 0
      %4076 = vmatprep.subr.bf16.mxu0 0
      %4077 = vmatpush2.bf16.msra.mxu0 0
      %4078 = vmatprep.subr.bf16.mxu0 0
      %4079 = vmatpush2.bf16.msra.mxu0 0
      %4080 = vmatprep.subr.bf16.mxu0 0
      %4081 = vmatpush2.bf16.msra.mxu0 0
      %4082 = vmatprep.subr.bf16.mxu0 0
      %4083 = vmatpush2.bf16.msra.mxu0 0
      %4084 = vmatprep.mubr.bf16.mxu0 0
      %4085 = vmatmul.mubr.bf16.gmra.mxu0 %v3986
      %v4086 = vpop.f32.mrf.mxu0
      %v4087 = vadd.f32 0.0, %v4086
      %v4088 = vpop.f32.mrf.mxu0
      %v4089 = vpop.f32.mrf.mxu0
      %v4090 = vadd.f32 0.0, %v4089
      %v4091 = vpop.f32.mrf.mxu0
      %4092 = vmatprep.mubr.bf16.mxu0 0
      %4093 = vmatmul.mubr.bf16.gmra.mxu0 %v3987
      %v4094 = vpop.f32.mrf.mxu0
      %v4095 = vadd.f32 0.0, %v4094
      %v4096 = vpop.f32.mrf.mxu0
      %v4097 = vpop.f32.mrf.mxu0
      %v4098 = vpop.f32.mrf.mxu0
      %4099 = vdwg.mxu0
      %v4100 = vadd.f32 %v3980, %v4087
      %v4101 = vadd.f32 %v3981, %v4090
      %v4102 = vadd.f32 %v3982, %v4095
      %v4103 = vld [vmem:[#allocation4 + $0xc] sm:$0xff]
      %v4104 = vld [vmem:[#allocation4 + $0x14] sm:$0xff]
      %v4105 = vld [vmem:[#allocation4 + $0x1c] sm:$0xff]
      %v4106 = vpack.c.bf16 %v4104, %v4103
      %v4107 = vpack.c.bf16 %v4105, %v4105
      %v4108 = vld [vmem:[%s5 + $0x180] sm:$0xf]
      %v4109 = vld [vmem:[%s5 + $0x184] sm:$0xf]
      %v4110 = vld [vmem:[%s5 + $0x188] sm:$0xf]
      %v4111 = vld [vmem:[%s5 + $0x18c] sm:$0xf]
      %v4112 = vld [vmem:[%s5 + $0x190] sm:$0xf]
      %v4113 = vld [vmem:[%s5 + $0x194] sm:$0xf]
      %v4114 = vld [vmem:[%s5 + $0x198] sm:$0xf]
      %v4115 = vld [vmem:[%s5 + $0x19c] sm:$0xf]
      %v4116 = vld [vmem:[%s5 + $0x1a0] sm:$0xf]
      %v4117 = vld [vmem:[%s5 + $0x1a4] sm:$0xf]
      %v4118 = vld [vmem:[%s5 + $0x1a8] sm:$0xf]
      %v4119 = vld [vmem:[%s5 + $0x1ac] sm:$0xf]
      %v4120 = vld [vmem:[%s5 + $0x1b0] sm:$0xf]
      %v4121 = vld [vmem:[%s5 + $0x1b4] sm:$0xf]
      %v4122 = vld [vmem:[%s5 + $0x1b8] sm:$0xf]
      %v4123 = vld [vmem:[%s5 + $0x1bc] sm:$0xf]
      %v4140 = vunpack.c.l.b16 %v4108
      %v4141 = vunpack.c.l.b16 %v4109
      %v4142 = vunpack.c.l.b16 %v4110
      %v4143 = vunpack.c.l.b16 %v4111
      %v4144 = vunpack.c.l.b16 %v4112
      %v4145 = vunpack.c.l.b16 %v4113
      %v4146 = vunpack.c.l.b16 %v4114
      %v4147 = vunpack.c.l.b16 %v4115
      %v4148 = vunpack.c.l.b16 %v4116
      %v4149 = vunpack.c.l.b16 %v4117
      %v4150 = vunpack.c.l.b16 %v4118
      %v4151 = vunpack.c.l.b16 %v4119
      %v4152 = vunpack.c.l.b16 %v4120
      %v4153 = vunpack.c.l.b16 %v4121
      %v4154 = vunpack.c.l.b16 %v4122
      %v4155 = vunpack.c.l.b16 %v4123
      %v4156 = vpack.c.b16 %v4141, %v4140
      %v4157 = vpack.c.b16 %v4143, %v4142
      %v4158 = vpack.c.b16 %v4145, %v4144
      %v4159 = vpack.c.b16 %v4147, %v4146
      %v4160 = vpack.c.b16 %v4149, %v4148
      %v4161 = vpack.c.b16 %v4151, %v4150
      %v4162 = vpack.c.b16 %v4153, %v4152
      %v4163 = vpack.c.b16 %v4155, %v4154
      %4172 = vmatprep.subr.bf16.mxu0 0
      %4173 = vmatpush1.bf16.msra.mxu0 %v4163
      %4174 = vmatprep.subr.bf16.mxu0 0
      %4175 = vmatpush1.bf16.msra.mxu0 %v4162
      %4176 = vmatprep.subr.bf16.mxu0 0
      %4177 = vmatpush1.bf16.msra.mxu0 %v4161
      %4178 = vmatprep.subr.bf16.mxu0 0
      %4179 = vmatpush1.bf16.msra.mxu0 %v4160
      %4180 = vmatprep.subr.bf16.mxu0 0
      %4181 = vmatpush1.bf16.msra.mxu0 %v4159
      %4182 = vmatprep.subr.bf16.mxu0 0
      %4183 = vmatpush1.bf16.msra.mxu0 %v4158
      %4184 = vmatprep.subr.bf16.mxu0 0
      %4185 = vmatpush1.bf16.msra.mxu0 %v4157
      %4186 = vmatprep.subr.bf16.mxu0 0
      %4187 = vmatpush1.bf16.msra.mxu0 %v4156
      %4188 = vmatprep.subr.bf16.mxu0 0
      %4189 = vmatpush2.bf16.msra.mxu0 0
      %4190 = vmatprep.subr.bf16.mxu0 0
      %4191 = vmatpush2.bf16.msra.mxu0 0
      %4192 = vmatprep.subr.bf16.mxu0 0
      %4193 = vmatpush2.bf16.msra.mxu0 0
      %4194 = vmatprep.subr.bf16.mxu0 0
      %4195 = vmatpush2.bf16.msra.mxu0 0
      %4196 = vmatprep.subr.bf16.mxu0 0
      %4197 = vmatpush2.bf16.msra.mxu0 0
      %4198 = vmatprep.subr.bf16.mxu0 0
      %4199 = vmatpush2.bf16.msra.mxu0 0
      %4200 = vmatprep.subr.bf16.mxu0 0
      %4201 = vmatpush2.bf16.msra.mxu0 0
      %4202 = vmatprep.subr.bf16.mxu0 0
      %4203 = vmatpush2.bf16.msra.mxu0 0
      %4204 = vmatprep.mubr.bf16.mxu0 0
      %4205 = vmatmul.mubr.bf16.gmra.mxu0 %v4106
      %v4206 = vpop.f32.mrf.mxu0
      %v4207 = vadd.f32 0.0, %v4206
      %v4208 = vpop.f32.mrf.mxu0
      %v4209 = vpop.f32.mrf.mxu0
      %v4210 = vadd.f32 0.0, %v4209
      %v4211 = vpop.f32.mrf.mxu0
      %4212 = vmatprep.mubr.bf16.mxu0 0
      %4213 = vmatmul.mubr.bf16.gmra.mxu0 %v4107
      %v4214 = vpop.f32.mrf.mxu0
      %v4215 = vadd.f32 0.0, %v4214
      %v4216 = vpop.f32.mrf.mxu0
      %v4217 = vpop.f32.mrf.mxu0
      %v4218 = vpop.f32.mrf.mxu0
      %4219 = vdwg.mxu0
      %v4220 = vadd.f32 %v4100, %v4207
      %v4221 = vadd.f32 %v4101, %v4210
      %v4222 = vadd.f32 %v4102, %v4215
      %v4223 = vld [vmem:[#allocation4 + $0xd] sm:$0xff]
      %v4224 = vld [vmem:[#allocation4 + $0x15] sm:$0xff]
      %v4225 = vld [vmem:[#allocation4 + $0x1d] sm:$0xff]
      %v4226 = vpack.c.bf16 %v4224, %v4223
      %v4227 = vpack.c.bf16 %v4225, %v4225
      %v4228 = vld [vmem:[%s5 + $0x1c0] sm:$0xf]
      %v4229 = vld [vmem:[%s5 + $0x1c4] sm:$0xf]
      %v4230 = vld [vmem:[%s5 + $0x1c8] sm:$0xf]
      %v4231 = vld [vmem:[%s5 + $0x1cc] sm:$0xf]
      %v4232 = vld [vmem:[%s5 + $0x1d0] sm:$0xf]
      %v4233 = vld [vmem:[%s5 + $0x1d4] sm:$0xf]
      %v4234 = vld [vmem:[%s5 + $0x1d8] sm:$0xf]
      %v4235 = vld [vmem:[%s5 + $0x1dc] sm:$0xf]
      %v4236 = vld [vmem:[%s5 + $0x1e0] sm:$0xf]
      %v4237 = vld [vmem:[%s5 + $0x1e4] sm:$0xf]
      %v4238 = vld [vmem:[%s5 + $0x1e8] sm:$0xf]
      %v4239 = vld [vmem:[%s5 + $0x1ec] sm:$0xf]
      %v4240 = vld [vmem:[%s5 + $0x1f0] sm:$0xf]
      %v4241 = vld [vmem:[%s5 + $0x1f4] sm:$0xf]
      %v4242 = vld [vmem:[%s5 + $0x1f8] sm:$0xf]
      %v4243 = vld [vmem:[%s5 + $0x1fc] sm:$0xf]
      %v4260 = vunpack.c.l.b16 %v4228
      %v4261 = vunpack.c.l.b16 %v4229
      %v4262 = vunpack.c.l.b16 %v4230
      %v4263 = vunpack.c.l.b16 %v4231
      %v4264 = vunpack.c.l.b16 %v4232
      %v4265 = vunpack.c.l.b16 %v4233
      %v4266 = vunpack.c.l.b16 %v4234
      %v4267 = vunpack.c.l.b16 %v4235
      %v4268 = vunpack.c.l.b16 %v4236
      %v4269 = vunpack.c.l.b16 %v4237
      %v4270 = vunpack.c.l.b16 %v4238
      %v4271 = vunpack.c.l.b16 %v4239
      %v4272 = vunpack.c.l.b16 %v4240
      %v4273 = vunpack.c.l.b16 %v4241
      %v4274 = vunpack.c.l.b16 %v4242
      %v4275 = vunpack.c.l.b16 %v4243
      %v4276 = vpack.c.b16 %v4261, %v4260
      %v4277 = vpack.c.b16 %v4263, %v4262
      %v4278 = vpack.c.b16 %v4265, %v4264
      %v4279 = vpack.c.b16 %v4267, %v4266
      %v4280 = vpack.c.b16 %v4269, %v4268
      %v4281 = vpack.c.b16 %v4271, %v4270
      %v4282 = vpack.c.b16 %v4273, %v4272
      %v4283 = vpack.c.b16 %v4275, %v4274
      %4292 = vmatprep.subr.bf16.mxu0 0
      %4293 = vmatpush1.bf16.msra.mxu0 %v4283
      %4294 = vmatprep.subr.bf16.mxu0 0
      %4295 = vmatpush1.bf16.msra.mxu0 %v4282
      %4296 = vmatprep.subr.bf16.mxu0 0
      %4297 = vmatpush1.bf16.msra.mxu0 %v4281
      %4298 = vmatprep.subr.bf16.mxu0 0
      %4299 = vmatpush1.bf16.msra.mxu0 %v4280
      %4300 = vmatprep.subr.bf16.mxu0 0
      %4301 = vmatpush1.bf16.msra.mxu0 %v4279
      %4302 = vmatprep.subr.bf16.mxu0 0
      %4303 = vmatpush1.bf16.msra.mxu0 %v4278
      %4304 = vmatprep.subr.bf16.mxu0 0
      %4305 = vmatpush1.bf16.msra.mxu0 %v4277
      %4306 = vmatprep.subr.bf16.mxu0 0
      %4307 = vmatpush1.bf16.msra.mxu0 %v4276
      %4308 = vmatprep.subr.bf16.mxu0 0
      %4309 = vmatpush2.bf16.msra.mxu0 0
      %4310 = vmatprep.subr.bf16.mxu0 0
      %4311 = vmatpush2.bf16.msra.mxu0 0
      %4312 = vmatprep.subr.bf16.mxu0 0
      %4313 = vmatpush2.bf16.msra.mxu0 0
      %4314 = vmatprep.subr.bf16.mxu0 0
      %4315 = vmatpush2.bf16.msra.mxu0 0
      %4316 = vmatprep.subr.bf16.mxu0 0
      %4317 = vmatpush2.bf16.msra.mxu0 0
      %4318 = vmatprep.subr.bf16.mxu0 0
      %4319 = vmatpush2.bf16.msra.mxu0 0
      %4320 = vmatprep.subr.bf16.mxu0 0
      %4321 = vmatpush2.bf16.msra.mxu0 0
      %4322 = vmatprep.subr.bf16.mxu0 0
      %4323 = vmatpush2.bf16.msra.mxu0 0
      %4324 = vmatprep.mubr.bf16.mxu0 0
      %4325 = vmatmul.mubr.bf16.gmra.mxu0 %v4226
      %v4326 = vpop.f32.mrf.mxu0
      %v4327 = vadd.f32 0.0, %v4326
      %v4328 = vpop.f32.mrf.mxu0
      %v4329 = vpop.f32.mrf.mxu0
      %v4330 = vadd.f32 0.0, %v4329
      %v4331 = vpop.f32.mrf.mxu0
      %4332 = vmatprep.mubr.bf16.mxu0 0
      %4333 = vmatmul.mubr.bf16.gmra.mxu0 %v4227
      %v4334 = vpop.f32.mrf.mxu0
      %v4335 = vadd.f32 0.0, %v4334
      %v4336 = vpop.f32.mrf.mxu0
      %v4337 = vpop.f32.mrf.mxu0
      %v4338 = vpop.f32.mrf.mxu0
      %4339 = vdwg.mxu0
      %v4340 = vadd.f32 %v4220, %v4327
      %v4341 = vadd.f32 %v4221, %v4330
      %v4342 = vadd.f32 %v4222, %v4335
      %v4343 = vld [vmem:[#allocation4 + $0xe] sm:$0xff]
      %v4344 = vld [vmem:[#allocation4 + $0x16] sm:$0xff]
      %v4345 = vld [vmem:[#allocation4 + $0x1e] sm:$0xff]
      %v4346 = vpack.c.bf16 %v4344, %v4343
      %v4347 = vpack.c.bf16 %v4345, %v4345
      %v4348 = vld [vmem:[%s5 + $0x200] sm:$0xf]
      %v4349 = vld [vmem:[%s5 + $0x204] sm:$0xf]
      %v4350 = vld [vmem:[%s5 + $0x208] sm:$0xf]
      %v4351 = vld [vmem:[%s5 + $0x20c] sm:$0xf]
      %v4352 = vld [vmem:[%s5 + $0x210] sm:$0xf]
      %v4353 = vld [vmem:[%s5 + $0x214] sm:$0xf]
      %v4354 = vld [vmem:[%s5 + $0x218] sm:$0xf]
      %v4355 = vld [vmem:[%s5 + $0x21c] sm:$0xf]
      %v4356 = vld [vmem:[%s5 + $0x220] sm:$0xf]
      %v4357 = vld [vmem:[%s5 + $0x224] sm:$0xf]
      %v4358 = vld [vmem:[%s5 + $0x228] sm:$0xf]
      %v4359 = vld [vmem:[%s5 + $0x22c] sm:$0xf]
      %v4360 = vld [vmem:[%s5 + $0x230] sm:$0xf]
      %v4361 = vld [vmem:[%s5 + $0x234] sm:$0xf]
      %v4362 = vld [vmem:[%s5 + $0x238] sm:$0xf]
      %v4363 = vld [vmem:[%s5 + $0x23c] sm:$0xf]
      %v4380 = vunpack.c.l.b16 %v4348
      %v4381 = vunpack.c.l.b16 %v4349
      %v4382 = vunpack.c.l.b16 %v4350
      %v4383 = vunpack.c.l.b16 %v4351
      %v4384 = vunpack.c.l.b16 %v4352
      %v4385 = vunpack.c.l.b16 %v4353
      %v4386 = vunpack.c.l.b16 %v4354
      %v4387 = vunpack.c.l.b16 %v4355
      %v4388 = vunpack.c.l.b16 %v4356
      %v4389 = vunpack.c.l.b16 %v4357
      %v4390 = vunpack.c.l.b16 %v4358
      %v4391 = vunpack.c.l.b16 %v4359
      %v4392 = vunpack.c.l.b16 %v4360
      %v4393 = vunpack.c.l.b16 %v4361
      %v4394 = vunpack.c.l.b16 %v4362
      %v4395 = vunpack.c.l.b16 %v4363
      %v4396 = vpack.c.b16 %v4381, %v4380
      %v4397 = vpack.c.b16 %v4383, %v4382
      %v4398 = vpack.c.b16 %v4385, %v4384
      %v4399 = vpack.c.b16 %v4387, %v4386
      %v4400 = vpack.c.b16 %v4389, %v4388
      %v4401 = vpack.c.b16 %v4391, %v4390
      %v4402 = vpack.c.b16 %v4393, %v4392
      %v4403 = vpack.c.b16 %v4395, %v4394
      %4412 = vmatprep.subr.bf16.mxu0 0
      %4413 = vmatpush1.bf16.msra.mxu0 %v4403
      %4414 = vmatprep.subr.bf16.mxu0 0
      %4415 = vmatpush1.bf16.msra.mxu0 %v4402
      %4416 = vmatprep.subr.bf16.mxu0 0
      %4417 = vmatpush1.bf16.msra.mxu0 %v4401
      %4418 = vmatprep.subr.bf16.mxu0 0
      %4419 = vmatpush1.bf16.msra.mxu0 %v4400
      %4420 = vmatprep.subr.bf16.mxu0 0
      %4421 = vmatpush1.bf16.msra.mxu0 %v4399
      %4422 = vmatprep.subr.bf16.mxu0 0
      %4423 = vmatpush1.bf16.msra.mxu0 %v4398
      %4424 = vmatprep.subr.bf16.mxu0 0
      %4425 = vmatpush1.bf16.msra.mxu0 %v4397
      %4426 = vmatprep.subr.bf16.mxu0 0
      %4427 = vmatpush1.bf16.msra.mxu0 %v4396
      %4428 = vmatprep.subr.bf16.mxu0 0
      %4429 = vmatpush2.bf16.msra.mxu0 0
      %4430 = vmatprep.subr.bf16.mxu0 0
      %4431 = vmatpush2.bf16.msra.mxu0 0
      %4432 = vmatprep.subr.bf16.mxu0 0
      %4433 = vmatpush2.bf16.msra.mxu0 0
      %4434 = vmatprep.subr.bf16.mxu0 0
      %4435 = vmatpush2.bf16.msra.mxu0 0
      %4436 = vmatprep.subr.bf16.mxu0 0
      %4437 = vmatpush2.bf16.msra.mxu0 0
      %4438 = vmatprep.subr.bf16.mxu0 0
      %4439 = vmatpush2.bf16.msra.mxu0 0
      %4440 = vmatprep.subr.bf16.mxu0 0
      %4441 = vmatpush2.bf16.msra.mxu0 0
      %4442 = vmatprep.subr.bf16.mxu0 0
      %4443 = vmatpush2.bf16.msra.mxu0 0
      %4444 = vmatprep.mubr.bf16.mxu0 0
      %4445 = vmatmul.mubr.bf16.gmra.mxu0 %v4346
      %v4446 = vpop.f32.mrf.mxu0
      %v4447 = vadd.f32 0.0, %v4446
      %v4448 = vpop.f32.mrf.mxu0
      %v4449 = vpop.f32.mrf.mxu0
      %v4450 = vadd.f32 0.0, %v4449
      %v4451 = vpop.f32.mrf.mxu0
      %4452 = vmatprep.mubr.bf16.mxu0 0
      %4453 = vmatmul.mubr.bf16.gmra.mxu0 %v4347
      %v4454 = vpop.f32.mrf.mxu0
      %v4455 = vadd.f32 0.0, %v4454
      %v4456 = vpop.f32.mrf.mxu0
      %v4457 = vpop.f32.mrf.mxu0
      %v4458 = vpop.f32.mrf.mxu0
      %4459 = vdwg.mxu0
      %v4460 = vadd.f32 %v4340, %v4447
      %v4461 = vadd.f32 %v4341, %v4450
      %v4462 = vadd.f32 %v4342, %v4455
      %v4463 = vld [vmem:[%s6] sm:$0x1]
      %v4465 = vlaneseq
      %v4466 = vshrl.u32 %v4465, 7
      %v4467 = vsub.s32 0, %v4466
      %v4468 = vrot.slane %v4463, %v4467
      %v4470 = vadd.f32 %v4460, %v4468
      %v4471 = vadd.f32 %v4461, %v4468
      %v4472 = vadd.f32 %v4462, %v4468
      %v4473 = vmax.f32 %v4470, 0.0
      %v4474 = vmax.f32 %v4471, 0.0
      %v4475 = vmax.f32 %v4472, 0.0
      %4476 = vst [vmem:[#allocation7] sm:$0xff] %v4473
      %4477 = vst [vmem:[#allocation7 + $0x8] sm:$0xff] %v4474
      %4478 = vst [vmem:[#allocation7 + $0x10] sm:$0xff] %v4475
      %v4479 = vld [vmem:[#allocation7] ss:$2 sm:$0x3]
      %4480 = vst [vmem:[#allocation8 + $0x50] sm:$0x3] %v4479
      %s4481 = scalar_lea.vmem [#allocation7], 12
      %v4482 = vld [vmem:[%s4481] ss:$2 sm:$0x3]
      %4483 = vst [vmem:[#allocation8 + $0x52] sm:$0x3] %v4482
      %v4484 = vld [vmem:[#allocation8] sm:$0xff]
      %v4485 = vld [vmem:[#allocation8 + $0x8] sm:$0xff]
      %v4486 = vld [vmem:[#allocation8 + $0x10] sm:$0xff]
      %v4487 = vld [vmem:[#allocation8 + $0x18] sm:$0xff]
      %v4488 = vld [vmem:[#allocation8 + $0x20] sm:$0xff]
      %v4489 = vld [vmem:[#allocation8 + $0x28] sm:$0xff]
      %v4490 = vld [vmem:[#allocation8 + $0x30] sm:$0xff]
      %v4491 = vld [vmem:[#allocation8 + $0x38] sm:$0xff]
      %v4492 = vld [vmem:[#allocation8 + $0x40] sm:$0xff]
      %v4493 = vld [vmem:[#allocation8 + $0x48] sm:$0xff]
      %v4494 = vld [vmem:[#allocation8 + $0x50] sm:$0xff]
      %v4495 = vpack.c.bf16 %v4485, %v4484
      %v4496 = vpack.c.bf16 %v4487, %v4486
      %v4497 = vpack.c.bf16 %v4489, %v4488
      %v4498 = vpack.c.bf16 %v4491, %v4490
      %v4499 = vpack.c.bf16 %v4493, %v4492
      %v4500 = vpack.c.bf16 %v4494, %v4494
      %v4501 = vld [vmem:[%s7] sm:$0xf]
      %v4502 = vld [vmem:[%s7 + $0x4] sm:$0xf]
      %v4503 = vld [vmem:[%s7 + $0x8] sm:$0xf]
      %v4504 = vld [vmem:[%s7 + $0xc] sm:$0xf]
      %v4505 = vld [vmem:[%s7 + $0x10] sm:$0xf]
      %v4506 = vld [vmem:[%s7 + $0x14] sm:$0xf]
      %v4507 = vld [vmem:[%s7 + $0x18] sm:$0xf]
      %v4508 = vld [vmem:[%s7 + $0x1c] sm:$0xf]
      %v4509 = vld [vmem:[%s7 + $0x20] sm:$0xf]
      %v4510 = vld [vmem:[%s7 + $0x24] sm:$0xf]
      %v4511 = vld [vmem:[%s7 + $0x28] sm:$0xf]
      %v4512 = vld [vmem:[%s7 + $0x2c] sm:$0xf]
      %v4513 = vld [vmem:[%s7 + $0x30] sm:$0xf]
      %v4514 = vld [vmem:[%s7 + $0x34] sm:$0xf]
      %v4515 = vld [vmem:[%s7 + $0x38] sm:$0xf]
      %v4516 = vld [vmem:[%s7 + $0x3c] sm:$0xf]
      %v4517 = vld [vmem:[%s8] sm:$0x1]
      %v4519 = vlaneseq
      %v4520 = vshrl.u32 %v4519, 7
      %v4521 = vsub.s32 0, %v4520
      %v4522 = vrot.slane %v4517, %v4521
      %v4540 = vunpack.c.l.b16 %v4501
      %v4541 = vunpack.c.l.b16 %v4502
      %v4542 = vunpack.c.l.b16 %v4503
      %v4543 = vunpack.c.l.b16 %v4504
      %v4544 = vunpack.c.l.b16 %v4505
      %v4545 = vunpack.c.l.b16 %v4506
      %v4546 = vunpack.c.l.b16 %v4507
      %v4547 = vunpack.c.l.b16 %v4508
      %v4548 = vunpack.c.l.b16 %v4509
      %v4549 = vunpack.c.l.b16 %v4510
      %v4550 = vunpack.c.l.b16 %v4511
      %v4551 = vunpack.c.l.b16 %v4512
      %v4552 = vunpack.c.l.b16 %v4513
      %v4553 = vunpack.c.l.b16 %v4514
      %v4554 = vunpack.c.l.b16 %v4515
      %v4555 = vunpack.c.l.b16 %v4516
      %v4556 = vpack.c.b16 %v4541, %v4540
      %v4557 = vpack.c.b16 %v4543, %v4542
      %v4558 = vpack.c.b16 %v4545, %v4544
      %v4559 = vpack.c.b16 %v4547, %v4546
      %v4560 = vpack.c.b16 %v4549, %v4548
      %v4561 = vpack.c.b16 %v4551, %v4550
      %v4562 = vpack.c.b16 %v4553, %v4552
      %v4563 = vpack.c.b16 %v4555, %v4554
      %4572 = vmatprep.subr.bf16.mxu0 0
      %4573 = vmatpush1.bf16.msra.mxu0 %v4563
      %4574 = vmatprep.subr.bf16.mxu0 0
      %4575 = vmatpush1.bf16.msra.mxu0 %v4562
      %4576 = vmatprep.subr.bf16.mxu0 0
      %4577 = vmatpush1.bf16.msra.mxu0 %v4561
      %4578 = vmatprep.subr.bf16.mxu0 0
      %4579 = vmatpush1.bf16.msra.mxu0 %v4560
      %4580 = vmatprep.subr.bf16.mxu0 0
      %4581 = vmatpush1.bf16.msra.mxu0 %v4559
      %4582 = vmatprep.subr.bf16.mxu0 0
      %4583 = vmatpush1.bf16.msra.mxu0 %v4558
      %4584 = vmatprep.subr.bf16.mxu0 0
      %4585 = vmatpush1.bf16.msra.mxu0 %v4557
      %4586 = vmatprep.subr.bf16.mxu0 0
      %4587 = vmatpush1.bf16.msra.mxu0 %v4556
      %4588 = vmatprep.subr.bf16.mxu0 0
      %4589 = vmatpush2.bf16.msra.mxu0 0
      %4590 = vmatprep.subr.bf16.mxu0 0
      %4591 = vmatpush2.bf16.msra.mxu0 0
      %4592 = vmatprep.subr.bf16.mxu0 0
      %4593 = vmatpush2.bf16.msra.mxu0 0
      %4594 = vmatprep.subr.bf16.mxu0 0
      %4595 = vmatpush2.bf16.msra.mxu0 0
      %4596 = vmatprep.subr.bf16.mxu0 0
      %4597 = vmatpush2.bf16.msra.mxu0 0
      %4598 = vmatprep.subr.bf16.mxu0 0
      %4599 = vmatpush2.bf16.msra.mxu0 0
      %4600 = vmatprep.subr.bf16.mxu0 0
      %4601 = vmatpush2.bf16.msra.mxu0 0
      %4602 = vmatprep.subr.bf16.mxu0 0
      %4603 = vmatpush2.bf16.msra.mxu0 0
      %4604 = vmatprep.mubr.bf16.mxu0 0
      %4605 = vmatmul.mubr.bf16.gmra.mxu0 %v4495
      %v4606 = vpop.f32.mrf.mxu0
      %v4607 = vadd.f32 %v4522, %v4606
      %v4608 = vpop.f32.mrf.mxu0
      %v4609 = vpop.f32.mrf.mxu0
      %v4610 = vadd.f32 %v4522, %v4609
      %v4611 = vpop.f32.mrf.mxu0
      %4612 = vmatprep.mubr.bf16.mxu0 0
      %4613 = vmatmul.mubr.bf16.gmra.mxu0 %v4496
      %v4614 = vpop.f32.mrf.mxu0
      %v4615 = vadd.f32 %v4522, %v4614
      %v4616 = vpop.f32.mrf.mxu0
      %v4617 = vpop.f32.mrf.mxu0
      %v4618 = vadd.f32 %v4522, %v4617
      %v4619 = vpop.f32.mrf.mxu0
      %4620 = vmatprep.mubr.bf16.mxu0 0
      %4621 = vmatmul.mubr.bf16.gmra.mxu0 %v4497
      %v4622 = vpop.f32.mrf.mxu0
      %v4623 = vadd.f32 %v4522, %v4622
      %v4624 = vpop.f32.mrf.mxu0
      %v4625 = vpop.f32.mrf.mxu0
      %v4626 = vadd.f32 %v4522, %v4625
      %v4627 = vpop.f32.mrf.mxu0
      %4628 = vmatprep.mubr.bf16.mxu0 0
      %4629 = vmatmul.mubr.bf16.gmra.mxu0 %v4498
      %v4630 = vpop.f32.mrf.mxu0
      %v4631 = vadd.f32 %v4522, %v4630
      %v4632 = vpop.f32.mrf.mxu0
      %v4633 = vpop.f32.mrf.mxu0
      %v4634 = vadd.f32 %v4522, %v4633
      %v4635 = vpop.f32.mrf.mxu0
      %4636 = vmatprep.mubr.bf16.mxu0 0
      %4637 = vmatmul.mubr.bf16.gmra.mxu0 %v4499
      %v4638 = vpop.f32.mrf.mxu0
      %v4639 = vadd.f32 %v4522, %v4638
      %v4640 = vpop.f32.mrf.mxu0
      %v4641 = vpop.f32.mrf.mxu0
      %v4642 = vadd.f32 %v4522, %v4641
      %v4643 = vpop.f32.mrf.mxu0
      %4644 = vmatprep.mubr.bf16.mxu0 0
      %4645 = vmatmul.mubr.bf16.gmra.mxu0 %v4500
      %v4646 = vpop.f32.mrf.mxu0
      %v4647 = vadd.f32 %v4522, %v4646
      %v4648 = vpop.f32.mrf.mxu0
      %v4649 = vpop.f32.mrf.mxu0
      %v4650 = vpop.f32.mrf.mxu0
      %4651 = vdwg.mxu0
      %4652 = vst [vmem:[%s332] sm:$0xff] %v4607
      %4653 = vst [vmem:[%s332 + $0x8] sm:$0xff] %v4610
      %4654 = vst [vmem:[%s332 + $0x10] sm:$0xff] %v4615
      %4655 = vst [vmem:[%s332 + $0x18] sm:$0xff] %v4618
      %4656 = vst [vmem:[%s332 + $0x20] sm:$0xff] %v4623
      %4657 = vst [vmem:[%s332 + $0x28] sm:$0xff] %v4626
      %4658 = vst [vmem:[%s332 + $0x30] sm:$0xff] %v4631
      %4659 = vst [vmem:[%s332 + $0x38] sm:$0xff] %v4634
      %4660 = vst [vmem:[%s332 + $0x40] sm:$0xff] %v4639
      %4661 = vst [vmem:[%s332 + $0x48] sm:$0xff] %v4642
      %4662 = vst [vmem:[%s332 + $0x50] sm:$0xff] %v4647
      %p4663 = scmp.lt.s32.totalorder %s20, 1
      %s4664 = scalar_select %p4663, %s20, 1
      %s4665 = smul.addr %s4664, 11
      %s4666 = smul.addr %s4665, 8
      %s4667 = scalar_lea.vmem %s9, %s4666
      // Predicated region
      $region57: #{attention_net_forward.9} parent=55 // pred_check
        %p4668 = pneg %p232
      $region58: #{attention_net_forward.9} parent=55 // pred_check_branch
        %4670 = sbr.rel (%p4668) target = $region60
      $region59: #{attention_net_forward.9} parent=55 // pred_region
        _
      $region60: #{attention_net_forward.9} parent=55 // pred_fallthru
        _
    $region56: #{attention_net_forward.9} parent=5 // pred_fallthru
      _
    %p4671 = scmp.le.s32.totalorder 2, %s15
    // Predicated region
    $region61: #{attention_net_forward.9} parent=5 // pred_check
      %p4672 = pneg %p4671
    $region62: #{attention_net_forward.9} parent=5 // pred_check_branch
      %4674 = sbr.rel (%p4672) target = $region64
    $region63: #{attention_net_forward.9} parent=5 // pred_region
      %s4675 = ssub.s32 %s15, 2
      // Predicated region
      $region65: #{attention_net_forward.9} parent=63 // pred_check
        %p4676 = pneg %p238
      $region66: #{attention_net_forward.9} parent=63 // pred_check_branch
        %4678 = sbr.rel (%p4676) target = $region68
      $region67: #{attention_net_forward.9} parent=63 // pred_region
        %p4679 = scmp.lt.s32.totalorder %s21, 1
        %s4680 = scalar_select %p4679, %s21, 1
        %s4681 = smul.addr %s4680, 11
        %s4682 = smul.addr %s4681, 8
        %s4683 = scalar_lea.vmem %s9, %s4682
      $region68: #{attention_net_forward.9} parent=63 // pred_fallthru
        _
    $region64: #{attention_net_forward.9} parent=5 // pred_fallthru
      _
  $region6: #{attention_net_forward.9} parent=0 // loop_footer
    %s19 = sadd.s32 1, %s15
  $region7: #{attention_net_forward.9} parent=0 // loop_footer_branch
    %14 = sbr.rel target = $region3
  $region8: #{attention_net_forward.9} parent=0 // loop_exit
    _

// kernel: attention_net_forward.11
$region0: #{attention_net_forward.11}
  #allocation0 [shape = 'u32[]', space=smem, size = 0x4, offset = 0x4, fixed_abs, tag = 'smem constant byte address 0x4 - core index']
  #allocation1 [shape = 'u32[144,128]{1,0:T(1,128)}', space=vmem, size = 0x12000, scoped, tag = 'internal scratch']
  %s0 = inlined_call_operand.vmem [shape: bf16[8,64,128], index: 0, kind: input, shape index: {}]
  %s1 = inlined_call_operand.vmem [shape: bf16[128,128], index: 1, kind: input, shape index: {}]
  %s2 = inlined_call_operand.vmem [shape: f32[1,128], index: 2, kind: input, shape index: {}]
  %s3 = inlined_call_operand.vmem [shape: f32[8,1,128], index: 3, kind: output, shape index: {0}]
  %s4 = inlined_call_operand.hbm [shape: f32[8,1,128], index: 4, kind: output, shape index: {1}]
  %5 = xla_tuple %s3, %s4
  %s6 = sld [smem:[#allocation0]]
  $region53: #{attention_net_forward.11} parent=0
    _
  %s8 = ssub.s32 1, %s6
  %s9 = scalar_select 0, %s8, %s6
  $region1: #{attention_net_forward.11} parent=0
    #allocation2 [shape = 'u8[4096]{0}', space=vmem, size = 0x1000, scoped, tag = 'output window, operand 1']
    #allocation3 [shape = 's32[2]{0}', space=sflag, size = 0x8, scoped, tag = 'scoped memory for attention_net_forward.11']
    %10 = vsyncpa [#allocation3], 0
    %s11 = scalar_lea.sflag [#allocation3], 1
    %12 = vsyncpa %s11, 0
    loop: start=0, step=1, limit=4
    $region2: #{attention_net_forward.11} parent=1 // loop_pre_header
      _
    $region3: #{attention_net_forward.11} parent=1 // loop_header
      %s14 = sphi 0, %s18
      %p15 = scmp.ge.s32.totalorder %s14, 4
      %s24 = sphi 0, %s26
      %s27 = sphi 0, %s24
      %s28 = sphi 0, %s27
      %s44 = sphi 0, %s28
      %s48 = sphi 0, %s48
      %s50 = sphi 0, %s48
      %s51 = sphi 0, %s50
      %s65 = sphi 0, %s51
      %s69 = sphi 0, %s69
      %s71 = sphi 0, %s69
      %s72 = sphi 0, %s71
      %s86 = sphi 0, %s72
      %s92 = sphi 0, %s94
      %s95 = sphi 0, %s92
      %s96 = sphi 0, %s95
      %s112 = sphi 0, %s96
      %s118 = sphi 0, %s120
      %s121 = sphi 0, %s118
      %s122 = sphi 0, %s121
      %s138 = sphi 0, %s122
    $region4: #{attention_net_forward.11} parent=1 // loop_header_branch
      %17 = sbr.rel (%p15) target = $region8
    $region5: #{attention_net_forward.11} parent=1 // loop_body
      %s19 = ssub.s32 %s14, 1
      %s20 = ssub.s32 %s14, 2
      %s21 = sadd.s32 %s14, 1
      %s22 = ssub.s32 %s14, %s21
      %p23 = scmp.eq.s32.totalorder %s22, 0
      %s25 = sadd.s32 %s24, 1
      %s26 = scalar_select %p23, %s24, %s25
      %p29 = pneg %p23
      %p30 = scmp.eq.s32.totalorder %s14, 1
      %p31 = por %p29, %p30
      %p32 = scmp.ne.s32.totalorder %s24, %s27
      %p33 = scmp.eq.s32.totalorder %s14, 0
      %p34 = por %p32, %p33
      %p35 = scmp.ne.s32.totalorder %s24, %s27
      %p36 = scmp.eq.s32.totalorder %s19, 1
      %p37 = por %p35, %p36
      %p38 = scmp.ne.s32.totalorder %s27, %s28
      %p39 = scmp.eq.s32.totalorder %s19, 0
      %p40 = por %p38, %p39
      %p41 = scmp.ne.s32.totalorder %s27, %s28
      %p42 = scmp.eq.s32.totalorder %s20, 1
      %p43 = por %p41, %p42
      %p45 = scmp.ne.s32.totalorder %s28, %s44
      %p46 = scmp.eq.s32.totalorder %s20, 0
      %p47 = por %p45, %p46
      %s49 = sadd.s32 %s48, 1
      %p52 = scmp.eq.s32.totalorder %s14, 1
      %p53 = scmp.ne.s32.totalorder %s48, %s50
      %p54 = scmp.eq.s32.totalorder %s14, 0
      %p55 = por %p53, %p54
      %p56 = scmp.ne.s32.totalorder %s48, %s50
      %p57 = scmp.eq.s32.totalorder %s19, 1
      %p58 = por %p56, %p57
      %p59 = scmp.ne.s32.totalorder %s50, %s51
      %p60 = scmp.eq.s32.totalorder %s19, 0
      %p61 = por %p59, %p60
      %p62 = scmp.ne.s32.totalorder %s50, %s51
      %p63 = scmp.eq.s32.totalorder %s20, 1
      %p64 = por %p62, %p63
      %p66 = scmp.ne.s32.totalorder %s51, %s65
      %p67 = scmp.eq.s32.totalorder %s20, 0
      %p68 = por %p66, %p67
      %s70 = sadd.s32 %s69, 1
      %p73 = scmp.eq.s32.totalorder %s14, 1
      %p74 = scmp.ne.s32.totalorder %s69, %s71
      %p75 = scmp.eq.s32.totalorder %s14, 0
      %p76 = por %p74, %p75
      %p77 = scmp.ne.s32.totalorder %s69, %s71
      %p78 = scmp.eq.s32.totalorder %s19, 1
      %p79 = por %p77, %p78
      %p80 = scmp.ne.s32.totalorder %s71, %s72
      %p81 = scmp.eq.s32.totalorder %s19, 0
      %p82 = por %p80, %p81
      %p83 = scmp.ne.s32.totalorder %s71, %s72
      %p84 = scmp.eq.s32.totalorder %s20, 1
      %p85 = por %p83, %p84
      %p87 = scmp.ne.s32.totalorder %s72, %s86
      %p88 = scmp.eq.s32.totalorder %s20, 0
      %p89 = por %p87, %p88
      %s90 = ssub.s32 %s14, %s21
      %p91 = scmp.eq.s32.totalorder %s90, 0
      %s93 = sadd.s32 %s92, 1
      %s94 = scalar_select %p91, %s92, %s93
      %p97 = pneg %p91
      %p98 = scmp.eq.s32.totalorder %s14, 1
      %p99 = por %p97, %p98
      %p100 = scmp.ne.s32.totalorder %s92, %s95
      %p101 = scmp.eq.s32.totalorder %s14, 0
      %p102 = por %p100, %p101
      %p103 = scmp.ne.s32.totalorder %s92, %s95
      %p104 = scmp.eq.s32.totalorder %s19, 1
      %p105 = por %p103, %p104
      %p106 = scmp.ne.s32.totalorder %s95, %s96
      %p107 = scmp.eq.s32.totalorder %s19, 0
      %p108 = por %p106, %p107
      %p109 = scmp.ne.s32.totalorder %s95, %s96
      %p110 = scmp.eq.s32.totalorder %s20, 1
      %p111 = por %p109, %p110
      %p113 = scmp.ne.s32.totalorder %s96, %s112
      %p114 = scmp.eq.s32.totalorder %s20, 0
      %p115 = por %p113, %p114
      %s116 = ssub.s32 %s14, %s21
      %p117 = scmp.eq.s32.totalorder %s116, 0
      %s119 = sadd.s32 %s118, 1
      %s120 = scalar_select %p117, %s118, %s119
      %p123 = pneg %p117
      %p124 = scmp.eq.s32.totalorder %s14, 1
      %p125 = por %p123, %p124
      %p126 = scmp.ne.s32.totalorder %s118, %s121
      %p127 = scmp.eq.s32.totalorder %s14, 0
      %p128 = por %p126, %p127
      %p129 = scmp.ne.s32.totalorder %s118, %s121
      %p130 = scmp.eq.s32.totalorder %s19, 1
      %p131 = por %p129, %p130
      %p132 = scmp.ne.s32.totalorder %s121, %s122
      %p133 = scmp.eq.s32.totalorder %s19, 0
      %p134 = por %p132, %p133
      %p135 = scmp.ne.s32.totalorder %s121, %s122
      %p136 = scmp.eq.s32.totalorder %s20, 1
      %p137 = por %p135, %p136
      %p139 = scmp.ne.s32.totalorder %s122, %s138
      %p140 = scmp.eq.s32.totalorder %s20, 0
      %p141 = por %p139, %p140
      %p142 = scmp.le.s32.totalorder 1, %s14
      %p143 = scmp.lt.s32.totalorder %s14, 3
      %p144 = pnand %p142, %p143
      %p145 = pneg %p144
      // Predicated region
      $region9: #{attention_net_forward.11} parent=5 // pred_check
        _
      $region10: #{attention_net_forward.11} parent=5 // pred_check_branch
        %147 = sbr.rel (%p144) target = $region12
      $region11: #{attention_net_forward.11} parent=5 // pred_region
        %s148 = ssub.s32 %s14, 1
        // Predicated region
        $region13: #{attention_net_forward.11} parent=11 // pred_check
          %p149 = pneg %p61
        $region14: #{attention_net_forward.11} parent=11 // pred_check_branch
          %151 = sbr.rel (%p149) target = $region16
        $region15: #{attention_net_forward.11} parent=11 // pred_region
          _
        $region16: #{attention_net_forward.11} parent=11 // pred_fallthru
          _
        // Predicated region
        $region17: #{attention_net_forward.11} parent=11 // pred_check
          %p152 = pneg %p82
        $region18: #{attention_net_forward.11} parent=11 // pred_check_branch
          %154 = sbr.rel (%p152) target = $region20
        $region19: #{attention_net_forward.11} parent=11 // pred_region
          _
        $region20: #{attention_net_forward.11} parent=11 // pred_fallthru
          _
      $region12: #{attention_net_forward.11} parent=5 // pred_fallthru
        _
      %p155 = scmp.lt.s32.totalorder %s14, 2
      // Predicated region
      $region21: #{attention_net_forward.11} parent=5 // pred_check
        %p156 = pneg %p155
      $region22: #{attention_net_forward.11} parent=5 // pred_check_branch
        %158 = sbr.rel (%p156) target = $region24
      $region23: #{attention_net_forward.11} parent=5 // pred_region
        // Predicated region
        $region25: #{attention_net_forward.11} parent=23 // pred_check
          %p159 = pneg %p34
        $region26: #{attention_net_forward.11} parent=23 // pred_check_branch
          %161 = sbr.rel (%p159) target = $region28
        $region27: #{attention_net_forward.11} parent=23 // pred_region
          %s162 = smul.u32 4, %s14
          %p163 = scmp.lt.s32.totalorder %s162, 7
          %s164 = scalar_select %p163, %s162, 7
          %s165 = smul.addr %s164, 8
          %s166 = smul.addr %s165, 4
          %s167 = scalar_lea.vmem %s0, %s166
          %s168 = smul.u32 4, %s14
        $region28: #{attention_net_forward.11} parent=23 // pred_fallthru
          _
      $region24: #{attention_net_forward.11} parent=5 // pred_fallthru
        _
      %p169 = scmp.le.s32.totalorder 1, %s14
      %p170 = scmp.lt.s32.totalorder %s14, 3
      %p171 = pnand %p169, %p170
      %p172 = pneg %p171
      // Predicated region
      $region29: #{attention_net_forward.11} parent=5 // pred_check
        _
      $region30: #{attention_net_forward.11} parent=5 // pred_check_branch
        %174 = sbr.rel (%p171) target = $region32
      $region31: #{attention_net_forward.11} parent=5 // pred_region
        %s175 = ssub.s32 %s14, 1
        %s176 = smul.u32 4, %s19
        %p177 = scmp.lt.s32.totalorder %s176, 7
        %s178 = scalar_select %p177, %s176, 7
        %s179 = smul.addr %s178, 8
        %s180 = smul.addr %s179, 4
        %s181 = scalar_lea.vmem %s0, %s180
        %p182 = pneg %p40
        %p183 = pneg %p37
        %p184 = pneg %p61
        %p185 = pneg %p58
        %p186 = pneg %p82
        %p187 = pneg %p79
        %p188 = pneg %p108
        %p189 = pneg %p105
        %s190 = smul.u32 4, %s19
        %p191 = scmp.lt.s32.totalorder %s190, 7
        %s192 = scalar_select %p191, %s190, 7
        %s193 = scalar_lea.vmem %s3, %s192
        %p194 = pneg %p134
        %p195 = pneg %p131
        %s196 = sand.u32 %s121, 1
        %s197 = scalar_lea.sflag [#allocation3], %s196
        %s198 = sand.u32 %s121, 1
        %s199 = smul.addr %s198, 4
        %s200 = scalar_lea.vmem [#allocation2], %s199
        %s201 = smul.u32 4, %s19
        %p202 = scmp.lt.s32.totalorder %s201, 7
        %s203 = scalar_select %p202, %s201, 7
        %s204 = smul.addr %s203, 8
        %s205 = smul.addr %s204, 4
        %s206 = scalar_lea.vmem %s0, %s205
        %s207 = smul.u32 4, %s19
        %s208 = smul.u32 4, %s19
        %p209 = scmp.lt.s32.totalorder %s208, 7
        %s210 = scalar_select %p209, %s208, 7
        %s211 = scalar_lea.vmem %s3, %s210
        %s212 = smul.u32 4, %s19
        %s213 = smul.u32 4, %s19
        %v215 = vld [vmem:[%s206] sm:$0xf]
        %v216 = vld [vmem:[%s206 + $0x4] sm:$0xf]
        %v217 = vld [vmem:[%s206 + $0x8] sm:$0xf]
        %v218 = vld [vmem:[%s206 + $0xc] sm:$0xf]
        %v219 = vld [vmem:[%s206 + $0x10] sm:$0xf]
        %v220 = vld [vmem:[%s206 + $0x14] sm:$0xf]
        %v221 = vld [vmem:[%s206 + $0x18] sm:$0xf]
        %v222 = vld [vmem:[%s206 + $0x1c] sm:$0xf]
        %v223 = vld [vmem:[%s206 + $0x20] sm:$0xf]
        %v224 = vld [vmem:[%s206 + $0x24] sm:$0xf]
        %v225 = vld [vmem:[%s206 + $0x28] sm:$0xf]
        %v226 = vld [vmem:[%s206 + $0x2c] sm:$0xf]
        %v227 = vld [vmem:[%s206 + $0x30] sm:$0xf]
        %v228 = vld [vmem:[%s206 + $0x34] sm:$0xf]
        %v229 = vld [vmem:[%s206 + $0x38] sm:$0xf]
        %v230 = vld [vmem:[%s206 + $0x3c] sm:$0xf]
        %v231 = vld [vmem:[%s206 + $0x40] sm:$0xf]
        %v232 = vld [vmem:[%s206 + $0x44] sm:$0xf]
        %v233 = vld [vmem:[%s206 + $0x48] sm:$0xf]
        %v234 = vld [vmem:[%s206 + $0x4c] sm:$0xf]
        %v235 = vld [vmem:[%s206 + $0x50] sm:$0xf]
        %v236 = vld [vmem:[%s206 + $0x54] sm:$0xf]
        %v237 = vld [vmem:[%s206 + $0x58] sm:$0xf]
        %v238 = vld [vmem:[%s206 + $0x5c] sm:$0xf]
        %v239 = vld [vmem:[%s206 + $0x60] sm:$0xf]
        %v240 = vld [vmem:[%s206 + $0x64] sm:$0xf]
        %v241 = vld [vmem:[%s206 + $0x68] sm:$0xf]
        %v242 = vld [vmem:[%s206 + $0x6c] sm:$0xf]
        %v243 = vld [vmem:[%s206 + $0x70] sm:$0xf]
        %v244 = vld [vmem:[%s206 + $0x74] sm:$0xf]
        %v245 = vld [vmem:[%s206 + $0x78] sm:$0xf]
        %v246 = vld [vmem:[%s206 + $0x7c] sm:$0xf]
        %v247 = vunpack.c.l.bf16 %v215
        %v248 = vunpack.c.l.bf16 %v216
        %v249 = vunpack.c.l.bf16 %v217
        %v250 = vunpack.c.l.bf16 %v218
        %v251 = vunpack.c.l.bf16 %v219
        %v252 = vunpack.c.l.bf16 %v220
        %v253 = vunpack.c.l.bf16 %v221
        %v254 = vunpack.c.l.bf16 %v222
        %v255 = vunpack.c.l.bf16 %v223
        %v256 = vunpack.c.l.bf16 %v224
        %v257 = vunpack.c.l.bf16 %v225
        %v258 = vunpack.c.l.bf16 %v226
        %v259 = vunpack.c.l.bf16 %v227
        %v260 = vunpack.c.l.bf16 %v228
        %v261 = vunpack.c.l.bf16 %v229
        %v262 = vunpack.c.l.bf16 %v230
        %v263 = vunpack.c.l.bf16 %v231
        %v264 = vunpack.c.l.bf16 %v232
        %v265 = vunpack.c.l.bf16 %v233
        %v266 = vunpack.c.l.bf16 %v234
        %v267 = vunpack.c.l.bf16 %v235
        %v268 = vunpack.c.l.bf16 %v236
        %v269 = vunpack.c.l.bf16 %v237
        %v270 = vunpack.c.l.bf16 %v238
        %v271 = vunpack.c.l.bf16 %v239
        %v272 = vunpack.c.l.bf16 %v240
        %v273 = vunpack.c.l.bf16 %v241
        %v274 = vunpack.c.l.bf16 %v242
        %v275 = vunpack.c.l.bf16 %v243
        %v276 = vunpack.c.l.bf16 %v244
        %v277 = vunpack.c.l.bf16 %v245
        %v278 = vunpack.c.l.bf16 %v246
        %v279 = vadd.f32 %v247, %v248
        %v280 = vadd.f32 %v279, %v249
        %v281 = vadd.f32 %v280, %v250
        %v282 = vadd.f32 %v281, %v251
        %v283 = vadd.f32 %v282, %v252
        %v284 = vadd.f32 %v283, %v253
        %v285 = vadd.f32 %v284, %v254
        %v286 = vrot.slane %v285, 4
        %v287 = vadd.f32 %v285, %v286
        %v288 = vrot.slane %v287, 2
        %v289 = vadd.f32 %v287, %v288
        %v290 = vrot.slane %v289, 1
        %v291 = vadd.f32 %v289, %v290
        %v292 = vadd.f32 %v255, %v256
        %v293 = vadd.f32 %v292, %v257
        %v294 = vadd.f32 %v293, %v258
        %v295 = vadd.f32 %v294, %v259
        %v296 = vadd.f32 %v295, %v260
        %v297 = vadd.f32 %v296, %v261
        %v298 = vadd.f32 %v297, %v262
        %v299 = vrot.slane %v298, 4
        %v300 = vadd.f32 %v298, %v299
        %v301 = vrot.slane %v300, 2
        %v302 = vadd.f32 %v300, %v301
        %v303 = vrot.slane %v302, 1
        %v304 = vadd.f32 %v302, %v303
        %v305 = vadd.f32 %v263, %v264
        %v306 = vadd.f32 %v305, %v265
        %v307 = vadd.f32 %v306, %v266
        %v308 = vadd.f32 %v307, %v267
        %v309 = vadd.f32 %v308, %v268
        %v310 = vadd.f32 %v309, %v269
        %v311 = vadd.f32 %v310, %v270
        %v312 = vrot.slane %v311, 4
        %v313 = vadd.f32 %v311, %v312
        %v314 = vrot.slane %v313, 2
        %v315 = vadd.f32 %v313, %v314
        %v316 = vrot.slane %v315, 1
        %v317 = vadd.f32 %v315, %v316
        %v318 = vadd.f32 %v271, %v272
        %v319 = vadd.f32 %v318, %v273
        %v320 = vadd.f32 %v319, %v274
        %v321 = vadd.f32 %v320, %v275
        %v322 = vadd.f32 %v321, %v276
        %v323 = vadd.f32 %v322, %v277
        %v324 = vadd.f32 %v323, %v278
        %v325 = vrot.slane %v324, 4
        %v326 = vadd.f32 %v324, %v325
        %v327 = vrot.slane %v326, 2
        %v328 = vadd.f32 %v326, %v327
        %v329 = vrot.slane %v328, 1
        %v330 = vadd.f32 %v328, %v329
        %v331 = vrcp.pop 64.0
        %v332 = vmul.f32 %v291, %v331
        %v333 = vmul.f32 %v304, %v331
        %v334 = vmul.f32 %v317, %v331
        %v335 = vmul.f32 %v330, %v331
        %336 = vst [vmem:[%s211] sm:$0x1] %v332
        %337 = vst [vmem:[%s211 + $0x1] sm:$0x1] %v333
        %338 = vst [vmem:[%s211 + $0x2] sm:$0x1] %v334
        %339 = vst [vmem:[%s211 + $0x3] sm:$0x1] %v335
        %v340 = vpack.c.bf16 %v332, %v332
        %v341 = vpack.c.bf16 %v333, %v333
        %v342 = vpack.c.bf16 %v334, %v334
        %v343 = vpack.c.bf16 %v335, %v335
        %v344 = vld [vmem:[%s1] sm:$0xf]
        %v345 = vld [vmem:[%s1 + $0x4] sm:$0xf]
        %v346 = vld [vmem:[%s1 + $0x8] sm:$0xf]
        %v347 = vld [vmem:[%s1 + $0xc] sm:$0xf]
        %v348 = vld [vmem:[%s1 + $0x10] sm:$0xf]
        %v349 = vld [vmem:[%s1 + $0x14] sm:$0xf]
        %v350 = vld [vmem:[%s1 + $0x18] sm:$0xf]
        %v351 = vld [vmem:[%s1 + $0x1c] sm:$0xf]
        %v352 = vld [vmem:[%s1 + $0x20] sm:$0xf]
        %v353 = vld [vmem:[%s1 + $0x24] sm:$0xf]
        %v354 = vld [vmem:[%s1 + $0x28] sm:$0xf]
        %v355 = vld [vmem:[%s1 + $0x2c] sm:$0xf]
        %v356 = vld [vmem:[%s1 + $0x30] sm:$0xf]
        %v357 = vld [vmem:[%s1 + $0x34] sm:$0xf]
        %v358 = vld [vmem:[%s1 + $0x38] sm:$0xf]
        %v359 = vld [vmem:[%s1 + $0x3c] sm:$0xf]
        %v360 = vld [vmem:[%s2] sm:$0x1]
        %v362 = vlaneseq
        %v363 = vshrl.u32 %v362, 7
        %v364 = vsub.s32 0, %v363
        %v365 = vrot.slane %v360, %v364
        %v371 = vunpack.c.l.b16 %v340
        %v372 = vunpack.c.l.b16 %v341
        %v373 = vunpack.c.l.b16 %v342
        %v374 = vunpack.c.l.b16 %v343
        %vm375 = vcmask 1041409
        %v376 = vsel %vm375, %v372, %v371
        %vm377 = vcmask 1042434
        %v378 = vsel %vm377, %v373, %v376
        %vm379 = vcmask 1043459
        %v380 = vsel %vm379, %v374, %v378
        %v381 = vpack.c.b16 %v380, %v380
        %v399 = vunpack.c.l.b16 %v344
        %v400 = vunpack.c.l.b16 %v345
        %v401 = vunpack.c.l.b16 %v346
        %v402 = vunpack.c.l.b16 %v347
        %v403 = vunpack.c.l.b16 %v348
        %v404 = vunpack.c.l.b16 %v349
        %v405 = vunpack.c.l.b16 %v350
        %v406 = vunpack.c.l.b16 %v351
        %v407 = vunpack.c.l.b16 %v352
        %v408 = vunpack.c.l.b16 %v353
        %v409 = vunpack.c.l.b16 %v354
        %v410 = vunpack.c.l.b16 %v355
        %v411 = vunpack.c.l.b16 %v356
        %v412 = vunpack.c.l.b16 %v357
        %v413 = vunpack.c.l.b16 %v358
        %v414 = vunpack.c.l.b16 %v359
        %v415 = vpack.c.b16 %v400, %v399
        %v416 = vpack.c.b16 %v402, %v401
        %v417 = vpack.c.b16 %v404, %v403
        %v418 = vpack.c.b16 %v406, %v405
        %v419 = vpack.c.b16 %v408, %v407
        %v420 = vpack.c.b16 %v410, %v409
        %v421 = vpack.c.b16 %v412, %v411
        %v422 = vpack.c.b16 %v414, %v413
        %431 = vmatprep.subr.bf16.mxu0 0
        %432 = vmatpush1.bf16.msra.mxu0 %v422
        %433 = vmatprep.subr.bf16.mxu0 0
        %434 = vmatpush1.bf16.msra.mxu0 %v421
        %435 = vmatprep.subr.bf16.mxu0 0
        %436 = vmatpush1.bf16.msra.mxu0 %v420
        %437 = vmatprep.subr.bf16.mxu0 0
        %438 = vmatpush1.bf16.msra.mxu0 %v419
        %439 = vmatprep.subr.bf16.mxu0 0
        %440 = vmatpush1.bf16.msra.mxu0 %v418
        %441 = vmatprep.subr.bf16.mxu0 0
        %442 = vmatpush1.bf16.msra.mxu0 %v417
        %443 = vmatprep.subr.bf16.mxu0 0
        %444 = vmatpush1.bf16.msra.mxu0 %v416
        %445 = vmatprep.subr.bf16.mxu0 0
        %446 = vmatpush1.bf16.msra.mxu0 %v415
        %447 = vmatprep.subr.bf16.mxu0 0
        %448 = vmatpush2.bf16.msra.mxu0 0
        %449 = vmatprep.subr.bf16.mxu0 0
        %450 = vmatpush2.bf16.msra.mxu0 0
        %451 = vmatprep.subr.bf16.mxu0 0
        %452 = vmatpush2.bf16.msra.mxu0 0
        %453 = vmatprep.subr.bf16.mxu0 0
        %454 = vmatpush2.bf16.msra.mxu0 0
        %455 = vmatprep.subr.bf16.mxu0 0
        %456 = vmatpush2.bf16.msra.mxu0 0
        %457 = vmatprep.subr.bf16.mxu0 0
        %458 = vmatpush2.bf16.msra.mxu0 0
        %459 = vmatprep.subr.bf16.mxu0 0
        %460 = vmatpush2.bf16.msra.mxu0 0
        %461 = vmatprep.subr.bf16.mxu0 0
        %462 = vmatpush2.bf16.msra.mxu0 0
        %463 = vmatprep.mubr.bf16.mxu0 0
        %464 = vmatmul.mubr.bf16.gmra.mxu0 %v381
        %v465 = vpop.f32.mrf.mxu0
        %v466 = vadd.f32 %v365, %v465
        %v467 = vpop.f32.mrf.mxu0
        %v468 = vpop.f32.mrf.mxu0
        %v469 = vpop.f32.mrf.mxu0
        %470 = vdwg.mxu0
        %v473 = vunpack.c.l.s4 1966171168
        %v474 = vunpack.c.0.s8 %v473
        %v475 = vlaneseq
        %v476 = vshrl.u32 %v475, 7
        %v477 = vsub.s32 %v474, %v476
        %v478 = vrot.slane %v466, %v477
        %v479 = vcombine.high %v478, %v478
        %v481 = vunpack.c.l.s4 1966171168
        %v482 = vunpack.c.0.s8 %v481
        %v483 = vlaneseq
        %v484 = vshrl.u32 %v483, 7
        %v485 = vsub.s32 %v482, %v484
        %v486 = vrot.slane %v478, %v485
        %v488 = vunpack.c.l.s4 1966171168
        %v489 = vunpack.c.0.s8 %v488
        %v490 = vlaneseq
        %v491 = vshrl.u32 %v490, 7
        %v492 = vsub.s32 %v489, %v491
        %v493 = vrot.slane %v479, %v492
        %v494 = vcombine.high %v486, %v486
        %v495 = vcombine.high %v493, %v493
        %500 = vst [vmem:[%s200] sm:$0x1] %v486
        %501 = vst [vmem:[%s200 + $0x1] sm:$0x1] %v493
        %502 = vst [vmem:[%s200 + $0x2] sm:$0x1] %v494
        %503 = vst [vmem:[%s200 + $0x3] sm:$0x1] %v495
        %s504 = smul.u32 4, %s19
        %p505 = scmp.lt.s32.totalorder %s504, 7
        %s506 = scalar_select %p505, %s504, 7
        %s507 = scalar_lea.vmem %s3, %s506
        %s508 = sand.u32 %s121, 1
        %s509 = scalar_lea.sflag [#allocation3], %s508
        %s510 = sand.u32 %s121, 1
        %s511 = smul.addr %s510, 4
        %s512 = scalar_lea.vmem [#allocation2], %s511
        // Predicated region
        $region33: #{attention_net_forward.11} parent=31 // pred_check
          %p513 = pneg %p105
        $region34: #{attention_net_forward.11} parent=31 // pred_check_branch
          %515 = sbr.rel (%p513) target = $region36
        $region35: #{attention_net_forward.11} parent=31 // pred_region
          %s516 = smul.u32 4, %s19
        $region36: #{attention_net_forward.11} parent=31 // pred_fallthru
          _
        // Predicated region
        $region37: #{attention_net_forward.11} parent=31 // pred_check
          %p517 = pneg %p131
        $region38: #{attention_net_forward.11} parent=31 // pred_check_branch
          %519 = sbr.rel (%p517) target = $region40
        $region39: #{attention_net_forward.11} parent=31 // pred_region
          %s520 = smul.u32 4, %s19
          %s522 = ssub.s32 64, 64
          %523 = vsyncadd %s509, %s522
          %s524 = smul.addr %s520, 16
          %s525 = scalar_lea.hbm %s4, %s524
          %s526 = sshll.u32 %s512, 4
          %s527 = int_to_ptr.vmem [resolvable:$true] %s526
          %532 = dma.vmem_to_hbm [thread:$0]  %s527, 64, %s525, %s509, 16, 16, 1
        $region40: #{attention_net_forward.11} parent=31 // pred_fallthru
          _
      $region32: #{attention_net_forward.11} parent=5 // pred_fallthru
        _
      %p533 = scmp.le.s32.totalorder 2, %s14
      // Predicated region
      $region41: #{attention_net_forward.11} parent=5 // pred_check
        %p534 = pneg %p533
      $region42: #{attention_net_forward.11} parent=5 // pred_check_branch
        %536 = sbr.rel (%p534) target = $region44
      $region43: #{attention_net_forward.11} parent=5 // pred_region
        %s537 = ssub.s32 %s14, 2
        // Predicated region
        $region45: #{attention_net_forward.11} parent=43 // pred_check
          %p538 = pneg %p111
        $region46: #{attention_net_forward.11} parent=43 // pred_check_branch
          %540 = sbr.rel (%p538) target = $region48
        $region47: #{attention_net_forward.11} parent=43 // pred_region
          %s541 = smul.u32 4, %s20
          %p542 = scmp.lt.s32.totalorder %s541, 7
          %s543 = scalar_select %p542, %s541, 7
          %s544 = scalar_lea.vmem %s3, %s543
        $region48: #{attention_net_forward.11} parent=43 // pred_fallthru
          _
        // Predicated region
        $region49: #{attention_net_forward.11} parent=43 // pred_check
          %p545 = pneg %p137
        $region50: #{attention_net_forward.11} parent=43 // pred_check_branch
          %547 = sbr.rel (%p545) target = $region52
        $region51: #{attention_net_forward.11} parent=43 // pred_region
          %s548 = sand.u32 %s122, 1
          %s549 = scalar_lea.sflag [#allocation3], %s548
          %s550 = sand.u32 %s122, 1
          %s551 = smul.addr %s550, 4
          %s552 = scalar_lea.vmem [#allocation2], %s551
          %553 = dma.done %s549, 64
        $region52: #{attention_net_forward.11} parent=43 // pred_fallthru
          _
      $region44: #{attention_net_forward.11} parent=5 // pred_fallthru
        _
    $region6: #{attention_net_forward.11} parent=1 // loop_footer
      %s18 = sadd.s32 1, %s14
    $region7: #{attention_net_forward.11} parent=1 // loop_footer_branch
      %13 = sbr.rel target = $region3
    $region8: #{attention_net_forward.11} parent=1 // loop_exit
      _
    %554 = vsyncpa [#allocation3], 1
    %s555 = scalar_lea.sflag [#allocation3], 1
    %556 = vsyncpa %s555, 1

// kernel: attention_net_forward.10
$region0: #{attention_net_forward.10}
  #allocation0 [shape = 'u32[]', space=smem, size = 0x4, offset = 0x4, fixed_abs, tag = 'smem constant byte address 0x4 - core index']
  #allocation1 [shape = 'u32[144,128]{1,0:T(1,128)}', space=vmem, size = 0x12000, scoped, tag = 'internal scratch']
  %s0 = inlined_call_operand.vmem [shape: f32[512,128], index: 0, kind: input, shape index: {}]
  %s1 = inlined_call_operand.vmem [shape: bf16[128,128], index: 1, kind: input, shape index: {}]
  %s2 = inlined_call_operand.vmem [shape: f32[1,128], index: 2, kind: input, shape index: {}]
  %s3 = inlined_call_operand.vmem [shape: bf16[512,128], index: 3, kind: output, shape index: {}]
  %s4 = sld [smem:[#allocation0]]
  $region45: #{attention_net_forward.10} parent=0
    _
  %s6 = ssub.s32 1, %s4
  %s7 = scalar_select 0, %s6, %s4
  loop: start=0, step=1, limit=4
  $region2: #{attention_net_forward.10} parent=0 // loop_pre_header
    _
  $region3: #{attention_net_forward.10} parent=0 // loop_header
    %s9 = sphi 0, %s13
    %p10 = scmp.ge.s32.totalorder %s9, 4
    %s19 = sphi 0, %s21
    %s22 = sphi 0, %s19
    %s23 = sphi 0, %s22
    %s39 = sphi 0, %s23
    %s43 = sphi 0, %s43
    %s45 = sphi 0, %s43
    %s46 = sphi 0, %s45
    %s60 = sphi 0, %s46
    %s64 = sphi 0, %s64
    %s66 = sphi 0, %s64
    %s67 = sphi 0, %s66
    %s81 = sphi 0, %s67
    %s87 = sphi 0, %s89
    %s90 = sphi 0, %s87
    %s91 = sphi 0, %s90
    %s107 = sphi 0, %s91
  $region4: #{attention_net_forward.10} parent=0 // loop_header_branch
    %12 = sbr.rel (%p10) target = $region8
  $region5: #{attention_net_forward.10} parent=0 // loop_body
    %s14 = ssub.s32 %s9, 1
    %s15 = ssub.s32 %s9, 2
    %s16 = sadd.s32 %s9, 1
    %s17 = ssub.s32 %s9, %s16
    %p18 = scmp.eq.s32.totalorder %s17, 0
    %s20 = sadd.s32 %s19, 1
    %s21 = scalar_select %p18, %s19, %s20
    %p24 = pneg %p18
    %p25 = scmp.eq.s32.totalorder %s9, 1
    %p26 = por %p24, %p25
    %p27 = scmp.ne.s32.totalorder %s19, %s22
    %p28 = scmp.eq.s32.totalorder %s9, 0
    %p29 = por %p27, %p28
    %p30 = scmp.ne.s32.totalorder %s19, %s22
    %p31 = scmp.eq.s32.totalorder %s14, 1
    %p32 = por %p30, %p31
    %p33 = scmp.ne.s32.totalorder %s22, %s23
    %p34 = scmp.eq.s32.totalorder %s14, 0
    %p35 = por %p33, %p34
    %p36 = scmp.ne.s32.totalorder %s22, %s23
    %p37 = scmp.eq.s32.totalorder %s15, 1
    %p38 = por %p36, %p37
    %p40 = scmp.ne.s32.totalorder %s23, %s39
    %p41 = scmp.eq.s32.totalorder %s15, 0
    %p42 = por %p40, %p41
    %s44 = sadd.s32 %s43, 1
    %p47 = scmp.eq.s32.totalorder %s9, 1
    %p48 = scmp.ne.s32.totalorder %s43, %s45
    %p49 = scmp.eq.s32.totalorder %s9, 0
    %p50 = por %p48, %p49
    %p51 = scmp.ne.s32.totalorder %s43, %s45
    %p52 = scmp.eq.s32.totalorder %s14, 1
    %p53 = por %p51, %p52
    %p54 = scmp.ne.s32.totalorder %s45, %s46
    %p55 = scmp.eq.s32.totalorder %s14, 0
    %p56 = por %p54, %p55
    %p57 = scmp.ne.s32.totalorder %s45, %s46
    %p58 = scmp.eq.s32.totalorder %s15, 1
    %p59 = por %p57, %p58
    %p61 = scmp.ne.s32.totalorder %s46, %s60
    %p62 = scmp.eq.s32.totalorder %s15, 0
    %p63 = por %p61, %p62
    %s65 = sadd.s32 %s64, 1
    %p68 = scmp.eq.s32.totalorder %s9, 1
    %p69 = scmp.ne.s32.totalorder %s64, %s66
    %p70 = scmp.eq.s32.totalorder %s9, 0
    %p71 = por %p69, %p70
    %p72 = scmp.ne.s32.totalorder %s64, %s66
    %p73 = scmp.eq.s32.totalorder %s14, 1
    %p74 = por %p72, %p73
    %p75 = scmp.ne.s32.totalorder %s66, %s67
    %p76 = scmp.eq.s32.totalorder %s14, 0
    %p77 = por %p75, %p76
    %p78 = scmp.ne.s32.totalorder %s66, %s67
    %p79 = scmp.eq.s32.totalorder %s15, 1
    %p80 = por %p78, %p79
    %p82 = scmp.ne.s32.totalorder %s67, %s81
    %p83 = scmp.eq.s32.totalorder %s15, 0
    %p84 = por %p82, %p83
    %s85 = ssub.s32 %s9, %s16
    %p86 = scmp.eq.s32.totalorder %s85, 0
    %s88 = sadd.s32 %s87, 1
    %s89 = scalar_select %p86, %s87, %s88
    %p92 = pneg %p86
    %p93 = scmp.eq.s32.totalorder %s9, 1
    %p94 = por %p92, %p93
    %p95 = scmp.ne.s32.totalorder %s87, %s90
    %p96 = scmp.eq.s32.totalorder %s9, 0
    %p97 = por %p95, %p96
    %p98 = scmp.ne.s32.totalorder %s87, %s90
    %p99 = scmp.eq.s32.totalorder %s14, 1
    %p100 = por %p98, %p99
    %p101 = scmp.ne.s32.totalorder %s90, %s91
    %p102 = scmp.eq.s32.totalorder %s14, 0
    %p103 = por %p101, %p102
    %p104 = scmp.ne.s32.totalorder %s90, %s91
    %p105 = scmp.eq.s32.totalorder %s15, 1
    %p106 = por %p104, %p105
    %p108 = scmp.ne.s32.totalorder %s91, %s107
    %p109 = scmp.eq.s32.totalorder %s15, 0
    %p110 = por %p108, %p109
    %p111 = scmp.le.s32.totalorder 1, %s9
    %p112 = scmp.lt.s32.totalorder %s9, 3
    %p113 = pnand %p111, %p112
    %p114 = pneg %p113
    // Predicated region
    $region9: #{attention_net_forward.10} parent=5 // pred_check
      _
    $region10: #{attention_net_forward.10} parent=5 // pred_check_branch
      %116 = sbr.rel (%p113) target = $region12
    $region11: #{attention_net_forward.10} parent=5 // pred_region
      %s117 = ssub.s32 %s9, 1
      // Predicated region
      $region13: #{attention_net_forward.10} parent=11 // pred_check
        %p118 = pneg %p56
      $region14: #{attention_net_forward.10} parent=11 // pred_check_branch
        %120 = sbr.rel (%p118) target = $region16
      $region15: #{attention_net_forward.10} parent=11 // pred_region
        _
      $region16: #{attention_net_forward.10} parent=11 // pred_fallthru
        _
      // Predicated region
      $region17: #{attention_net_forward.10} parent=11 // pred_check
        %p121 = pneg %p77
      $region18: #{attention_net_forward.10} parent=11 // pred_check_branch
        %123 = sbr.rel (%p121) target = $region20
      $region19: #{attention_net_forward.10} parent=11 // pred_region
        _
      $region20: #{attention_net_forward.10} parent=11 // pred_fallthru
        _
    $region12: #{attention_net_forward.10} parent=5 // pred_fallthru
      _
    %p124 = scmp.lt.s32.totalorder %s9, 2
    // Predicated region
    $region21: #{attention_net_forward.10} parent=5 // pred_check
      %p125 = pneg %p124
    $region22: #{attention_net_forward.10} parent=5 // pred_check_branch
      %127 = sbr.rel (%p125) target = $region24
    $region23: #{attention_net_forward.10} parent=5 // pred_region
      // Predicated region
      $region25: #{attention_net_forward.10} parent=23 // pred_check
        %p128 = pneg %p29
      $region26: #{attention_net_forward.10} parent=23 // pred_check_branch
        %130 = sbr.rel (%p128) target = $region28
      $region27: #{attention_net_forward.10} parent=23 // pred_region
        %s131 = smul.u32 32, %s9
        %p132 = scmp.lt.s32.totalorder %s131, 63
        %s133 = scalar_select %p132, %s131, 63
        %s134 = smul.addr %s133, 8
        %s135 = scalar_lea.vmem %s0, %s134
        %s136 = smul.u32 32, %s9
      $region28: #{attention_net_forward.10} parent=23 // pred_fallthru
        _
    $region24: #{attention_net_forward.10} parent=5 // pred_fallthru
      _
    %p137 = scmp.le.s32.totalorder 1, %s9
    %p138 = scmp.lt.s32.totalorder %s9, 3
    %p139 = pnand %p137, %p138
    %p140 = pneg %p139
    // Predicated region
    $region29: #{attention_net_forward.10} parent=5 // pred_check
      _
    $region30: #{attention_net_forward.10} parent=5 // pred_check_branch
      %142 = sbr.rel (%p139) target = $region32
    $region31: #{attention_net_forward.10} parent=5 // pred_region
      %s143 = ssub.s32 %s9, 1
      %s144 = smul.u32 32, %s14
      %p145 = scmp.lt.s32.totalorder %s144, 63
      %s146 = scalar_select %p145, %s144, 63
      %s147 = smul.addr %s146, 8
      %s148 = scalar_lea.vmem %s0, %s147
      %p149 = pneg %p35
      %p150 = pneg %p32
      %p151 = pneg %p56
      %p152 = pneg %p53
      %p153 = pneg %p77
      %p154 = pneg %p74
      %p155 = pneg %p103
      %p156 = pneg %p100
      %s157 = smul.u32 32, %s14
      %p158 = scmp.lt.s32.totalorder %s157, 63
      %s159 = scalar_select %p158, %s157, 63
      %s160 = smul.addr %s159, 4
      %s161 = scalar_lea.vmem %s3, %s160
      %s162 = smul.u32 32, %s14
      %p163 = scmp.lt.s32.totalorder %s162, 63
      %s164 = scalar_select %p163, %s162, 63
      %s165 = smul.addr %s164, 8
      %s166 = scalar_lea.vmem %s0, %s165
      %s167 = smul.u32 32, %s14
      %s168 = smul.u32 32, %s14
      %p169 = scmp.lt.s32.totalorder %s168, 63
      %s170 = scalar_select %p169, %s168, 63
      %s171 = smul.addr %s170, 4
      %s172 = scalar_lea.vmem %s3, %s171
      %s173 = smul.u32 32, %s14
      %v175 = vld [vmem:[%s166] sm:$0xff]
      %v176 = vld [vmem:[%s166 + $0x8] sm:$0xff]
      %v177 = vld [vmem:[%s166 + $0x10] sm:$0xff]
      %v178 = vld [vmem:[%s166 + $0x18] sm:$0xff]
      %v179 = vld [vmem:[%s166 + $0x20] sm:$0xff]
      %v180 = vld [vmem:[%s166 + $0x28] sm:$0xff]
      %v181 = vld [vmem:[%s166 + $0x30] sm:$0xff]
      %v182 = vld [vmem:[%s166 + $0x38] sm:$0xff]
      %v183 = vld [vmem:[%s166 + $0x40] sm:$0xff]
      %v184 = vld [vmem:[%s166 + $0x48] sm:$0xff]
      %v185 = vld [vmem:[%s166 + $0x50] sm:$0xff]
      %v186 = vld [vmem:[%s166 + $0x58] sm:$0xff]
      %v187 = vld [vmem:[%s166 + $0x60] sm:$0xff]
      %v188 = vld [vmem:[%s166 + $0x68] sm:$0xff]
      %v189 = vld [vmem:[%s166 + $0x70] sm:$0xff]
      %v190 = vld [vmem:[%s166 + $0x78] sm:$0xff]
      %v191 = vld [vmem:[%s166 + $0x80] sm:$0xff]
      %v192 = vld [vmem:[%s166 + $0x88] sm:$0xff]
      %v193 = vld [vmem:[%s166 + $0x90] sm:$0xff]
      %v194 = vld [vmem:[%s166 + $0x98] sm:$0xff]
      %v195 = vld [vmem:[%s166 + $0xa0] sm:$0xff]
      %v196 = vld [vmem:[%s166 + $0xa8] sm:$0xff]
      %v197 = vld [vmem:[%s166 + $0xb0] sm:$0xff]
      %v198 = vld [vmem:[%s166 + $0xb8] sm:$0xff]
      %v199 = vld [vmem:[%s166 + $0xc0] sm:$0xff]
      %v200 = vld [vmem:[%s166 + $0xc8] sm:$0xff]
      %v201 = vld [vmem:[%s166 + $0xd0] sm:$0xff]
      %v202 = vld [vmem:[%s166 + $0xd8] sm:$0xff]
      %v203 = vld [vmem:[%s166 + $0xe0] sm:$0xff]
      %v204 = vld [vmem:[%s166 + $0xe8] sm:$0xff]
      %v205 = vld [vmem:[%s166 + $0xf0] sm:$0xff]
      %v206 = vld [vmem:[%s166 + $0xf8] sm:$0xff]
      %v207 = vpack.c.bf16 %v176, %v175
      %v208 = vpack.c.bf16 %v178, %v177
      %v209 = vpack.c.bf16 %v180, %v179
      %v210 = vpack.c.bf16 %v182, %v181
      %v211 = vpack.c.bf16 %v184, %v183
      %v212 = vpack.c.bf16 %v186, %v185
      %v213 = vpack.c.bf16 %v188, %v187
      %v214 = vpack.c.bf16 %v190, %v189
      %v215 = vpack.c.bf16 %v192, %v191
      %v216 = vpack.c.bf16 %v194, %v193
      %v217 = vpack.c.bf16 %v196, %v195
      %v218 = vpack.c.bf16 %v198, %v197
      %v219 = vpack.c.bf16 %v200, %v199
      %v220 = vpack.c.bf16 %v202, %v201
      %v221 = vpack.c.bf16 %v204, %v203
      %v222 = vpack.c.bf16 %v206, %v205
      %v223 = vld [vmem:[%s1] sm:$0xf]
      %v224 = vld [vmem:[%s1 + $0x4] sm:$0xf]
      %v225 = vld [vmem:[%s1 + $0x8] sm:$0xf]
      %v226 = vld [vmem:[%s1 + $0xc] sm:$0xf]
      %v227 = vld [vmem:[%s1 + $0x10] sm:$0xf]
      %v228 = vld [vmem:[%s1 + $0x14] sm:$0xf]
      %v229 = vld [vmem:[%s1 + $0x18] sm:$0xf]
      %v230 = vld [vmem:[%s1 + $0x1c] sm:$0xf]
      %v231 = vld [vmem:[%s1 + $0x20] sm:$0xf]
      %v232 = vld [vmem:[%s1 + $0x24] sm:$0xf]
      %v233 = vld [vmem:[%s1 + $0x28] sm:$0xf]
      %v234 = vld [vmem:[%s1 + $0x2c] sm:$0xf]
      %v235 = vld [vmem:[%s1 + $0x30] sm:$0xf]
      %v236 = vld [vmem:[%s1 + $0x34] sm:$0xf]
      %v237 = vld [vmem:[%s1 + $0x38] sm:$0xf]
      %v238 = vld [vmem:[%s1 + $0x3c] sm:$0xf]
      %v239 = vld [vmem:[%s2] sm:$0x1]
      %v241 = vlaneseq
      %v242 = vshrl.u32 %v241, 7
      %v243 = vsub.s32 0, %v242
      %v244 = vrot.slane %v239, %v243
      %v262 = vunpack.c.l.b16 %v223
      %v263 = vunpack.c.l.b16 %v224
      %v264 = vunpack.c.l.b16 %v225
      %v265 = vunpack.c.l.b16 %v226
      %v266 = vunpack.c.l.b16 %v227
      %v267 = vunpack.c.l.b16 %v228
      %v268 = vunpack.c.l.b16 %v229
      %v269 = vunpack.c.l.b16 %v230
      %v270 = vunpack.c.l.b16 %v231
      %v271 = vunpack.c.l.b16 %v232
      %v272 = vunpack.c.l.b16 %v233
      %v273 = vunpack.c.l.b16 %v234
      %v274 = vunpack.c.l.b16 %v235
      %v275 = vunpack.c.l.b16 %v236
      %v276 = vunpack.c.l.b16 %v237
      %v277 = vunpack.c.l.b16 %v238
      %v278 = vpack.c.b16 %v263, %v262
      %v279 = vpack.c.b16 %v265, %v264
      %v280 = vpack.c.b16 %v267, %v266
      %v281 = vpack.c.b16 %v269, %v268
      %v282 = vpack.c.b16 %v271, %v270
      %v283 = vpack.c.b16 %v273, %v272
      %v284 = vpack.c.b16 %v275, %v274
      %v285 = vpack.c.b16 %v277, %v276
      %294 = vmatprep.subr.bf16.mxu0 0
      %295 = vmatpush1.bf16.msra.mxu0 %v285
      %296 = vmatprep.subr.bf16.mxu0 0
      %297 = vmatpush1.bf16.msra.mxu0 %v284
      %298 = vmatprep.subr.bf16.mxu0 0
      %299 = vmatpush1.bf16.msra.mxu0 %v283
      %300 = vmatprep.subr.bf16.mxu0 0
      %301 = vmatpush1.bf16.msra.mxu0 %v282
      %302 = vmatprep.subr.bf16.mxu0 0
      %303 = vmatpush1.bf16.msra.mxu0 %v281
      %304 = vmatprep.subr.bf16.mxu0 0
      %305 = vmatpush1.bf16.msra.mxu0 %v280
      %306 = vmatprep.subr.bf16.mxu0 0
      %307 = vmatpush1.bf16.msra.mxu0 %v279
      %308 = vmatprep.subr.bf16.mxu0 0
      %309 = vmatpush1.bf16.msra.mxu0 %v278
      %310 = vmatprep.subr.bf16.mxu0 0
      %311 = vmatpush2.bf16.msra.mxu0 0
      %312 = vmatprep.subr.bf16.mxu0 0
      %313 = vmatpush2.bf16.msra.mxu0 0
      %314 = vmatprep.subr.bf16.mxu0 0
      %315 = vmatpush2.bf16.msra.mxu0 0
      %316 = vmatprep.subr.bf16.mxu0 0
      %317 = vmatpush2.bf16.msra.mxu0 0
      %318 = vmatprep.subr.bf16.mxu0 0
      %319 = vmatpush2.bf16.msra.mxu0 0
      %320 = vmatprep.subr.bf16.mxu0 0
      %321 = vmatpush2.bf16.msra.mxu0 0
      %322 = vmatprep.subr.bf16.mxu0 0
      %323 = vmatpush2.bf16.msra.mxu0 0
      %324 = vmatprep.subr.bf16.mxu0 0
      %325 = vmatpush2.bf16.msra.mxu0 0
      %326 = vmatprep.mubr.bf16.mxu0 0
      %327 = vmatmul.mubr.bf16.gmra.mxu0 %v207
      %v328 = vpop.f32.mrf.mxu0
      %v329 = vadd.f32 %v244, %v328
      %v330 = vpop.f32.mrf.mxu0
      %v331 = vpop.f32.mrf.mxu0
      %v332 = vadd.f32 %v244, %v331
      %v333 = vpop.f32.mrf.mxu0
      %334 = vmatprep.mubr.bf16.mxu0 0
      %335 = vmatmul.mubr.bf16.gmra.mxu0 %v208
      %v336 = vpop.f32.mrf.mxu0
      %v337 = vadd.f32 %v244, %v336
      %v338 = vpop.f32.mrf.mxu0
      %v339 = vpop.f32.mrf.mxu0
      %v340 = vadd.f32 %v244, %v339
      %v341 = vpop.f32.mrf.mxu0
      %342 = vmatprep.mubr.bf16.mxu0 0
      %343 = vmatmul.mubr.bf16.gmra.mxu0 %v209
      %v344 = vpop.f32.mrf.mxu0
      %v345 = vadd.f32 %v244, %v344
      %v346 = vpop.f32.mrf.mxu0
      %v347 = vpop.f32.mrf.mxu0
      %v348 = vadd.f32 %v244, %v347
      %v349 = vpop.f32.mrf.mxu0
      %350 = vmatprep.mubr.bf16.mxu0 0
      %351 = vmatmul.mubr.bf16.gmra.mxu0 %v210
      %v352 = vpop.f32.mrf.mxu0
      %v353 = vadd.f32 %v244, %v352
      %v354 = vpop.f32.mrf.mxu0
      %v355 = vpop.f32.mrf.mxu0
      %v356 = vadd.f32 %v244, %v355
      %v357 = vpop.f32.mrf.mxu0
      %358 = vmatprep.mubr.bf16.mxu0 0
      %359 = vmatmul.mubr.bf16.gmra.mxu0 %v211
      %v360 = vpop.f32.mrf.mxu0
      %v361 = vadd.f32 %v244, %v360
      %v362 = vpop.f32.mrf.mxu0
      %v363 = vpop.f32.mrf.mxu0
      %v364 = vadd.f32 %v244, %v363
      %v365 = vpop.f32.mrf.mxu0
      %366 = vmatprep.mubr.bf16.mxu0 0
      %367 = vmatmul.mubr.bf16.gmra.mxu0 %v212
      %v368 = vpop.f32.mrf.mxu0
      %v369 = vadd.f32 %v244, %v368
      %v370 = vpop.f32.mrf.mxu0
      %v371 = vpop.f32.mrf.mxu0
      %v372 = vadd.f32 %v244, %v371
      %v373 = vpop.f32.mrf.mxu0
      %374 = vmatprep.mubr.bf16.mxu0 0
      %375 = vmatmul.mubr.bf16.gmra.mxu0 %v213
      %v376 = vpop.f32.mrf.mxu0
      %v377 = vadd.f32 %v244, %v376
      %v378 = vpop.f32.mrf.mxu0
      %v379 = vpop.f32.mrf.mxu0
      %v380 = vadd.f32 %v244, %v379
      %v381 = vpop.f32.mrf.mxu0
      %382 = vmatprep.mubr.bf16.mxu0 0
      %383 = vmatmul.mubr.bf16.gmra.mxu0 %v214
      %v384 = vpop.f32.mrf.mxu0
      %v385 = vadd.f32 %v244, %v384
      %v386 = vpop.f32.mrf.mxu0
      %v387 = vpop.f32.mrf.mxu0
      %v388 = vadd.f32 %v244, %v387
      %v389 = vpop.f32.mrf.mxu0
      %390 = vmatprep.mubr.bf16.mxu0 0
      %391 = vmatmul.mubr.bf16.gmra.mxu0 %v215
      %v392 = vpop.f32.mrf.mxu0
      %v393 = vadd.f32 %v244, %v392
      %v394 = vpop.f32.mrf.mxu0
      %v395 = vpop.f32.mrf.mxu0
      %v396 = vadd.f32 %v244, %v395
      %v397 = vpop.f32.mrf.mxu0
      %398 = vmatprep.mubr.bf16.mxu0 0
      %399 = vmatmul.mubr.bf16.gmra.mxu0 %v216
      %v400 = vpop.f32.mrf.mxu0
      %v401 = vadd.f32 %v244, %v400
      %v402 = vpop.f32.mrf.mxu0
      %v403 = vpop.f32.mrf.mxu0
      %v404 = vadd.f32 %v244, %v403
      %v405 = vpop.f32.mrf.mxu0
      %406 = vmatprep.mubr.bf16.mxu0 0
      %407 = vmatmul.mubr.bf16.gmra.mxu0 %v217
      %v408 = vpop.f32.mrf.mxu0
      %v409 = vadd.f32 %v244, %v408
      %v410 = vpop.f32.mrf.mxu0
      %v411 = vpop.f32.mrf.mxu0
      %v412 = vadd.f32 %v244, %v411
      %v413 = vpop.f32.mrf.mxu0
      %414 = vmatprep.mubr.bf16.mxu0 0
      %415 = vmatmul.mubr.bf16.gmra.mxu0 %v218
      %v416 = vpop.f32.mrf.mxu0
      %v417 = vadd.f32 %v244, %v416
      %v418 = vpop.f32.mrf.mxu0
      %v419 = vpop.f32.mrf.mxu0
      %v420 = vadd.f32 %v244, %v419
      %v421 = vpop.f32.mrf.mxu0
      %422 = vmatprep.mubr.bf16.mxu0 0
      %423 = vmatmul.mubr.bf16.gmra.mxu0 %v219
      %v424 = vpop.f32.mrf.mxu0
      %v425 = vadd.f32 %v244, %v424
      %v426 = vpop.f32.mrf.mxu0
      %v427 = vpop.f32.mrf.mxu0
      %v428 = vadd.f32 %v244, %v427
      %v429 = vpop.f32.mrf.mxu0
      %430 = vmatprep.mubr.bf16.mxu0 0
      %431 = vmatmul.mubr.bf16.gmra.mxu0 %v220
      %v432 = vpop.f32.mrf.mxu0
      %v433 = vadd.f32 %v244, %v432
      %v434 = vpop.f32.mrf.mxu0
      %v435 = vpop.f32.mrf.mxu0
      %v436 = vadd.f32 %v244, %v435
      %v437 = vpop.f32.mrf.mxu0
      %438 = vmatprep.mubr.bf16.mxu0 0
      %439 = vmatmul.mubr.bf16.gmra.mxu0 %v221
      %v440 = vpop.f32.mrf.mxu0
      %v441 = vadd.f32 %v244, %v440
      %v442 = vpop.f32.mrf.mxu0
      %v443 = vpop.f32.mrf.mxu0
      %v444 = vadd.f32 %v244, %v443
      %v445 = vpop.f32.mrf.mxu0
      %446 = vmatprep.mubr.bf16.mxu0 0
      %447 = vmatmul.mubr.bf16.gmra.mxu0 %v222
      %v448 = vpop.f32.mrf.mxu0
      %v449 = vadd.f32 %v244, %v448
      %v450 = vpop.f32.mrf.mxu0
      %v451 = vpop.f32.mrf.mxu0
      %v452 = vadd.f32 %v244, %v451
      %v453 = vpop.f32.mrf.mxu0
      %454 = vdwg.mxu0
      %v455 = vmax.f32 %v329, 0.0
      %v456 = vmax.f32 %v332, 0.0
      %v457 = vmax.f32 %v337, 0.0
      %v458 = vmax.f32 %v340, 0.0
      %v459 = vmax.f32 %v345, 0.0
      %v460 = vmax.f32 %v348, 0.0
      %v461 = vmax.f32 %v353, 0.0
      %v462 = vmax.f32 %v356, 0.0
      %v463 = vmax.f32 %v361, 0.0
      %v464 = vmax.f32 %v364, 0.0
      %v465 = vmax.f32 %v369, 0.0
      %v466 = vmax.f32 %v372, 0.0
      %v467 = vmax.f32 %v377, 0.0
      %v468 = vmax.f32 %v380, 0.0
      %v469 = vmax.f32 %v385, 0.0
      %v470 = vmax.f32 %v388, 0.0
      %v471 = vmax.f32 %v393, 0.0
      %v472 = vmax.f32 %v396, 0.0
      %v473 = vmax.f32 %v401, 0.0
      %v474 = vmax.f32 %v404, 0.0
      %v475 = vmax.f32 %v409, 0.0
      %v476 = vmax.f32 %v412, 0.0
      %v477 = vmax.f32 %v417, 0.0
      %v478 = vmax.f32 %v420, 0.0
      %v479 = vmax.f32 %v425, 0.0
      %v480 = vmax.f32 %v428, 0.0
      %v481 = vmax.f32 %v433, 0.0
      %v482 = vmax.f32 %v436, 0.0
      %v483 = vmax.f32 %v441, 0.0
      %v484 = vmax.f32 %v444, 0.0
      %v485 = vmax.f32 %v449, 0.0
      %v486 = vmax.f32 %v452, 0.0
      %v487 = vpack.c.bf16 %v456, %v455
      %v488 = vpack.c.bf16 %v458, %v457
      %v489 = vpack.c.bf16 %v460, %v459
      %v490 = vpack.c.bf16 %v462, %v461
      %v491 = vpack.c.bf16 %v464, %v463
      %v492 = vpack.c.bf16 %v466, %v465
      %v493 = vpack.c.bf16 %v468, %v467
      %v494 = vpack.c.bf16 %v470, %v469
      %v495 = vpack.c.bf16 %v472, %v471
      %v496 = vpack.c.bf16 %v474, %v473
      %v497 = vpack.c.bf16 %v476, %v475
      %v498 = vpack.c.bf16 %v478, %v477
      %v499 = vpack.c.bf16 %v480, %v479
      %v500 = vpack.c.bf16 %v482, %v481
      %v501 = vpack.c.bf16 %v484, %v483
      %v502 = vpack.c.bf16 %v486, %v485
      %v519 = vunpack.c.l.b16 %v487
      %v520 = vunpack.c.h.b16 %v487
      %v521 = vunpack.c.l.b16 %v488
      %v522 = vunpack.c.h.b16 %v488
      %v523 = vunpack.c.l.b16 %v489
      %v524 = vunpack.c.h.b16 %v489
      %v525 = vunpack.c.l.b16 %v490
      %v526 = vunpack.c.h.b16 %v490
      %v527 = vunpack.c.l.b16 %v491
      %v528 = vunpack.c.h.b16 %v491
      %v529 = vunpack.c.l.b16 %v492
      %v530 = vunpack.c.h.b16 %v492
      %v531 = vunpack.c.l.b16 %v493
      %v532 = vunpack.c.h.b16 %v493
      %v533 = vunpack.c.l.b16 %v494
      %v534 = vunpack.c.h.b16 %v494
      %v535 = vunpack.c.l.b16 %v495
      %v536 = vunpack.c.h.b16 %v495
      %v537 = vunpack.c.l.b16 %v496
      %v538 = vunpack.c.h.b16 %v496
      %v539 = vunpack.c.l.b16 %v497
      %v540 = vunpack.c.h.b16 %v497
      %v541 = vunpack.c.l.b16 %v498
      %v542 = vunpack.c.h.b16 %v498
      %v543 = vunpack.c.l.b16 %v499
      %v544 = vunpack.c.h.b16 %v499
      %v545 = vunpack.c.l.b16 %v500
      %v546 = vunpack.c.h.b16 %v500
      %v547 = vunpack.c.l.b16 %v501
      %v548 = vunpack.c.h.b16 %v501
      %v549 = vunpack.c.l.b16 %v502
      %v550 = vunpack.c.h.b16 %v502
      %v551 = vpack.c.b16 %v519, %v519
      %v552 = vpack.c.b16 %v520, %v520
      %v553 = vpack.c.b16 %v521, %v521
      %v554 = vpack.c.b16 %v522, %v522
      %v555 = vpack.c.b16 %v523, %v523
      %v556 = vpack.c.b16 %v524, %v524
      %v557 = vpack.c.b16 %v525, %v525
      %v558 = vpack.c.b16 %v526, %v526
      %v559 = vpack.c.b16 %v527, %v527
      %v560 = vpack.c.b16 %v528, %v528
      %v561 = vpack.c.b16 %v529, %v529
      %v562 = vpack.c.b16 %v530, %v530
      %v563 = vpack.c.b16 %v531, %v531
      %v564 = vpack.c.b16 %v532, %v532
      %v565 = vpack.c.b16 %v533, %v533
      %v566 = vpack.c.b16 %v534, %v534
      %v567 = vpack.c.b16 %v535, %v535
      %v568 = vpack.c.b16 %v536, %v536
      %v569 = vpack.c.b16 %v537, %v537
      %v570 = vpack.c.b16 %v538, %v538
      %v571 = vpack.c.b16 %v539, %v539
      %v572 = vpack.c.b16 %v540, %v540
      %v573 = vpack.c.b16 %v541, %v541
      %v574 = vpack.c.b16 %v542, %v542
      %v575 = vpack.c.b16 %v543, %v543
      %v576 = vpack.c.b16 %v544, %v544
      %v577 = vpack.c.b16 %v545, %v545
      %v578 = vpack.c.b16 %v546, %v546
      %v579 = vpack.c.b16 %v547, %v547
      %v580 = vpack.c.b16 %v548, %v548
      %v581 = vpack.c.b16 %v549, %v549
      %v582 = vpack.c.b16 %v550, %v550
      %615 = vst [vmem:[%s172] sm:$0xf] %v551
      %616 = vst [vmem:[%s172 + $0x4] sm:$0xf] %v552
      %617 = vst [vmem:[%s172 + $0x8] sm:$0xf] %v553
      %618 = vst [vmem:[%s172 + $0xc] sm:$0xf] %v554
      %619 = vst [vmem:[%s172 + $0x10] sm:$0xf] %v555
      %620 = vst [vmem:[%s172 + $0x14] sm:$0xf] %v556
      %621 = vst [vmem:[%s172 + $0x18] sm:$0xf] %v557
      %622 = vst [vmem:[%s172 + $0x1c] sm:$0xf] %v558
      %623 = vst [vmem:[%s172 + $0x20] sm:$0xf] %v559
      %624 = vst [vmem:[%s172 + $0x24] sm:$0xf] %v560
      %625 = vst [vmem:[%s172 + $0x28] sm:$0xf] %v561
      %626 = vst [vmem:[%s172 + $0x2c] sm:$0xf] %v562
      %627 = vst [vmem:[%s172 + $0x30] sm:$0xf] %v563
      %628 = vst [vmem:[%s172 + $0x34] sm:$0xf] %v564
      %629 = vst [vmem:[%s172 + $0x38] sm:$0xf] %v565
      %630 = vst [vmem:[%s172 + $0x3c] sm:$0xf] %v566
      %631 = vst [vmem:[%s172 + $0x40] sm:$0xf] %v567
      %632 = vst [vmem:[%s172 + $0x44] sm:$0xf] %v568
      %633 = vst [vmem:[%s172 + $0x48] sm:$0xf] %v569
      %634 = vst [vmem:[%s172 + $0x4c] sm:$0xf] %v570
      %635 = vst [vmem:[%s172 + $0x50] sm:$0xf] %v571
      %636 = vst [vmem:[%s172 + $0x54] sm:$0xf] %v572
      %637 = vst [vmem:[%s172 + $0x58] sm:$0xf] %v573
      %638 = vst [vmem:[%s172 + $0x5c] sm:$0xf] %v574
      %639 = vst [vmem:[%s172 + $0x60] sm:$0xf] %v575
      %640 = vst [vmem:[%s172 + $0x64] sm:$0xf] %v576
      %641 = vst [vmem:[%s172 + $0x68] sm:$0xf] %v577
      %642 = vst [vmem:[%s172 + $0x6c] sm:$0xf] %v578
      %643 = vst [vmem:[%s172 + $0x70] sm:$0xf] %v579
      %644 = vst [vmem:[%s172 + $0x74] sm:$0xf] %v580
      %645 = vst [vmem:[%s172 + $0x78] sm:$0xf] %v581
      %646 = vst [vmem:[%s172 + $0x7c] sm:$0xf] %v582
      %s647 = smul.u32 32, %s14
      %p648 = scmp.lt.s32.totalorder %s647, 63
      %s649 = scalar_select %p648, %s647, 63
      %s650 = smul.addr %s649, 4
      %s651 = scalar_lea.vmem %s3, %s650
      // Predicated region
      $region33: #{attention_net_forward.10} parent=31 // pred_check
        %p652 = pneg %p100
      $region34: #{attention_net_forward.10} parent=31 // pred_check_branch
        %654 = sbr.rel (%p652) target = $region36
      $region35: #{attention_net_forward.10} parent=31 // pred_region
        %s655 = smul.u32 32, %s14
      $region36: #{attention_net_forward.10} parent=31 // pred_fallthru
        _
    $region32: #{attention_net_forward.10} parent=5 // pred_fallthru
      _
    %p656 = scmp.le.s32.totalorder 2, %s9
    // Predicated region
    $region37: #{attention_net_forward.10} parent=5 // pred_check
      %p657 = pneg %p656
    $region38: #{attention_net_forward.10} parent=5 // pred_check_branch
      %659 = sbr.rel (%p657) target = $region40
    $region39: #{attention_net_forward.10} parent=5 // pred_region
      %s660 = ssub.s32 %s9, 2
      // Predicated region
      $region41: #{attention_net_forward.10} parent=39 // pred_check
        %p661 = pneg %p106
      $region42: #{attention_net_forward.10} parent=39 // pred_check_branch
        %663 = sbr.rel (%p661) target = $region44
      $region43: #{attention_net_forward.10} parent=39 // pred_region
        %s664 = smul.u32 32, %s15
        %p665 = scmp.lt.s32.totalorder %s664, 63
        %s666 = scalar_select %p665, %s664, 63
        %s667 = smul.addr %s666, 4
        %s668 = scalar_lea.vmem %s3, %s667
      $region44: #{attention_net_forward.10} parent=39 // pred_fallthru
        _
    $region40: #{attention_net_forward.10} parent=5 // pred_fallthru
      _
  $region6: #{attention_net_forward.10} parent=0 // loop_footer
    %s13 = sadd.s32 1, %s9
  $region7: #{attention_net_forward.10} parent=0 // loop_footer_branch
    %8 = sbr.rel target = $region3
  $region8: #{attention_net_forward.10} parent=0 // loop_exit
    _

// kernel: attention_net_forward.13
$region0: #{attention_net_forward.13}
  #allocation0 [shape = 'u32[]', space=smem, size = 0x4, offset = 0x4, fixed_abs, tag = 'smem constant byte address 0x4 - core index']
  #allocation1 [shape = 'u32[144,128]{1,0:T(1,128)}', space=vmem, size = 0x12000, scoped, tag = 'internal scratch']
  %s0 = inlined_call_operand.vmem [shape: f32[8,128], index: 0, kind: input, shape index: {}]
  %s1 = inlined_call_operand.vmem [shape: bf16[128,128], index: 1, kind: input, shape index: {}]
  %s2 = inlined_call_operand.vmem [shape: f32[1,128], index: 2, kind: input, shape index: {}]
  %s3 = inlined_call_operand.hbm [shape: f32[8,128], index: 3, kind: output, shape index: {}]
  %s4 = sld [smem:[#allocation0]]
  $region22: #{attention_net_forward.13} parent=0
    _
  %s6 = ssub.s32 1, %s4
  %s7 = scalar_select 0, %s6, %s4
  $region1: #{attention_net_forward.13} parent=0
    #allocation2 [shape = 'u8[4096]{0}', space=vmem, size = 0x1000, scoped, tag = 'output window, operand 0, single buffered']
    #allocation3 [shape = 's32[1]{0}', space=sflag, size = 0x4, scoped, tag = 'scoped memory for attention_net_forward.13']
    %8 = vsyncpa [#allocation3], 0
    // Predicated region
    $region2: #{attention_net_forward.13} parent=1 // pred_check
      _
    $region3: #{attention_net_forward.13} parent=1 // pred_check_branch
      %10 = sbr.rel (0) target = $region5
    $region4: #{attention_net_forward.13} parent=1 // pred_region
      _
    $region5: #{attention_net_forward.13} parent=1 // pred_fallthru
      _
    // Predicated region
    $region6: #{attention_net_forward.13} parent=1 // pred_check
      _
    $region7: #{attention_net_forward.13} parent=1 // pred_check_branch
      %12 = sbr.rel (0) target = $region9
    $region8: #{attention_net_forward.13} parent=1 // pred_region
      _
    $region9: #{attention_net_forward.13} parent=1 // pred_fallthru
      _
    // Predicated region
    $region10: #{attention_net_forward.13} parent=1 // pred_check
      _
    $region11: #{attention_net_forward.13} parent=1 // pred_check_branch
      %14 = sbr.rel (0) target = $region13
    $region12: #{attention_net_forward.13} parent=1 // pred_region
      _
    $region13: #{attention_net_forward.13} parent=1 // pred_fallthru
      _
    %v16 = vld [vmem:[%s0] sm:$0xff]
    %v17 = vpack.c.bf16 %v16, %v16
    %v18 = vld [vmem:[%s1] sm:$0xf]
    %v19 = vld [vmem:[%s1 + $0x4] sm:$0xf]
    %v20 = vld [vmem:[%s1 + $0x8] sm:$0xf]
    %v21 = vld [vmem:[%s1 + $0xc] sm:$0xf]
    %v22 = vld [vmem:[%s1 + $0x10] sm:$0xf]
    %v23 = vld [vmem:[%s1 + $0x14] sm:$0xf]
    %v24 = vld [vmem:[%s1 + $0x18] sm:$0xf]
    %v25 = vld [vmem:[%s1 + $0x1c] sm:$0xf]
    %v26 = vld [vmem:[%s1 + $0x20] sm:$0xf]
    %v27 = vld [vmem:[%s1 + $0x24] sm:$0xf]
    %v28 = vld [vmem:[%s1 + $0x28] sm:$0xf]
    %v29 = vld [vmem:[%s1 + $0x2c] sm:$0xf]
    %v30 = vld [vmem:[%s1 + $0x30] sm:$0xf]
    %v31 = vld [vmem:[%s1 + $0x34] sm:$0xf]
    %v32 = vld [vmem:[%s1 + $0x38] sm:$0xf]
    %v33 = vld [vmem:[%s1 + $0x3c] sm:$0xf]
    %v34 = vld [vmem:[%s2] sm:$0x1]
    %v36 = vlaneseq
    %v37 = vshrl.u32 %v36, 7
    %v38 = vsub.s32 0, %v37
    %v39 = vrot.slane %v34, %v38
    %v57 = vunpack.c.l.b16 %v18
    %v58 = vunpack.c.l.b16 %v19
    %v59 = vunpack.c.l.b16 %v20
    %v60 = vunpack.c.l.b16 %v21
    %v61 = vunpack.c.l.b16 %v22
    %v62 = vunpack.c.l.b16 %v23
    %v63 = vunpack.c.l.b16 %v24
    %v64 = vunpack.c.l.b16 %v25
    %v65 = vunpack.c.l.b16 %v26
    %v66 = vunpack.c.l.b16 %v27
    %v67 = vunpack.c.l.b16 %v28
    %v68 = vunpack.c.l.b16 %v29
    %v69 = vunpack.c.l.b16 %v30
    %v70 = vunpack.c.l.b16 %v31
    %v71 = vunpack.c.l.b16 %v32
    %v72 = vunpack.c.l.b16 %v33
    %v73 = vpack.c.b16 %v58, %v57
    %v74 = vpack.c.b16 %v60, %v59
    %v75 = vpack.c.b16 %v62, %v61
    %v76 = vpack.c.b16 %v64, %v63
    %v77 = vpack.c.b16 %v66, %v65
    %v78 = vpack.c.b16 %v68, %v67
    %v79 = vpack.c.b16 %v70, %v69
    %v80 = vpack.c.b16 %v72, %v71
    %89 = vmatprep.subr.bf16.mxu0 0
    %90 = vmatpush1.bf16.msra.mxu0 %v80
    %91 = vmatprep.subr.bf16.mxu0 0
    %92 = vmatpush1.bf16.msra.mxu0 %v79
    %93 = vmatprep.subr.bf16.mxu0 0
    %94 = vmatpush1.bf16.msra.mxu0 %v78
    %95 = vmatprep.subr.bf16.mxu0 0
    %96 = vmatpush1.bf16.msra.mxu0 %v77
    %97 = vmatprep.subr.bf16.mxu0 0
    %98 = vmatpush1.bf16.msra.mxu0 %v76
    %99 = vmatprep.subr.bf16.mxu0 0
    %100 = vmatpush1.bf16.msra.mxu0 %v75
    %101 = vmatprep.subr.bf16.mxu0 0
    %102 = vmatpush1.bf16.msra.mxu0 %v74
    %103 = vmatprep.subr.bf16.mxu0 0
    %104 = vmatpush1.bf16.msra.mxu0 %v73
    %105 = vmatprep.subr.bf16.mxu0 0
    %106 = vmatpush2.bf16.msra.mxu0 0
    %107 = vmatprep.subr.bf16.mxu0 0
    %108 = vmatpush2.bf16.msra.mxu0 0
    %109 = vmatprep.subr.bf16.mxu0 0
    %110 = vmatpush2.bf16.msra.mxu0 0
    %111 = vmatprep.subr.bf16.mxu0 0
    %112 = vmatpush2.bf16.msra.mxu0 0
    %113 = vmatprep.subr.bf16.mxu0 0
    %114 = vmatpush2.bf16.msra.mxu0 0
    %115 = vmatprep.subr.bf16.mxu0 0
    %116 = vmatpush2.bf16.msra.mxu0 0
    %117 = vmatprep.subr.bf16.mxu0 0
    %118 = vmatpush2.bf16.msra.mxu0 0
    %119 = vmatprep.subr.bf16.mxu0 0
    %120 = vmatpush2.bf16.msra.mxu0 0
    %121 = vmatprep.mubr.bf16.mxu0 0
    %122 = vmatmul.mubr.bf16.gmra.mxu0 %v17
    %v123 = vpop.f32.mrf.mxu0
    %v124 = vadd.f32 %v39, %v123
    %v125 = vpop.f32.mrf.mxu0
    %v126 = vpop.f32.mrf.mxu0
    %v127 = vpop.f32.mrf.mxu0
    %128 = vdwg.mxu0
    %129 = vst [vmem:[#allocation2] sm:$0xff] %v124
    // Predicated region
    $region14: #{attention_net_forward.13} parent=1 // pred_check
      _
    $region15: #{attention_net_forward.13} parent=1 // pred_check_branch
      %131 = sbr.rel (0) target = $region17
    $region16: #{attention_net_forward.13} parent=1 // pred_region
      %s133 = ssub.s32 128, 128
      %134 = vsyncadd [#allocation3], %s133
      %s136 = sshll.u32 [#allocation2], 4
      %s137 = int_to_ptr.vmem [resolvable:$true] %s136
      %139 = dma.vmem_to_hbm [thread:$0]  %s137, 128, %s3, [#allocation3]
    $region17: #{attention_net_forward.13} parent=1 // pred_fallthru
      _
    // Predicated region
    $region18: #{attention_net_forward.13} parent=1 // pred_check
      _
    $region19: #{attention_net_forward.13} parent=1 // pred_check_branch
      %141 = sbr.rel (0) target = $region21
    $region20: #{attention_net_forward.13} parent=1 // pred_region
      %142 = dma.done [#allocation3], 128
    $region21: #{attention_net_forward.13} parent=1 // pred_fallthru
      _
    %143 = vsyncpa [#allocation3], 1

// kernel: attention_net_forward.12
$region0: #{attention_net_forward.12}
  #allocation0 [shape = 'u32[]', space=smem, size = 0x4, offset = 0x4, fixed_abs, tag = 'smem constant byte address 0x4 - core index']
  #allocation1 [shape = 'u32[144,128]{1,0:T(1,128)}', space=vmem, size = 0x12000, scoped, tag = 'internal scratch']
  %s0 = inlined_call_operand.vmem [shape: f32[2,640], index: 0, kind: input, shape index: {}]
  %s1 = inlined_call_operand.vmem [shape: bf16[640,128], index: 1, kind: input, shape index: {}]
  %s2 = inlined_call_operand.vmem [shape: f32[1,128], index: 2, kind: input, shape index: {}]
  %s3 = inlined_call_operand.hbm [shape: f32[2,128], index: 3, kind: output, shape index: {}]
  %s4 = sld [smem:[#allocation0]]
  $region22: #{attention_net_forward.12} parent=0
    _
  %s6 = ssub.s32 1, %s4
  %s7 = scalar_select 0, %s6, %s4
  $region1: #{attention_net_forward.12} parent=0
    #allocation2 [shape = 'u8[1024]{0}', space=vmem, size = 0x400, scoped, tag = 'output window, operand 0, single buffered']
    #allocation3 [shape = 's32[1]{0}', space=sflag, size = 0x4, scoped, tag = 'scoped memory for attention_net_forward.12']
    %8 = vsyncpa [#allocation3], 0
    // Predicated region
    $region2: #{attention_net_forward.12} parent=1 // pred_check
      _
    $region3: #{attention_net_forward.12} parent=1 // pred_check_branch
      %10 = sbr.rel (0) target = $region5
    $region4: #{attention_net_forward.12} parent=1 // pred_region
      _
    $region5: #{attention_net_forward.12} parent=1 // pred_fallthru
      _
    // Predicated region
    $region6: #{attention_net_forward.12} parent=1 // pred_check
      _
    $region7: #{attention_net_forward.12} parent=1 // pred_check_branch
      %12 = sbr.rel (0) target = $region9
    $region8: #{attention_net_forward.12} parent=1 // pred_region
      _
    $region9: #{attention_net_forward.12} parent=1 // pred_fallthru
      _
    // Predicated region
    $region10: #{attention_net_forward.12} parent=1 // pred_check
      _
    $region11: #{attention_net_forward.12} parent=1 // pred_check_branch
      %14 = sbr.rel (0) target = $region13
    $region12: #{attention_net_forward.12} parent=1 // pred_region
      _
    $region13: #{attention_net_forward.12} parent=1 // pred_fallthru
      _
    %v16 = vld [vmem:[%s0] sm:$0xff]
    %v17 = vld [vmem:[%s0 + $0x8] sm:$0x3]
    %v20 = vcombine.high %v16, %v16
    %v22 = vunpack.c.l.s4 1983009808
    %v23 = vunpack.c.0.s8 %v22
    %v24 = vlaneseq
    %v25 = vshrl.u32 %v24, 7
    %v26 = vsub.s32 %v23, %v25
    %v27 = vrot.slane %v16, %v26
    %v29 = vunpack.c.l.s4 1983009808
    %v30 = vunpack.c.0.s8 %v29
    %v31 = vlaneseq
    %v32 = vshrl.u32 %v31, 7
    %v33 = vsub.s32 %v30, %v32
    %v34 = vrot.slane %v20, %v33
    %v35 = vcombine.high %v27, %v27
    %v36 = vcombine.high %v34, %v34
    %v38 = vunpack.c.l.s4 1983009808
    %v39 = vunpack.c.0.s8 %v38
    %v40 = vlaneseq
    %v41 = vshrl.u32 %v40, 7
    %v42 = vsub.s32 %v39, %v41
    %v43 = vrot.slane %v17, %v42
    %v49 = vpack.c.bf16 %v27, %v27
    %v50 = vpack.c.bf16 %v35, %v35
    %v51 = vpack.c.bf16 %v34, %v34
    %v52 = vpack.c.bf16 %v36, %v36
    %v53 = vpack.c.bf16 %v43, %v43
    %v54 = vld [vmem:[%s1] sm:$0xf]
    %v55 = vld [vmem:[%s1 + $0x4] sm:$0xf]
    %v56 = vld [vmem:[%s1 + $0x8] sm:$0xf]
    %v57 = vld [vmem:[%s1 + $0xc] sm:$0xf]
    %v58 = vld [vmem:[%s1 + $0x10] sm:$0xf]
    %v59 = vld [vmem:[%s1 + $0x14] sm:$0xf]
    %v60 = vld [vmem:[%s1 + $0x18] sm:$0xf]
    %v61 = vld [vmem:[%s1 + $0x1c] sm:$0xf]
    %v62 = vld [vmem:[%s1 + $0x20] sm:$0xf]
    %v63 = vld [vmem:[%s1 + $0x24] sm:$0xf]
    %v64 = vld [vmem:[%s1 + $0x28] sm:$0xf]
    %v65 = vld [vmem:[%s1 + $0x2c] sm:$0xf]
    %v66 = vld [vmem:[%s1 + $0x30] sm:$0xf]
    %v67 = vld [vmem:[%s1 + $0x34] sm:$0xf]
    %v68 = vld [vmem:[%s1 + $0x38] sm:$0xf]
    %v69 = vld [vmem:[%s1 + $0x3c] sm:$0xf]
    %v70 = vld [vmem:[%s1 + $0x40] sm:$0xf]
    %v71 = vld [vmem:[%s1 + $0x44] sm:$0xf]
    %v72 = vld [vmem:[%s1 + $0x48] sm:$0xf]
    %v73 = vld [vmem:[%s1 + $0x4c] sm:$0xf]
    %v74 = vld [vmem:[%s1 + $0x50] sm:$0xf]
    %v75 = vld [vmem:[%s1 + $0x54] sm:$0xf]
    %v76 = vld [vmem:[%s1 + $0x58] sm:$0xf]
    %v77 = vld [vmem:[%s1 + $0x5c] sm:$0xf]
    %v78 = vld [vmem:[%s1 + $0x60] sm:$0xf]
    %v79 = vld [vmem:[%s1 + $0x64] sm:$0xf]
    %v80 = vld [vmem:[%s1 + $0x68] sm:$0xf]
    %v81 = vld [vmem:[%s1 + $0x6c] sm:$0xf]
    %v82 = vld [vmem:[%s1 + $0x70] sm:$0xf]
    %v83 = vld [vmem:[%s1 + $0x74] sm:$0xf]
    %v84 = vld [vmem:[%s1 + $0x78] sm:$0xf]
    %v85 = vld [vmem:[%s1 + $0x7c] sm:$0xf]
    %v86 = vld [vmem:[%s1 + $0x80] sm:$0xf]
    %v87 = vld [vmem:[%s1 + $0x84] sm:$0xf]
    %v88 = vld [vmem:[%s1 + $0x88] sm:$0xf]
    %v89 = vld [vmem:[%s1 + $0x8c] sm:$0xf]
    %v90 = vld [vmem:[%s1 + $0x90] sm:$0xf]
    %v91 = vld [vmem:[%s1 + $0x94] sm:$0xf]
    %v92 = vld [vmem:[%s1 + $0x98] sm:$0xf]
    %v93 = vld [vmem:[%s1 + $0x9c] sm:$0xf]
    %v94 = vld [vmem:[%s1 + $0xa0] sm:$0xf]
    %v95 = vld [vmem:[%s1 + $0xa4] sm:$0xf]
    %v96 = vld [vmem:[%s1 + $0xa8] sm:$0xf]
    %v97 = vld [vmem:[%s1 + $0xac] sm:$0xf]
    %v98 = vld [vmem:[%s1 + $0xb0] sm:$0xf]
    %v99 = vld [vmem:[%s1 + $0xb4] sm:$0xf]
    %v100 = vld [vmem:[%s1 + $0xb8] sm:$0xf]
    %v101 = vld [vmem:[%s1 + $0xbc] sm:$0xf]
    %v102 = vld [vmem:[%s1 + $0xc0] sm:$0xf]
    %v103 = vld [vmem:[%s1 + $0xc4] sm:$0xf]
    %v104 = vld [vmem:[%s1 + $0xc8] sm:$0xf]
    %v105 = vld [vmem:[%s1 + $0xcc] sm:$0xf]
    %v106 = vld [vmem:[%s1 + $0xd0] sm:$0xf]
    %v107 = vld [vmem:[%s1 + $0xd4] sm:$0xf]
    %v108 = vld [vmem:[%s1 + $0xd8] sm:$0xf]
    %v109 = vld [vmem:[%s1 + $0xdc] sm:$0xf]
    %v110 = vld [vmem:[%s1 + $0xe0] sm:$0xf]
    %v111 = vld [vmem:[%s1 + $0xe4] sm:$0xf]
    %v112 = vld [vmem:[%s1 + $0xe8] sm:$0xf]
    %v113 = vld [vmem:[%s1 + $0xec] sm:$0xf]
    %v114 = vld [vmem:[%s1 + $0xf0] sm:$0xf]
    %v115 = vld [vmem:[%s1 + $0xf4] sm:$0xf]
    %v116 = vld [vmem:[%s1 + $0xf8] sm:$0xf]
    %v117 = vld [vmem:[%s1 + $0xfc] sm:$0xf]
    %v118 = vld [vmem:[%s1 + $0x100] sm:$0xf]
    %v119 = vld [vmem:[%s1 + $0x104] sm:$0xf]
    %v120 = vld [vmem:[%s1 + $0x108] sm:$0xf]
    %v121 = vld [vmem:[%s1 + $0x10c] sm:$0xf]
    %v122 = vld [vmem:[%s1 + $0x110] sm:$0xf]
    %v123 = vld [vmem:[%s1 + $0x114] sm:$0xf]
    %v124 = vld [vmem:[%s1 + $0x118] sm:$0xf]
    %v125 = vld [vmem:[%s1 + $0x11c] sm:$0xf]
    %v126 = vld [vmem:[%s1 + $0x120] sm:$0xf]
    %v127 = vld [vmem:[%s1 + $0x124] sm:$0xf]
    %v128 = vld [vmem:[%s1 + $0x128] sm:$0xf]
    %v129 = vld [vmem:[%s1 + $0x12c] sm:$0xf]
    %v130 = vld [vmem:[%s1 + $0x130] sm:$0xf]
    %v131 = vld [vmem:[%s1 + $0x134] sm:$0xf]
    %v132 = vld [vmem:[%s1 + $0x138] sm:$0xf]
    %v133 = vld [vmem:[%s1 + $0x13c] sm:$0xf]
    %v134 = vld [vmem:[%s2] sm:$0x1]
    %v136 = vlaneseq
    %v137 = vshrl.u32 %v136, 7
    %v138 = vsub.s32 0, %v137
    %v139 = vrot.slane %v134, %v138
    %v221 = vunpack.c.l.b16 %v54
    %v222 = vunpack.c.l.b16 %v55
    %v223 = vunpack.c.l.b16 %v56
    %v224 = vunpack.c.l.b16 %v57
    %v225 = vunpack.c.l.b16 %v58
    %v226 = vunpack.c.l.b16 %v59
    %v227 = vunpack.c.l.b16 %v60
    %v228 = vunpack.c.l.b16 %v61
    %v229 = vunpack.c.l.b16 %v62
    %v230 = vunpack.c.l.b16 %v63
    %v231 = vunpack.c.l.b16 %v64
    %v232 = vunpack.c.l.b16 %v65
    %v233 = vunpack.c.l.b16 %v66
    %v234 = vunpack.c.l.b16 %v67
    %v235 = vunpack.c.l.b16 %v68
    %v236 = vunpack.c.l.b16 %v69
    %v237 = vunpack.c.l.b16 %v70
    %v238 = vunpack.c.l.b16 %v71
    %v239 = vunpack.c.l.b16 %v72
    %v240 = vunpack.c.l.b16 %v73
    %v241 = vunpack.c.l.b16 %v74
    %v242 = vunpack.c.l.b16 %v75
    %v243 = vunpack.c.l.b16 %v76
    %v244 = vunpack.c.l.b16 %v77
    %v245 = vunpack.c.l.b16 %v78
    %v246 = vunpack.c.l.b16 %v79
    %v247 = vunpack.c.l.b16 %v80
    %v248 = vunpack.c.l.b16 %v81
    %v249 = vunpack.c.l.b16 %v82
    %v250 = vunpack.c.l.b16 %v83
    %v251 = vunpack.c.l.b16 %v84
    %v252 = vunpack.c.l.b16 %v85
    %v253 = vunpack.c.l.b16 %v86
    %v254 = vunpack.c.l.b16 %v87
    %v255 = vunpack.c.l.b16 %v88
    %v256 = vunpack.c.l.b16 %v89
    %v257 = vunpack.c.l.b16 %v90
    %v258 = vunpack.c.l.b16 %v91
    %v259 = vunpack.c.l.b16 %v92
    %v260 = vunpack.c.l.b16 %v93
    %v261 = vunpack.c.l.b16 %v94
    %v262 = vunpack.c.l.b16 %v95
    %v263 = vunpack.c.l.b16 %v96
    %v264 = vunpack.c.l.b16 %v97
    %v265 = vunpack.c.l.b16 %v98
    %v266 = vunpack.c.l.b16 %v99
    %v267 = vunpack.c.l.b16 %v100
    %v268 = vunpack.c.l.b16 %v101
    %v269 = vunpack.c.l.b16 %v102
    %v270 = vunpack.c.l.b16 %v103
    %v271 = vunpack.c.l.b16 %v104
    %v272 = vunpack.c.l.b16 %v105
    %v273 = vunpack.c.l.b16 %v106
    %v274 = vunpack.c.l.b16 %v107
    %v275 = vunpack.c.l.b16 %v108
    %v276 = vunpack.c.l.b16 %v109
    %v277 = vunpack.c.l.b16 %v110
    %v278 = vunpack.c.l.b16 %v111
    %v279 = vunpack.c.l.b16 %v112
    %v280 = vunpack.c.l.b16 %v113
    %v281 = vunpack.c.l.b16 %v114
    %v282 = vunpack.c.l.b16 %v115
    %v283 = vunpack.c.l.b16 %v116
    %v284 = vunpack.c.l.b16 %v117
    %v285 = vunpack.c.l.b16 %v118
    %v286 = vunpack.c.l.b16 %v119
    %v287 = vunpack.c.l.b16 %v120
    %v288 = vunpack.c.l.b16 %v121
    %v289 = vunpack.c.l.b16 %v122
    %v290 = vunpack.c.l.b16 %v123
    %v291 = vunpack.c.l.b16 %v124
    %v292 = vunpack.c.l.b16 %v125
    %v293 = vunpack.c.l.b16 %v126
    %v294 = vunpack.c.l.b16 %v127
    %v295 = vunpack.c.l.b16 %v128
    %v296 = vunpack.c.l.b16 %v129
    %v297 = vunpack.c.l.b16 %v130
    %v298 = vunpack.c.l.b16 %v131
    %v299 = vunpack.c.l.b16 %v132
    %v300 = vunpack.c.l.b16 %v133
    %v301 = vpack.c.b16 %v222, %v221
    %v302 = vpack.c.b16 %v224, %v223
    %v303 = vpack.c.b16 %v226, %v225
    %v304 = vpack.c.b16 %v228, %v227
    %v305 = vpack.c.b16 %v230, %v229
    %v306 = vpack.c.b16 %v232, %v231
    %v307 = vpack.c.b16 %v234, %v233
    %v308 = vpack.c.b16 %v236, %v235
    %v309 = vpack.c.b16 %v238, %v237
    %v310 = vpack.c.b16 %v240, %v239
    %v311 = vpack.c.b16 %v242, %v241
    %v312 = vpack.c.b16 %v244, %v243
    %v313 = vpack.c.b16 %v246, %v245
    %v314 = vpack.c.b16 %v248, %v247
    %v315 = vpack.c.b16 %v250, %v249
    %v316 = vpack.c.b16 %v252, %v251
    %v317 = vpack.c.b16 %v254, %v253
    %v318 = vpack.c.b16 %v256, %v255
    %v319 = vpack.c.b16 %v258, %v257
    %v320 = vpack.c.b16 %v260, %v259
    %v321 = vpack.c.b16 %v262, %v261
    %v322 = vpack.c.b16 %v264, %v263
    %v323 = vpack.c.b16 %v266, %v265
    %v324 = vpack.c.b16 %v268, %v267
    %v325 = vpack.c.b16 %v270, %v269
    %v326 = vpack.c.b16 %v272, %v271
    %v327 = vpack.c.b16 %v274, %v273
    %v328 = vpack.c.b16 %v276, %v275
    %v329 = vpack.c.b16 %v278, %v277
    %v330 = vpack.c.b16 %v280, %v279
    %v331 = vpack.c.b16 %v282, %v281
    %v332 = vpack.c.b16 %v284, %v283
    %v333 = vpack.c.b16 %v286, %v285
    %v334 = vpack.c.b16 %v288, %v287
    %v335 = vpack.c.b16 %v290, %v289
    %v336 = vpack.c.b16 %v292, %v291
    %v337 = vpack.c.b16 %v294, %v293
    %v338 = vpack.c.b16 %v296, %v295
    %v339 = vpack.c.b16 %v298, %v297
    %v340 = vpack.c.b16 %v300, %v299
    %381 = vmatprep.subr.bf16.mxu0 0
    %382 = vmatpush1.bf16.msra.mxu0 %v308
    %383 = vmatprep.subr.bf16.mxu0 0
    %384 = vmatpush1.bf16.msra.mxu0 %v307
    %385 = vmatprep.subr.bf16.mxu0 0
    %386 = vmatpush1.bf16.msra.mxu0 %v306
    %387 = vmatprep.subr.bf16.mxu0 0
    %388 = vmatpush1.bf16.msra.mxu0 %v305
    %389 = vmatprep.subr.bf16.mxu0 0
    %390 = vmatpush1.bf16.msra.mxu0 %v304
    %391 = vmatprep.subr.bf16.mxu0 0
    %392 = vmatpush1.bf16.msra.mxu0 %v303
    %393 = vmatprep.subr.bf16.mxu0 0
    %394 = vmatpush1.bf16.msra.mxu0 %v302
    %395 = vmatprep.subr.bf16.mxu0 0
    %396 = vmatpush1.bf16.msra.mxu0 %v301
    %397 = vmatprep.subr.bf16.mxu0 0
    %398 = vmatpush2.bf16.msra.mxu0 %v316
    %399 = vmatprep.subr.bf16.mxu0 0
    %400 = vmatpush2.bf16.msra.mxu0 %v315
    %401 = vmatprep.subr.bf16.mxu0 0
    %402 = vmatpush2.bf16.msra.mxu0 %v314
    %403 = vmatprep.subr.bf16.mxu0 0
    %404 = vmatpush2.bf16.msra.mxu0 %v313
    %405 = vmatprep.subr.bf16.mxu0 0
    %406 = vmatpush2.bf16.msra.mxu0 %v312
    %407 = vmatprep.subr.bf16.mxu0 0
    %408 = vmatpush2.bf16.msra.mxu0 %v311
    %409 = vmatprep.subr.bf16.mxu0 0
    %410 = vmatpush2.bf16.msra.mxu0 %v310
    %411 = vmatprep.subr.bf16.mxu0 0
    %412 = vmatpush2.bf16.msra.mxu0 %v309
    %413 = vmatprep.mubr.bf16.mxu0 %v50
    %414 = vmatmul.mubr.bf16.gmra.mxu0 %v49
    %v415 = vpop.f32.mrf.mxu0
    %v416 = vadd.f32 %v139, %v415
    %v417 = vpop.f32.mrf.mxu0
    %v418 = vpop.f32.mrf.mxu0
    %v419 = vpop.f32.mrf.mxu0
    %420 = vdwg.mxu0
    %421 = vmatprep.subr.bf16.mxu0 0
    %422 = vmatpush1.bf16.msra.mxu0 %v324
    %423 = vmatprep.subr.bf16.mxu0 0
    %424 = vmatpush1.bf16.msra.mxu0 %v323
    %425 = vmatprep.subr.bf16.mxu0 0
    %426 = vmatpush1.bf16.msra.mxu0 %v322
    %427 = vmatprep.subr.bf16.mxu0 0
    %428 = vmatpush1.bf16.msra.mxu0 %v321
    %429 = vmatprep.subr.bf16.mxu0 0
    %430 = vmatpush1.bf16.msra.mxu0 %v320
    %431 = vmatprep.subr.bf16.mxu0 0
    %432 = vmatpush1.bf16.msra.mxu0 %v319
    %433 = vmatprep.subr.bf16.mxu0 0
    %434 = vmatpush1.bf16.msra.mxu0 %v318
    %435 = vmatprep.subr.bf16.mxu0 0
    %436 = vmatpush1.bf16.msra.mxu0 %v317
    %437 = vmatprep.subr.bf16.mxu0 0
    %438 = vmatpush2.bf16.msra.mxu0 %v332
    %439 = vmatprep.subr.bf16.mxu0 0
    %440 = vmatpush2.bf16.msra.mxu0 %v331
    %441 = vmatprep.subr.bf16.mxu0 0
    %442 = vmatpush2.bf16.msra.mxu0 %v330
    %443 = vmatprep.subr.bf16.mxu0 0
    %444 = vmatpush2.bf16.msra.mxu0 %v329
    %445 = vmatprep.subr.bf16.mxu0 0
    %446 = vmatpush2.bf16.msra.mxu0 %v328
    %447 = vmatprep.subr.bf16.mxu0 0
    %448 = vmatpush2.bf16.msra.mxu0 %v327
    %449 = vmatprep.subr.bf16.mxu0 0
    %450 = vmatpush2.bf16.msra.mxu0 %v326
    %451 = vmatprep.subr.bf16.mxu0 0
    %452 = vmatpush2.bf16.msra.mxu0 %v325
    %453 = vmatprep.mubr.bf16.mxu0 %v52
    %454 = vmatmul.mubr.bf16.gmra.mxu0 %v51
    %v455 = vpop.f32.mrf.mxu0
    %v456 = vadd.f32 %v416, %v455
    %v457 = vpop.f32.mrf.mxu0
    %v458 = vpop.f32.mrf.mxu0
    %v459 = vpop.f32.mrf.mxu0
    %460 = vdwg.mxu0
    %461 = vmatprep.subr.bf16.mxu0 0
    %462 = vmatpush1.bf16.msra.mxu0 %v340
    %463 = vmatprep.subr.bf16.mxu0 0
    %464 = vmatpush1.bf16.msra.mxu0 %v339
    %465 = vmatprep.subr.bf16.mxu0 0
    %466 = vmatpush1.bf16.msra.mxu0 %v338
    %467 = vmatprep.subr.bf16.mxu0 0
    %468 = vmatpush1.bf16.msra.mxu0 %v337
    %469 = vmatprep.subr.bf16.mxu0 0
    %470 = vmatpush1.bf16.msra.mxu0 %v336
    %471 = vmatprep.subr.bf16.mxu0 0
    %472 = vmatpush1.bf16.msra.mxu0 %v335
    %473 = vmatprep.subr.bf16.mxu0 0
    %474 = vmatpush1.bf16.msra.mxu0 %v334
    %475 = vmatprep.subr.bf16.mxu0 0
    %476 = vmatpush1.bf16.msra.mxu0 %v333
    %477 = vmatprep.subr.bf16.mxu0 0
    %478 = vmatpush2.bf16.msra.mxu0 0
    %479 = vmatprep.subr.bf16.mxu0 0
    %480 = vmatpush2.bf16.msra.mxu0 0
    %481 = vmatprep.subr.bf16.mxu0 0
    %482 = vmatpush2.bf16.msra.mxu0 0
    %483 = vmatprep.subr.bf16.mxu0 0
    %484 = vmatpush2.bf16.msra.mxu0 0
    %485 = vmatprep.subr.bf16.mxu0 0
    %486 = vmatpush2.bf16.msra.mxu0 0
    %487 = vmatprep.subr.bf16.mxu0 0
    %488 = vmatpush2.bf16.msra.mxu0 0
    %489 = vmatprep.subr.bf16.mxu0 0
    %490 = vmatpush2.bf16.msra.mxu0 0
    %491 = vmatprep.subr.bf16.mxu0 0
    %492 = vmatpush2.bf16.msra.mxu0 0
    %493 = vmatprep.mubr.bf16.mxu0 0
    %494 = vmatmul.mubr.bf16.gmra.mxu0 %v53
    %v495 = vpop.f32.mrf.mxu0
    %v496 = vadd.f32 %v456, %v495
    %v497 = vpop.f32.mrf.mxu0
    %v498 = vpop.f32.mrf.mxu0
    %v499 = vpop.f32.mrf.mxu0
    %500 = vdwg.mxu0
    %501 = vst [vmem:[#allocation2] sm:$0x3] %v496
    // Predicated region
    $region14: #{attention_net_forward.12} parent=1 // pred_check
      _
    $region15: #{attention_net_forward.12} parent=1 // pred_check_branch
      %503 = sbr.rel (0) target = $region17
    $region16: #{attention_net_forward.12} parent=1 // pred_region
      %s505 = ssub.s32 32, 32
      %506 = vsyncadd [#allocation3], %s505
      %s508 = sshll.u32 [#allocation2], 4
      %s509 = int_to_ptr.vmem [resolvable:$true] %s508
      %511 = dma.vmem_to_hbm [thread:$0]  %s509, 32, %s3, [#allocation3]
    $region17: #{attention_net_forward.12} parent=1 // pred_fallthru
      _
    // Predicated region
    $region18: #{attention_net_forward.12} parent=1 // pred_check
      _
    $region19: #{attention_net_forward.12} parent=1 // pred_check_branch
      %513 = sbr.rel (0) target = $region21
    $region20: #{attention_net_forward.12} parent=1 // pred_region
      %514 = dma.done [#allocation3], 32
    $region21: #{attention_net_forward.12} parent=1 // pred_fallthru
      _
    %515 = vsyncpa [#allocation3], 1

</llo_original>
